<compile_context>
chip_gen: v5e
topology: v5e:2x2
jax: 0.10.0
libtpu: 0.0.40
codegen_flags: <defaults>
</compile_context>

<pallas_src>
import functools

import jax
import jax.numpy as jnp
from jax import lax
from jax.experimental import pallas as pl
from jax.experimental.pallas import tpu as pltpu

EPS = 1e-5


# --------------------------------------------------------------------------
# Pallas kernel: whole LinearAttnFFN block fused, one batch element per step.
# All activations are (C, HW) with HW = P*N on the lane axis.
# --------------------------------------------------------------------------
def _linear_attn_ffn_kernel(x_ref, wkvq_ref, wo_ref, wf1_ref, wf2_ref, b_ref,
                            o_ref, attn_ref, *, P, N, eps, approx_recip):
    C = wo_ref.shape[0]
    Fd = wf1_ref.shape[0]
    CKVQ = wkvq_ref.shape[0]
    HW = x_ref.shape[2]
    inv_count = 1.0 / float(C * HW)
    cdt = wo_ref.dtype                       # MXU operand dtype (bf16 fast / f32 exact)

    x = x_ref[0]                             # (C, HW), f32

    def group_norm(z):
        # GroupNorm(num_groups=1): normalize over ALL C*HW elements of this sample.
        # Affine is folded into the downstream conv weights -> only center + scale here.
        # One traversal: accumulate sum and sum-of-squares together.
        s1 = jnp.sum(jnp.sum(z, axis=-1, keepdims=True), axis=-2, keepdims=True)
        s2 = jnp.sum(jnp.sum(z * z, axis=-1, keepdims=True), axis=-2, keepdims=True)
        mean = s1 * inv_count
        var = jnp.maximum(s2 * inv_count - mean * mean, 0.0)
        return (z - mean) * lax.rsqrt(var + eps)

    # Packed per-channel biases (single small DMA), kept in f32.
    b_kvq = b_ref[0:CKVQ, 0:1]               # (2C+8, 1)
    b_o = b_ref[0:C, 1:2]                    # (C, 1)
    b_f1 = b_ref[0:Fd, 2:3]                  # (Fd, 1)
    b_f2 = b_ref[0:C, 3:4]                   # (C, 1)

    # ----------------- attention branch -----------------
    xn = group_norm(x)
    # Single fused [k; v; q] projection (q last so every row slice is 8-aligned).
    kvq = jnp.dot(wkvq_ref[...], xn.astype(cdt),
                  preferred_element_type=jnp.float32) + b_kvq          # (2C+8, HW) f32
    k = kvq[0:C]
    v = kvq[C:2 * C]
    q = kvq[2 * C:2 * C + 1]

    # Per-pixel softmax over the N patches.  Each pixel is a 128-aligned lane
    # segment; pieces go straight into a VMEM scratch slice (no concatenate).
    for p in range(P):                        # P is small & static -> unrolled
        lo, hi = p * N, (p + 1) * N
        q_p = q[:, lo:hi]                                               # (1, N)
        m_p = jnp.max(q_p, axis=-1, keepdims=True)
        e_p = jnp.exp(q_p - m_p)
        inv = pl.reciprocal(jnp.sum(e_p, axis=-1, keepdims=True), approx=approx_recip)
        score_p = e_p * inv                                             # (1, N)
        ctx_p = jnp.sum(k[:, lo:hi] * score_p, axis=-1, keepdims=True)  # (C, 1)
        piece = jnp.maximum(v[:, lo:hi], 0.0) * ctx_p                   # (C, N)
        attn_ref[:, lo:hi] = piece.astype(attn_ref.dtype)               # lane-dense store

    y = jnp.dot(wo_ref[...], attn_ref[...],
                preferred_element_type=jnp.float32) + b_o
    x = x + y                                                           # residual 1

    # ----------------- FFN branch -----------------
    xn2 = group_norm(x)
    h = jnp.dot(wf1_ref[...], xn2.astype(cdt),
                preferred_element_type=jnp.float32) + b_f1              # (Fd, HW) f32
    h = h * jax.nn.sigmoid(h)                                           # SiLU (exp on EUP)
    y2 = jnp.dot(wf2_ref[...], h.astype(cdt),
                 preferred_element_type=jnp.float32) + b_f2             # (C, HW)

    o_ref[0] = x + y2                                                   # residual 2


# --------------------------------------------------------------------------
# Parameter init (deterministic) — mirrors the PyTorch module's tensors.
# --------------------------------------------------------------------------
def init_params(key, embed_dim, ffn_latent_dim):
    C, Fd = embed_dim, ffn_latent_dim
    ks = jax.random.split(key, 12)
    p = {}
    p['gn1_w'] = 1.0 + 0.1 * jax.random.normal(ks[0], (C,), jnp.float32)
    p['gn1_b'] = 0.1 * jax.random.normal(ks[1], (C,), jnp.float32)
    p['qkv_w'] = 0.1 * jax.random.normal(ks[2], (1 + 2 * C, C, 1, 1), jnp.float32)
    p['qkv_b'] = 0.05 * jax.random.normal(ks[3], (1 + 2 * C,), jnp.float32)
    p['out_w'] = 0.1 * jax.random.normal(ks[4], (C, C, 1, 1), jnp.float32)
    p['out_b'] = 0.05 * jax.random.normal(ks[5], (C,), jnp.float32)
    p['gn2_w'] = 1.0 + 0.1 * jax.random.normal(ks[6], (C,), jnp.float32)
    p['gn2_b'] = 0.1 * jax.random.normal(ks[7], (C,), jnp.float32)
    p['ffn1_w'] = 0.1 * jax.random.normal(ks[8], (Fd, C, 1, 1), jnp.float32)
    p['ffn1_b'] = 0.05 * jax.random.normal(ks[9], (Fd,), jnp.float32)
    p['ffn2_w'] = 0.1 * jax.random.normal(ks[10], (C, Fd, 1, 1), jnp.float32)
    p['ffn2_b'] = 0.05 * jax.random.normal(ks[11], (C,), jnp.float32)
    return p


# --------------------------------------------------------------------------
# Wrapper: NCHW (B, C, P, N) in / out — no transposes, only free reshapes.
# --------------------------------------------------------------------------
def linear_attn_ffn_pallas(x, params, *, embed_dim, ffn_latent_dim, eps=EPS, fast_math=True):
    B, C, P, N = x.shape
    assert C == embed_dim
    Fd = ffn_latent_dim
    HW = P * N
    CKVQ = 2 * C + 8                               # stacked [k; v; q] rows, padded to mult. of 8
    BROWS = ((max(CKVQ, Fd) + 7) // 8) * 8         # rows of the packed-bias array

    cdt = jnp.bfloat16 if fast_math else jnp.float32

    x_flat = x.reshape(B, C, HW).astype(jnp.float32)        # contiguous -> free

    # 1x1 conv weights -> plain (out, in) matrices.
    wqkv = params['qkv_w'][:, :, 0, 0].astype(jnp.float32)
    bqkv = params['qkv_b'].astype(jnp.float32)
    wq, bq = wqkv[0:1], bqkv[0:1]
    wk, bk = wqkv[1:1 + C], bqkv[1:1 + C]
    wv, bv = wqkv[1 + C:], bqkv[1 + C:]
    wo, bo = params['out_w'][:, :, 0, 0], params['out_b']
    wf1, bf1 = params['ffn1_w'][:, :, 0, 0], params['ffn1_b']
    wf2, bf2 = params['ffn2_w'][:, :, 0, 0], params['ffn2_b']
    g1, be1 = params['gn1_w'], params['gn1_b']
    g2, be2 = params['gn2_w'], params['gn2_b']

    # Fold the GroupNorm affine into the downstream 1x1 convs:
    #   W @ (z * gamma + beta) + b  ==  (W * gamma) @ z + (W @ beta + b)
    def fold(w, b, gamma, beta):
        return w * gamma[None, :], b + w @ beta

    wq_f, bq_f = fold(wq, bq, g1, be1)
    wk_f, bk_f = fold(wk, bk, g1, be1)
    wv_f, bv_f = fold(wv, bv, g1, be1)
    wf1_f, bf1_f = fold(wf1, bf1, g2, be2)

    # Fuse q/k/v into ONE matmul: stack [k; v; q] (q last so all in-kernel row
    # slices start on 8-row boundaries), zero-pad to CKVQ rows.
    wkvq = (jnp.zeros((CKVQ, C), jnp.float32)
            .at[0:C].set(wk_f).at[C:2 * C].set(wv_f).at[2 * C:2 * C + 1].set(wq_f))
    bkvq = (jnp.zeros((CKVQ,), jnp.float32)
            .at[0:C].set(bk_f).at[C:2 * C].set(bv_f).at[2 * C:2 * C + 1].set(bq_f))

    # Pack the remaining per-channel bias vectors into one small array -> one DMA.
    biases = (jnp.zeros((BROWS, 4), jnp.float32)
              .at[0:CKVQ, 0].set(bkvq)
              .at[0:C, 1].set(bo)
              .at[0:Fd, 2].set(bf1_f)
              .at[0:C, 3].set(bf2))

    kernel = functools.partial(_linear_attn_ffn_kernel, P=P, N=N, eps=eps,
                               approx_recip=fast_math)

    def const(shape):
        # TODO(synk): pipeline_mode=pl.Buffered(1) for these never-changing blocks
        # once single-buffering is needed for the VMEM budget.
        return pl.BlockSpec(shape, lambda n: (0, 0))

    out_flat = pl.pallas_call(
        kernel,
        out_shape=jax.ShapeDtypeStruct((B, C, HW), jnp.float32),
        grid_spec=pltpu.PrefetchScalarGridSpec(
            num_scalar_prefetch=0,
            grid=(B,),
            in_specs=[
                pl.BlockSpec((1, C, HW), lambda n: (n, 0, 0)),   # x (one sample / step)
                const((CKVQ, C)),                                # fused k/v/q weights
                const((C, C)),                                   # out-proj weights
                const((Fd, C)),                                  # FFN conv-1 weights (GN2 folded)
                const((C, Fd)),                                  # FFN conv-2 weights
                const((BROWS, 4)),                               # packed biases
            ],
            out_specs=pl.BlockSpec((1, C, HW), lambda n: (n, 0, 0)),
            scratch_shapes=[pltpu.VMEM((C, HW), cdt)],           # attention pieces buffer
        ),
        compiler_params=pltpu.CompilerParams(
            dimension_semantics=("parallel",)),
    )(x_flat,
      wkvq.astype(cdt), wo.astype(cdt), wf1_f.astype(cdt), wf2.astype(cdt),
      biases)

    return out_flat.reshape(B, C, P, N)


# --------------------------------------------------------------------------
# Pure-JAX reference (inference mode), mirrors the PyTorch module in NCHW.
# --------------------------------------------------------------------------
def reference_forward(x, params, *, embed_dim, ffn_latent_dim, eps=EPS):
    C = embed_dim
    dn = ('NCHW', 'OIHW', 'NCHW')

    def group_norm(z, w, b):
        mean = jnp.mean(z, axis=(1, 2, 3), keepdims=True)
        var = jnp.mean(jnp.square(z - mean), axis=(1, 2, 3), keepdims=True)
        zn = (z - mean) / jnp.sqrt(var + eps)
        return zn * w[None, :, None, None] + b[None, :, None, None]

    def conv1x1(z, w, b):
        y = lax.conv_general_dilated(z, w, (1, 1), 'VALID', dimension_numbers=dn)
        return y + b[None, :, None, None]

    # attention branch
    h = group_norm(x, params['gn1_w'], params['gn1_b'])
    qkv = conv1x1(h, params['qkv_w'], params['qkv_b'])
    q, k, v = qkv[:, 0:1], qkv[:, 1:1 + C], qkv[:, 1 + C:]
    score = jax.nn.softmax(q, axis=-1)
    ctx = jnp.sum(k * score, axis=-1, keepdims=True)
    attn = jax.nn.relu(v) * ctx
    x = x + conv1x1(attn, params['out_w'], params['out_b'])

    # FFN branch
    h = group_norm(x, params['gn2_w'], params['gn2_b'])
    h = conv1x1(h, params['ffn1_w'], params['ffn1_b'])
    h = h * jax.nn.sigmoid(h)
    h = conv1x1(h, params['ffn2_w'], params['ffn2_b'])
    return x + h


if __name__ == "__main__":
    # MobileViT-V2 unfolded tensor: x is (B, embed_dim, pixels_per_patch, num_patches).
    embed_dim, ffn_latent_dim = 64, 128
    B, P, N = 2, 4, 256          # lane dim N (and P*N) multiple of 128

    key = jax.random.PRNGKey(0)
    kx, kp = jax.random.split(key)
    x = jax.random.normal(kx, (B, embed_dim, P, N), jnp.float32)   # NCHW, like PyTorch
    params = init_params(kp, embed_dim, ffn_latent_dim)

    ref = reference_forward(x, params, embed_dim=embed_dim, ffn_latent_dim=ffn_latent_dim)

    # Exact path (f32 MXU operands): validates the structural changes (fused kvq,
    # folded GroupNorm affine, one-pass stats, scratch-based attention assembly).
    out_exact = jax.block_until_ready(
        linear_attn_ffn_pallas(x, params, embed_dim=embed_dim,
                               ffn_latent_dim=ffn_latent_dim, fast_math=False))
    assert out_exact.shape == ref.shape == (B, embed_dim, P, N)
    err_exact = float(jnp.max(jnp.abs(out_exact - ref)))
    assert jnp.allclose(out_exact, ref, rtol=2e-3, atol=2e-3), \
        f"f32 path max abs err = {err_exact}"

    # Fast path (bf16 MXU operands, f32 accumulation and norm/softmax/residual math).
    out_fast = jax.block_until_ready(
        linear_attn_ffn_pallas(x, params, embed_dim=embed_dim,
                               ffn_latent_dim=ffn_latent_dim, fast_math=True))
    err_fast = float(jnp.max(jnp.abs(out_fast - ref)))
    assert jnp.allclose(out_fast, ref, rtol=3e-2, atol=5e-2), \
        f"bf16 path max abs err = {err_fast}"

    print("KERNEL_OK")
</pallas_src>

<mosaic_0001>
module attributes {stable_mosaic.version = 11 : i64} {
  func.func @_linear_attn_ffn_kernel(%arg0: i32, %arg1: memref<1x64x1024xf32, #tpu.memory_space<vmem>>, %arg2: memref<136x64xf32, #tpu.memory_space<vmem>>, %arg3: memref<64x64xf32, #tpu.memory_space<vmem>>, %arg4: memref<128x64xf32, #tpu.memory_space<vmem>>, %arg5: memref<64x128xf32, #tpu.memory_space<vmem>>, %arg6: memref<136x4xf32, #tpu.memory_space<vmem>>, %arg7: memref<1x64x1024xf32, #tpu.memory_space<vmem>>, %arg8: memref<64x1024xf32, #tpu.memory_space<vmem>>) attributes {dimension_semantics = [#tpu.dimension_semantics<parallel>], iteration_bounds = array<i64: 2>, scalar_prefetch = 0 : i64, scratch_operands = 1 : i64, tpu.core_type = #tpu.core_type<tc>, window_params = [{transform_indices = @transform_0, window_bounds = array<i64: 1, 64, 1024>}, {pipeline_mode = #tpu.pipeline_mode<synchronous>, transform_indices = @transform_1, window_bounds = array<i64: 136, 64>}, {pipeline_mode = #tpu.pipeline_mode<synchronous>, transform_indices = @transform_2, window_bounds = array<i64: 64, 64>}, {pipeline_mode = #tpu.pipeline_mode<synchronous>, transform_indices = @transform_3, window_bounds = array<i64: 128, 64>}, {pipeline_mode = #tpu.pipeline_mode<synchronous>, transform_indices = @transform_4, window_bounds = array<i64: 64, 128>}, {pipeline_mode = #tpu.pipeline_mode<synchronous>, transform_indices = @transform_5, window_bounds = array<i64: 136, 4>}, {transform_indices = @transform_6, window_bounds = array<i64: 1, 64, 1024>}]} {
    %c0 = arith.constant 0 : index
    %c0_0 = arith.constant 0 : index
    %c0_1 = arith.constant 0 : index
    %0 = vector.load %arg1[%c0, %c0_0, %c0_1] : memref<1x64x1024xf32, #tpu.memory_space<vmem>>, vector<1x64x1024xf32>
    %1 = vector.shape_cast %0 : vector<1x64x1024xf32> to vector<64x1024xf32>
    %c0_2 = arith.constant 0 : index
    %c0_3 = arith.constant 0 : index
    %2 = vector.load %arg6[%c0_2, %c0_3] : memref<136x4xf32, #tpu.memory_space<vmem>>, vector<136x1xf32>
    %c0_4 = arith.constant 0 : index
    %c1 = arith.constant 1 : index
    %3 = vector.load %arg6[%c0_4, %c1] : memref<136x4xf32, #tpu.memory_space<vmem>>, vector<64x1xf32>
    %c0_5 = arith.constant 0 : index
    %c2 = arith.constant 2 : index
    %4 = vector.load %arg6[%c0_5, %c2] : memref<136x4xf32, #tpu.memory_space<vmem>>, vector<128x1xf32>
    %c0_6 = arith.constant 0 : index
    %c3 = arith.constant 3 : index
    %5 = vector.load %arg6[%c0_6, %c3] : memref<136x4xf32, #tpu.memory_space<vmem>>, vector<64x1xf32>
    %cst = arith.constant dense<0.000000e+00> : vector<64xf32>
    %6 = vector.multi_reduction <add>, %1, %cst [1] : vector<64x1024xf32> to vector<64xf32>
    %7 = vector.shape_cast %6 : vector<64xf32> to vector<64x1xf32>
    %cst_7 = arith.constant dense<0.000000e+00> : vector<1xf32>
    %8 = vector.multi_reduction <add>, %7, %cst_7 [0] : vector<64x1xf32> to vector<1xf32>
    %9 = vector.shape_cast %8 : vector<1xf32> to vector<1x1xf32>
    %10 = arith.mulf %1, %1 : vector<64x1024xf32>
    %cst_8 = arith.constant dense<0.000000e+00> : vector<64xf32>
    %11 = vector.multi_reduction <add>, %10, %cst_8 [1] : vector<64x1024xf32> to vector<64xf32>
    %12 = vector.shape_cast %11 : vector<64xf32> to vector<64x1xf32>
    %cst_9 = arith.constant dense<0.000000e+00> : vector<1xf32>
    %13 = vector.multi_reduction <add>, %12, %cst_9 [0] : vector<64x1xf32> to vector<1xf32>
    %14 = vector.shape_cast %13 : vector<1xf32> to vector<1x1xf32>
    %cst_10 = arith.constant 1.52587891E-5 : f32
    %15 = vector.broadcast %cst_10 : f32 to vector<1x1xf32>
    %16 = arith.mulf %9, %15 : vector<1x1xf32>
    %cst_11 = arith.constant 1.52587891E-5 : f32
    %17 = vector.broadcast %cst_11 : f32 to vector<1x1xf32>
    %18 = arith.mulf %14, %17 : vector<1x1xf32>
    %19 = arith.mulf %16, %16 : vector<1x1xf32>
    %20 = arith.subf %18, %19 : vector<1x1xf32>
    %cst_12 = arith.constant 0.000000e+00 : f32
    %21 = vector.broadcast %cst_12 : f32 to vector<1x1xf32>
    %22 = arith.maximumf %20, %21 : vector<1x1xf32>
    %23 = vector.broadcast %16 : vector<1x1xf32> to vector<64x1024xf32>
    %24 = arith.subf %1, %23 : vector<64x1024xf32>
    %cst_13 = arith.constant 9.99999974E-6 : f32
    %25 = vector.broadcast %cst_13 : f32 to vector<1x1xf32>
    %26 = arith.addf %22, %25 : vector<1x1xf32>
    %27 = math.rsqrt %26 : vector<1x1xf32>
    %28 = vector.broadcast %27 : vector<1x1xf32> to vector<64x1024xf32>
    %29 = arith.mulf %24, %28 : vector<64x1024xf32>
    %c0_14 = arith.constant 0 : index
    %c0_15 = arith.constant 0 : index
    %30 = vector.load %arg2[%c0_14, %c0_15] : memref<136x64xf32, #tpu.memory_space<vmem>>, vector<136x64xf32>
    %cst_16 = arith.constant dense<0.000000e+00> : vector<136x1024xf32>
    %31 = tpu.matmul %30, %29, %cst_16 {dimension_numbers = #tpu.dot_dimension_numbers<[1], [0], [0], [1], [0, 0, 1, 1], [], []>} : vector<136x64xf32>, vector<64x1024xf32>, vector<136x1024xf32> -> vector<136x1024xf32>
    %32 = vector.broadcast %2 : vector<136x1xf32> to vector<136x1024xf32>
    %33 = arith.addf %31, %32 : vector<136x1024xf32>
    %34 = vector.extract_strided_slice %33 {offsets = [0, 0], sizes = [64, 1024], strides = [1, 1]} : vector<136x1024xf32> to vector<64x1024xf32>
    %35 = vector.extract_strided_slice %33 {offsets = [64, 0], sizes = [64, 1024], strides = [1, 1]} : vector<136x1024xf32> to vector<64x1024xf32>
    %36 = vector.extract_strided_slice %33 {offsets = [128, 0], sizes = [1, 1024], strides = [1, 1]} : vector<136x1024xf32> to vector<1x1024xf32>
    %37 = vector.extract_strided_slice %36 {offsets = [0, 0], sizes = [1, 256], strides = [1, 1]} : vector<1x1024xf32> to vector<1x256xf32>
    %cst_17 = arith.constant dense<0xFF800000> : vector<1xf32>
    %38 = vector.multi_reduction <maximumf>, %37, %cst_17 [1] : vector<1x256xf32> to vector<1xf32>
    %39 = vector.shape_cast %38 : vector<1xf32> to vector<1x1xf32>
    %40 = vector.broadcast %39 : vector<1x1xf32> to vector<1x256xf32>
    %41 = arith.subf %37, %40 : vector<1x256xf32>
    %42 = math.exp %41 : vector<1x256xf32>
    %cst_18 = arith.constant dense<0.000000e+00> : vector<1xf32>
    %43 = vector.multi_reduction <add>, %42, %cst_18 [1] : vector<1x256xf32> to vector<1xf32>
    %44 = vector.shape_cast %43 : vector<1xf32> to vector<1x1xf32>
    %45 = tpu.reciprocal %44 : vector<1x1xf32> -> vector<1x1xf32>
    %46 = vector.broadcast %45 : vector<1x1xf32> to vector<1x256xf32>
    %47 = arith.mulf %42, %46 : vector<1x256xf32>
    %48 = vector.extract_strided_slice %34 {offsets = [0, 0], sizes = [64, 256], strides = [1, 1]} : vector<64x1024xf32> to vector<64x256xf32>
    %49 = vector.broadcast %47 : vector<1x256xf32> to vector<64x256xf32>
    %50 = arith.mulf %48, %49 : vector<64x256xf32>
    %cst_19 = arith.constant dense<0.000000e+00> : vector<64xf32>
    %51 = vector.multi_reduction <add>, %50, %cst_19 [1] : vector<64x256xf32> to vector<64xf32>
    %52 = vector.shape_cast %51 : vector<64xf32> to vector<64x1xf32>
    %53 = vector.extract_strided_slice %35 {offsets = [0, 0], sizes = [64, 256], strides = [1, 1]} : vector<64x1024xf32> to vector<64x256xf32>
    %cst_20 = arith.constant 0.000000e+00 : f32
    %54 = vector.broadcast %cst_20 : f32 to vector<64x256xf32>
    %55 = arith.maximumf %53, %54 : vector<64x256xf32>
    %56 = vector.broadcast %52 : vector<64x1xf32> to vector<64x256xf32>
    %57 = arith.mulf %55, %56 : vector<64x256xf32>
    %c0_21 = arith.constant 0 : index
    %c0_22 = arith.constant 0 : index
    %58 = vector.load %arg8[%c0_21, %c0_22] : memref<64x1024xf32, #tpu.memory_space<vmem>>, vector<64x256xf32>
    tpu.vector_store %arg8[%c0_21, %c0_22], %57 {strides = array<i32>} : memref<64x1024xf32, #tpu.memory_space<vmem>>, vector<64x256xf32>,
    %59 = vector.extract_strided_slice %36 {offsets = [0, 256], sizes = [1, 256], strides = [1, 1]} : vector<1x1024xf32> to vector<1x256xf32>
    %cst_23 = arith.constant dense<0xFF800000> : vector<1xf32>
    %60 = vector.multi_reduction <maximumf>, %59, %cst_23 [1] : vector<1x256xf32> to vector<1xf32>
    %61 = vector.shape_cast %60 : vector<1xf32> to vector<1x1xf32>
    %62 = vector.broadcast %61 : vector<1x1xf32> to vector<1x256xf32>
    %63 = arith.subf %59, %62 : vector<1x256xf32>
    %64 = math.exp %63 : vector<1x256xf32>
    %cst_24 = arith.constant dense<0.000000e+00> : vector<1xf32>
    %65 = vector.multi_reduction <add>, %64, %cst_24 [1] : vector<1x256xf32> to vector<1xf32>
    %66 = vector.shape_cast %65 : vector<1xf32> to vector<1x1xf32>
    %67 = tpu.reciprocal %66 : vector<1x1xf32> -> vector<1x1xf32>
    %68 = vector.broadcast %67 : vector<1x1xf32> to vector<1x256xf32>
    %69 = arith.mulf %64, %68 : vector<1x256xf32>
    %70 = vector.extract_strided_slice %34 {offsets = [0, 256], sizes = [64, 256], strides = [1, 1]} : vector<64x1024xf32> to vector<64x256xf32>
    %71 = vector.broadcast %69 : vector<1x256xf32> to vector<64x256xf32>
    %72 = arith.mulf %70, %71 : vector<64x256xf32>
    %cst_25 = arith.constant dense<0.000000e+00> : vector<64xf32>
    %73 = vector.multi_reduction <add>, %72, %cst_25 [1] : vector<64x256xf32> to vector<64xf32>
    %74 = vector.shape_cast %73 : vector<64xf32> to vector<64x1xf32>
    %75 = vector.extract_strided_slice %35 {offsets = [0, 256], sizes = [64, 256], strides = [1, 1]} : vector<64x1024xf32> to vector<64x256xf32>
    %cst_26 = arith.constant 0.000000e+00 : f32
    %76 = vector.broadcast %cst_26 : f32 to vector<64x256xf32>
    %77 = arith.maximumf %75, %76 : vector<64x256xf32>
    %78 = vector.broadcast %74 : vector<64x1xf32> to vector<64x256xf32>
    %79 = arith.mulf %77, %78 : vector<64x256xf32>
    %c0_27 = arith.constant 0 : index
    %c256 = arith.constant 256 : index
    %80 = vector.load %arg8[%c0_27, %c256] : memref<64x1024xf32, #tpu.memory_space<vmem>>, vector<64x256xf32>
    tpu.vector_store %arg8[%c0_27, %c256], %79 {strides = array<i32>} : memref<64x1024xf32, #tpu.memory_space<vmem>>, vector<64x256xf32>,
    %81 = vector.extract_strided_slice %36 {offsets = [0, 512], sizes = [1, 256], strides = [1, 1]} : vector<1x1024xf32> to vector<1x256xf32>
    %cst_28 = arith.constant dense<0xFF800000> : vector<1xf32>
    %82 = vector.multi_reduction <maximumf>, %81, %cst_28 [1] : vector<1x256xf32> to vector<1xf32>
    %83 = vector.shape_cast %82 : vector<1xf32> to vector<1x1xf32>
    %84 = vector.broadcast %83 : vector<1x1xf32> to vector<1x256xf32>
    %85 = arith.subf %81, %84 : vector<1x256xf32>
    %86 = math.exp %85 : vector<1x256xf32>
    %cst_29 = arith.constant dense<0.000000e+00> : vector<1xf32>
    %87 = vector.multi_reduction <add>, %86, %cst_29 [1] : vector<1x256xf32> to vector<1xf32>
    %88 = vector.shape_cast %87 : vector<1xf32> to vector<1x1xf32>
    %89 = tpu.reciprocal %88 : vector<1x1xf32> -> vector<1x1xf32>
    %90 = vector.broadcast %89 : vector<1x1xf32> to vector<1x256xf32>
    %91 = arith.mulf %86, %90 : vector<1x256xf32>
    %92 = vector.extract_strided_slice %34 {offsets = [0, 512], sizes = [64, 256], strides = [1, 1]} : vector<64x1024xf32> to vector<64x256xf32>
    %93 = vector.broadcast %91 : vector<1x256xf32> to vector<64x256xf32>
    %94 = arith.mulf %92, %93 : vector<64x256xf32>
    %cst_30 = arith.constant dense<0.000000e+00> : vector<64xf32>
    %95 = vector.multi_reduction <add>, %94, %cst_30 [1] : vector<64x256xf32> to vector<64xf32>
    %96 = vector.shape_cast %95 : vector<64xf32> to vector<64x1xf32>
    %97 = vector.extract_strided_slice %35 {offsets = [0, 512], sizes = [64, 256], strides = [1, 1]} : vector<64x1024xf32> to vector<64x256xf32>
    %cst_31 = arith.constant 0.000000e+00 : f32
    %98 = vector.broadcast %cst_31 : f32 to vector<64x256xf32>
    %99 = arith.maximumf %97, %98 : vector<64x256xf32>
    %100 = vector.broadcast %96 : vector<64x1xf32> to vector<64x256xf32>
    %101 = arith.mulf %99, %100 : vector<64x256xf32>
    %c0_32 = arith.constant 0 : index
    %c512 = arith.constant 512 : index
    %102 = vector.load %arg8[%c0_32, %c512] : memref<64x1024xf32, #tpu.memory_space<vmem>>, vector<64x256xf32>
    tpu.vector_store %arg8[%c0_32, %c512], %101 {strides = array<i32>} : memref<64x1024xf32, #tpu.memory_space<vmem>>, vector<64x256xf32>,
    %103 = vector.extract_strided_slice %36 {offsets = [0, 768], sizes = [1, 256], strides = [1, 1]} : vector<1x1024xf32> to vector<1x256xf32>
    %cst_33 = arith.constant dense<0xFF800000> : vector<1xf32>
    %104 = vector.multi_reduction <maximumf>, %103, %cst_33 [1] : vector<1x256xf32> to vector<1xf32>
    %105 = vector.shape_cast %104 : vector<1xf32> to vector<1x1xf32>
    %106 = vector.broadcast %105 : vector<1x1xf32> to vector<1x256xf32>
    %107 = arith.subf %103, %106 : vector<1x256xf32>
    %108 = math.exp %107 : vector<1x256xf32>
    %cst_34 = arith.constant dense<0.000000e+00> : vector<1xf32>
    %109 = vector.multi_reduction <add>, %108, %cst_34 [1] : vector<1x256xf32> to vector<1xf32>
    %110 = vector.shape_cast %109 : vector<1xf32> to vector<1x1xf32>
    %111 = tpu.reciprocal %110 : vector<1x1xf32> -> vector<1x1xf32>
    %112 = vector.broadcast %111 : vector<1x1xf32> to vector<1x256xf32>
    %113 = arith.mulf %108, %112 : vector<1x256xf32>
    %114 = vector.extract_strided_slice %34 {offsets = [0, 768], sizes = [64, 256], strides = [1, 1]} : vector<64x1024xf32> to vector<64x256xf32>
    %115 = vector.broadcast %113 : vector<1x256xf32> to vector<64x256xf32>
    %116 = arith.mulf %114, %115 : vector<64x256xf32>
    %cst_35 = arith.constant dense<0.000000e+00> : vector<64xf32>
    %117 = vector.multi_reduction <add>, %116, %cst_35 [1] : vector<64x256xf32> to vector<64xf32>
    %118 = vector.shape_cast %117 : vector<64xf32> to vector<64x1xf32>
    %119 = vector.extract_strided_slice %35 {offsets = [0, 768], sizes = [64, 256], strides = [1, 1]} : vector<64x1024xf32> to vector<64x256xf32>
    %cst_36 = arith.constant 0.000000e+00 : f32
    %120 = vector.broadcast %cst_36 : f32 to vector<64x256xf32>
    %121 = arith.maximumf %119, %120 : vector<64x256xf32>
    %122 = vector.broadcast %118 : vector<64x1xf32> to vector<64x256xf32>
    %123 = arith.mulf %121, %122 : vector<64x256xf32>
    %c0_37 = arith.constant 0 : index
    %c768 = arith.constant 768 : index
    %124 = vector.load %arg8[%c0_37, %c768] : memref<64x1024xf32, #tpu.memory_space<vmem>>, vector<64x256xf32>
    tpu.vector_store %arg8[%c0_37, %c768], %123 {strides = array<i32>} : memref<64x1024xf32, #tpu.memory_space<vmem>>, vector<64x256xf32>,
    %c0_38 = arith.constant 0 : index
    %c0_39 = arith.constant 0 : index
    %125 = vector.load %arg3[%c0_38, %c0_39] : memref<64x64xf32, #tpu.memory_space<vmem>>, vector<64x64xf32>
    %c0_40 = arith.constant 0 : index
    %c0_41 = arith.constant 0 : index
    %126 = vector.load %arg8[%c0_40, %c0_41] : memref<64x1024xf32, #tpu.memory_space<vmem>>, vector<64x1024xf32>
    %cst_42 = arith.constant dense<0.000000e+00> : vector<64x1024xf32>
    %127 = tpu.matmul %125, %126, %cst_42 {dimension_numbers = #tpu.dot_dimension_numbers<[1], [0], [0], [1], [0, 0, 1, 1], [], []>} : vector<64x64xf32>, vector<64x1024xf32>, vector<64x1024xf32> -> vector<64x1024xf32>
    %128 = vector.broadcast %3 : vector<64x1xf32> to vector<64x1024xf32>
    %129 = arith.addf %127, %128 : vector<64x1024xf32>
    %130 = arith.addf %1, %129 : vector<64x1024xf32>
    %cst_43 = arith.constant dense<0.000000e+00> : vector<64xf32>
    %131 = vector.multi_reduction <add>, %130, %cst_43 [1] : vector<64x1024xf32> to vector<64xf32>
    %132 = vector.shape_cast %131 : vector<64xf32> to vector<64x1xf32>
    %cst_44 = arith.constant dense<0.000000e+00> : vector<1xf32>
    %133 = vector.multi_reduction <add>, %132, %cst_44 [0] : vector<64x1xf32> to vector<1xf32>
    %134 = vector.shape_cast %133 : vector<1xf32> to vector<1x1xf32>
    %135 = arith.mulf %130, %130 : vector<64x1024xf32>
    %cst_45 = arith.constant dense<0.000000e+00> : vector<64xf32>
    %136 = vector.multi_reduction <add>, %135, %cst_45 [1] : vector<64x1024xf32> to vector<64xf32>
    %137 = vector.shape_cast %136 : vector<64xf32> to vector<64x1xf32>
    %cst_46 = arith.constant dense<0.000000e+00> : vector<1xf32>
    %138 = vector.multi_reduction <add>, %137, %cst_46 [0] : vector<64x1xf32> to vector<1xf32>
    %139 = vector.shape_cast %138 : vector<1xf32> to vector<1x1xf32>
    %cst_47 = arith.constant 1.52587891E-5 : f32
    %140 = vector.broadcast %cst_47 : f32 to vector<1x1xf32>
    %141 = arith.mulf %134, %140 : vector<1x1xf32>
    %cst_48 = arith.constant 1.52587891E-5 : f32
    %142 = vector.broadcast %cst_48 : f32 to vector<1x1xf32>
    %143 = arith.mulf %139, %142 : vector<1x1xf32>
    %144 = arith.mulf %141, %141 : vector<1x1xf32>
    %145 = arith.subf %143, %144 : vector<1x1xf32>
    %cst_49 = arith.constant 0.000000e+00 : f32
    %146 = vector.broadcast %cst_49 : f32 to vector<1x1xf32>
    %147 = arith.maximumf %145, %146 : vector<1x1xf32>
    %148 = vector.broadcast %141 : vector<1x1xf32> to vector<64x1024xf32>
    %149 = arith.subf %130, %148 : vector<64x1024xf32>
    %cst_50 = arith.constant 9.99999974E-6 : f32
    %150 = vector.broadcast %cst_50 : f32 to vector<1x1xf32>
    %151 = arith.addf %147, %150 : vector<1x1xf32>
    %152 = math.rsqrt %151 : vector<1x1xf32>
    %153 = vector.broadcast %152 : vector<1x1xf32> to vector<64x1024xf32>
    %154 = arith.mulf %149, %153 : vector<64x1024xf32>
    %c0_51 = arith.constant 0 : index
    %c0_52 = arith.constant 0 : index
    %155 = vector.load %arg4[%c0_51, %c0_52] : memref<128x64xf32, #tpu.memory_space<vmem>>, vector<128x64xf32>
    %cst_53 = arith.constant dense<0.000000e+00> : vector<128x1024xf32>
    %156 = tpu.matmul %155, %154, %cst_53 {dimension_numbers = #tpu.dot_dimension_numbers<[1], [0], [0], [1], [0, 0, 1, 1], [], []>} : vector<128x64xf32>, vector<64x1024xf32>, vector<128x1024xf32> -> vector<128x1024xf32>
    %157 = vector.broadcast %4 : vector<128x1xf32> to vector<128x1024xf32>
    %158 = arith.addf %156, %157 : vector<128x1024xf32>
    %159 = arith.negf %158 : vector<128x1024xf32>
    %160 = math.exp %159 : vector<128x1024xf32>
    %cst_54 = arith.constant 1.000000e+00 : f32
    %161 = vector.broadcast %cst_54 : f32 to vector<128x1024xf32>
    %162 = arith.addf %161, %160 : vector<128x1024xf32>
    %163 = arith.divf %161, %162 : vector<128x1024xf32>
    %164 = arith.mulf %158, %163 : vector<128x1024xf32>
    %c0_55 = arith.constant 0 : index
    %c0_56 = arith.constant 0 : index
    %165 = vector.load %arg5[%c0_55, %c0_56] : memref<64x128xf32, #tpu.memory_space<vmem>>, vector<64x128xf32>
    %cst_57 = arith.constant dense<0.000000e+00> : vector<64x1024xf32>
    %166 = tpu.matmul %165, %164, %cst_57 {dimension_numbers = #tpu.dot_dimension_numbers<[1], [0], [0], [1], [0, 0, 1, 1], [], []>} : vector<64x128xf32>, vector<128x1024xf32>, vector<64x1024xf32> -> vector<64x1024xf32>
    %167 = vector.broadcast %5 : vector<64x1xf32> to vector<64x1024xf32>
    %168 = arith.addf %166, %167 : vector<64x1024xf32>
    %169 = arith.addf %130, %168 : vector<64x1024xf32>
    %c0_58 = arith.constant 0 : index
    %c0_59 = arith.constant 0 : index
    %c0_60 = arith.constant 0 : index
    %170 = vector.load %arg7[%c0_58, %c0_59, %c0_60] : memref<1x64x1024xf32, #tpu.memory_space<vmem>>, vector<1x64x1024xf32>
    %171 = vector.shape_cast %170 : vector<1x64x1024xf32> to vector<64x1024xf32>
    %172 = vector.shape_cast %169 : vector<64x1024xf32> to vector<1x64x1024xf32>
    tpu.vector_store %arg7[%c0_58, %c0_59, %c0_60], %172 {strides = array<i32>} : memref<1x64x1024xf32, #tpu.memory_space<vmem>>, vector<1x64x1024xf32>,
    return
  }
  func.func @transform_0(%arg0: i32) -> (i32, i32, i32) {
    %c0_i32 = arith.constant 0 : i32
    %c0_i32_0 = arith.constant 0 : i32
    %c0_i32_1 = arith.constant 0 : i32
    return %arg0, %c0_i32, %c0_i32_0 : i32, i32, i32
  }
  func.func @transform_1(%arg0: i32) -> (i32, i32) {
    %c0_i32 = arith.constant 0 : i32
    %c0_i32_0 = arith.constant 0 : i32
    %c0_i32_1 = arith.constant 0 : i32
    return %c0_i32, %c0_i32_0 : i32, i32
  }
  func.func @transform_2(%arg0: i32) -> (i32, i32) {
    %c0_i32 = arith.constant 0 : i32
    %c0_i32_0 = arith.constant 0 : i32
    %c0_i32_1 = arith.constant 0 : i32
    return %c0_i32, %c0_i32_0 : i32, i32
  }
  func.func @transform_3(%arg0: i32) -> (i32, i32) {
    %c0_i32 = arith.constant 0 : i32
    %c0_i32_0 = arith.constant 0 : i32
    %c0_i32_1 = arith.constant 0 : i32
    return %c0_i32, %c0_i32_0 : i32, i32
  }
  func.func @transform_4(%arg0: i32) -> (i32, i32) {
    %c0_i32 = arith.constant 0 : i32
    %c0_i32_0 = arith.constant 0 : i32
    %c0_i32_1 = arith.constant 0 : i32
    return %c0_i32, %c0_i32_0 : i32, i32
  }
  func.func @transform_5(%arg0: i32) -> (i32, i32) {
    %c0_i32 = arith.constant 0 : i32
    %c0_i32_0 = arith.constant 0 : i32
    %c0_i32_1 = arith.constant 0 : i32
    return %c0_i32, %c0_i32_0 : i32, i32
  }
  func.func @transform_6(%arg0: i32) -> (i32, i32, i32) {
    %c0_i32 = arith.constant 0 : i32
    %c0_i32_0 = arith.constant 0 : i32
    %c0_i32_1 = arith.constant 0 : i32
    return %arg0, %c0_i32, %c0_i32_0 : i32, i32, i32
  }
}

</mosaic_0001>

<llo_original>
// kernel: tpu_custom_call.1
$region0: #{tpu_custom_call.1}
  #allocation0 [shape = 'u32[]', space=smem, size = 0x4, offset = 0x4, fixed_abs, tag = 'smem constant byte address 0x4 - core index']
  #allocation1 [shape = 'u32[72,128]{1,0:T(1,128)}', space=vmem, size = 0x9000, scoped, tag = 'internal scratch']
  #allocation2 [shape = 'f32[64,1024]{1,0:T(8,128)}', space=vmem, size = 0x40000, scoped, tag = 'scratch operand']
  %s0 = inlined_call_operand.hbm [shape: f32[2,64,1024], index: 0, kind: input, shape index: {}]
  %s1 = inlined_call_operand.vmem [shape: f32[136,64], index: 1, kind: input, shape index: {}]
  %s2 = inlined_call_operand.vmem [shape: f32[64,64], index: 2, kind: input, shape index: {}]
  %s3 = inlined_call_operand.vmem [shape: f32[128,64], index: 3, kind: input, shape index: {}]
  %s4 = inlined_call_operand.vmem [shape: f32[64,128], index: 4, kind: input, shape index: {}]
  %s5 = inlined_call_operand.vmem [shape: f32[136,4], index: 5, kind: input, shape index: {}]
  %s6 = inlined_call_operand.hbm [shape: f32[2,64,1024], index: 6, kind: output, shape index: {}]
  %s7 = sld [smem:[#allocation0]]
  $region61: #{tpu_custom_call.1} parent=0
    _
  %s9 = ssub.s32 1, %s7
  %s10 = scalar_select 0, %s9, %s7
  $region1: #{tpu_custom_call.1} parent=0
    #allocation3 [shape = 'u8[524288]{0}', space=vmem, size = 0x80000, scoped, tag = 'input window, operand 0']
    #allocation4 [shape = 's32[2]{0}', space=sflag, size = 0x8, scoped, tag = 'scoped memory for tpu_custom_call.1']
    #allocation5 [shape = 's32[2]{0}', space=sflag, size = 0x8, scoped, tag = 'scoped memory for tpu_custom_call.1']
    #allocation6 [shape = 'u8[524288]{0}', space=vmem, size = 0x80000, scoped, tag = 'output window, operand 0']
    %11 = vsyncpa [#allocation4], 0
    %s12 = scalar_lea.sflag [#allocation4], 1
    %13 = vsyncpa %s12, 0
    %14 = vsyncpa [#allocation5], 0
    %s15 = scalar_lea.sflag [#allocation5], 1
    %16 = vsyncpa %s15, 0
    loop: start=0, step=1, limit=4
    $region2: #{tpu_custom_call.1} parent=1 // loop_pre_header
      _
    $region3: #{tpu_custom_call.1} parent=1 // loop_header
      %s18 = sphi 0, %s22
      %p19 = scmp.ge.s32.totalorder %s18, 4
      %s28 = sphi 0, %s30
      %s31 = sphi 0, %s28
      %s32 = sphi 0, %s31
      %s48 = sphi 0, %s32
      %s52 = sphi 0, %s52
      %s54 = sphi 0, %s52
      %s55 = sphi 0, %s54
      %s69 = sphi 0, %s55
      %s73 = sphi 0, %s73
      %s75 = sphi 0, %s73
      %s76 = sphi 0, %s75
      %s90 = sphi 0, %s76
      %s94 = sphi 0, %s94
      %s96 = sphi 0, %s94
      %s97 = sphi 0, %s96
      %s111 = sphi 0, %s97
      %s115 = sphi 0, %s115
      %s117 = sphi 0, %s115
      %s118 = sphi 0, %s117
      %s132 = sphi 0, %s118
      %s136 = sphi 0, %s136
      %s138 = sphi 0, %s136
      %s139 = sphi 0, %s138
      %s153 = sphi 0, %s139
      %s159 = sphi 0, %s161
      %s162 = sphi 0, %s159
      %s163 = sphi 0, %s162
      %s179 = sphi 0, %s163
    $region4: #{tpu_custom_call.1} parent=1 // loop_header_branch
      %21 = sbr.rel (%p19) target = $region8
    $region5: #{tpu_custom_call.1} parent=1 // loop_body
      %s23 = ssub.s32 %s18, 1
      %s24 = ssub.s32 %s18, 2
      %s25 = sadd.s32 %s18, 1
      %s26 = ssub.s32 %s18, %s25
      %p27 = scmp.eq.s32.totalorder %s26, 0
      %s29 = sadd.s32 %s28, 1
      %s30 = scalar_select %p27, %s28, %s29
      %p33 = pneg %p27
      %p34 = scmp.eq.s32.totalorder %s18, 1
      %p35 = por %p33, %p34
      %p36 = scmp.ne.s32.totalorder %s28, %s31
      %p37 = scmp.eq.s32.totalorder %s18, 0
      %p38 = por %p36, %p37
      %p39 = scmp.ne.s32.totalorder %s28, %s31
      %p40 = scmp.eq.s32.totalorder %s23, 1
      %p41 = por %p39, %p40
      %p42 = scmp.ne.s32.totalorder %s31, %s32
      %p43 = scmp.eq.s32.totalorder %s23, 0
      %p44 = por %p42, %p43
      %p45 = scmp.ne.s32.totalorder %s31, %s32
      %p46 = scmp.eq.s32.totalorder %s24, 1
      %p47 = por %p45, %p46
      %p49 = scmp.ne.s32.totalorder %s32, %s48
      %p50 = scmp.eq.s32.totalorder %s24, 0
      %p51 = por %p49, %p50
      %s53 = sadd.s32 %s52, 1
      %p56 = scmp.eq.s32.totalorder %s18, 1
      %p57 = scmp.ne.s32.totalorder %s52, %s54
      %p58 = scmp.eq.s32.totalorder %s18, 0
      %p59 = por %p57, %p58
      %p60 = scmp.ne.s32.totalorder %s52, %s54
      %p61 = scmp.eq.s32.totalorder %s23, 1
      %p62 = por %p60, %p61
      %p63 = scmp.ne.s32.totalorder %s54, %s55
      %p64 = scmp.eq.s32.totalorder %s23, 0
      %p65 = por %p63, %p64
      %p66 = scmp.ne.s32.totalorder %s54, %s55
      %p67 = scmp.eq.s32.totalorder %s24, 1
      %p68 = por %p66, %p67
      %p70 = scmp.ne.s32.totalorder %s55, %s69
      %p71 = scmp.eq.s32.totalorder %s24, 0
      %p72 = por %p70, %p71
      %s74 = sadd.s32 %s73, 1
      %p77 = scmp.eq.s32.totalorder %s18, 1
      %p78 = scmp.ne.s32.totalorder %s73, %s75
      %p79 = scmp.eq.s32.totalorder %s18, 0
      %p80 = por %p78, %p79
      %p81 = scmp.ne.s32.totalorder %s73, %s75
      %p82 = scmp.eq.s32.totalorder %s23, 1
      %p83 = por %p81, %p82
      %p84 = scmp.ne.s32.totalorder %s75, %s76
      %p85 = scmp.eq.s32.totalorder %s23, 0
      %p86 = por %p84, %p85
      %p87 = scmp.ne.s32.totalorder %s75, %s76
      %p88 = scmp.eq.s32.totalorder %s24, 1
      %p89 = por %p87, %p88
      %p91 = scmp.ne.s32.totalorder %s76, %s90
      %p92 = scmp.eq.s32.totalorder %s24, 0
      %p93 = por %p91, %p92
      %s95 = sadd.s32 %s94, 1
      %p98 = scmp.eq.s32.totalorder %s18, 1
      %p99 = scmp.ne.s32.totalorder %s94, %s96
      %p100 = scmp.eq.s32.totalorder %s18, 0
      %p101 = por %p99, %p100
      %p102 = scmp.ne.s32.totalorder %s94, %s96
      %p103 = scmp.eq.s32.totalorder %s23, 1
      %p104 = por %p102, %p103
      %p105 = scmp.ne.s32.totalorder %s96, %s97
      %p106 = scmp.eq.s32.totalorder %s23, 0
      %p107 = por %p105, %p106
      %p108 = scmp.ne.s32.totalorder %s96, %s97
      %p109 = scmp.eq.s32.totalorder %s24, 1
      %p110 = por %p108, %p109
      %p112 = scmp.ne.s32.totalorder %s97, %s111
      %p113 = scmp.eq.s32.totalorder %s24, 0
      %p114 = por %p112, %p113
      %s116 = sadd.s32 %s115, 1
      %p119 = scmp.eq.s32.totalorder %s18, 1
      %p120 = scmp.ne.s32.totalorder %s115, %s117
      %p121 = scmp.eq.s32.totalorder %s18, 0
      %p122 = por %p120, %p121
      %p123 = scmp.ne.s32.totalorder %s115, %s117
      %p124 = scmp.eq.s32.totalorder %s23, 1
      %p125 = por %p123, %p124
      %p126 = scmp.ne.s32.totalorder %s117, %s118
      %p127 = scmp.eq.s32.totalorder %s23, 0
      %p128 = por %p126, %p127
      %p129 = scmp.ne.s32.totalorder %s117, %s118
      %p130 = scmp.eq.s32.totalorder %s24, 1
      %p131 = por %p129, %p130
      %p133 = scmp.ne.s32.totalorder %s118, %s132
      %p134 = scmp.eq.s32.totalorder %s24, 0
      %p135 = por %p133, %p134
      %s137 = sadd.s32 %s136, 1
      %p140 = scmp.eq.s32.totalorder %s18, 1
      %p141 = scmp.ne.s32.totalorder %s136, %s138
      %p142 = scmp.eq.s32.totalorder %s18, 0
      %p143 = por %p141, %p142
      %p144 = scmp.ne.s32.totalorder %s136, %s138
      %p145 = scmp.eq.s32.totalorder %s23, 1
      %p146 = por %p144, %p145
      %p147 = scmp.ne.s32.totalorder %s138, %s139
      %p148 = scmp.eq.s32.totalorder %s23, 0
      %p149 = por %p147, %p148
      %p150 = scmp.ne.s32.totalorder %s138, %s139
      %p151 = scmp.eq.s32.totalorder %s24, 1
      %p152 = por %p150, %p151
      %p154 = scmp.ne.s32.totalorder %s139, %s153
      %p155 = scmp.eq.s32.totalorder %s24, 0
      %p156 = por %p154, %p155
      %s157 = ssub.s32 %s18, %s25
      %p158 = scmp.eq.s32.totalorder %s157, 0
      %s160 = sadd.s32 %s159, 1
      %s161 = scalar_select %p158, %s159, %s160
      %p164 = pneg %p158
      %p165 = scmp.eq.s32.totalorder %s18, 1
      %p166 = por %p164, %p165
      %p167 = scmp.ne.s32.totalorder %s159, %s162
      %p168 = scmp.eq.s32.totalorder %s18, 0
      %p169 = por %p167, %p168
      %p170 = scmp.ne.s32.totalorder %s159, %s162
      %p171 = scmp.eq.s32.totalorder %s23, 1
      %p172 = por %p170, %p171
      %p173 = scmp.ne.s32.totalorder %s162, %s163
      %p174 = scmp.eq.s32.totalorder %s23, 0
      %p175 = por %p173, %p174
      %p176 = scmp.ne.s32.totalorder %s162, %s163
      %p177 = scmp.eq.s32.totalorder %s24, 1
      %p178 = por %p176, %p177
      %p180 = scmp.ne.s32.totalorder %s163, %s179
      %p181 = scmp.eq.s32.totalorder %s24, 0
      %p182 = por %p180, %p181
      %p183 = scmp.le.s32.totalorder 1, %s18
      %p184 = scmp.lt.s32.totalorder %s18, 3
      %p185 = pnand %p183, %p184
      %p186 = pneg %p185
      // Predicated region
      $region9: #{tpu_custom_call.1} parent=5 // pred_check
        _
      $region10: #{tpu_custom_call.1} parent=5 // pred_check_branch
        %188 = sbr.rel (%p185) target = $region12
      $region11: #{tpu_custom_call.1} parent=5 // pred_region
        %s189 = ssub.s32 %s18, 1
        // Predicated region
        $region13: #{tpu_custom_call.1} parent=11 // pred_check
          %p190 = pneg %p65
        $region14: #{tpu_custom_call.1} parent=11 // pred_check_branch
          %192 = sbr.rel (%p190) target = $region16
        $region15: #{tpu_custom_call.1} parent=11 // pred_region
          _
        $region16: #{tpu_custom_call.1} parent=11 // pred_fallthru
          _
        // Predicated region
        $region17: #{tpu_custom_call.1} parent=11 // pred_check
          %p193 = pneg %p86
        $region18: #{tpu_custom_call.1} parent=11 // pred_check_branch
          %195 = sbr.rel (%p193) target = $region20
        $region19: #{tpu_custom_call.1} parent=11 // pred_region
          _
        $region20: #{tpu_custom_call.1} parent=11 // pred_fallthru
          _
        // Predicated region
        $region21: #{tpu_custom_call.1} parent=11 // pred_check
          %p196 = pneg %p107
        $region22: #{tpu_custom_call.1} parent=11 // pred_check_branch
          %198 = sbr.rel (%p196) target = $region24
        $region23: #{tpu_custom_call.1} parent=11 // pred_region
          _
        $region24: #{tpu_custom_call.1} parent=11 // pred_fallthru
          _
        // Predicated region
        $region25: #{tpu_custom_call.1} parent=11 // pred_check
          %p199 = pneg %p128
        $region26: #{tpu_custom_call.1} parent=11 // pred_check_branch
          %201 = sbr.rel (%p199) target = $region28
        $region27: #{tpu_custom_call.1} parent=11 // pred_region
          _
        $region28: #{tpu_custom_call.1} parent=11 // pred_fallthru
          _
        // Predicated region
        $region29: #{tpu_custom_call.1} parent=11 // pred_check
          %p202 = pneg %p149
        $region30: #{tpu_custom_call.1} parent=11 // pred_check_branch
          %204 = sbr.rel (%p202) target = $region32
        $region31: #{tpu_custom_call.1} parent=11 // pred_region
          _
        $region32: #{tpu_custom_call.1} parent=11 // pred_fallthru
          _
      $region12: #{tpu_custom_call.1} parent=5 // pred_fallthru
        _
      %p205 = scmp.lt.s32.totalorder %s18, 2
      // Predicated region
      $region33: #{tpu_custom_call.1} parent=5 // pred_check
        %p206 = pneg %p205
      $region34: #{tpu_custom_call.1} parent=5 // pred_check_branch
        %208 = sbr.rel (%p206) target = $region36
      $region35: #{tpu_custom_call.1} parent=5 // pred_region
        // Predicated region
        $region37: #{tpu_custom_call.1} parent=35 // pred_check
          %p209 = pneg %p38
        $region38: #{tpu_custom_call.1} parent=35 // pred_check_branch
          %211 = sbr.rel (%p209) target = $region40
        $region39: #{tpu_custom_call.1} parent=35 // pred_region
          %s212 = sand.u32 %s28, 1
          %s213 = scalar_lea.sflag [#allocation4], %s212
          %s214 = sand.u32 %s28, 1
          %s215 = smul.addr %s214, 512
          %s216 = scalar_lea.vmem [#allocation3], %s215
          %218 = vsyncadd %s213, 0
          %s219 = smul.addr %s18, 64
          %s220 = smul.addr %s219, 8
          %s221 = scalar_lea.hbm %s0, %s220
          %s222 = sshll.u32 %s221, 4
          %s223 = int_to_ptr.hbm [resolvable:$true] %s222
          %s224 = sshll.u32 %s216, 4
          %s225 = int_to_ptr.vmem [resolvable:$true] %s224
          %230 = dma.hbm_to_vmem [thread:$0]  %s223, 8192, %s225, %s213, 1024, 1024, 64
        $region40: #{tpu_custom_call.1} parent=35 // pred_fallthru
          _
      $region36: #{tpu_custom_call.1} parent=5 // pred_fallthru
        _
      %p231 = scmp.le.s32.totalorder 1, %s18
      %p232 = scmp.lt.s32.totalorder %s18, 3
      %p233 = pnand %p231, %p232
      %p234 = pneg %p233
      // Predicated region
      $region41: #{tpu_custom_call.1} parent=5 // pred_check
        _
      $region42: #{tpu_custom_call.1} parent=5 // pred_check_branch
        %236 = sbr.rel (%p233) target = $region44
      $region43: #{tpu_custom_call.1} parent=5 // pred_region
        %s237 = ssub.s32 %s18, 1
        %s238 = sand.u32 %s31, 1
        %s239 = scalar_lea.sflag [#allocation4], %s238
        %s240 = sand.u32 %s31, 1
        %s241 = smul.addr %s240, 512
        %s242 = scalar_lea.vmem [#allocation3], %s241
        // Predicated region
        $region45: #{tpu_custom_call.1} parent=43 // pred_check
          %p243 = pneg %p44
        $region46: #{tpu_custom_call.1} parent=43 // pred_check_branch
          %245 = sbr.rel (%p243) target = $region48
        $region47: #{tpu_custom_call.1} parent=43 // pred_region
          %247 = dma.done %s239, 8192
        $region48: #{tpu_custom_call.1} parent=43 // pred_fallthru
          _
        %s248 = sand.u32 %s31, 1
        %s249 = scalar_lea.sflag [#allocation4], %s248
        %s250 = sand.u32 %s31, 1
        %s251 = smul.addr %s250, 512
        %s252 = scalar_lea.vmem [#allocation3], %s251
        %p253 = pneg %p44
        %p254 = pneg %p41
        %p255 = pneg %p65
        %p256 = pneg %p62
        %p257 = pneg %p86
        %p258 = pneg %p83
        %p259 = pneg %p107
        %p260 = pneg %p104
        %p261 = pneg %p128
        %p262 = pneg %p125
        %p263 = pneg %p149
        %p264 = pneg %p146
        %p265 = pneg %p175
        %p266 = pneg %p172
        %s267 = sand.u32 %s162, 1
        %s268 = scalar_lea.sflag [#allocation5], %s267
        %s269 = sand.u32 %s162, 1
        %s270 = smul.addr %s269, 512
        %s271 = scalar_lea.vmem [#allocation6], %s270
        %v272 = vld [vmem:[%s242] sm:$0xff]
        %v273 = vld [vmem:[%s242 + $0x8] sm:$0xff]
        %v274 = vld [vmem:[%s242 + $0x10] sm:$0xff]
        %v275 = vld [vmem:[%s242 + $0x18] sm:$0xff]
        %v276 = vld [vmem:[%s242 + $0x20] sm:$0xff]
        %v277 = vld [vmem:[%s242 + $0x28] sm:$0xff]
        %v278 = vld [vmem:[%s242 + $0x30] sm:$0xff]
        %v279 = vld [vmem:[%s242 + $0x38] sm:$0xff]
        %v280 = vld [vmem:[%s242 + $0x40] sm:$0xff]
        %v281 = vld [vmem:[%s242 + $0x48] sm:$0xff]
        %v282 = vld [vmem:[%s242 + $0x50] sm:$0xff]
        %v283 = vld [vmem:[%s242 + $0x58] sm:$0xff]
        %v284 = vld [vmem:[%s242 + $0x60] sm:$0xff]
        %v285 = vld [vmem:[%s242 + $0x68] sm:$0xff]
        %v286 = vld [vmem:[%s242 + $0x70] sm:$0xff]
        %v287 = vld [vmem:[%s242 + $0x78] sm:$0xff]
        %v288 = vld [vmem:[%s242 + $0x80] sm:$0xff]
        %v289 = vld [vmem:[%s242 + $0x88] sm:$0xff]
        %v290 = vld [vmem:[%s242 + $0x90] sm:$0xff]
        %v291 = vld [vmem:[%s242 + $0x98] sm:$0xff]
        %v292 = vld [vmem:[%s242 + $0xa0] sm:$0xff]
        %v293 = vld [vmem:[%s242 + $0xa8] sm:$0xff]
        %v294 = vld [vmem:[%s242 + $0xb0] sm:$0xff]
        %v295 = vld [vmem:[%s242 + $0xb8] sm:$0xff]
        %v296 = vld [vmem:[%s242 + $0xc0] sm:$0xff]
        %v297 = vld [vmem:[%s242 + $0xc8] sm:$0xff]
        %v298 = vld [vmem:[%s242 + $0xd0] sm:$0xff]
        %v299 = vld [vmem:[%s242 + $0xd8] sm:$0xff]
        %v300 = vld [vmem:[%s242 + $0xe0] sm:$0xff]
        %v301 = vld [vmem:[%s242 + $0xe8] sm:$0xff]
        %v302 = vld [vmem:[%s242 + $0xf0] sm:$0xff]
        %v303 = vld [vmem:[%s242 + $0xf8] sm:$0xff]
        %v304 = vld [vmem:[%s242 + $0x100] sm:$0xff]
        %v305 = vld [vmem:[%s242 + $0x108] sm:$0xff]
        %v306 = vld [vmem:[%s242 + $0x110] sm:$0xff]
        %v307 = vld [vmem:[%s242 + $0x118] sm:$0xff]
        %v308 = vld [vmem:[%s242 + $0x120] sm:$0xff]
        %v309 = vld [vmem:[%s242 + $0x128] sm:$0xff]
        %v310 = vld [vmem:[%s242 + $0x130] sm:$0xff]
        %v311 = vld [vmem:[%s242 + $0x138] sm:$0xff]
        %v312 = vld [vmem:[%s242 + $0x140] sm:$0xff]
        %v313 = vld [vmem:[%s242 + $0x148] sm:$0xff]
        %v314 = vld [vmem:[%s242 + $0x150] sm:$0xff]
        %v315 = vld [vmem:[%s242 + $0x158] sm:$0xff]
        %v316 = vld [vmem:[%s242 + $0x160] sm:$0xff]
        %v317 = vld [vmem:[%s242 + $0x168] sm:$0xff]
        %v318 = vld [vmem:[%s242 + $0x170] sm:$0xff]
        %v319 = vld [vmem:[%s242 + $0x178] sm:$0xff]
        %v320 = vld [vmem:[%s242 + $0x180] sm:$0xff]
        %v321 = vld [vmem:[%s242 + $0x188] sm:$0xff]
        %v322 = vld [vmem:[%s242 + $0x190] sm:$0xff]
        %v323 = vld [vmem:[%s242 + $0x198] sm:$0xff]
        %v324 = vld [vmem:[%s242 + $0x1a0] sm:$0xff]
        %v325 = vld [vmem:[%s242 + $0x1a8] sm:$0xff]
        %v326 = vld [vmem:[%s242 + $0x1b0] sm:$0xff]
        %v327 = vld [vmem:[%s242 + $0x1b8] sm:$0xff]
        %v328 = vld [vmem:[%s242 + $0x1c0] sm:$0xff]
        %v329 = vld [vmem:[%s242 + $0x1c8] sm:$0xff]
        %v330 = vld [vmem:[%s242 + $0x1d0] sm:$0xff]
        %v331 = vld [vmem:[%s242 + $0x1d8] sm:$0xff]
        %v332 = vld [vmem:[%s242 + $0x1e0] sm:$0xff]
        %v333 = vld [vmem:[%s242 + $0x1e8] sm:$0xff]
        %v334 = vld [vmem:[%s242 + $0x1f0] sm:$0xff]
        %v335 = vld [vmem:[%s242 + $0x1f8] sm:$0xff]
        %v336 = vld [vmem:[%s5] sm:$0xff]
        %v337 = vld [vmem:[%s5 + $0x8] sm:$0xff]
        %v338 = vld [vmem:[%s5 + $0x10] sm:$0xff]
        %v339 = vld [vmem:[%s5 + $0x18] sm:$0xff]
        %v340 = vld [vmem:[%s5 + $0x20] sm:$0xff]
        %v341 = vld [vmem:[%s5 + $0x28] sm:$0xff]
        %v342 = vld [vmem:[%s5 + $0x30] sm:$0xff]
        %v343 = vld [vmem:[%s5 + $0x38] sm:$0xff]
        %v344 = vld [vmem:[%s5 + $0x40] sm:$0xff]
        %v345 = vld [vmem:[%s5 + $0x48] sm:$0xff]
        %v346 = vld [vmem:[%s5 + $0x50] sm:$0xff]
        %v347 = vld [vmem:[%s5 + $0x58] sm:$0xff]
        %v348 = vld [vmem:[%s5 + $0x60] sm:$0xff]
        %v349 = vld [vmem:[%s5 + $0x68] sm:$0xff]
        %v350 = vld [vmem:[%s5 + $0x70] sm:$0xff]
        %v351 = vld [vmem:[%s5 + $0x78] sm:$0xff]
        %v352 = vld [vmem:[%s5 + $0x80] sm:$0xff]
        %v353 = vadd.f32 %v272, %v273
        %v354 = vadd.f32 %v353, %v274
        %v355 = vadd.f32 %v354, %v275
        %v356 = vadd.f32 %v355, %v276
        %v357 = vadd.f32 %v356, %v277
        %v358 = vadd.f32 %v357, %v278
        %v359 = vadd.f32 %v358, %v279
        %360 = vadd.xlane.f32.xlu0 %v359
        %v361 = vpop.xlane.xlu0 %360
        %v362 = vadd.f32 %v280, %v281
        %v363 = vadd.f32 %v362, %v282
        %v364 = vadd.f32 %v363, %v283
        %v365 = vadd.f32 %v364, %v284
        %v366 = vadd.f32 %v365, %v285
        %v367 = vadd.f32 %v366, %v286
        %v368 = vadd.f32 %v367, %v287
        %369 = vadd.xlane.f32.xlu0 %v368
        %v370 = vpop.xlane.xlu0 %369
        %v371 = vadd.f32 %v288, %v289
        %v372 = vadd.f32 %v371, %v290
        %v373 = vadd.f32 %v372, %v291
        %v374 = vadd.f32 %v373, %v292
        %v375 = vadd.f32 %v374, %v293
        %v376 = vadd.f32 %v375, %v294
        %v377 = vadd.f32 %v376, %v295
        %378 = vadd.xlane.f32.xlu0 %v377
        %v379 = vpop.xlane.xlu0 %378
        %v380 = vadd.f32 %v296, %v297
        %v381 = vadd.f32 %v380, %v298
        %v382 = vadd.f32 %v381, %v299
        %v383 = vadd.f32 %v382, %v300
        %v384 = vadd.f32 %v383, %v301
        %v385 = vadd.f32 %v384, %v302
        %v386 = vadd.f32 %v385, %v303
        %387 = vadd.xlane.f32.xlu0 %v386
        %v388 = vpop.xlane.xlu0 %387
        %v389 = vadd.f32 %v304, %v305
        %v390 = vadd.f32 %v389, %v306
        %v391 = vadd.f32 %v390, %v307
        %v392 = vadd.f32 %v391, %v308
        %v393 = vadd.f32 %v392, %v309
        %v394 = vadd.f32 %v393, %v310
        %v395 = vadd.f32 %v394, %v311
        %396 = vadd.xlane.f32.xlu0 %v395
        %v397 = vpop.xlane.xlu0 %396
        %v398 = vadd.f32 %v312, %v313
        %v399 = vadd.f32 %v398, %v314
        %v400 = vadd.f32 %v399, %v315
        %v401 = vadd.f32 %v400, %v316
        %v402 = vadd.f32 %v401, %v317
        %v403 = vadd.f32 %v402, %v318
        %v404 = vadd.f32 %v403, %v319
        %405 = vadd.xlane.f32.xlu0 %v404
        %v406 = vpop.xlane.xlu0 %405
        %v407 = vadd.f32 %v320, %v321
        %v408 = vadd.f32 %v407, %v322
        %v409 = vadd.f32 %v408, %v323
        %v410 = vadd.f32 %v409, %v324
        %v411 = vadd.f32 %v410, %v325
        %v412 = vadd.f32 %v411, %v326
        %v413 = vadd.f32 %v412, %v327
        %414 = vadd.xlane.f32.xlu0 %v413
        %v415 = vpop.xlane.xlu0 %414
        %v416 = vadd.f32 %v328, %v329
        %v417 = vadd.f32 %v416, %v330
        %v418 = vadd.f32 %v417, %v331
        %v419 = vadd.f32 %v418, %v332
        %v420 = vadd.f32 %v419, %v333
        %v421 = vadd.f32 %v420, %v334
        %v422 = vadd.f32 %v421, %v335
        %423 = vadd.xlane.f32.xlu0 %v422
        %v424 = vpop.xlane.xlu0 %423
        %v425 = vadd.f32 %v361, %v370
        %v426 = vadd.f32 %v425, %v379
        %v427 = vadd.f32 %v426, %v388
        %v428 = vadd.f32 %v427, %v397
        %v429 = vadd.f32 %v428, %v406
        %v430 = vadd.f32 %v429, %v415
        %v431 = vadd.f32 %v430, %v424
        %v432 = vrot.slane %v431, 4
        %v433 = vadd.f32 %v431, %v432
        %v434 = vrot.slane %v433, 2
        %v435 = vadd.f32 %v433, %v434
        %v436 = vrot.slane %v435, 1
        %v437 = vadd.f32 %v435, %v436
        %v438 = vmul.f32 %v272, %v272
        %v439 = vmul.f32 %v273, %v273
        %v440 = vmul.f32 %v274, %v274
        %v441 = vmul.f32 %v275, %v275
        %v442 = vmul.f32 %v276, %v276
        %v443 = vmul.f32 %v277, %v277
        %v444 = vmul.f32 %v278, %v278
        %v445 = vmul.f32 %v279, %v279
        %v446 = vmul.f32 %v280, %v280
        %v447 = vmul.f32 %v281, %v281
        %v448 = vmul.f32 %v282, %v282
        %v449 = vmul.f32 %v283, %v283
        %v450 = vmul.f32 %v284, %v284
        %v451 = vmul.f32 %v285, %v285
        %v452 = vmul.f32 %v286, %v286
        %v453 = vmul.f32 %v287, %v287
        %v454 = vmul.f32 %v288, %v288
        %v455 = vmul.f32 %v289, %v289
        %v456 = vmul.f32 %v290, %v290
        %v457 = vmul.f32 %v291, %v291
        %v458 = vmul.f32 %v292, %v292
        %v459 = vmul.f32 %v293, %v293
        %v460 = vmul.f32 %v294, %v294
        %v461 = vmul.f32 %v295, %v295
        %v462 = vmul.f32 %v296, %v296
        %v463 = vmul.f32 %v297, %v297
        %v464 = vmul.f32 %v298, %v298
        %v465 = vmul.f32 %v299, %v299
        %v466 = vmul.f32 %v300, %v300
        %v467 = vmul.f32 %v301, %v301
        %v468 = vmul.f32 %v302, %v302
        %v469 = vmul.f32 %v303, %v303
        %v470 = vmul.f32 %v304, %v304
        %v471 = vmul.f32 %v305, %v305
        %v472 = vmul.f32 %v306, %v306
        %v473 = vmul.f32 %v307, %v307
        %v474 = vmul.f32 %v308, %v308
        %v475 = vmul.f32 %v309, %v309
        %v476 = vmul.f32 %v310, %v310
        %v477 = vmul.f32 %v311, %v311
        %v478 = vmul.f32 %v312, %v312
        %v479 = vmul.f32 %v313, %v313
        %v480 = vmul.f32 %v314, %v314
        %v481 = vmul.f32 %v315, %v315
        %v482 = vmul.f32 %v316, %v316
        %v483 = vmul.f32 %v317, %v317
        %v484 = vmul.f32 %v318, %v318
        %v485 = vmul.f32 %v319, %v319
        %v486 = vmul.f32 %v320, %v320
        %v487 = vmul.f32 %v321, %v321
        %v488 = vmul.f32 %v322, %v322
        %v489 = vmul.f32 %v323, %v323
        %v490 = vmul.f32 %v324, %v324
        %v491 = vmul.f32 %v325, %v325
        %v492 = vmul.f32 %v326, %v326
        %v493 = vmul.f32 %v327, %v327
        %v494 = vmul.f32 %v328, %v328
        %v495 = vmul.f32 %v329, %v329
        %v496 = vmul.f32 %v330, %v330
        %v497 = vmul.f32 %v331, %v331
        %v498 = vmul.f32 %v332, %v332
        %v499 = vmul.f32 %v333, %v333
        %v500 = vmul.f32 %v334, %v334
        %v501 = vmul.f32 %v335, %v335
        %v502 = vadd.f32 %v438, %v439
        %v503 = vadd.f32 %v502, %v440
        %v504 = vadd.f32 %v503, %v441
        %v505 = vadd.f32 %v504, %v442
        %v506 = vadd.f32 %v505, %v443
        %v507 = vadd.f32 %v506, %v444
        %v508 = vadd.f32 %v507, %v445
        %509 = vadd.xlane.f32.xlu0 %v508
        %v510 = vpop.xlane.xlu0 %509
        %v511 = vadd.f32 %v446, %v447
        %v512 = vadd.f32 %v511, %v448
        %v513 = vadd.f32 %v512, %v449
        %v514 = vadd.f32 %v513, %v450
        %v515 = vadd.f32 %v514, %v451
        %v516 = vadd.f32 %v515, %v452
        %v517 = vadd.f32 %v516, %v453
        %518 = vadd.xlane.f32.xlu0 %v517
        %v519 = vpop.xlane.xlu0 %518
        %v520 = vadd.f32 %v454, %v455
        %v521 = vadd.f32 %v520, %v456
        %v522 = vadd.f32 %v521, %v457
        %v523 = vadd.f32 %v522, %v458
        %v524 = vadd.f32 %v523, %v459
        %v525 = vadd.f32 %v524, %v460
        %v526 = vadd.f32 %v525, %v461
        %527 = vadd.xlane.f32.xlu0 %v526
        %v528 = vpop.xlane.xlu0 %527
        %v529 = vadd.f32 %v462, %v463
        %v530 = vadd.f32 %v529, %v464
        %v531 = vadd.f32 %v530, %v465
        %v532 = vadd.f32 %v531, %v466
        %v533 = vadd.f32 %v532, %v467
        %v534 = vadd.f32 %v533, %v468
        %v535 = vadd.f32 %v534, %v469
        %536 = vadd.xlane.f32.xlu0 %v535
        %v537 = vpop.xlane.xlu0 %536
        %v538 = vadd.f32 %v470, %v471
        %v539 = vadd.f32 %v538, %v472
        %v540 = vadd.f32 %v539, %v473
        %v541 = vadd.f32 %v540, %v474
        %v542 = vadd.f32 %v541, %v475
        %v543 = vadd.f32 %v542, %v476
        %v544 = vadd.f32 %v543, %v477
        %545 = vadd.xlane.f32.xlu0 %v544
        %v546 = vpop.xlane.xlu0 %545
        %v547 = vadd.f32 %v478, %v479
        %v548 = vadd.f32 %v547, %v480
        %v549 = vadd.f32 %v548, %v481
        %v550 = vadd.f32 %v549, %v482
        %v551 = vadd.f32 %v550, %v483
        %v552 = vadd.f32 %v551, %v484
        %v553 = vadd.f32 %v552, %v485
        %554 = vadd.xlane.f32.xlu0 %v553
        %v555 = vpop.xlane.xlu0 %554
        %v556 = vadd.f32 %v486, %v487
        %v557 = vadd.f32 %v556, %v488
        %v558 = vadd.f32 %v557, %v489
        %v559 = vadd.f32 %v558, %v490
        %v560 = vadd.f32 %v559, %v491
        %v561 = vadd.f32 %v560, %v492
        %v562 = vadd.f32 %v561, %v493
        %563 = vadd.xlane.f32.xlu0 %v562
        %v564 = vpop.xlane.xlu0 %563
        %v565 = vadd.f32 %v494, %v495
        %v566 = vadd.f32 %v565, %v496
        %v567 = vadd.f32 %v566, %v497
        %v568 = vadd.f32 %v567, %v498
        %v569 = vadd.f32 %v568, %v499
        %v570 = vadd.f32 %v569, %v500
        %v571 = vadd.f32 %v570, %v501
        %572 = vadd.xlane.f32.xlu0 %v571
        %v573 = vpop.xlane.xlu0 %572
        %v574 = vadd.f32 %v510, %v519
        %v575 = vadd.f32 %v574, %v528
        %v576 = vadd.f32 %v575, %v537
        %v577 = vadd.f32 %v576, %v546
        %v578 = vadd.f32 %v577, %v555
        %v579 = vadd.f32 %v578, %v564
        %v580 = vadd.f32 %v579, %v573
        %v581 = vrot.slane %v580, 4
        %v582 = vadd.f32 %v580, %v581
        %v583 = vrot.slane %v582, 2
        %v584 = vadd.f32 %v582, %v583
        %v585 = vrot.slane %v584, 1
        %v586 = vadd.f32 %v584, %v585
        %v587 = vmul.f32 %v437, 1.5258789e-05
        %v588 = vmul.f32 %v586, 1.5258789e-05
        %v589 = vmul.f32 %v587, %v587
        %v590 = vsub.f32 %v588, %v589
        %v591 = vmax.f32 %v590, 0.0
        %v592 = vsub.f32 %v272, %v587
        %v593 = vsub.f32 %v273, %v587
        %v594 = vsub.f32 %v274, %v587
        %v595 = vsub.f32 %v275, %v587
        %v596 = vsub.f32 %v276, %v587
        %v597 = vsub.f32 %v277, %v587
        %v598 = vsub.f32 %v278, %v587
        %v599 = vsub.f32 %v279, %v587
        %v600 = vsub.f32 %v280, %v587
        %v601 = vsub.f32 %v281, %v587
        %v602 = vsub.f32 %v282, %v587
        %v603 = vsub.f32 %v283, %v587
        %v604 = vsub.f32 %v284, %v587
        %v605 = vsub.f32 %v285, %v587
        %v606 = vsub.f32 %v286, %v587
        %v607 = vsub.f32 %v287, %v587
        %v608 = vsub.f32 %v288, %v587
        %v609 = vsub.f32 %v289, %v587
        %v610 = vsub.f32 %v290, %v587
        %v611 = vsub.f32 %v291, %v587
        %v612 = vsub.f32 %v292, %v587
        %v613 = vsub.f32 %v293, %v587
        %v614 = vsub.f32 %v294, %v587
        %v615 = vsub.f32 %v295, %v587
        %v616 = vsub.f32 %v296, %v587
        %v617 = vsub.f32 %v297, %v587
        %v618 = vsub.f32 %v298, %v587
        %v619 = vsub.f32 %v299, %v587
        %v620 = vsub.f32 %v300, %v587
        %v621 = vsub.f32 %v301, %v587
        %v622 = vsub.f32 %v302, %v587
        %v623 = vsub.f32 %v303, %v587
        %v624 = vsub.f32 %v304, %v587
        %v625 = vsub.f32 %v305, %v587
        %v626 = vsub.f32 %v306, %v587
        %v627 = vsub.f32 %v307, %v587
        %v628 = vsub.f32 %v308, %v587
        %v629 = vsub.f32 %v309, %v587
        %v630 = vsub.f32 %v310, %v587
        %v631 = vsub.f32 %v311, %v587
        %v632 = vsub.f32 %v312, %v587
        %v633 = vsub.f32 %v313, %v587
        %v634 = vsub.f32 %v314, %v587
        %v635 = vsub.f32 %v315, %v587
        %v636 = vsub.f32 %v316, %v587
        %v637 = vsub.f32 %v317, %v587
        %v638 = vsub.f32 %v318, %v587
        %v639 = vsub.f32 %v319, %v587
        %v640 = vsub.f32 %v320, %v587
        %v641 = vsub.f32 %v321, %v587
        %v642 = vsub.f32 %v322, %v587
        %v643 = vsub.f32 %v323, %v587
        %v644 = vsub.f32 %v324, %v587
        %v645 = vsub.f32 %v325, %v587
        %v646 = vsub.f32 %v326, %v587
        %v647 = vsub.f32 %v327, %v587
        %v648 = vsub.f32 %v328, %v587
        %v649 = vsub.f32 %v329, %v587
        %v650 = vsub.f32 %v330, %v587
        %v651 = vsub.f32 %v331, %v587
        %v652 = vsub.f32 %v332, %v587
        %v653 = vsub.f32 %v333, %v587
        %v654 = vsub.f32 %v334, %v587
        %v655 = vsub.f32 %v335, %v587
        %v656 = vadd.f32 %v591, 1e-05
        %v657 = vrsqrt.pop %v656
        %v658 = vmul.f32 %v657, %v656
        %v659 = vmul.f32 %v658, %v657
        %v660 = vmul.f32 0.5, %v659
        %v661 = vsub.f32 1.5, %v660
        %v662 = vmul.f32 %v657, %v661
        %vm663 = vweird.f32 %v656
        %vm664 = vweird.f32 %v657
        %vm665 = vmor %vm663, %vm664
        %v666 = vsel %vm665, %v657, %v662
        %v667 = vmul.f32 %v592, %v666
        %v668 = vmul.f32 %v593, %v666
        %v669 = vmul.f32 %v594, %v666
        %v670 = vmul.f32 %v595, %v666
        %v671 = vmul.f32 %v596, %v666
        %v672 = vmul.f32 %v597, %v666
        %v673 = vmul.f32 %v598, %v666
        %v674 = vmul.f32 %v599, %v666
        %v675 = vmul.f32 %v600, %v666
        %v676 = vmul.f32 %v601, %v666
        %v677 = vmul.f32 %v602, %v666
        %v678 = vmul.f32 %v603, %v666
        %v679 = vmul.f32 %v604, %v666
        %v680 = vmul.f32 %v605, %v666
        %v681 = vmul.f32 %v606, %v666
        %v682 = vmul.f32 %v607, %v666
        %v683 = vmul.f32 %v608, %v666
        %v684 = vmul.f32 %v609, %v666
        %v685 = vmul.f32 %v610, %v666
        %v686 = vmul.f32 %v611, %v666
        %v687 = vmul.f32 %v612, %v666
        %v688 = vmul.f32 %v613, %v666
        %v689 = vmul.f32 %v614, %v666
        %v690 = vmul.f32 %v615, %v666
        %v691 = vmul.f32 %v616, %v666
        %v692 = vmul.f32 %v617, %v666
        %v693 = vmul.f32 %v618, %v666
        %v694 = vmul.f32 %v619, %v666
        %v695 = vmul.f32 %v620, %v666
        %v696 = vmul.f32 %v621, %v666
        %v697 = vmul.f32 %v622, %v666
        %v698 = vmul.f32 %v623, %v666
        %v699 = vmul.f32 %v624, %v666
        %v700 = vmul.f32 %v625, %v666
        %v701 = vmul.f32 %v626, %v666
        %v702 = vmul.f32 %v627, %v666
        %v703 = vmul.f32 %v628, %v666
        %v704 = vmul.f32 %v629, %v666
        %v705 = vmul.f32 %v630, %v666
        %v706 = vmul.f32 %v631, %v666
        %v707 = vmul.f32 %v632, %v666
        %v708 = vmul.f32 %v633, %v666
        %v709 = vmul.f32 %v634, %v666
        %v710 = vmul.f32 %v635, %v666
        %v711 = vmul.f32 %v636, %v666
        %v712 = vmul.f32 %v637, %v666
        %v713 = vmul.f32 %v638, %v666
        %v714 = vmul.f32 %v639, %v666
        %v715 = vmul.f32 %v640, %v666
        %v716 = vmul.f32 %v641, %v666
        %v717 = vmul.f32 %v642, %v666
        %v718 = vmul.f32 %v643, %v666
        %v719 = vmul.f32 %v644, %v666
        %v720 = vmul.f32 %v645, %v666
        %v721 = vmul.f32 %v646, %v666
        %v722 = vmul.f32 %v647, %v666
        %v723 = vmul.f32 %v648, %v666
        %v724 = vmul.f32 %v649, %v666
        %v725 = vmul.f32 %v650, %v666
        %v726 = vmul.f32 %v651, %v666
        %v727 = vmul.f32 %v652, %v666
        %v728 = vmul.f32 %v653, %v666
        %v729 = vmul.f32 %v654, %v666
        %v730 = vmul.f32 %v655, %v666
        %v731 = vld [vmem:[%s1] sm:$0xff]
        %v732 = vld [vmem:[%s1 + $0x8] sm:$0xff]
        %v733 = vld [vmem:[%s1 + $0x10] sm:$0xff]
        %v734 = vld [vmem:[%s1 + $0x18] sm:$0xff]
        %v735 = vld [vmem:[%s1 + $0x20] sm:$0xff]
        %v736 = vld [vmem:[%s1 + $0x28] sm:$0xff]
        %v737 = vld [vmem:[%s1 + $0x30] sm:$0xff]
        %v738 = vld [vmem:[%s1 + $0x38] sm:$0xff]
        %v739 = vld [vmem:[%s1 + $0x40] sm:$0xff]
        %v740 = vld [vmem:[%s1 + $0x48] sm:$0xff]
        %v741 = vld [vmem:[%s1 + $0x50] sm:$0xff]
        %v742 = vld [vmem:[%s1 + $0x58] sm:$0xff]
        %v743 = vld [vmem:[%s1 + $0x60] sm:$0xff]
        %v744 = vld [vmem:[%s1 + $0x68] sm:$0xff]
        %v745 = vld [vmem:[%s1 + $0x70] sm:$0xff]
        %v746 = vld [vmem:[%s1 + $0x78] sm:$0xff]
        %v747 = vld [vmem:[%s1 + $0x80] sm:$0xff]
        %749 = vset.pattern.permute.xlu0 0
        %750 = vperm.xlu0 %749, %v336
        %v751 = vpop.permute.xlu0 %750
        %754 = vset.pattern.permute.xlu0 0
        %755 = vperm.xlu0 %754, %v337
        %v756 = vpop.permute.xlu0 %755
        %759 = vset.pattern.permute.xlu0 0
        %760 = vperm.xlu0 %759, %v338
        %v761 = vpop.permute.xlu0 %760
        %764 = vset.pattern.permute.xlu0 0
        %765 = vperm.xlu0 %764, %v339
        %v766 = vpop.permute.xlu0 %765
        %769 = vset.pattern.permute.xlu0 0
        %770 = vperm.xlu0 %769, %v340
        %v771 = vpop.permute.xlu0 %770
        %774 = vset.pattern.permute.xlu0 0
        %775 = vperm.xlu0 %774, %v341
        %v776 = vpop.permute.xlu0 %775
        %779 = vset.pattern.permute.xlu0 0
        %780 = vperm.xlu0 %779, %v342
        %v781 = vpop.permute.xlu0 %780
        %784 = vset.pattern.permute.xlu0 0
        %785 = vperm.xlu0 %784, %v343
        %v786 = vpop.permute.xlu0 %785
        %789 = vset.pattern.permute.xlu0 0
        %790 = vperm.xlu0 %789, %v344
        %v791 = vpop.permute.xlu0 %790
        %794 = vset.pattern.permute.xlu0 0
        %795 = vperm.xlu0 %794, %v345
        %v796 = vpop.permute.xlu0 %795
        %799 = vset.pattern.permute.xlu0 0
        %800 = vperm.xlu0 %799, %v346
        %v801 = vpop.permute.xlu0 %800
        %804 = vset.pattern.permute.xlu0 0
        %805 = vperm.xlu0 %804, %v347
        %v806 = vpop.permute.xlu0 %805
        %809 = vset.pattern.permute.xlu0 0
        %810 = vperm.xlu0 %809, %v348
        %v811 = vpop.permute.xlu0 %810
        %814 = vset.pattern.permute.xlu0 0
        %815 = vperm.xlu0 %814, %v349
        %v816 = vpop.permute.xlu0 %815
        %819 = vset.pattern.permute.xlu0 0
        %820 = vperm.xlu0 %819, %v350
        %v821 = vpop.permute.xlu0 %820
        %824 = vset.pattern.permute.xlu0 0
        %825 = vperm.xlu0 %824, %v351
        %v826 = vpop.permute.xlu0 %825
        %829 = vset.pattern.permute.xlu0 0
        %830 = vperm.xlu0 %829, %v352
        %v831 = vpop.permute.xlu0 %830
        %vm833 = vcmask 523264
        %v835 = vsel %vm833, %v731, 0
        %v838 = vsel %vm833, %v732, 0
        %v841 = vsel %vm833, %v733, 0
        %v844 = vsel %vm833, %v734, 0
        %v847 = vsel %vm833, %v735, 0
        %v850 = vsel %vm833, %v736, 0
        %v853 = vsel %vm833, %v737, 0
        %v856 = vsel %vm833, %v738, 0
        %v859 = vsel %vm833, %v739, 0
        %v862 = vsel %vm833, %v740, 0
        %v865 = vsel %vm833, %v741, 0
        %v868 = vsel %vm833, %v742, 0
        %v871 = vsel %vm833, %v743, 0
        %v874 = vsel %vm833, %v744, 0
        %v877 = vsel %vm833, %v745, 0
        %v880 = vsel %vm833, %v746, 0
        %v883 = vsel %vm833, %v747, 0
        %885 = vmatpush.msra.mxu0 0.0
        %886 = vmatpush.msra.mxu0 0.0
        %887 = vmatpush.msra.mxu0 0.0
        %888 = vmatpush.msra.mxu0 0.0
        %889 = vmatpush.msra.mxu0 0.0
        %890 = vmatpush.msra.mxu0 0.0
        %891 = vmatpush.msra.mxu0 0.0
        %892 = vmatpush.msra.mxu0 0.0
        %893 = vmatpush.msra.mxu0 %v723
        %894 = vmatpush.msra.mxu0 %v715
        %895 = vmatpush.msra.mxu0 %v707
        %896 = vmatpush.msra.mxu0 %v699
        %897 = vmatpush.msra.mxu0 %v691
        %898 = vmatpush.msra.mxu0 %v683
        %899 = vmatpush.msra.mxu0 %v675
        %900 = vmatpush.msra.mxu0 %v667
        %901 = vmatmul.f32.gmra.mxu0 %v835
        %v902 = vpop.f32.mrf.mxu0
        %v903 = vadd.f32 %v751, %v902
        %904 = vmatmul.f32.gmra.mxu0 %v838
        %v905 = vpop.f32.mrf.mxu0
        %v906 = vadd.f32 %v756, %v905
        %907 = vmatmul.f32.gmra.mxu0 %v841
        %v908 = vpop.f32.mrf.mxu0
        %v909 = vadd.f32 %v761, %v908
        %910 = vmatmul.f32.gmra.mxu0 %v844
        %v911 = vpop.f32.mrf.mxu0
        %v912 = vadd.f32 %v766, %v911
        %913 = vmatmul.f32.gmra.mxu0 %v847
        %v914 = vpop.f32.mrf.mxu0
        %v915 = vadd.f32 %v771, %v914
        %916 = vmatmul.f32.gmra.mxu0 %v850
        %v917 = vpop.f32.mrf.mxu0
        %v918 = vadd.f32 %v776, %v917
        %919 = vmatmul.f32.gmra.mxu0 %v853
        %v920 = vpop.f32.mrf.mxu0
        %v921 = vadd.f32 %v781, %v920
        %922 = vmatmul.f32.gmra.mxu0 %v856
        %v923 = vpop.f32.mrf.mxu0
        %v924 = vadd.f32 %v786, %v923
        %925 = vmatmul.f32.gmra.mxu0 %v859
        %v926 = vpop.f32.mrf.mxu0
        %v927 = vadd.f32 %v791, %v926
        %928 = vmatmul.f32.gmra.mxu0 %v862
        %v929 = vpop.f32.mrf.mxu0
        %v930 = vadd.f32 %v796, %v929
        %931 = vmatmul.f32.gmra.mxu0 %v865
        %v932 = vpop.f32.mrf.mxu0
        %v933 = vadd.f32 %v801, %v932
        %934 = vmatmul.f32.gmra.mxu0 %v868
        %v935 = vpop.f32.mrf.mxu0
        %v936 = vadd.f32 %v806, %v935
        %937 = vmatmul.f32.gmra.mxu0 %v871
        %v938 = vpop.f32.mrf.mxu0
        %v939 = vadd.f32 %v811, %v938
        %940 = vmatmul.f32.gmra.mxu0 %v874
        %v941 = vpop.f32.mrf.mxu0
        %v942 = vadd.f32 %v816, %v941
        %943 = vmatmul.f32.gmra.mxu0 %v877
        %v944 = vpop.f32.mrf.mxu0
        %v945 = vadd.f32 %v821, %v944
        %946 = vmatmul.f32.gmra.mxu0 %v880
        %v947 = vpop.f32.mrf.mxu0
        %v948 = vadd.f32 %v826, %v947
        %949 = vmatmul.f32.gmra.mxu0 %v883
        %v950 = vpop.f32.mrf.mxu0
        %v951 = vadd.f32 %v831, %v950
        %952 = vdwg.mxu0
        %953 = vmatpush.msra.mxu0 0.0
        %954 = vmatpush.msra.mxu0 0.0
        %955 = vmatpush.msra.mxu0 0.0
        %956 = vmatpush.msra.mxu0 0.0
        %957 = vmatpush.msra.mxu0 0.0
        %958 = vmatpush.msra.mxu0 0.0
        %959 = vmatpush.msra.mxu0 0.0
        %960 = vmatpush.msra.mxu0 0.0
        %961 = vmatpush.msra.mxu0 %v724
        %962 = vmatpush.msra.mxu0 %v716
        %963 = vmatpush.msra.mxu0 %v708
        %964 = vmatpush.msra.mxu0 %v700
        %965 = vmatpush.msra.mxu0 %v692
        %966 = vmatpush.msra.mxu0 %v684
        %967 = vmatpush.msra.mxu0 %v676
        %968 = vmatpush.msra.mxu0 %v668
        %969 = vmatmul.f32.gmra.mxu0 %v835
        %v970 = vpop.f32.mrf.mxu0
        %v971 = vadd.f32 %v751, %v970
        %972 = vmatmul.f32.gmra.mxu0 %v838
        %v973 = vpop.f32.mrf.mxu0
        %v974 = vadd.f32 %v756, %v973
        %975 = vmatmul.f32.gmra.mxu0 %v841
        %v976 = vpop.f32.mrf.mxu0
        %v977 = vadd.f32 %v761, %v976
        %978 = vmatmul.f32.gmra.mxu0 %v844
        %v979 = vpop.f32.mrf.mxu0
        %v980 = vadd.f32 %v766, %v979
        %981 = vmatmul.f32.gmra.mxu0 %v847
        %v982 = vpop.f32.mrf.mxu0
        %v983 = vadd.f32 %v771, %v982
        %984 = vmatmul.f32.gmra.mxu0 %v850
        %v985 = vpop.f32.mrf.mxu0
        %v986 = vadd.f32 %v776, %v985
        %987 = vmatmul.f32.gmra.mxu0 %v853
        %v988 = vpop.f32.mrf.mxu0
        %v989 = vadd.f32 %v781, %v988
        %990 = vmatmul.f32.gmra.mxu0 %v856
        %v991 = vpop.f32.mrf.mxu0
        %v992 = vadd.f32 %v786, %v991
        %993 = vmatmul.f32.gmra.mxu0 %v859
        %v994 = vpop.f32.mrf.mxu0
        %v995 = vadd.f32 %v791, %v994
        %996 = vmatmul.f32.gmra.mxu0 %v862
        %v997 = vpop.f32.mrf.mxu0
        %v998 = vadd.f32 %v796, %v997
        %999 = vmatmul.f32.gmra.mxu0 %v865
        %v1000 = vpop.f32.mrf.mxu0
        %v1001 = vadd.f32 %v801, %v1000
        %1002 = vmatmul.f32.gmra.mxu0 %v868
        %v1003 = vpop.f32.mrf.mxu0
        %v1004 = vadd.f32 %v806, %v1003
        %1005 = vmatmul.f32.gmra.mxu0 %v871
        %v1006 = vpop.f32.mrf.mxu0
        %v1007 = vadd.f32 %v811, %v1006
        %1008 = vmatmul.f32.gmra.mxu0 %v874
        %v1009 = vpop.f32.mrf.mxu0
        %v1010 = vadd.f32 %v816, %v1009
        %1011 = vmatmul.f32.gmra.mxu0 %v877
        %v1012 = vpop.f32.mrf.mxu0
        %v1013 = vadd.f32 %v821, %v1012
        %1014 = vmatmul.f32.gmra.mxu0 %v880
        %v1015 = vpop.f32.mrf.mxu0
        %v1016 = vadd.f32 %v826, %v1015
        %1017 = vmatmul.f32.gmra.mxu0 %v883
        %v1018 = vpop.f32.mrf.mxu0
        %v1019 = vadd.f32 %v831, %v1018
        %1020 = vdwg.mxu0
        %1021 = vmatpush.msra.mxu0 0.0
        %1022 = vmatpush.msra.mxu0 0.0
        %1023 = vmatpush.msra.mxu0 0.0
        %1024 = vmatpush.msra.mxu0 0.0
        %1025 = vmatpush.msra.mxu0 0.0
        %1026 = vmatpush.msra.mxu0 0.0
        %1027 = vmatpush.msra.mxu0 0.0
        %1028 = vmatpush.msra.mxu0 0.0
        %1029 = vmatpush.msra.mxu0 %v725
        %1030 = vmatpush.msra.mxu0 %v717
        %1031 = vmatpush.msra.mxu0 %v709
        %1032 = vmatpush.msra.mxu0 %v701
        %1033 = vmatpush.msra.mxu0 %v693
        %1034 = vmatpush.msra.mxu0 %v685
        %1035 = vmatpush.msra.mxu0 %v677
        %1036 = vmatpush.msra.mxu0 %v669
        %1037 = vmatmul.f32.gmra.mxu0 %v835
        %v1038 = vpop.f32.mrf.mxu0
        %v1039 = vadd.f32 %v751, %v1038
        %1040 = vmatmul.f32.gmra.mxu0 %v838
        %v1041 = vpop.f32.mrf.mxu0
        %v1042 = vadd.f32 %v756, %v1041
        %1043 = vmatmul.f32.gmra.mxu0 %v841
        %v1044 = vpop.f32.mrf.mxu0
        %v1045 = vadd.f32 %v761, %v1044
        %1046 = vmatmul.f32.gmra.mxu0 %v844
        %v1047 = vpop.f32.mrf.mxu0
        %v1048 = vadd.f32 %v766, %v1047
        %1049 = vmatmul.f32.gmra.mxu0 %v847
        %v1050 = vpop.f32.mrf.mxu0
        %v1051 = vadd.f32 %v771, %v1050
        %1052 = vmatmul.f32.gmra.mxu0 %v850
        %v1053 = vpop.f32.mrf.mxu0
        %v1054 = vadd.f32 %v776, %v1053
        %1055 = vmatmul.f32.gmra.mxu0 %v853
        %v1056 = vpop.f32.mrf.mxu0
        %v1057 = vadd.f32 %v781, %v1056
        %1058 = vmatmul.f32.gmra.mxu0 %v856
        %v1059 = vpop.f32.mrf.mxu0
        %v1060 = vadd.f32 %v786, %v1059
        %1061 = vmatmul.f32.gmra.mxu0 %v859
        %v1062 = vpop.f32.mrf.mxu0
        %v1063 = vadd.f32 %v791, %v1062
        %1064 = vmatmul.f32.gmra.mxu0 %v862
        %v1065 = vpop.f32.mrf.mxu0
        %v1066 = vadd.f32 %v796, %v1065
        %1067 = vmatmul.f32.gmra.mxu0 %v865
        %v1068 = vpop.f32.mrf.mxu0
        %v1069 = vadd.f32 %v801, %v1068
        %1070 = vmatmul.f32.gmra.mxu0 %v868
        %v1071 = vpop.f32.mrf.mxu0
        %v1072 = vadd.f32 %v806, %v1071
        %1073 = vmatmul.f32.gmra.mxu0 %v871
        %v1074 = vpop.f32.mrf.mxu0
        %v1075 = vadd.f32 %v811, %v1074
        %1076 = vmatmul.f32.gmra.mxu0 %v874
        %v1077 = vpop.f32.mrf.mxu0
        %v1078 = vadd.f32 %v816, %v1077
        %1079 = vmatmul.f32.gmra.mxu0 %v877
        %v1080 = vpop.f32.mrf.mxu0
        %v1081 = vadd.f32 %v821, %v1080
        %1082 = vmatmul.f32.gmra.mxu0 %v880
        %v1083 = vpop.f32.mrf.mxu0
        %v1084 = vadd.f32 %v826, %v1083
        %1085 = vmatmul.f32.gmra.mxu0 %v883
        %v1086 = vpop.f32.mrf.mxu0
        %v1087 = vadd.f32 %v831, %v1086
        %1088 = vdwg.mxu0
        %1089 = vmatpush.msra.mxu0 0.0
        %1090 = vmatpush.msra.mxu0 0.0
        %1091 = vmatpush.msra.mxu0 0.0
        %1092 = vmatpush.msra.mxu0 0.0
        %1093 = vmatpush.msra.mxu0 0.0
        %1094 = vmatpush.msra.mxu0 0.0
        %1095 = vmatpush.msra.mxu0 0.0
        %1096 = vmatpush.msra.mxu0 0.0
        %1097 = vmatpush.msra.mxu0 %v726
        %1098 = vmatpush.msra.mxu0 %v718
        %1099 = vmatpush.msra.mxu0 %v710
        %1100 = vmatpush.msra.mxu0 %v702
        %1101 = vmatpush.msra.mxu0 %v694
        %1102 = vmatpush.msra.mxu0 %v686
        %1103 = vmatpush.msra.mxu0 %v678
        %1104 = vmatpush.msra.mxu0 %v670
        %1105 = vmatmul.f32.gmra.mxu0 %v835
        %v1106 = vpop.f32.mrf.mxu0
        %v1107 = vadd.f32 %v751, %v1106
        %1108 = vmatmul.f32.gmra.mxu0 %v838
        %v1109 = vpop.f32.mrf.mxu0
        %v1110 = vadd.f32 %v756, %v1109
        %1111 = vmatmul.f32.gmra.mxu0 %v841
        %v1112 = vpop.f32.mrf.mxu0
        %v1113 = vadd.f32 %v761, %v1112
        %1114 = vmatmul.f32.gmra.mxu0 %v844
        %v1115 = vpop.f32.mrf.mxu0
        %v1116 = vadd.f32 %v766, %v1115
        %1117 = vmatmul.f32.gmra.mxu0 %v847
        %v1118 = vpop.f32.mrf.mxu0
        %v1119 = vadd.f32 %v771, %v1118
        %1120 = vmatmul.f32.gmra.mxu0 %v850
        %v1121 = vpop.f32.mrf.mxu0
        %v1122 = vadd.f32 %v776, %v1121
        %1123 = vmatmul.f32.gmra.mxu0 %v853
        %v1124 = vpop.f32.mrf.mxu0
        %v1125 = vadd.f32 %v781, %v1124
        %1126 = vmatmul.f32.gmra.mxu0 %v856
        %v1127 = vpop.f32.mrf.mxu0
        %v1128 = vadd.f32 %v786, %v1127
        %1129 = vmatmul.f32.gmra.mxu0 %v859
        %v1130 = vpop.f32.mrf.mxu0
        %v1131 = vadd.f32 %v791, %v1130
        %1132 = vmatmul.f32.gmra.mxu0 %v862
        %v1133 = vpop.f32.mrf.mxu0
        %v1134 = vadd.f32 %v796, %v1133
        %1135 = vmatmul.f32.gmra.mxu0 %v865
        %v1136 = vpop.f32.mrf.mxu0
        %v1137 = vadd.f32 %v801, %v1136
        %1138 = vmatmul.f32.gmra.mxu0 %v868
        %v1139 = vpop.f32.mrf.mxu0
        %v1140 = vadd.f32 %v806, %v1139
        %1141 = vmatmul.f32.gmra.mxu0 %v871
        %v1142 = vpop.f32.mrf.mxu0
        %v1143 = vadd.f32 %v811, %v1142
        %1144 = vmatmul.f32.gmra.mxu0 %v874
        %v1145 = vpop.f32.mrf.mxu0
        %v1146 = vadd.f32 %v816, %v1145
        %1147 = vmatmul.f32.gmra.mxu0 %v877
        %v1148 = vpop.f32.mrf.mxu0
        %v1149 = vadd.f32 %v821, %v1148
        %1150 = vmatmul.f32.gmra.mxu0 %v880
        %v1151 = vpop.f32.mrf.mxu0
        %v1152 = vadd.f32 %v826, %v1151
        %1153 = vmatmul.f32.gmra.mxu0 %v883
        %v1154 = vpop.f32.mrf.mxu0
        %v1155 = vadd.f32 %v831, %v1154
        %1156 = vdwg.mxu0
        %1157 = vmatpush.msra.mxu0 0.0
        %1158 = vmatpush.msra.mxu0 0.0
        %1159 = vmatpush.msra.mxu0 0.0
        %1160 = vmatpush.msra.mxu0 0.0
        %1161 = vmatpush.msra.mxu0 0.0
        %1162 = vmatpush.msra.mxu0 0.0
        %1163 = vmatpush.msra.mxu0 0.0
        %1164 = vmatpush.msra.mxu0 0.0
        %1165 = vmatpush.msra.mxu0 %v727
        %1166 = vmatpush.msra.mxu0 %v719
        %1167 = vmatpush.msra.mxu0 %v711
        %1168 = vmatpush.msra.mxu0 %v703
        %1169 = vmatpush.msra.mxu0 %v695
        %1170 = vmatpush.msra.mxu0 %v687
        %1171 = vmatpush.msra.mxu0 %v679
        %1172 = vmatpush.msra.mxu0 %v671
        %1173 = vmatmul.f32.gmra.mxu0 %v835
        %v1174 = vpop.f32.mrf.mxu0
        %v1175 = vadd.f32 %v751, %v1174
        %1176 = vmatmul.f32.gmra.mxu0 %v838
        %v1177 = vpop.f32.mrf.mxu0
        %v1178 = vadd.f32 %v756, %v1177
        %1179 = vmatmul.f32.gmra.mxu0 %v841
        %v1180 = vpop.f32.mrf.mxu0
        %v1181 = vadd.f32 %v761, %v1180
        %1182 = vmatmul.f32.gmra.mxu0 %v844
        %v1183 = vpop.f32.mrf.mxu0
        %v1184 = vadd.f32 %v766, %v1183
        %1185 = vmatmul.f32.gmra.mxu0 %v847
        %v1186 = vpop.f32.mrf.mxu0
        %v1187 = vadd.f32 %v771, %v1186
        %1188 = vmatmul.f32.gmra.mxu0 %v850
        %v1189 = vpop.f32.mrf.mxu0
        %v1190 = vadd.f32 %v776, %v1189
        %1191 = vmatmul.f32.gmra.mxu0 %v853
        %v1192 = vpop.f32.mrf.mxu0
        %v1193 = vadd.f32 %v781, %v1192
        %1194 = vmatmul.f32.gmra.mxu0 %v856
        %v1195 = vpop.f32.mrf.mxu0
        %v1196 = vadd.f32 %v786, %v1195
        %1197 = vmatmul.f32.gmra.mxu0 %v859
        %v1198 = vpop.f32.mrf.mxu0
        %v1199 = vadd.f32 %v791, %v1198
        %1200 = vmatmul.f32.gmra.mxu0 %v862
        %v1201 = vpop.f32.mrf.mxu0
        %v1202 = vadd.f32 %v796, %v1201
        %1203 = vmatmul.f32.gmra.mxu0 %v865
        %v1204 = vpop.f32.mrf.mxu0
        %v1205 = vadd.f32 %v801, %v1204
        %1206 = vmatmul.f32.gmra.mxu0 %v868
        %v1207 = vpop.f32.mrf.mxu0
        %v1208 = vadd.f32 %v806, %v1207
        %1209 = vmatmul.f32.gmra.mxu0 %v871
        %v1210 = vpop.f32.mrf.mxu0
        %v1211 = vadd.f32 %v811, %v1210
        %1212 = vmatmul.f32.gmra.mxu0 %v874
        %v1213 = vpop.f32.mrf.mxu0
        %v1214 = vadd.f32 %v816, %v1213
        %1215 = vmatmul.f32.gmra.mxu0 %v877
        %v1216 = vpop.f32.mrf.mxu0
        %v1217 = vadd.f32 %v821, %v1216
        %1218 = vmatmul.f32.gmra.mxu0 %v880
        %v1219 = vpop.f32.mrf.mxu0
        %v1220 = vadd.f32 %v826, %v1219
        %1221 = vmatmul.f32.gmra.mxu0 %v883
        %v1222 = vpop.f32.mrf.mxu0
        %v1223 = vadd.f32 %v831, %v1222
        %1224 = vdwg.mxu0
        %1225 = vmatpush.msra.mxu0 0.0
        %1226 = vmatpush.msra.mxu0 0.0
        %1227 = vmatpush.msra.mxu0 0.0
        %1228 = vmatpush.msra.mxu0 0.0
        %1229 = vmatpush.msra.mxu0 0.0
        %1230 = vmatpush.msra.mxu0 0.0
        %1231 = vmatpush.msra.mxu0 0.0
        %1232 = vmatpush.msra.mxu0 0.0
        %1233 = vmatpush.msra.mxu0 %v728
        %1234 = vmatpush.msra.mxu0 %v720
        %1235 = vmatpush.msra.mxu0 %v712
        %1236 = vmatpush.msra.mxu0 %v704
        %1237 = vmatpush.msra.mxu0 %v696
        %1238 = vmatpush.msra.mxu0 %v688
        %1239 = vmatpush.msra.mxu0 %v680
        %1240 = vmatpush.msra.mxu0 %v672
        %1241 = vmatmul.f32.gmra.mxu0 %v835
        %v1242 = vpop.f32.mrf.mxu0
        %v1243 = vadd.f32 %v751, %v1242
        %1244 = vmatmul.f32.gmra.mxu0 %v838
        %v1245 = vpop.f32.mrf.mxu0
        %v1246 = vadd.f32 %v756, %v1245
        %1247 = vmatmul.f32.gmra.mxu0 %v841
        %v1248 = vpop.f32.mrf.mxu0
        %v1249 = vadd.f32 %v761, %v1248
        %1250 = vmatmul.f32.gmra.mxu0 %v844
        %v1251 = vpop.f32.mrf.mxu0
        %v1252 = vadd.f32 %v766, %v1251
        %1253 = vmatmul.f32.gmra.mxu0 %v847
        %v1254 = vpop.f32.mrf.mxu0
        %v1255 = vadd.f32 %v771, %v1254
        %1256 = vmatmul.f32.gmra.mxu0 %v850
        %v1257 = vpop.f32.mrf.mxu0
        %v1258 = vadd.f32 %v776, %v1257
        %1259 = vmatmul.f32.gmra.mxu0 %v853
        %v1260 = vpop.f32.mrf.mxu0
        %v1261 = vadd.f32 %v781, %v1260
        %1262 = vmatmul.f32.gmra.mxu0 %v856
        %v1263 = vpop.f32.mrf.mxu0
        %v1264 = vadd.f32 %v786, %v1263
        %1265 = vmatmul.f32.gmra.mxu0 %v859
        %v1266 = vpop.f32.mrf.mxu0
        %v1267 = vadd.f32 %v791, %v1266
        %1268 = vmatmul.f32.gmra.mxu0 %v862
        %v1269 = vpop.f32.mrf.mxu0
        %v1270 = vadd.f32 %v796, %v1269
        %1271 = vmatmul.f32.gmra.mxu0 %v865
        %v1272 = vpop.f32.mrf.mxu0
        %v1273 = vadd.f32 %v801, %v1272
        %1274 = vmatmul.f32.gmra.mxu0 %v868
        %v1275 = vpop.f32.mrf.mxu0
        %v1276 = vadd.f32 %v806, %v1275
        %1277 = vmatmul.f32.gmra.mxu0 %v871
        %v1278 = vpop.f32.mrf.mxu0
        %v1279 = vadd.f32 %v811, %v1278
        %1280 = vmatmul.f32.gmra.mxu0 %v874
        %v1281 = vpop.f32.mrf.mxu0
        %v1282 = vadd.f32 %v816, %v1281
        %1283 = vmatmul.f32.gmra.mxu0 %v877
        %v1284 = vpop.f32.mrf.mxu0
        %v1285 = vadd.f32 %v821, %v1284
        %1286 = vmatmul.f32.gmra.mxu0 %v880
        %v1287 = vpop.f32.mrf.mxu0
        %v1288 = vadd.f32 %v826, %v1287
        %1289 = vmatmul.f32.gmra.mxu0 %v883
        %v1290 = vpop.f32.mrf.mxu0
        %v1291 = vadd.f32 %v831, %v1290
        %1292 = vdwg.mxu0
        %1293 = vmatpush.msra.mxu0 0.0
        %1294 = vmatpush.msra.mxu0 0.0
        %1295 = vmatpush.msra.mxu0 0.0
        %1296 = vmatpush.msra.mxu0 0.0
        %1297 = vmatpush.msra.mxu0 0.0
        %1298 = vmatpush.msra.mxu0 0.0
        %1299 = vmatpush.msra.mxu0 0.0
        %1300 = vmatpush.msra.mxu0 0.0
        %1301 = vmatpush.msra.mxu0 %v729
        %1302 = vmatpush.msra.mxu0 %v721
        %1303 = vmatpush.msra.mxu0 %v713
        %1304 = vmatpush.msra.mxu0 %v705
        %1305 = vmatpush.msra.mxu0 %v697
        %1306 = vmatpush.msra.mxu0 %v689
        %1307 = vmatpush.msra.mxu0 %v681
        %1308 = vmatpush.msra.mxu0 %v673
        %1309 = vmatmul.f32.gmra.mxu0 %v835
        %v1310 = vpop.f32.mrf.mxu0
        %v1311 = vadd.f32 %v751, %v1310
        %1312 = vmatmul.f32.gmra.mxu0 %v838
        %v1313 = vpop.f32.mrf.mxu0
        %v1314 = vadd.f32 %v756, %v1313
        %1315 = vmatmul.f32.gmra.mxu0 %v841
        %v1316 = vpop.f32.mrf.mxu0
        %v1317 = vadd.f32 %v761, %v1316
        %1318 = vmatmul.f32.gmra.mxu0 %v844
        %v1319 = vpop.f32.mrf.mxu0
        %v1320 = vadd.f32 %v766, %v1319
        %1321 = vmatmul.f32.gmra.mxu0 %v847
        %v1322 = vpop.f32.mrf.mxu0
        %v1323 = vadd.f32 %v771, %v1322
        %1324 = vmatmul.f32.gmra.mxu0 %v850
        %v1325 = vpop.f32.mrf.mxu0
        %v1326 = vadd.f32 %v776, %v1325
        %1327 = vmatmul.f32.gmra.mxu0 %v853
        %v1328 = vpop.f32.mrf.mxu0
        %v1329 = vadd.f32 %v781, %v1328
        %1330 = vmatmul.f32.gmra.mxu0 %v856
        %v1331 = vpop.f32.mrf.mxu0
        %v1332 = vadd.f32 %v786, %v1331
        %1333 = vmatmul.f32.gmra.mxu0 %v859
        %v1334 = vpop.f32.mrf.mxu0
        %v1335 = vadd.f32 %v791, %v1334
        %1336 = vmatmul.f32.gmra.mxu0 %v862
        %v1337 = vpop.f32.mrf.mxu0
        %v1338 = vadd.f32 %v796, %v1337
        %1339 = vmatmul.f32.gmra.mxu0 %v865
        %v1340 = vpop.f32.mrf.mxu0
        %v1341 = vadd.f32 %v801, %v1340
        %1342 = vmatmul.f32.gmra.mxu0 %v868
        %v1343 = vpop.f32.mrf.mxu0
        %v1344 = vadd.f32 %v806, %v1343
        %1345 = vmatmul.f32.gmra.mxu0 %v871
        %v1346 = vpop.f32.mrf.mxu0
        %v1347 = vadd.f32 %v811, %v1346
        %1348 = vmatmul.f32.gmra.mxu0 %v874
        %v1349 = vpop.f32.mrf.mxu0
        %v1350 = vadd.f32 %v816, %v1349
        %1351 = vmatmul.f32.gmra.mxu0 %v877
        %v1352 = vpop.f32.mrf.mxu0
        %v1353 = vadd.f32 %v821, %v1352
        %1354 = vmatmul.f32.gmra.mxu0 %v880
        %v1355 = vpop.f32.mrf.mxu0
        %v1356 = vadd.f32 %v826, %v1355
        %1357 = vmatmul.f32.gmra.mxu0 %v883
        %v1358 = vpop.f32.mrf.mxu0
        %v1359 = vadd.f32 %v831, %v1358
        %1360 = vdwg.mxu0
        %1361 = vmatpush.msra.mxu0 0.0
        %1362 = vmatpush.msra.mxu0 0.0
        %1363 = vmatpush.msra.mxu0 0.0
        %1364 = vmatpush.msra.mxu0 0.0
        %1365 = vmatpush.msra.mxu0 0.0
        %1366 = vmatpush.msra.mxu0 0.0
        %1367 = vmatpush.msra.mxu0 0.0
        %1368 = vmatpush.msra.mxu0 0.0
        %1369 = vmatpush.msra.mxu0 %v730
        %1370 = vmatpush.msra.mxu0 %v722
        %1371 = vmatpush.msra.mxu0 %v714
        %1372 = vmatpush.msra.mxu0 %v706
        %1373 = vmatpush.msra.mxu0 %v698
        %1374 = vmatpush.msra.mxu0 %v690
        %1375 = vmatpush.msra.mxu0 %v682
        %1376 = vmatpush.msra.mxu0 %v674
        %1377 = vmatmul.f32.gmra.mxu0 %v835
        %v1378 = vpop.f32.mrf.mxu0
        %v1379 = vadd.f32 %v751, %v1378
        %1380 = vmatmul.f32.gmra.mxu0 %v838
        %v1381 = vpop.f32.mrf.mxu0
        %v1382 = vadd.f32 %v756, %v1381
        %1383 = vmatmul.f32.gmra.mxu0 %v841
        %v1384 = vpop.f32.mrf.mxu0
        %v1385 = vadd.f32 %v761, %v1384
        %1386 = vmatmul.f32.gmra.mxu0 %v844
        %v1387 = vpop.f32.mrf.mxu0
        %v1388 = vadd.f32 %v766, %v1387
        %1389 = vmatmul.f32.gmra.mxu0 %v847
        %v1390 = vpop.f32.mrf.mxu0
        %v1391 = vadd.f32 %v771, %v1390
        %1392 = vmatmul.f32.gmra.mxu0 %v850
        %v1393 = vpop.f32.mrf.mxu0
        %v1394 = vadd.f32 %v776, %v1393
        %1395 = vmatmul.f32.gmra.mxu0 %v853
        %v1396 = vpop.f32.mrf.mxu0
        %v1397 = vadd.f32 %v781, %v1396
        %1398 = vmatmul.f32.gmra.mxu0 %v856
        %v1399 = vpop.f32.mrf.mxu0
        %v1400 = vadd.f32 %v786, %v1399
        %1401 = vmatmul.f32.gmra.mxu0 %v859
        %v1402 = vpop.f32.mrf.mxu0
        %v1403 = vadd.f32 %v791, %v1402
        %1404 = vmatmul.f32.gmra.mxu0 %v862
        %v1405 = vpop.f32.mrf.mxu0
        %v1406 = vadd.f32 %v796, %v1405
        %1407 = vmatmul.f32.gmra.mxu0 %v865
        %v1408 = vpop.f32.mrf.mxu0
        %v1409 = vadd.f32 %v801, %v1408
        %1410 = vmatmul.f32.gmra.mxu0 %v868
        %v1411 = vpop.f32.mrf.mxu0
        %v1412 = vadd.f32 %v806, %v1411
        %1413 = vmatmul.f32.gmra.mxu0 %v871
        %v1414 = vpop.f32.mrf.mxu0
        %v1415 = vadd.f32 %v811, %v1414
        %1416 = vmatmul.f32.gmra.mxu0 %v874
        %v1417 = vpop.f32.mrf.mxu0
        %v1418 = vadd.f32 %v816, %v1417
        %1419 = vmatmul.f32.gmra.mxu0 %v877
        %v1420 = vpop.f32.mrf.mxu0
        %v1421 = vadd.f32 %v821, %v1420
        %1422 = vmatmul.f32.gmra.mxu0 %v880
        %v1423 = vpop.f32.mrf.mxu0
        %v1424 = vadd.f32 %v826, %v1423
        %1425 = vmatmul.f32.gmra.mxu0 %v883
        %v1426 = vpop.f32.mrf.mxu0
        %v1427 = vadd.f32 %v831, %v1426
        %1428 = vdwg.mxu0
        %vm1429 = vcmask 1040384
        %v1430 = vsel %vm1429, %v951, -inf
        %v1431 = vsel %vm1429, %v1019, -inf
        %v1432 = vmax.f32 %v1430, %v1431
        %1433 = vmax.xlane.f32.xlu0 %v1432
        %v1434 = vpop.xlane.xlu0 %1433
        %v1435 = vsub.f32 %v951, %v1434
        %v1436 = vsub.f32 %v1019, %v1434
        %v1437 = vmul.f32 %v1435, 1.442695
        %v1438 = vpow.pop %v1437
        %v1439 = vmul.f32 %v1436, 1.442695
        %v1440 = vpow.pop %v1439
        %v1441 = vsel %vm1429, %v1438, 0.0
        %v1442 = vsel %vm1429, %v1440, 0.0
        %v1443 = vadd.f32 %v1441, %v1442
        %1444 = vadd.xlane.f32.xlu0 %v1443
        %v1445 = vpop.xlane.xlu0 %1444
        %v1446 = vrcp.pop %v1445
        %v1447 = vmul.f32 %v1445, %v1446
        %v1448 = vsub.f32 1.0, %v1447
        %v1449 = vmul.f32 %v1446, %v1448
        %v1450 = vadd.f32 %v1446, %v1449
        %vm1451 = vweird.f32 %v1445
        %vm1452 = vweird.f32 %v1446
        %vm1453 = vmor %vm1451, %vm1452
        %v1454 = vsel %vm1453, %v1446, %v1450
        %v1455 = vand.u32 2147483647, %v1445
        %vm1456 = vcmp.eq.f32.partialorder %v1455, 8.507059e+37
        %v1457 = vand.u32 %v1445, 2147483648
        %v1458 = vor.u32 1.1754944e-38, %v1457
        %v1459 = vsel %vm1456, %v1458, %v1454
        %v1460 = vmul.f32 %v1438, %v1459
        %v1461 = vmul.f32 %v1440, %v1459
        %v1462 = vperm.slane %v1460, 0
        %v1463 = vperm.slane %v1461, 0
        %v1464 = vmul.f32 %v903, %v1462
        %v1465 = vmul.f32 %v971, %v1463
        %v1466 = vmul.f32 %v906, %v1462
        %v1467 = vmul.f32 %v974, %v1463
        %v1468 = vmul.f32 %v909, %v1462
        %v1469 = vmul.f32 %v977, %v1463
        %v1470 = vmul.f32 %v912, %v1462
        %v1471 = vmul.f32 %v980, %v1463
        %v1472 = vmul.f32 %v915, %v1462
        %v1473 = vmul.f32 %v983, %v1463
        %v1474 = vmul.f32 %v918, %v1462
        %v1475 = vmul.f32 %v986, %v1463
        %v1476 = vmul.f32 %v921, %v1462
        %v1477 = vmul.f32 %v989, %v1463
        %v1478 = vmul.f32 %v924, %v1462
        %v1479 = vmul.f32 %v992, %v1463
        %v1480 = vadd.f32 %v1464, %v1465
        %1481 = vadd.xlane.f32.xlu0 %v1480
        %v1482 = vpop.xlane.xlu0 %1481
        %v1483 = vadd.f32 %v1466, %v1467
        %1484 = vadd.xlane.f32.xlu0 %v1483
        %v1485 = vpop.xlane.xlu0 %1484
        %v1486 = vadd.f32 %v1468, %v1469
        %1487 = vadd.xlane.f32.xlu0 %v1486
        %v1488 = vpop.xlane.xlu0 %1487
        %v1489 = vadd.f32 %v1470, %v1471
        %1490 = vadd.xlane.f32.xlu0 %v1489
        %v1491 = vpop.xlane.xlu0 %1490
        %v1492 = vadd.f32 %v1472, %v1473
        %1493 = vadd.xlane.f32.xlu0 %v1492
        %v1494 = vpop.xlane.xlu0 %1493
        %v1495 = vadd.f32 %v1474, %v1475
        %1496 = vadd.xlane.f32.xlu0 %v1495
        %v1497 = vpop.xlane.xlu0 %1496
        %v1498 = vadd.f32 %v1476, %v1477
        %1499 = vadd.xlane.f32.xlu0 %v1498
        %v1500 = vpop.xlane.xlu0 %1499
        %v1501 = vadd.f32 %v1478, %v1479
        %1502 = vadd.xlane.f32.xlu0 %v1501
        %v1503 = vpop.xlane.xlu0 %1502
        %v1504 = vmax.f32 %v927, 0.0
        %v1505 = vmax.f32 %v995, 0.0
        %v1506 = vmax.f32 %v930, 0.0
        %v1507 = vmax.f32 %v998, 0.0
        %v1508 = vmax.f32 %v933, 0.0
        %v1509 = vmax.f32 %v1001, 0.0
        %v1510 = vmax.f32 %v936, 0.0
        %v1511 = vmax.f32 %v1004, 0.0
        %v1512 = vmax.f32 %v939, 0.0
        %v1513 = vmax.f32 %v1007, 0.0
        %v1514 = vmax.f32 %v942, 0.0
        %v1515 = vmax.f32 %v1010, 0.0
        %v1516 = vmax.f32 %v945, 0.0
        %v1517 = vmax.f32 %v1013, 0.0
        %v1518 = vmax.f32 %v948, 0.0
        %v1519 = vmax.f32 %v1016, 0.0
        %v1520 = vmul.f32 %v1504, %v1482
        %v1521 = vmul.f32 %v1505, %v1482
        %v1522 = vmul.f32 %v1506, %v1485
        %v1523 = vmul.f32 %v1507, %v1485
        %v1524 = vmul.f32 %v1508, %v1488
        %v1525 = vmul.f32 %v1509, %v1488
        %v1526 = vmul.f32 %v1510, %v1491
        %v1527 = vmul.f32 %v1511, %v1491
        %v1528 = vmul.f32 %v1512, %v1494
        %v1529 = vmul.f32 %v1513, %v1494
        %v1530 = vmul.f32 %v1514, %v1497
        %v1531 = vmul.f32 %v1515, %v1497
        %v1532 = vmul.f32 %v1516, %v1500
        %v1533 = vmul.f32 %v1517, %v1500
        %v1534 = vmul.f32 %v1518, %v1503
        %v1535 = vmul.f32 %v1519, %v1503
        %1536 = vst [vmem:[#allocation2] sm:$0xff] %v1520
        %1537 = vst [vmem:[#allocation2 + $0x8] sm:$0xff] %v1521
        %1538 = vst [vmem:[#allocation2 + $0x40] sm:$0xff] %v1522
        %1539 = vst [vmem:[#allocation2 + $0x48] sm:$0xff] %v1523
        %1540 = vst [vmem:[#allocation2 + $0x80] sm:$0xff] %v1524
        %1541 = vst [vmem:[#allocation2 + $0x88] sm:$0xff] %v1525
        %1542 = vst [vmem:[#allocation2 + $0xc0] sm:$0xff] %v1526
        %1543 = vst [vmem:[#allocation2 + $0xc8] sm:$0xff] %v1527
        %1544 = vst [vmem:[#allocation2 + $0x100] sm:$0xff] %v1528
        %1545 = vst [vmem:[#allocation2 + $0x108] sm:$0xff] %v1529
        %1546 = vst [vmem:[#allocation2 + $0x140] sm:$0xff] %v1530
        %1547 = vst [vmem:[#allocation2 + $0x148] sm:$0xff] %v1531
        %1548 = vst [vmem:[#allocation2 + $0x180] sm:$0xff] %v1532
        %1549 = vst [vmem:[#allocation2 + $0x188] sm:$0xff] %v1533
        %1550 = vst [vmem:[#allocation2 + $0x1c0] sm:$0xff] %v1534
        %1551 = vst [vmem:[#allocation2 + $0x1c8] sm:$0xff] %v1535
        %v1552 = vsel %vm1429, %v1087, -inf
        %v1553 = vsel %vm1429, %v1155, -inf
        %v1554 = vmax.f32 %v1552, %v1553
        %1555 = vmax.xlane.f32.xlu0 %v1554
        %v1556 = vpop.xlane.xlu0 %1555
        %v1557 = vsub.f32 %v1087, %v1556
        %v1558 = vsub.f32 %v1155, %v1556
        %v1559 = vmul.f32 %v1557, 1.442695
        %v1560 = vpow.pop %v1559
        %v1561 = vmul.f32 %v1558, 1.442695
        %v1562 = vpow.pop %v1561
        %v1563 = vsel %vm1429, %v1560, 0.0
        %v1564 = vsel %vm1429, %v1562, 0.0
        %v1565 = vadd.f32 %v1563, %v1564
        %1566 = vadd.xlane.f32.xlu0 %v1565
        %v1567 = vpop.xlane.xlu0 %1566
        %v1568 = vrcp.pop %v1567
        %v1569 = vmul.f32 %v1567, %v1568
        %v1570 = vsub.f32 1.0, %v1569
        %v1571 = vmul.f32 %v1568, %v1570
        %v1572 = vadd.f32 %v1568, %v1571
        %vm1573 = vweird.f32 %v1567
        %vm1574 = vweird.f32 %v1568
        %vm1575 = vmor %vm1573, %vm1574
        %v1576 = vsel %vm1575, %v1568, %v1572
        %v1577 = vand.u32 2147483647, %v1567
        %vm1578 = vcmp.eq.f32.partialorder %v1577, 8.507059e+37
        %v1579 = vand.u32 %v1567, 2147483648
        %v1580 = vor.u32 1.1754944e-38, %v1579
        %v1581 = vsel %vm1578, %v1580, %v1576
        %v1582 = vmul.f32 %v1560, %v1581
        %v1583 = vmul.f32 %v1562, %v1581
        %v1584 = vperm.slane %v1582, 0
        %v1585 = vperm.slane %v1583, 0
        %v1586 = vmul.f32 %v1039, %v1584
        %v1587 = vmul.f32 %v1107, %v1585
        %v1588 = vmul.f32 %v1042, %v1584
        %v1589 = vmul.f32 %v1110, %v1585
        %v1590 = vmul.f32 %v1045, %v1584
        %v1591 = vmul.f32 %v1113, %v1585
        %v1592 = vmul.f32 %v1048, %v1584
        %v1593 = vmul.f32 %v1116, %v1585
        %v1594 = vmul.f32 %v1051, %v1584
        %v1595 = vmul.f32 %v1119, %v1585
        %v1596 = vmul.f32 %v1054, %v1584
        %v1597 = vmul.f32 %v1122, %v1585
        %v1598 = vmul.f32 %v1057, %v1584
        %v1599 = vmul.f32 %v1125, %v1585
        %v1600 = vmul.f32 %v1060, %v1584
        %v1601 = vmul.f32 %v1128, %v1585
        %v1602 = vadd.f32 %v1586, %v1587
        %1603 = vadd.xlane.f32.xlu0 %v1602
        %v1604 = vpop.xlane.xlu0 %1603
        %v1605 = vadd.f32 %v1588, %v1589
        %1606 = vadd.xlane.f32.xlu0 %v1605
        %v1607 = vpop.xlane.xlu0 %1606
        %v1608 = vadd.f32 %v1590, %v1591
        %1609 = vadd.xlane.f32.xlu0 %v1608
        %v1610 = vpop.xlane.xlu0 %1609
        %v1611 = vadd.f32 %v1592, %v1593
        %1612 = vadd.xlane.f32.xlu0 %v1611
        %v1613 = vpop.xlane.xlu0 %1612
        %v1614 = vadd.f32 %v1594, %v1595
        %1615 = vadd.xlane.f32.xlu0 %v1614
        %v1616 = vpop.xlane.xlu0 %1615
        %v1617 = vadd.f32 %v1596, %v1597
        %1618 = vadd.xlane.f32.xlu0 %v1617
        %v1619 = vpop.xlane.xlu0 %1618
        %v1620 = vadd.f32 %v1598, %v1599
        %1621 = vadd.xlane.f32.xlu0 %v1620
        %v1622 = vpop.xlane.xlu0 %1621
        %v1623 = vadd.f32 %v1600, %v1601
        %1624 = vadd.xlane.f32.xlu0 %v1623
        %v1625 = vpop.xlane.xlu0 %1624
        %v1626 = vmax.f32 %v1063, 0.0
        %v1627 = vmax.f32 %v1131, 0.0
        %v1628 = vmax.f32 %v1066, 0.0
        %v1629 = vmax.f32 %v1134, 0.0
        %v1630 = vmax.f32 %v1069, 0.0
        %v1631 = vmax.f32 %v1137, 0.0
        %v1632 = vmax.f32 %v1072, 0.0
        %v1633 = vmax.f32 %v1140, 0.0
        %v1634 = vmax.f32 %v1075, 0.0
        %v1635 = vmax.f32 %v1143, 0.0
        %v1636 = vmax.f32 %v1078, 0.0
        %v1637 = vmax.f32 %v1146, 0.0
        %v1638 = vmax.f32 %v1081, 0.0
        %v1639 = vmax.f32 %v1149, 0.0
        %v1640 = vmax.f32 %v1084, 0.0
        %v1641 = vmax.f32 %v1152, 0.0
        %v1642 = vmul.f32 %v1626, %v1604
        %v1643 = vmul.f32 %v1627, %v1604
        %v1644 = vmul.f32 %v1628, %v1607
        %v1645 = vmul.f32 %v1629, %v1607
        %v1646 = vmul.f32 %v1630, %v1610
        %v1647 = vmul.f32 %v1631, %v1610
        %v1648 = vmul.f32 %v1632, %v1613
        %v1649 = vmul.f32 %v1633, %v1613
        %v1650 = vmul.f32 %v1634, %v1616
        %v1651 = vmul.f32 %v1635, %v1616
        %v1652 = vmul.f32 %v1636, %v1619
        %v1653 = vmul.f32 %v1637, %v1619
        %v1654 = vmul.f32 %v1638, %v1622
        %v1655 = vmul.f32 %v1639, %v1622
        %v1656 = vmul.f32 %v1640, %v1625
        %v1657 = vmul.f32 %v1641, %v1625
        %1658 = vst [vmem:[#allocation2 + $0x10] sm:$0xff] %v1642
        %1659 = vst [vmem:[#allocation2 + $0x18] sm:$0xff] %v1643
        %1660 = vst [vmem:[#allocation2 + $0x50] sm:$0xff] %v1644
        %1661 = vst [vmem:[#allocation2 + $0x58] sm:$0xff] %v1645
        %1662 = vst [vmem:[#allocation2 + $0x90] sm:$0xff] %v1646
        %1663 = vst [vmem:[#allocation2 + $0x98] sm:$0xff] %v1647
        %1664 = vst [vmem:[#allocation2 + $0xd0] sm:$0xff] %v1648
        %1665 = vst [vmem:[#allocation2 + $0xd8] sm:$0xff] %v1649
        %1666 = vst [vmem:[#allocation2 + $0x110] sm:$0xff] %v1650
        %1667 = vst [vmem:[#allocation2 + $0x118] sm:$0xff] %v1651
        %1668 = vst [vmem:[#allocation2 + $0x150] sm:$0xff] %v1652
        %1669 = vst [vmem:[#allocation2 + $0x158] sm:$0xff] %v1653
        %1670 = vst [vmem:[#allocation2 + $0x190] sm:$0xff] %v1654
        %1671 = vst [vmem:[#allocation2 + $0x198] sm:$0xff] %v1655
        %1672 = vst [vmem:[#allocation2 + $0x1d0] sm:$0xff] %v1656
        %1673 = vst [vmem:[#allocation2 + $0x1d8] sm:$0xff] %v1657
        %v1674 = vsel %vm1429, %v1223, -inf
        %v1675 = vsel %vm1429, %v1291, -inf
        %v1676 = vmax.f32 %v1674, %v1675
        %1677 = vmax.xlane.f32.xlu0 %v1676
        %v1678 = vpop.xlane.xlu0 %1677
        %v1679 = vsub.f32 %v1223, %v1678
        %v1680 = vsub.f32 %v1291, %v1678
        %v1681 = vmul.f32 %v1679, 1.442695
        %v1682 = vpow.pop %v1681
        %v1683 = vmul.f32 %v1680, 1.442695
        %v1684 = vpow.pop %v1683
        %v1685 = vsel %vm1429, %v1682, 0.0
        %v1686 = vsel %vm1429, %v1684, 0.0
        %v1687 = vadd.f32 %v1685, %v1686
        %1688 = vadd.xlane.f32.xlu0 %v1687
        %v1689 = vpop.xlane.xlu0 %1688
        %v1690 = vrcp.pop %v1689
        %v1691 = vmul.f32 %v1689, %v1690
        %v1692 = vsub.f32 1.0, %v1691
        %v1693 = vmul.f32 %v1690, %v1692
        %v1694 = vadd.f32 %v1690, %v1693
        %vm1695 = vweird.f32 %v1689
        %vm1696 = vweird.f32 %v1690
        %vm1697 = vmor %vm1695, %vm1696
        %v1698 = vsel %vm1697, %v1690, %v1694
        %v1699 = vand.u32 2147483647, %v1689
        %vm1700 = vcmp.eq.f32.partialorder %v1699, 8.507059e+37
        %v1701 = vand.u32 %v1689, 2147483648
        %v1702 = vor.u32 1.1754944e-38, %v1701
        %v1703 = vsel %vm1700, %v1702, %v1698
        %v1704 = vmul.f32 %v1682, %v1703
        %v1705 = vmul.f32 %v1684, %v1703
        %v1706 = vperm.slane %v1704, 0
        %v1707 = vperm.slane %v1705, 0
        %v1708 = vmul.f32 %v1175, %v1706
        %v1709 = vmul.f32 %v1243, %v1707
        %v1710 = vmul.f32 %v1178, %v1706
        %v1711 = vmul.f32 %v1246, %v1707
        %v1712 = vmul.f32 %v1181, %v1706
        %v1713 = vmul.f32 %v1249, %v1707
        %v1714 = vmul.f32 %v1184, %v1706
        %v1715 = vmul.f32 %v1252, %v1707
        %v1716 = vmul.f32 %v1187, %v1706
        %v1717 = vmul.f32 %v1255, %v1707
        %v1718 = vmul.f32 %v1190, %v1706
        %v1719 = vmul.f32 %v1258, %v1707
        %v1720 = vmul.f32 %v1193, %v1706
        %v1721 = vmul.f32 %v1261, %v1707
        %v1722 = vmul.f32 %v1196, %v1706
        %v1723 = vmul.f32 %v1264, %v1707
        %v1724 = vadd.f32 %v1708, %v1709
        %1725 = vadd.xlane.f32.xlu0 %v1724
        %v1726 = vpop.xlane.xlu0 %1725
        %v1727 = vadd.f32 %v1710, %v1711
        %1728 = vadd.xlane.f32.xlu0 %v1727
        %v1729 = vpop.xlane.xlu0 %1728
        %v1730 = vadd.f32 %v1712, %v1713
        %1731 = vadd.xlane.f32.xlu0 %v1730
        %v1732 = vpop.xlane.xlu0 %1731
        %v1733 = vadd.f32 %v1714, %v1715
        %1734 = vadd.xlane.f32.xlu0 %v1733
        %v1735 = vpop.xlane.xlu0 %1734
        %v1736 = vadd.f32 %v1716, %v1717
        %1737 = vadd.xlane.f32.xlu0 %v1736
        %v1738 = vpop.xlane.xlu0 %1737
        %v1739 = vadd.f32 %v1718, %v1719
        %1740 = vadd.xlane.f32.xlu0 %v1739
        %v1741 = vpop.xlane.xlu0 %1740
        %v1742 = vadd.f32 %v1720, %v1721
        %1743 = vadd.xlane.f32.xlu0 %v1742
        %v1744 = vpop.xlane.xlu0 %1743
        %v1745 = vadd.f32 %v1722, %v1723
        %1746 = vadd.xlane.f32.xlu0 %v1745
        %v1747 = vpop.xlane.xlu0 %1746
        %v1748 = vmax.f32 %v1199, 0.0
        %v1749 = vmax.f32 %v1267, 0.0
        %v1750 = vmax.f32 %v1202, 0.0
        %v1751 = vmax.f32 %v1270, 0.0
        %v1752 = vmax.f32 %v1205, 0.0
        %v1753 = vmax.f32 %v1273, 0.0
        %v1754 = vmax.f32 %v1208, 0.0
        %v1755 = vmax.f32 %v1276, 0.0
        %v1756 = vmax.f32 %v1211, 0.0
        %v1757 = vmax.f32 %v1279, 0.0
        %v1758 = vmax.f32 %v1214, 0.0
        %v1759 = vmax.f32 %v1282, 0.0
        %v1760 = vmax.f32 %v1217, 0.0
        %v1761 = vmax.f32 %v1285, 0.0
        %v1762 = vmax.f32 %v1220, 0.0
        %v1763 = vmax.f32 %v1288, 0.0
        %v1764 = vmul.f32 %v1748, %v1726
        %v1765 = vmul.f32 %v1749, %v1726
        %v1766 = vmul.f32 %v1750, %v1729
        %v1767 = vmul.f32 %v1751, %v1729
        %v1768 = vmul.f32 %v1752, %v1732
        %v1769 = vmul.f32 %v1753, %v1732
        %v1770 = vmul.f32 %v1754, %v1735
        %v1771 = vmul.f32 %v1755, %v1735
        %v1772 = vmul.f32 %v1756, %v1738
        %v1773 = vmul.f32 %v1757, %v1738
        %v1774 = vmul.f32 %v1758, %v1741
        %v1775 = vmul.f32 %v1759, %v1741
        %v1776 = vmul.f32 %v1760, %v1744
        %v1777 = vmul.f32 %v1761, %v1744
        %v1778 = vmul.f32 %v1762, %v1747
        %v1779 = vmul.f32 %v1763, %v1747
        %1780 = vst [vmem:[#allocation2 + $0x20] sm:$0xff] %v1764
        %1781 = vst [vmem:[#allocation2 + $0x28] sm:$0xff] %v1765
        %1782 = vst [vmem:[#allocation2 + $0x60] sm:$0xff] %v1766
        %1783 = vst [vmem:[#allocation2 + $0x68] sm:$0xff] %v1767
        %1784 = vst [vmem:[#allocation2 + $0xa0] sm:$0xff] %v1768
        %1785 = vst [vmem:[#allocation2 + $0xa8] sm:$0xff] %v1769
        %1786 = vst [vmem:[#allocation2 + $0xe0] sm:$0xff] %v1770
        %1787 = vst [vmem:[#allocation2 + $0xe8] sm:$0xff] %v1771
        %1788 = vst [vmem:[#allocation2 + $0x120] sm:$0xff] %v1772
        %1789 = vst [vmem:[#allocation2 + $0x128] sm:$0xff] %v1773
        %1790 = vst [vmem:[#allocation2 + $0x160] sm:$0xff] %v1774
        %1791 = vst [vmem:[#allocation2 + $0x168] sm:$0xff] %v1775
        %1792 = vst [vmem:[#allocation2 + $0x1a0] sm:$0xff] %v1776
        %1793 = vst [vmem:[#allocation2 + $0x1a8] sm:$0xff] %v1777
        %1794 = vst [vmem:[#allocation2 + $0x1e0] sm:$0xff] %v1778
        %1795 = vst [vmem:[#allocation2 + $0x1e8] sm:$0xff] %v1779
        %v1796 = vsel %vm1429, %v1359, -inf
        %v1797 = vsel %vm1429, %v1427, -inf
        %v1798 = vmax.f32 %v1796, %v1797
        %1799 = vmax.xlane.f32.xlu0 %v1798
        %v1800 = vpop.xlane.xlu0 %1799
        %v1801 = vsub.f32 %v1359, %v1800
        %v1802 = vsub.f32 %v1427, %v1800
        %v1803 = vmul.f32 %v1801, 1.442695
        %v1804 = vpow.pop %v1803
        %v1805 = vmul.f32 %v1802, 1.442695
        %v1806 = vpow.pop %v1805
        %v1807 = vsel %vm1429, %v1804, 0.0
        %v1808 = vsel %vm1429, %v1806, 0.0
        %v1809 = vadd.f32 %v1807, %v1808
        %1810 = vadd.xlane.f32.xlu0 %v1809
        %v1811 = vpop.xlane.xlu0 %1810
        %v1812 = vrcp.pop %v1811
        %v1813 = vmul.f32 %v1811, %v1812
        %v1814 = vsub.f32 1.0, %v1813
        %v1815 = vmul.f32 %v1812, %v1814
        %v1816 = vadd.f32 %v1812, %v1815
        %vm1817 = vweird.f32 %v1811
        %vm1818 = vweird.f32 %v1812
        %vm1819 = vmor %vm1817, %vm1818
        %v1820 = vsel %vm1819, %v1812, %v1816
        %v1821 = vand.u32 2147483647, %v1811
        %vm1822 = vcmp.eq.f32.partialorder %v1821, 8.507059e+37
        %v1823 = vand.u32 %v1811, 2147483648
        %v1824 = vor.u32 1.1754944e-38, %v1823
        %v1825 = vsel %vm1822, %v1824, %v1820
        %v1826 = vmul.f32 %v1804, %v1825
        %v1827 = vmul.f32 %v1806, %v1825
        %v1828 = vperm.slane %v1826, 0
        %v1829 = vperm.slane %v1827, 0
        %v1830 = vmul.f32 %v1311, %v1828
        %v1831 = vmul.f32 %v1379, %v1829
        %v1832 = vmul.f32 %v1314, %v1828
        %v1833 = vmul.f32 %v1382, %v1829
        %v1834 = vmul.f32 %v1317, %v1828
        %v1835 = vmul.f32 %v1385, %v1829
        %v1836 = vmul.f32 %v1320, %v1828
        %v1837 = vmul.f32 %v1388, %v1829
        %v1838 = vmul.f32 %v1323, %v1828
        %v1839 = vmul.f32 %v1391, %v1829
        %v1840 = vmul.f32 %v1326, %v1828
        %v1841 = vmul.f32 %v1394, %v1829
        %v1842 = vmul.f32 %v1329, %v1828
        %v1843 = vmul.f32 %v1397, %v1829
        %v1844 = vmul.f32 %v1332, %v1828
        %v1845 = vmul.f32 %v1400, %v1829
        %v1846 = vadd.f32 %v1830, %v1831
        %1847 = vadd.xlane.f32.xlu0 %v1846
        %v1848 = vpop.xlane.xlu0 %1847
        %v1849 = vadd.f32 %v1832, %v1833
        %1850 = vadd.xlane.f32.xlu0 %v1849
        %v1851 = vpop.xlane.xlu0 %1850
        %v1852 = vadd.f32 %v1834, %v1835
        %1853 = vadd.xlane.f32.xlu0 %v1852
        %v1854 = vpop.xlane.xlu0 %1853
        %v1855 = vadd.f32 %v1836, %v1837
        %1856 = vadd.xlane.f32.xlu0 %v1855
        %v1857 = vpop.xlane.xlu0 %1856
        %v1858 = vadd.f32 %v1838, %v1839
        %1859 = vadd.xlane.f32.xlu0 %v1858
        %v1860 = vpop.xlane.xlu0 %1859
        %v1861 = vadd.f32 %v1840, %v1841
        %1862 = vadd.xlane.f32.xlu0 %v1861
        %v1863 = vpop.xlane.xlu0 %1862
        %v1864 = vadd.f32 %v1842, %v1843
        %1865 = vadd.xlane.f32.xlu0 %v1864
        %v1866 = vpop.xlane.xlu0 %1865
        %v1867 = vadd.f32 %v1844, %v1845
        %1868 = vadd.xlane.f32.xlu0 %v1867
        %v1869 = vpop.xlane.xlu0 %1868
        %v1870 = vmax.f32 %v1335, 0.0
        %v1871 = vmax.f32 %v1403, 0.0
        %v1872 = vmax.f32 %v1338, 0.0
        %v1873 = vmax.f32 %v1406, 0.0
        %v1874 = vmax.f32 %v1341, 0.0
        %v1875 = vmax.f32 %v1409, 0.0
        %v1876 = vmax.f32 %v1344, 0.0
        %v1877 = vmax.f32 %v1412, 0.0
        %v1878 = vmax.f32 %v1347, 0.0
        %v1879 = vmax.f32 %v1415, 0.0
        %v1880 = vmax.f32 %v1350, 0.0
        %v1881 = vmax.f32 %v1418, 0.0
        %v1882 = vmax.f32 %v1353, 0.0
        %v1883 = vmax.f32 %v1421, 0.0
        %v1884 = vmax.f32 %v1356, 0.0
        %v1885 = vmax.f32 %v1424, 0.0
        %v1886 = vmul.f32 %v1870, %v1848
        %v1887 = vmul.f32 %v1871, %v1848
        %v1888 = vmul.f32 %v1872, %v1851
        %v1889 = vmul.f32 %v1873, %v1851
        %v1890 = vmul.f32 %v1874, %v1854
        %v1891 = vmul.f32 %v1875, %v1854
        %v1892 = vmul.f32 %v1876, %v1857
        %v1893 = vmul.f32 %v1877, %v1857
        %v1894 = vmul.f32 %v1878, %v1860
        %v1895 = vmul.f32 %v1879, %v1860
        %v1896 = vmul.f32 %v1880, %v1863
        %v1897 = vmul.f32 %v1881, %v1863
        %v1898 = vmul.f32 %v1882, %v1866
        %v1899 = vmul.f32 %v1883, %v1866
        %v1900 = vmul.f32 %v1884, %v1869
        %v1901 = vmul.f32 %v1885, %v1869
        %1902 = vst [vmem:[#allocation2 + $0x30] sm:$0xff] %v1886
        %1903 = vst [vmem:[#allocation2 + $0x38] sm:$0xff] %v1887
        %1904 = vst [vmem:[#allocation2 + $0x70] sm:$0xff] %v1888
        %1905 = vst [vmem:[#allocation2 + $0x78] sm:$0xff] %v1889
        %1906 = vst [vmem:[#allocation2 + $0xb0] sm:$0xff] %v1890
        %1907 = vst [vmem:[#allocation2 + $0xb8] sm:$0xff] %v1891
        %1908 = vst [vmem:[#allocation2 + $0xf0] sm:$0xff] %v1892
        %1909 = vst [vmem:[#allocation2 + $0xf8] sm:$0xff] %v1893
        %1910 = vst [vmem:[#allocation2 + $0x130] sm:$0xff] %v1894
        %1911 = vst [vmem:[#allocation2 + $0x138] sm:$0xff] %v1895
        %1912 = vst [vmem:[#allocation2 + $0x170] sm:$0xff] %v1896
        %1913 = vst [vmem:[#allocation2 + $0x178] sm:$0xff] %v1897
        %1914 = vst [vmem:[#allocation2 + $0x1b0] sm:$0xff] %v1898
        %1915 = vst [vmem:[#allocation2 + $0x1b8] sm:$0xff] %v1899
        %1916 = vst [vmem:[#allocation2 + $0x1f0] sm:$0xff] %v1900
        %1917 = vst [vmem:[#allocation2 + $0x1f8] sm:$0xff] %v1901
        %v1918 = vld [vmem:[%s2] sm:$0xff]
        %v1919 = vld [vmem:[%s2 + $0x8] sm:$0xff]
        %v1920 = vld [vmem:[%s2 + $0x10] sm:$0xff]
        %v1921 = vld [vmem:[%s2 + $0x18] sm:$0xff]
        %v1922 = vld [vmem:[%s2 + $0x20] sm:$0xff]
        %v1923 = vld [vmem:[%s2 + $0x28] sm:$0xff]
        %v1924 = vld [vmem:[%s2 + $0x30] sm:$0xff]
        %v1925 = vld [vmem:[%s2 + $0x38] sm:$0xff]
        %v1926 = vld [vmem:[#allocation2] sm:$0xff]
        %v1927 = vld [vmem:[#allocation2 + $0x8] sm:$0xff]
        %v1928 = vld [vmem:[#allocation2 + $0x10] sm:$0xff]
        %v1929 = vld [vmem:[#allocation2 + $0x18] sm:$0xff]
        %v1930 = vld [vmem:[#allocation2 + $0x20] sm:$0xff]
        %v1931 = vld [vmem:[#allocation2 + $0x28] sm:$0xff]
        %v1932 = vld [vmem:[#allocation2 + $0x30] sm:$0xff]
        %v1933 = vld [vmem:[#allocation2 + $0x38] sm:$0xff]
        %v1934 = vld [vmem:[#allocation2 + $0x40] sm:$0xff]
        %v1935 = vld [vmem:[#allocation2 + $0x48] sm:$0xff]
        %v1936 = vld [vmem:[#allocation2 + $0x50] sm:$0xff]
        %v1937 = vld [vmem:[#allocation2 + $0x58] sm:$0xff]
        %v1938 = vld [vmem:[#allocation2 + $0x60] sm:$0xff]
        %v1939 = vld [vmem:[#allocation2 + $0x68] sm:$0xff]
        %v1940 = vld [vmem:[#allocation2 + $0x70] sm:$0xff]
        %v1941 = vld [vmem:[#allocation2 + $0x78] sm:$0xff]
        %v1942 = vld [vmem:[#allocation2 + $0x80] sm:$0xff]
        %v1943 = vld [vmem:[#allocation2 + $0x88] sm:$0xff]
        %v1944 = vld [vmem:[#allocation2 + $0x90] sm:$0xff]
        %v1945 = vld [vmem:[#allocation2 + $0x98] sm:$0xff]
        %v1946 = vld [vmem:[#allocation2 + $0xa0] sm:$0xff]
        %v1947 = vld [vmem:[#allocation2 + $0xa8] sm:$0xff]
        %v1948 = vld [vmem:[#allocation2 + $0xb0] sm:$0xff]
        %v1949 = vld [vmem:[#allocation2 + $0xb8] sm:$0xff]
        %v1950 = vld [vmem:[#allocation2 + $0xc0] sm:$0xff]
        %v1951 = vld [vmem:[#allocation2 + $0xc8] sm:$0xff]
        %v1952 = vld [vmem:[#allocation2 + $0xd0] sm:$0xff]
        %v1953 = vld [vmem:[#allocation2 + $0xd8] sm:$0xff]
        %v1954 = vld [vmem:[#allocation2 + $0xe0] sm:$0xff]
        %v1955 = vld [vmem:[#allocation2 + $0xe8] sm:$0xff]
        %v1956 = vld [vmem:[#allocation2 + $0xf0] sm:$0xff]
        %v1957 = vld [vmem:[#allocation2 + $0xf8] sm:$0xff]
        %v1958 = vld [vmem:[#allocation2 + $0x100] sm:$0xff]
        %v1959 = vld [vmem:[#allocation2 + $0x108] sm:$0xff]
        %v1960 = vld [vmem:[#allocation2 + $0x110] sm:$0xff]
        %v1961 = vld [vmem:[#allocation2 + $0x118] sm:$0xff]
        %v1962 = vld [vmem:[#allocation2 + $0x120] sm:$0xff]
        %v1963 = vld [vmem:[#allocation2 + $0x128] sm:$0xff]
        %v1964 = vld [vmem:[#allocation2 + $0x130] sm:$0xff]
        %v1965 = vld [vmem:[#allocation2 + $0x138] sm:$0xff]
        %v1966 = vld [vmem:[#allocation2 + $0x140] sm:$0xff]
        %v1967 = vld [vmem:[#allocation2 + $0x148] sm:$0xff]
        %v1968 = vld [vmem:[#allocation2 + $0x150] sm:$0xff]
        %v1969 = vld [vmem:[#allocation2 + $0x158] sm:$0xff]
        %v1970 = vld [vmem:[#allocation2 + $0x160] sm:$0xff]
        %v1971 = vld [vmem:[#allocation2 + $0x168] sm:$0xff]
        %v1972 = vld [vmem:[#allocation2 + $0x170] sm:$0xff]
        %v1973 = vld [vmem:[#allocation2 + $0x178] sm:$0xff]
        %v1974 = vld [vmem:[#allocation2 + $0x180] sm:$0xff]
        %v1975 = vld [vmem:[#allocation2 + $0x188] sm:$0xff]
        %v1976 = vld [vmem:[#allocation2 + $0x190] sm:$0xff]
        %v1977 = vld [vmem:[#allocation2 + $0x198] sm:$0xff]
        %v1978 = vld [vmem:[#allocation2 + $0x1a0] sm:$0xff]
        %v1979 = vld [vmem:[#allocation2 + $0x1a8] sm:$0xff]
        %v1980 = vld [vmem:[#allocation2 + $0x1b0] sm:$0xff]
        %v1981 = vld [vmem:[#allocation2 + $0x1b8] sm:$0xff]
        %v1982 = vld [vmem:[#allocation2 + $0x1c0] sm:$0xff]
        %v1983 = vld [vmem:[#allocation2 + $0x1c8] sm:$0xff]
        %v1984 = vld [vmem:[#allocation2 + $0x1d0] sm:$0xff]
        %v1985 = vld [vmem:[#allocation2 + $0x1d8] sm:$0xff]
        %v1986 = vld [vmem:[#allocation2 + $0x1e0] sm:$0xff]
        %v1987 = vld [vmem:[#allocation2 + $0x1e8] sm:$0xff]
        %v1988 = vld [vmem:[#allocation2 + $0x1f0] sm:$0xff]
        %v1989 = vld [vmem:[#allocation2 + $0x1f8] sm:$0xff]
        %1990 = vset.pattern.permute.xlu0 1
        %1991 = vperm.xlu0 %1990, %v336
        %v1992 = vpop.permute.xlu0 %1991
        %1994 = vset.pattern.permute.xlu0 1
        %1995 = vperm.xlu0 %1994, %v337
        %v1996 = vpop.permute.xlu0 %1995
        %1998 = vset.pattern.permute.xlu0 1
        %1999 = vperm.xlu0 %1998, %v338
        %v2000 = vpop.permute.xlu0 %1999
        %2002 = vset.pattern.permute.xlu0 1
        %2003 = vperm.xlu0 %2002, %v339
        %v2004 = vpop.permute.xlu0 %2003
        %2006 = vset.pattern.permute.xlu0 1
        %2007 = vperm.xlu0 %2006, %v340
        %v2008 = vpop.permute.xlu0 %2007
        %2010 = vset.pattern.permute.xlu0 1
        %2011 = vperm.xlu0 %2010, %v341
        %v2012 = vpop.permute.xlu0 %2011
        %2014 = vset.pattern.permute.xlu0 1
        %2015 = vperm.xlu0 %2014, %v342
        %v2016 = vpop.permute.xlu0 %2015
        %2018 = vset.pattern.permute.xlu0 1
        %2019 = vperm.xlu0 %2018, %v343
        %v2020 = vpop.permute.xlu0 %2019
        %v2023 = vsel %vm833, %v1918, 0
        %v2026 = vsel %vm833, %v1919, 0
        %v2029 = vsel %vm833, %v1920, 0
        %v2032 = vsel %vm833, %v1921, 0
        %v2035 = vsel %vm833, %v1922, 0
        %v2038 = vsel %vm833, %v1923, 0
        %v2041 = vsel %vm833, %v1924, 0
        %v2044 = vsel %vm833, %v1925, 0
        %2046 = vmatpush.msra.mxu0 0.0
        %2047 = vmatpush.msra.mxu0 0.0
        %2048 = vmatpush.msra.mxu0 0.0
        %2049 = vmatpush.msra.mxu0 0.0
        %2050 = vmatpush.msra.mxu0 0.0
        %2051 = vmatpush.msra.mxu0 0.0
        %2052 = vmatpush.msra.mxu0 0.0
        %2053 = vmatpush.msra.mxu0 0.0
        %2054 = vmatpush.msra.mxu0 %v1982
        %2055 = vmatpush.msra.mxu0 %v1974
        %2056 = vmatpush.msra.mxu0 %v1966
        %2057 = vmatpush.msra.mxu0 %v1958
        %2058 = vmatpush.msra.mxu0 %v1950
        %2059 = vmatpush.msra.mxu0 %v1942
        %2060 = vmatpush.msra.mxu0 %v1934
        %2061 = vmatpush.msra.mxu0 %v1926
        %2062 = vmatmul.f32.gmra.mxu0 %v2023
        %v2063 = vpop.f32.mrf.mxu0
        %v2064 = vadd.f32 %v1992, %v2063
        %2065 = vmatmul.f32.gmra.mxu0 %v2026
        %v2066 = vpop.f32.mrf.mxu0
        %v2067 = vadd.f32 %v1996, %v2066
        %2068 = vmatmul.f32.gmra.mxu0 %v2029
        %v2069 = vpop.f32.mrf.mxu0
        %v2070 = vadd.f32 %v2000, %v2069
        %2071 = vmatmul.f32.gmra.mxu0 %v2032
        %v2072 = vpop.f32.mrf.mxu0
        %v2073 = vadd.f32 %v2004, %v2072
        %2074 = vmatmul.f32.gmra.mxu0 %v2035
        %v2075 = vpop.f32.mrf.mxu0
        %v2076 = vadd.f32 %v2008, %v2075
        %2077 = vmatmul.f32.gmra.mxu0 %v2038
        %v2078 = vpop.f32.mrf.mxu0
        %v2079 = vadd.f32 %v2012, %v2078
        %2080 = vmatmul.f32.gmra.mxu0 %v2041
        %v2081 = vpop.f32.mrf.mxu0
        %v2082 = vadd.f32 %v2016, %v2081
        %2083 = vmatmul.f32.gmra.mxu0 %v2044
        %v2084 = vpop.f32.mrf.mxu0
        %v2085 = vadd.f32 %v2020, %v2084
        %2086 = vdwg.mxu0
        %2087 = vmatpush.msra.mxu0 0.0
        %2088 = vmatpush.msra.mxu0 0.0
        %2089 = vmatpush.msra.mxu0 0.0
        %2090 = vmatpush.msra.mxu0 0.0
        %2091 = vmatpush.msra.mxu0 0.0
        %2092 = vmatpush.msra.mxu0 0.0
        %2093 = vmatpush.msra.mxu0 0.0
        %2094 = vmatpush.msra.mxu0 0.0
        %2095 = vmatpush.msra.mxu0 %v1983
        %2096 = vmatpush.msra.mxu0 %v1975
        %2097 = vmatpush.msra.mxu0 %v1967
        %2098 = vmatpush.msra.mxu0 %v1959
        %2099 = vmatpush.msra.mxu0 %v1951
        %2100 = vmatpush.msra.mxu0 %v1943
        %2101 = vmatpush.msra.mxu0 %v1935
        %2102 = vmatpush.msra.mxu0 %v1927
        %2103 = vmatmul.f32.gmra.mxu0 %v2023
        %v2104 = vpop.f32.mrf.mxu0
        %v2105 = vadd.f32 %v1992, %v2104
        %2106 = vmatmul.f32.gmra.mxu0 %v2026
        %v2107 = vpop.f32.mrf.mxu0
        %v2108 = vadd.f32 %v1996, %v2107
        %2109 = vmatmul.f32.gmra.mxu0 %v2029
        %v2110 = vpop.f32.mrf.mxu0
        %v2111 = vadd.f32 %v2000, %v2110
        %2112 = vmatmul.f32.gmra.mxu0 %v2032
        %v2113 = vpop.f32.mrf.mxu0
        %v2114 = vadd.f32 %v2004, %v2113
        %2115 = vmatmul.f32.gmra.mxu0 %v2035
        %v2116 = vpop.f32.mrf.mxu0
        %v2117 = vadd.f32 %v2008, %v2116
        %2118 = vmatmul.f32.gmra.mxu0 %v2038
        %v2119 = vpop.f32.mrf.mxu0
        %v2120 = vadd.f32 %v2012, %v2119
        %2121 = vmatmul.f32.gmra.mxu0 %v2041
        %v2122 = vpop.f32.mrf.mxu0
        %v2123 = vadd.f32 %v2016, %v2122
        %2124 = vmatmul.f32.gmra.mxu0 %v2044
        %v2125 = vpop.f32.mrf.mxu0
        %v2126 = vadd.f32 %v2020, %v2125
        %2127 = vdwg.mxu0
        %2128 = vmatpush.msra.mxu0 0.0
        %2129 = vmatpush.msra.mxu0 0.0
        %2130 = vmatpush.msra.mxu0 0.0
        %2131 = vmatpush.msra.mxu0 0.0
        %2132 = vmatpush.msra.mxu0 0.0
        %2133 = vmatpush.msra.mxu0 0.0
        %2134 = vmatpush.msra.mxu0 0.0
        %2135 = vmatpush.msra.mxu0 0.0
        %2136 = vmatpush.msra.mxu0 %v1984
        %2137 = vmatpush.msra.mxu0 %v1976
        %2138 = vmatpush.msra.mxu0 %v1968
        %2139 = vmatpush.msra.mxu0 %v1960
        %2140 = vmatpush.msra.mxu0 %v1952
        %2141 = vmatpush.msra.mxu0 %v1944
        %2142 = vmatpush.msra.mxu0 %v1936
        %2143 = vmatpush.msra.mxu0 %v1928
        %2144 = vmatmul.f32.gmra.mxu0 %v2023
        %v2145 = vpop.f32.mrf.mxu0
        %v2146 = vadd.f32 %v1992, %v2145
        %2147 = vmatmul.f32.gmra.mxu0 %v2026
        %v2148 = vpop.f32.mrf.mxu0
        %v2149 = vadd.f32 %v1996, %v2148
        %2150 = vmatmul.f32.gmra.mxu0 %v2029
        %v2151 = vpop.f32.mrf.mxu0
        %v2152 = vadd.f32 %v2000, %v2151
        %2153 = vmatmul.f32.gmra.mxu0 %v2032
        %v2154 = vpop.f32.mrf.mxu0
        %v2155 = vadd.f32 %v2004, %v2154
        %2156 = vmatmul.f32.gmra.mxu0 %v2035
        %v2157 = vpop.f32.mrf.mxu0
        %v2158 = vadd.f32 %v2008, %v2157
        %2159 = vmatmul.f32.gmra.mxu0 %v2038
        %v2160 = vpop.f32.mrf.mxu0
        %v2161 = vadd.f32 %v2012, %v2160
        %2162 = vmatmul.f32.gmra.mxu0 %v2041
        %v2163 = vpop.f32.mrf.mxu0
        %v2164 = vadd.f32 %v2016, %v2163
        %2165 = vmatmul.f32.gmra.mxu0 %v2044
        %v2166 = vpop.f32.mrf.mxu0
        %v2167 = vadd.f32 %v2020, %v2166
        %2168 = vdwg.mxu0
        %2169 = vmatpush.msra.mxu0 0.0
        %2170 = vmatpush.msra.mxu0 0.0
        %2171 = vmatpush.msra.mxu0 0.0
        %2172 = vmatpush.msra.mxu0 0.0
        %2173 = vmatpush.msra.mxu0 0.0
        %2174 = vmatpush.msra.mxu0 0.0
        %2175 = vmatpush.msra.mxu0 0.0
        %2176 = vmatpush.msra.mxu0 0.0
        %2177 = vmatpush.msra.mxu0 %v1985
        %2178 = vmatpush.msra.mxu0 %v1977
        %2179 = vmatpush.msra.mxu0 %v1969
        %2180 = vmatpush.msra.mxu0 %v1961
        %2181 = vmatpush.msra.mxu0 %v1953
        %2182 = vmatpush.msra.mxu0 %v1945
        %2183 = vmatpush.msra.mxu0 %v1937
        %2184 = vmatpush.msra.mxu0 %v1929
        %2185 = vmatmul.f32.gmra.mxu0 %v2023
        %v2186 = vpop.f32.mrf.mxu0
        %v2187 = vadd.f32 %v1992, %v2186
        %2188 = vmatmul.f32.gmra.mxu0 %v2026
        %v2189 = vpop.f32.mrf.mxu0
        %v2190 = vadd.f32 %v1996, %v2189
        %2191 = vmatmul.f32.gmra.mxu0 %v2029
        %v2192 = vpop.f32.mrf.mxu0
        %v2193 = vadd.f32 %v2000, %v2192
        %2194 = vmatmul.f32.gmra.mxu0 %v2032
        %v2195 = vpop.f32.mrf.mxu0
        %v2196 = vadd.f32 %v2004, %v2195
        %2197 = vmatmul.f32.gmra.mxu0 %v2035
        %v2198 = vpop.f32.mrf.mxu0
        %v2199 = vadd.f32 %v2008, %v2198
        %2200 = vmatmul.f32.gmra.mxu0 %v2038
        %v2201 = vpop.f32.mrf.mxu0
        %v2202 = vadd.f32 %v2012, %v2201
        %2203 = vmatmul.f32.gmra.mxu0 %v2041
        %v2204 = vpop.f32.mrf.mxu0
        %v2205 = vadd.f32 %v2016, %v2204
        %2206 = vmatmul.f32.gmra.mxu0 %v2044
        %v2207 = vpop.f32.mrf.mxu0
        %v2208 = vadd.f32 %v2020, %v2207
        %2209 = vdwg.mxu0
        %2210 = vmatpush.msra.mxu0 0.0
        %2211 = vmatpush.msra.mxu0 0.0
        %2212 = vmatpush.msra.mxu0 0.0
        %2213 = vmatpush.msra.mxu0 0.0
        %2214 = vmatpush.msra.mxu0 0.0
        %2215 = vmatpush.msra.mxu0 0.0
        %2216 = vmatpush.msra.mxu0 0.0
        %2217 = vmatpush.msra.mxu0 0.0
        %2218 = vmatpush.msra.mxu0 %v1986
        %2219 = vmatpush.msra.mxu0 %v1978
        %2220 = vmatpush.msra.mxu0 %v1970
        %2221 = vmatpush.msra.mxu0 %v1962
        %2222 = vmatpush.msra.mxu0 %v1954
        %2223 = vmatpush.msra.mxu0 %v1946
        %2224 = vmatpush.msra.mxu0 %v1938
        %2225 = vmatpush.msra.mxu0 %v1930
        %2226 = vmatmul.f32.gmra.mxu0 %v2023
        %v2227 = vpop.f32.mrf.mxu0
        %v2228 = vadd.f32 %v1992, %v2227
        %2229 = vmatmul.f32.gmra.mxu0 %v2026
        %v2230 = vpop.f32.mrf.mxu0
        %v2231 = vadd.f32 %v1996, %v2230
        %2232 = vmatmul.f32.gmra.mxu0 %v2029
        %v2233 = vpop.f32.mrf.mxu0
        %v2234 = vadd.f32 %v2000, %v2233
        %2235 = vmatmul.f32.gmra.mxu0 %v2032
        %v2236 = vpop.f32.mrf.mxu0
        %v2237 = vadd.f32 %v2004, %v2236
        %2238 = vmatmul.f32.gmra.mxu0 %v2035
        %v2239 = vpop.f32.mrf.mxu0
        %v2240 = vadd.f32 %v2008, %v2239
        %2241 = vmatmul.f32.gmra.mxu0 %v2038
        %v2242 = vpop.f32.mrf.mxu0
        %v2243 = vadd.f32 %v2012, %v2242
        %2244 = vmatmul.f32.gmra.mxu0 %v2041
        %v2245 = vpop.f32.mrf.mxu0
        %v2246 = vadd.f32 %v2016, %v2245
        %2247 = vmatmul.f32.gmra.mxu0 %v2044
        %v2248 = vpop.f32.mrf.mxu0
        %v2249 = vadd.f32 %v2020, %v2248
        %2250 = vdwg.mxu0
        %2251 = vmatpush.msra.mxu0 0.0
        %2252 = vmatpush.msra.mxu0 0.0
        %2253 = vmatpush.msra.mxu0 0.0
        %2254 = vmatpush.msra.mxu0 0.0
        %2255 = vmatpush.msra.mxu0 0.0
        %2256 = vmatpush.msra.mxu0 0.0
        %2257 = vmatpush.msra.mxu0 0.0
        %2258 = vmatpush.msra.mxu0 0.0
        %2259 = vmatpush.msra.mxu0 %v1987
        %2260 = vmatpush.msra.mxu0 %v1979
        %2261 = vmatpush.msra.mxu0 %v1971
        %2262 = vmatpush.msra.mxu0 %v1963
        %2263 = vmatpush.msra.mxu0 %v1955
        %2264 = vmatpush.msra.mxu0 %v1947
        %2265 = vmatpush.msra.mxu0 %v1939
        %2266 = vmatpush.msra.mxu0 %v1931
        %2267 = vmatmul.f32.gmra.mxu0 %v2023
        %v2268 = vpop.f32.mrf.mxu0
        %v2269 = vadd.f32 %v1992, %v2268
        %2270 = vmatmul.f32.gmra.mxu0 %v2026
        %v2271 = vpop.f32.mrf.mxu0
        %v2272 = vadd.f32 %v1996, %v2271
        %2273 = vmatmul.f32.gmra.mxu0 %v2029
        %v2274 = vpop.f32.mrf.mxu0
        %v2275 = vadd.f32 %v2000, %v2274
        %2276 = vmatmul.f32.gmra.mxu0 %v2032
        %v2277 = vpop.f32.mrf.mxu0
        %v2278 = vadd.f32 %v2004, %v2277
        %2279 = vmatmul.f32.gmra.mxu0 %v2035
        %v2280 = vpop.f32.mrf.mxu0
        %v2281 = vadd.f32 %v2008, %v2280
        %2282 = vmatmul.f32.gmra.mxu0 %v2038
        %v2283 = vpop.f32.mrf.mxu0
        %v2284 = vadd.f32 %v2012, %v2283
        %2285 = vmatmul.f32.gmra.mxu0 %v2041
        %v2286 = vpop.f32.mrf.mxu0
        %v2287 = vadd.f32 %v2016, %v2286
        %2288 = vmatmul.f32.gmra.mxu0 %v2044
        %v2289 = vpop.f32.mrf.mxu0
        %v2290 = vadd.f32 %v2020, %v2289
        %2291 = vdwg.mxu0
        %2292 = vmatpush.msra.mxu0 0.0
        %2293 = vmatpush.msra.mxu0 0.0
        %2294 = vmatpush.msra.mxu0 0.0
        %2295 = vmatpush.msra.mxu0 0.0
        %2296 = vmatpush.msra.mxu0 0.0
        %2297 = vmatpush.msra.mxu0 0.0
        %2298 = vmatpush.msra.mxu0 0.0
        %2299 = vmatpush.msra.mxu0 0.0
        %2300 = vmatpush.msra.mxu0 %v1988
        %2301 = vmatpush.msra.mxu0 %v1980
        %2302 = vmatpush.msra.mxu0 %v1972
        %2303 = vmatpush.msra.mxu0 %v1964
        %2304 = vmatpush.msra.mxu0 %v1956
        %2305 = vmatpush.msra.mxu0 %v1948
        %2306 = vmatpush.msra.mxu0 %v1940
        %2307 = vmatpush.msra.mxu0 %v1932
        %2308 = vmatmul.f32.gmra.mxu0 %v2023
        %v2309 = vpop.f32.mrf.mxu0
        %v2310 = vadd.f32 %v1992, %v2309
        %2311 = vmatmul.f32.gmra.mxu0 %v2026
        %v2312 = vpop.f32.mrf.mxu0
        %v2313 = vadd.f32 %v1996, %v2312
        %2314 = vmatmul.f32.gmra.mxu0 %v2029
        %v2315 = vpop.f32.mrf.mxu0
        %v2316 = vadd.f32 %v2000, %v2315
        %2317 = vmatmul.f32.gmra.mxu0 %v2032
        %v2318 = vpop.f32.mrf.mxu0
        %v2319 = vadd.f32 %v2004, %v2318
        %2320 = vmatmul.f32.gmra.mxu0 %v2035
        %v2321 = vpop.f32.mrf.mxu0
        %v2322 = vadd.f32 %v2008, %v2321
        %2323 = vmatmul.f32.gmra.mxu0 %v2038
        %v2324 = vpop.f32.mrf.mxu0
        %v2325 = vadd.f32 %v2012, %v2324
        %2326 = vmatmul.f32.gmra.mxu0 %v2041
        %v2327 = vpop.f32.mrf.mxu0
        %v2328 = vadd.f32 %v2016, %v2327
        %2329 = vmatmul.f32.gmra.mxu0 %v2044
        %v2330 = vpop.f32.mrf.mxu0
        %v2331 = vadd.f32 %v2020, %v2330
        %2332 = vdwg.mxu0
        %2333 = vmatpush.msra.mxu0 0.0
        %2334 = vmatpush.msra.mxu0 0.0
        %2335 = vmatpush.msra.mxu0 0.0
        %2336 = vmatpush.msra.mxu0 0.0
        %2337 = vmatpush.msra.mxu0 0.0
        %2338 = vmatpush.msra.mxu0 0.0
        %2339 = vmatpush.msra.mxu0 0.0
        %2340 = vmatpush.msra.mxu0 0.0
        %2341 = vmatpush.msra.mxu0 %v1989
        %2342 = vmatpush.msra.mxu0 %v1981
        %2343 = vmatpush.msra.mxu0 %v1973
        %2344 = vmatpush.msra.mxu0 %v1965
        %2345 = vmatpush.msra.mxu0 %v1957
        %2346 = vmatpush.msra.mxu0 %v1949
        %2347 = vmatpush.msra.mxu0 %v1941
        %2348 = vmatpush.msra.mxu0 %v1933
        %2349 = vmatmul.f32.gmra.mxu0 %v2023
        %v2350 = vpop.f32.mrf.mxu0
        %v2351 = vadd.f32 %v1992, %v2350
        %2352 = vmatmul.f32.gmra.mxu0 %v2026
        %v2353 = vpop.f32.mrf.mxu0
        %v2354 = vadd.f32 %v1996, %v2353
        %2355 = vmatmul.f32.gmra.mxu0 %v2029
        %v2356 = vpop.f32.mrf.mxu0
        %v2357 = vadd.f32 %v2000, %v2356
        %2358 = vmatmul.f32.gmra.mxu0 %v2032
        %v2359 = vpop.f32.mrf.mxu0
        %v2360 = vadd.f32 %v2004, %v2359
        %2361 = vmatmul.f32.gmra.mxu0 %v2035
        %v2362 = vpop.f32.mrf.mxu0
        %v2363 = vadd.f32 %v2008, %v2362
        %2364 = vmatmul.f32.gmra.mxu0 %v2038
        %v2365 = vpop.f32.mrf.mxu0
        %v2366 = vadd.f32 %v2012, %v2365
        %2367 = vmatmul.f32.gmra.mxu0 %v2041
        %v2368 = vpop.f32.mrf.mxu0
        %v2369 = vadd.f32 %v2016, %v2368
        %2370 = vmatmul.f32.gmra.mxu0 %v2044
        %v2371 = vpop.f32.mrf.mxu0
        %v2372 = vadd.f32 %v2020, %v2371
        %2373 = vdwg.mxu0
        %v2374 = vadd.f32 %v272, %v2064
        %v2375 = vadd.f32 %v273, %v2105
        %v2376 = vadd.f32 %v274, %v2146
        %v2377 = vadd.f32 %v275, %v2187
        %v2378 = vadd.f32 %v276, %v2228
        %v2379 = vadd.f32 %v277, %v2269
        %v2380 = vadd.f32 %v278, %v2310
        %v2381 = vadd.f32 %v279, %v2351
        %v2382 = vadd.f32 %v280, %v2067
        %v2383 = vadd.f32 %v281, %v2108
        %v2384 = vadd.f32 %v282, %v2149
        %v2385 = vadd.f32 %v283, %v2190
        %v2386 = vadd.f32 %v284, %v2231
        %v2387 = vadd.f32 %v285, %v2272
        %v2388 = vadd.f32 %v286, %v2313
        %v2389 = vadd.f32 %v287, %v2354
        %v2390 = vadd.f32 %v288, %v2070
        %v2391 = vadd.f32 %v289, %v2111
        %v2392 = vadd.f32 %v290, %v2152
        %v2393 = vadd.f32 %v291, %v2193
        %v2394 = vadd.f32 %v292, %v2234
        %v2395 = vadd.f32 %v293, %v2275
        %v2396 = vadd.f32 %v294, %v2316
        %v2397 = vadd.f32 %v295, %v2357
        %v2398 = vadd.f32 %v296, %v2073
        %v2399 = vadd.f32 %v297, %v2114
        %v2400 = vadd.f32 %v298, %v2155
        %v2401 = vadd.f32 %v299, %v2196
        %v2402 = vadd.f32 %v300, %v2237
        %v2403 = vadd.f32 %v301, %v2278
        %v2404 = vadd.f32 %v302, %v2319
        %v2405 = vadd.f32 %v303, %v2360
        %v2406 = vadd.f32 %v304, %v2076
        %v2407 = vadd.f32 %v305, %v2117
        %v2408 = vadd.f32 %v306, %v2158
        %v2409 = vadd.f32 %v307, %v2199
        %v2410 = vadd.f32 %v308, %v2240
        %v2411 = vadd.f32 %v309, %v2281
        %v2412 = vadd.f32 %v310, %v2322
        %v2413 = vadd.f32 %v311, %v2363
        %v2414 = vadd.f32 %v312, %v2079
        %v2415 = vadd.f32 %v313, %v2120
        %v2416 = vadd.f32 %v314, %v2161
        %v2417 = vadd.f32 %v315, %v2202
        %v2418 = vadd.f32 %v316, %v2243
        %v2419 = vadd.f32 %v317, %v2284
        %v2420 = vadd.f32 %v318, %v2325
        %v2421 = vadd.f32 %v319, %v2366
        %v2422 = vadd.f32 %v320, %v2082
        %v2423 = vadd.f32 %v321, %v2123
        %v2424 = vadd.f32 %v322, %v2164
        %v2425 = vadd.f32 %v323, %v2205
        %v2426 = vadd.f32 %v324, %v2246
        %v2427 = vadd.f32 %v325, %v2287
        %v2428 = vadd.f32 %v326, %v2328
        %v2429 = vadd.f32 %v327, %v2369
        %v2430 = vadd.f32 %v328, %v2085
        %v2431 = vadd.f32 %v329, %v2126
        %v2432 = vadd.f32 %v330, %v2167
        %v2433 = vadd.f32 %v331, %v2208
        %v2434 = vadd.f32 %v332, %v2249
        %v2435 = vadd.f32 %v333, %v2290
        %v2436 = vadd.f32 %v334, %v2331
        %v2437 = vadd.f32 %v335, %v2372
        %v2438 = vadd.f32 %v2374, %v2375
        %v2439 = vadd.f32 %v2438, %v2376
        %v2440 = vadd.f32 %v2439, %v2377
        %v2441 = vadd.f32 %v2440, %v2378
        %v2442 = vadd.f32 %v2441, %v2379
        %v2443 = vadd.f32 %v2442, %v2380
        %v2444 = vadd.f32 %v2443, %v2381
        %2445 = vadd.xlane.f32.xlu0 %v2444
        %v2446 = vpop.xlane.xlu0 %2445
        %v2447 = vadd.f32 %v2382, %v2383
        %v2448 = vadd.f32 %v2447, %v2384
        %v2449 = vadd.f32 %v2448, %v2385
        %v2450 = vadd.f32 %v2449, %v2386
        %v2451 = vadd.f32 %v2450, %v2387
        %v2452 = vadd.f32 %v2451, %v2388
        %v2453 = vadd.f32 %v2452, %v2389
        %2454 = vadd.xlane.f32.xlu0 %v2453
        %v2455 = vpop.xlane.xlu0 %2454
        %v2456 = vadd.f32 %v2390, %v2391
        %v2457 = vadd.f32 %v2456, %v2392
        %v2458 = vadd.f32 %v2457, %v2393
        %v2459 = vadd.f32 %v2458, %v2394
        %v2460 = vadd.f32 %v2459, %v2395
        %v2461 = vadd.f32 %v2460, %v2396
        %v2462 = vadd.f32 %v2461, %v2397
        %2463 = vadd.xlane.f32.xlu0 %v2462
        %v2464 = vpop.xlane.xlu0 %2463
        %v2465 = vadd.f32 %v2398, %v2399
        %v2466 = vadd.f32 %v2465, %v2400
        %v2467 = vadd.f32 %v2466, %v2401
        %v2468 = vadd.f32 %v2467, %v2402
        %v2469 = vadd.f32 %v2468, %v2403
        %v2470 = vadd.f32 %v2469, %v2404
        %v2471 = vadd.f32 %v2470, %v2405
        %2472 = vadd.xlane.f32.xlu0 %v2471
        %v2473 = vpop.xlane.xlu0 %2472
        %v2474 = vadd.f32 %v2406, %v2407
        %v2475 = vadd.f32 %v2474, %v2408
        %v2476 = vadd.f32 %v2475, %v2409
        %v2477 = vadd.f32 %v2476, %v2410
        %v2478 = vadd.f32 %v2477, %v2411
        %v2479 = vadd.f32 %v2478, %v2412
        %v2480 = vadd.f32 %v2479, %v2413
        %2481 = vadd.xlane.f32.xlu0 %v2480
        %v2482 = vpop.xlane.xlu0 %2481
        %v2483 = vadd.f32 %v2414, %v2415
        %v2484 = vadd.f32 %v2483, %v2416
        %v2485 = vadd.f32 %v2484, %v2417
        %v2486 = vadd.f32 %v2485, %v2418
        %v2487 = vadd.f32 %v2486, %v2419
        %v2488 = vadd.f32 %v2487, %v2420
        %v2489 = vadd.f32 %v2488, %v2421
        %2490 = vadd.xlane.f32.xlu0 %v2489
        %v2491 = vpop.xlane.xlu0 %2490
        %v2492 = vadd.f32 %v2422, %v2423
        %v2493 = vadd.f32 %v2492, %v2424
        %v2494 = vadd.f32 %v2493, %v2425
        %v2495 = vadd.f32 %v2494, %v2426
        %v2496 = vadd.f32 %v2495, %v2427
        %v2497 = vadd.f32 %v2496, %v2428
        %v2498 = vadd.f32 %v2497, %v2429
        %2499 = vadd.xlane.f32.xlu0 %v2498
        %v2500 = vpop.xlane.xlu0 %2499
        %v2501 = vadd.f32 %v2430, %v2431
        %v2502 = vadd.f32 %v2501, %v2432
        %v2503 = vadd.f32 %v2502, %v2433
        %v2504 = vadd.f32 %v2503, %v2434
        %v2505 = vadd.f32 %v2504, %v2435
        %v2506 = vadd.f32 %v2505, %v2436
        %v2507 = vadd.f32 %v2506, %v2437
        %2508 = vadd.xlane.f32.xlu0 %v2507
        %v2509 = vpop.xlane.xlu0 %2508
        %v2510 = vadd.f32 %v2446, %v2455
        %v2511 = vadd.f32 %v2510, %v2464
        %v2512 = vadd.f32 %v2511, %v2473
        %v2513 = vadd.f32 %v2512, %v2482
        %v2514 = vadd.f32 %v2513, %v2491
        %v2515 = vadd.f32 %v2514, %v2500
        %v2516 = vadd.f32 %v2515, %v2509
        %v2517 = vrot.slane %v2516, 4
        %v2518 = vadd.f32 %v2516, %v2517
        %v2519 = vrot.slane %v2518, 2
        %v2520 = vadd.f32 %v2518, %v2519
        %v2521 = vrot.slane %v2520, 1
        %v2522 = vadd.f32 %v2520, %v2521
        %v2523 = vmul.f32 %v2374, %v2374
        %v2524 = vmul.f32 %v2375, %v2375
        %v2525 = vmul.f32 %v2376, %v2376
        %v2526 = vmul.f32 %v2377, %v2377
        %v2527 = vmul.f32 %v2378, %v2378
        %v2528 = vmul.f32 %v2379, %v2379
        %v2529 = vmul.f32 %v2380, %v2380
        %v2530 = vmul.f32 %v2381, %v2381
        %v2531 = vmul.f32 %v2382, %v2382
        %v2532 = vmul.f32 %v2383, %v2383
        %v2533 = vmul.f32 %v2384, %v2384
        %v2534 = vmul.f32 %v2385, %v2385
        %v2535 = vmul.f32 %v2386, %v2386
        %v2536 = vmul.f32 %v2387, %v2387
        %v2537 = vmul.f32 %v2388, %v2388
        %v2538 = vmul.f32 %v2389, %v2389
        %v2539 = vmul.f32 %v2390, %v2390
        %v2540 = vmul.f32 %v2391, %v2391
        %v2541 = vmul.f32 %v2392, %v2392
        %v2542 = vmul.f32 %v2393, %v2393
        %v2543 = vmul.f32 %v2394, %v2394
        %v2544 = vmul.f32 %v2395, %v2395
        %v2545 = vmul.f32 %v2396, %v2396
        %v2546 = vmul.f32 %v2397, %v2397
        %v2547 = vmul.f32 %v2398, %v2398
        %v2548 = vmul.f32 %v2399, %v2399
        %v2549 = vmul.f32 %v2400, %v2400
        %v2550 = vmul.f32 %v2401, %v2401
        %v2551 = vmul.f32 %v2402, %v2402
        %v2552 = vmul.f32 %v2403, %v2403
        %v2553 = vmul.f32 %v2404, %v2404
        %v2554 = vmul.f32 %v2405, %v2405
        %v2555 = vmul.f32 %v2406, %v2406
        %v2556 = vmul.f32 %v2407, %v2407
        %v2557 = vmul.f32 %v2408, %v2408
        %v2558 = vmul.f32 %v2409, %v2409
        %v2559 = vmul.f32 %v2410, %v2410
        %v2560 = vmul.f32 %v2411, %v2411
        %v2561 = vmul.f32 %v2412, %v2412
        %v2562 = vmul.f32 %v2413, %v2413
        %v2563 = vmul.f32 %v2414, %v2414
        %v2564 = vmul.f32 %v2415, %v2415
        %v2565 = vmul.f32 %v2416, %v2416
        %v2566 = vmul.f32 %v2417, %v2417
        %v2567 = vmul.f32 %v2418, %v2418
        %v2568 = vmul.f32 %v2419, %v2419
        %v2569 = vmul.f32 %v2420, %v2420
        %v2570 = vmul.f32 %v2421, %v2421
        %v2571 = vmul.f32 %v2422, %v2422
        %v2572 = vmul.f32 %v2423, %v2423
        %v2573 = vmul.f32 %v2424, %v2424
        %v2574 = vmul.f32 %v2425, %v2425
        %v2575 = vmul.f32 %v2426, %v2426
        %v2576 = vmul.f32 %v2427, %v2427
        %v2577 = vmul.f32 %v2428, %v2428
        %v2578 = vmul.f32 %v2429, %v2429
        %v2579 = vmul.f32 %v2430, %v2430
        %v2580 = vmul.f32 %v2431, %v2431
        %v2581 = vmul.f32 %v2432, %v2432
        %v2582 = vmul.f32 %v2433, %v2433
        %v2583 = vmul.f32 %v2434, %v2434
        %v2584 = vmul.f32 %v2435, %v2435
        %v2585 = vmul.f32 %v2436, %v2436
        %v2586 = vmul.f32 %v2437, %v2437
        %v2587 = vadd.f32 %v2523, %v2524
        %v2588 = vadd.f32 %v2587, %v2525
        %v2589 = vadd.f32 %v2588, %v2526
        %v2590 = vadd.f32 %v2589, %v2527
        %v2591 = vadd.f32 %v2590, %v2528
        %v2592 = vadd.f32 %v2591, %v2529
        %v2593 = vadd.f32 %v2592, %v2530
        %2594 = vadd.xlane.f32.xlu0 %v2593
        %v2595 = vpop.xlane.xlu0 %2594
        %v2596 = vadd.f32 %v2531, %v2532
        %v2597 = vadd.f32 %v2596, %v2533
        %v2598 = vadd.f32 %v2597, %v2534
        %v2599 = vadd.f32 %v2598, %v2535
        %v2600 = vadd.f32 %v2599, %v2536
        %v2601 = vadd.f32 %v2600, %v2537
        %v2602 = vadd.f32 %v2601, %v2538
        %2603 = vadd.xlane.f32.xlu0 %v2602
        %v2604 = vpop.xlane.xlu0 %2603
        %v2605 = vadd.f32 %v2539, %v2540
        %v2606 = vadd.f32 %v2605, %v2541
        %v2607 = vadd.f32 %v2606, %v2542
        %v2608 = vadd.f32 %v2607, %v2543
        %v2609 = vadd.f32 %v2608, %v2544
        %v2610 = vadd.f32 %v2609, %v2545
        %v2611 = vadd.f32 %v2610, %v2546
        %2612 = vadd.xlane.f32.xlu0 %v2611
        %v2613 = vpop.xlane.xlu0 %2612
        %v2614 = vadd.f32 %v2547, %v2548
        %v2615 = vadd.f32 %v2614, %v2549
        %v2616 = vadd.f32 %v2615, %v2550
        %v2617 = vadd.f32 %v2616, %v2551
        %v2618 = vadd.f32 %v2617, %v2552
        %v2619 = vadd.f32 %v2618, %v2553
        %v2620 = vadd.f32 %v2619, %v2554
        %2621 = vadd.xlane.f32.xlu0 %v2620
        %v2622 = vpop.xlane.xlu0 %2621
        %v2623 = vadd.f32 %v2555, %v2556
        %v2624 = vadd.f32 %v2623, %v2557
        %v2625 = vadd.f32 %v2624, %v2558
        %v2626 = vadd.f32 %v2625, %v2559
        %v2627 = vadd.f32 %v2626, %v2560
        %v2628 = vadd.f32 %v2627, %v2561
        %v2629 = vadd.f32 %v2628, %v2562
        %2630 = vadd.xlane.f32.xlu0 %v2629
        %v2631 = vpop.xlane.xlu0 %2630
        %v2632 = vadd.f32 %v2563, %v2564
        %v2633 = vadd.f32 %v2632, %v2565
        %v2634 = vadd.f32 %v2633, %v2566
        %v2635 = vadd.f32 %v2634, %v2567
        %v2636 = vadd.f32 %v2635, %v2568
        %v2637 = vadd.f32 %v2636, %v2569
        %v2638 = vadd.f32 %v2637, %v2570
        %2639 = vadd.xlane.f32.xlu0 %v2638
        %v2640 = vpop.xlane.xlu0 %2639
        %v2641 = vadd.f32 %v2571, %v2572
        %v2642 = vadd.f32 %v2641, %v2573
        %v2643 = vadd.f32 %v2642, %v2574
        %v2644 = vadd.f32 %v2643, %v2575
        %v2645 = vadd.f32 %v2644, %v2576
        %v2646 = vadd.f32 %v2645, %v2577
        %v2647 = vadd.f32 %v2646, %v2578
        %2648 = vadd.xlane.f32.xlu0 %v2647
        %v2649 = vpop.xlane.xlu0 %2648
        %v2650 = vadd.f32 %v2579, %v2580
        %v2651 = vadd.f32 %v2650, %v2581
        %v2652 = vadd.f32 %v2651, %v2582
        %v2653 = vadd.f32 %v2652, %v2583
        %v2654 = vadd.f32 %v2653, %v2584
        %v2655 = vadd.f32 %v2654, %v2585
        %v2656 = vadd.f32 %v2655, %v2586
        %2657 = vadd.xlane.f32.xlu0 %v2656
        %v2658 = vpop.xlane.xlu0 %2657
        %v2659 = vadd.f32 %v2595, %v2604
        %v2660 = vadd.f32 %v2659, %v2613
        %v2661 = vadd.f32 %v2660, %v2622
        %v2662 = vadd.f32 %v2661, %v2631
        %v2663 = vadd.f32 %v2662, %v2640
        %v2664 = vadd.f32 %v2663, %v2649
        %v2665 = vadd.f32 %v2664, %v2658
        %v2666 = vrot.slane %v2665, 4
        %v2667 = vadd.f32 %v2665, %v2666
        %v2668 = vrot.slane %v2667, 2
        %v2669 = vadd.f32 %v2667, %v2668
        %v2670 = vrot.slane %v2669, 1
        %v2671 = vadd.f32 %v2669, %v2670
        %v2672 = vmul.f32 %v2522, 1.5258789e-05
        %v2673 = vmul.f32 %v2671, 1.5258789e-05
        %v2674 = vmul.f32 %v2672, %v2672
        %v2675 = vsub.f32 %v2673, %v2674
        %v2676 = vmax.f32 %v2675, 0.0
        %v2677 = vsub.f32 %v2374, %v2672
        %v2678 = vsub.f32 %v2375, %v2672
        %v2679 = vsub.f32 %v2376, %v2672
        %v2680 = vsub.f32 %v2377, %v2672
        %v2681 = vsub.f32 %v2378, %v2672
        %v2682 = vsub.f32 %v2379, %v2672
        %v2683 = vsub.f32 %v2380, %v2672
        %v2684 = vsub.f32 %v2381, %v2672
        %v2685 = vsub.f32 %v2382, %v2672
        %v2686 = vsub.f32 %v2383, %v2672
        %v2687 = vsub.f32 %v2384, %v2672
        %v2688 = vsub.f32 %v2385, %v2672
        %v2689 = vsub.f32 %v2386, %v2672
        %v2690 = vsub.f32 %v2387, %v2672
        %v2691 = vsub.f32 %v2388, %v2672
        %v2692 = vsub.f32 %v2389, %v2672
        %v2693 = vsub.f32 %v2390, %v2672
        %v2694 = vsub.f32 %v2391, %v2672
        %v2695 = vsub.f32 %v2392, %v2672
        %v2696 = vsub.f32 %v2393, %v2672
        %v2697 = vsub.f32 %v2394, %v2672
        %v2698 = vsub.f32 %v2395, %v2672
        %v2699 = vsub.f32 %v2396, %v2672
        %v2700 = vsub.f32 %v2397, %v2672
        %v2701 = vsub.f32 %v2398, %v2672
        %v2702 = vsub.f32 %v2399, %v2672
        %v2703 = vsub.f32 %v2400, %v2672
        %v2704 = vsub.f32 %v2401, %v2672
        %v2705 = vsub.f32 %v2402, %v2672
        %v2706 = vsub.f32 %v2403, %v2672
        %v2707 = vsub.f32 %v2404, %v2672
        %v2708 = vsub.f32 %v2405, %v2672
        %v2709 = vsub.f32 %v2406, %v2672
        %v2710 = vsub.f32 %v2407, %v2672
        %v2711 = vsub.f32 %v2408, %v2672
        %v2712 = vsub.f32 %v2409, %v2672
        %v2713 = vsub.f32 %v2410, %v2672
        %v2714 = vsub.f32 %v2411, %v2672
        %v2715 = vsub.f32 %v2412, %v2672
        %v2716 = vsub.f32 %v2413, %v2672
        %v2717 = vsub.f32 %v2414, %v2672
        %v2718 = vsub.f32 %v2415, %v2672
        %v2719 = vsub.f32 %v2416, %v2672
        %v2720 = vsub.f32 %v2417, %v2672
        %v2721 = vsub.f32 %v2418, %v2672
        %v2722 = vsub.f32 %v2419, %v2672
        %v2723 = vsub.f32 %v2420, %v2672
        %v2724 = vsub.f32 %v2421, %v2672
        %v2725 = vsub.f32 %v2422, %v2672
        %v2726 = vsub.f32 %v2423, %v2672
        %v2727 = vsub.f32 %v2424, %v2672
        %v2728 = vsub.f32 %v2425, %v2672
        %v2729 = vsub.f32 %v2426, %v2672
        %v2730 = vsub.f32 %v2427, %v2672
        %v2731 = vsub.f32 %v2428, %v2672
        %v2732 = vsub.f32 %v2429, %v2672
        %v2733 = vsub.f32 %v2430, %v2672
        %v2734 = vsub.f32 %v2431, %v2672
        %v2735 = vsub.f32 %v2432, %v2672
        %v2736 = vsub.f32 %v2433, %v2672
        %v2737 = vsub.f32 %v2434, %v2672
        %v2738 = vsub.f32 %v2435, %v2672
        %v2739 = vsub.f32 %v2436, %v2672
        %v2740 = vsub.f32 %v2437, %v2672
        %v2741 = vadd.f32 %v2676, 1e-05
        %v2742 = vrsqrt.pop %v2741
        %v2743 = vmul.f32 %v2742, %v2741
        %v2744 = vmul.f32 %v2743, %v2742
        %v2745 = vmul.f32 0.5, %v2744
        %v2746 = vsub.f32 1.5, %v2745
        %v2747 = vmul.f32 %v2742, %v2746
        %vm2748 = vweird.f32 %v2741
        %vm2749 = vweird.f32 %v2742
        %vm2750 = vmor %vm2748, %vm2749
        %v2751 = vsel %vm2750, %v2742, %v2747
        %v2752 = vmul.f32 %v2677, %v2751
        %v2753 = vmul.f32 %v2678, %v2751
        %v2754 = vmul.f32 %v2679, %v2751
        %v2755 = vmul.f32 %v2680, %v2751
        %v2756 = vmul.f32 %v2681, %v2751
        %v2757 = vmul.f32 %v2682, %v2751
        %v2758 = vmul.f32 %v2683, %v2751
        %v2759 = vmul.f32 %v2684, %v2751
        %v2760 = vmul.f32 %v2685, %v2751
        %v2761 = vmul.f32 %v2686, %v2751
        %v2762 = vmul.f32 %v2687, %v2751
        %v2763 = vmul.f32 %v2688, %v2751
        %v2764 = vmul.f32 %v2689, %v2751
        %v2765 = vmul.f32 %v2690, %v2751
        %v2766 = vmul.f32 %v2691, %v2751
        %v2767 = vmul.f32 %v2692, %v2751
        %v2768 = vmul.f32 %v2693, %v2751
        %v2769 = vmul.f32 %v2694, %v2751
        %v2770 = vmul.f32 %v2695, %v2751
        %v2771 = vmul.f32 %v2696, %v2751
        %v2772 = vmul.f32 %v2697, %v2751
        %v2773 = vmul.f32 %v2698, %v2751
        %v2774 = vmul.f32 %v2699, %v2751
        %v2775 = vmul.f32 %v2700, %v2751
        %v2776 = vmul.f32 %v2701, %v2751
        %v2777 = vmul.f32 %v2702, %v2751
        %v2778 = vmul.f32 %v2703, %v2751
        %v2779 = vmul.f32 %v2704, %v2751
        %v2780 = vmul.f32 %v2705, %v2751
        %v2781 = vmul.f32 %v2706, %v2751
        %v2782 = vmul.f32 %v2707, %v2751
        %v2783 = vmul.f32 %v2708, %v2751
        %v2784 = vmul.f32 %v2709, %v2751
        %v2785 = vmul.f32 %v2710, %v2751
        %v2786 = vmul.f32 %v2711, %v2751
        %v2787 = vmul.f32 %v2712, %v2751
        %v2788 = vmul.f32 %v2713, %v2751
        %v2789 = vmul.f32 %v2714, %v2751
        %v2790 = vmul.f32 %v2715, %v2751
        %v2791 = vmul.f32 %v2716, %v2751
        %v2792 = vmul.f32 %v2717, %v2751
        %v2793 = vmul.f32 %v2718, %v2751
        %v2794 = vmul.f32 %v2719, %v2751
        %v2795 = vmul.f32 %v2720, %v2751
        %v2796 = vmul.f32 %v2721, %v2751
        %v2797 = vmul.f32 %v2722, %v2751
        %v2798 = vmul.f32 %v2723, %v2751
        %v2799 = vmul.f32 %v2724, %v2751
        %v2800 = vmul.f32 %v2725, %v2751
        %v2801 = vmul.f32 %v2726, %v2751
        %v2802 = vmul.f32 %v2727, %v2751
        %v2803 = vmul.f32 %v2728, %v2751
        %v2804 = vmul.f32 %v2729, %v2751
        %v2805 = vmul.f32 %v2730, %v2751
        %v2806 = vmul.f32 %v2731, %v2751
        %v2807 = vmul.f32 %v2732, %v2751
        %v2808 = vmul.f32 %v2733, %v2751
        %v2809 = vmul.f32 %v2734, %v2751
        %v2810 = vmul.f32 %v2735, %v2751
        %v2811 = vmul.f32 %v2736, %v2751
        %v2812 = vmul.f32 %v2737, %v2751
        %v2813 = vmul.f32 %v2738, %v2751
        %v2814 = vmul.f32 %v2739, %v2751
        %v2815 = vmul.f32 %v2740, %v2751
        %v2816 = vld [vmem:[%s3] sm:$0xff]
        %v2817 = vld [vmem:[%s3 + $0x8] sm:$0xff]
        %v2818 = vld [vmem:[%s3 + $0x10] sm:$0xff]
        %v2819 = vld [vmem:[%s3 + $0x18] sm:$0xff]
        %v2820 = vld [vmem:[%s3 + $0x20] sm:$0xff]
        %v2821 = vld [vmem:[%s3 + $0x28] sm:$0xff]
        %v2822 = vld [vmem:[%s3 + $0x30] sm:$0xff]
        %v2823 = vld [vmem:[%s3 + $0x38] sm:$0xff]
        %v2824 = vld [vmem:[%s3 + $0x40] sm:$0xff]
        %v2825 = vld [vmem:[%s3 + $0x48] sm:$0xff]
        %v2826 = vld [vmem:[%s3 + $0x50] sm:$0xff]
        %v2827 = vld [vmem:[%s3 + $0x58] sm:$0xff]
        %v2828 = vld [vmem:[%s3 + $0x60] sm:$0xff]
        %v2829 = vld [vmem:[%s3 + $0x68] sm:$0xff]
        %v2830 = vld [vmem:[%s3 + $0x70] sm:$0xff]
        %v2831 = vld [vmem:[%s3 + $0x78] sm:$0xff]
        %2832 = vset.pattern.permute.xlu0 2
        %2833 = vperm.xlu0 %2832, %v336
        %v2834 = vpop.permute.xlu0 %2833
        %2836 = vset.pattern.permute.xlu0 2
        %2837 = vperm.xlu0 %2836, %v337
        %v2838 = vpop.permute.xlu0 %2837
        %2840 = vset.pattern.permute.xlu0 2
        %2841 = vperm.xlu0 %2840, %v338
        %v2842 = vpop.permute.xlu0 %2841
        %2844 = vset.pattern.permute.xlu0 2
        %2845 = vperm.xlu0 %2844, %v339
        %v2846 = vpop.permute.xlu0 %2845
        %2848 = vset.pattern.permute.xlu0 2
        %2849 = vperm.xlu0 %2848, %v340
        %v2850 = vpop.permute.xlu0 %2849
        %2852 = vset.pattern.permute.xlu0 2
        %2853 = vperm.xlu0 %2852, %v341
        %v2854 = vpop.permute.xlu0 %2853
        %2856 = vset.pattern.permute.xlu0 2
        %2857 = vperm.xlu0 %2856, %v342
        %v2858 = vpop.permute.xlu0 %2857
        %2860 = vset.pattern.permute.xlu0 2
        %2861 = vperm.xlu0 %2860, %v343
        %v2862 = vpop.permute.xlu0 %2861
        %2864 = vset.pattern.permute.xlu0 2
        %2865 = vperm.xlu0 %2864, %v344
        %v2866 = vpop.permute.xlu0 %2865
        %2868 = vset.pattern.permute.xlu0 2
        %2869 = vperm.xlu0 %2868, %v345
        %v2870 = vpop.permute.xlu0 %2869
        %2872 = vset.pattern.permute.xlu0 2
        %2873 = vperm.xlu0 %2872, %v346
        %v2874 = vpop.permute.xlu0 %2873
        %2876 = vset.pattern.permute.xlu0 2
        %2877 = vperm.xlu0 %2876, %v347
        %v2878 = vpop.permute.xlu0 %2877
        %2880 = vset.pattern.permute.xlu0 2
        %2881 = vperm.xlu0 %2880, %v348
        %v2882 = vpop.permute.xlu0 %2881
        %2884 = vset.pattern.permute.xlu0 2
        %2885 = vperm.xlu0 %2884, %v349
        %v2886 = vpop.permute.xlu0 %2885
        %2888 = vset.pattern.permute.xlu0 2
        %2889 = vperm.xlu0 %2888, %v350
        %v2890 = vpop.permute.xlu0 %2889
        %2892 = vset.pattern.permute.xlu0 2
        %2893 = vperm.xlu0 %2892, %v351
        %v2894 = vpop.permute.xlu0 %2893
        %v2897 = vsel %vm833, %v2816, 0
        %v2900 = vsel %vm833, %v2817, 0
        %v2903 = vsel %vm833, %v2818, 0
        %v2906 = vsel %vm833, %v2819, 0
        %v2909 = vsel %vm833, %v2820, 0
        %v2912 = vsel %vm833, %v2821, 0
        %v2915 = vsel %vm833, %v2822, 0
        %v2918 = vsel %vm833, %v2823, 0
        %v2921 = vsel %vm833, %v2824, 0
        %v2924 = vsel %vm833, %v2825, 0
        %v2927 = vsel %vm833, %v2826, 0
        %v2930 = vsel %vm833, %v2827, 0
        %v2933 = vsel %vm833, %v2828, 0
        %v2936 = vsel %vm833, %v2829, 0
        %v2939 = vsel %vm833, %v2830, 0
        %v2942 = vsel %vm833, %v2831, 0
        %2944 = vmatpush.msra.mxu0 0.0
        %2945 = vmatpush.msra.mxu0 0.0
        %2946 = vmatpush.msra.mxu0 0.0
        %2947 = vmatpush.msra.mxu0 0.0
        %2948 = vmatpush.msra.mxu0 0.0
        %2949 = vmatpush.msra.mxu0 0.0
        %2950 = vmatpush.msra.mxu0 0.0
        %2951 = vmatpush.msra.mxu0 0.0
        %2952 = vmatpush.msra.mxu0 %v2808
        %2953 = vmatpush.msra.mxu0 %v2800
        %2954 = vmatpush.msra.mxu0 %v2792
        %2955 = vmatpush.msra.mxu0 %v2784
        %2956 = vmatpush.msra.mxu0 %v2776
        %2957 = vmatpush.msra.mxu0 %v2768
        %2958 = vmatpush.msra.mxu0 %v2760
        %2959 = vmatpush.msra.mxu0 %v2752
        %2960 = vmatmul.f32.gmra.mxu0 %v2897
        %v2961 = vpop.f32.mrf.mxu0
        %v2962 = vadd.f32 %v2834, %v2961
        %2963 = vmatmul.f32.gmra.mxu0 %v2900
        %v2964 = vpop.f32.mrf.mxu0
        %v2965 = vadd.f32 %v2838, %v2964
        %2966 = vmatmul.f32.gmra.mxu0 %v2903
        %v2967 = vpop.f32.mrf.mxu0
        %v2968 = vadd.f32 %v2842, %v2967
        %2969 = vmatmul.f32.gmra.mxu0 %v2906
        %v2970 = vpop.f32.mrf.mxu0
        %v2971 = vadd.f32 %v2846, %v2970
        %2972 = vmatmul.f32.gmra.mxu0 %v2909
        %v2973 = vpop.f32.mrf.mxu0
        %v2974 = vadd.f32 %v2850, %v2973
        %2975 = vmatmul.f32.gmra.mxu0 %v2912
        %v2976 = vpop.f32.mrf.mxu0
        %v2977 = vadd.f32 %v2854, %v2976
        %2978 = vmatmul.f32.gmra.mxu0 %v2915
        %v2979 = vpop.f32.mrf.mxu0
        %v2980 = vadd.f32 %v2858, %v2979
        %2981 = vmatmul.f32.gmra.mxu0 %v2918
        %v2982 = vpop.f32.mrf.mxu0
        %v2983 = vadd.f32 %v2862, %v2982
        %2984 = vmatmul.f32.gmra.mxu0 %v2921
        %v2985 = vpop.f32.mrf.mxu0
        %v2986 = vadd.f32 %v2866, %v2985
        %2987 = vmatmul.f32.gmra.mxu0 %v2924
        %v2988 = vpop.f32.mrf.mxu0
        %v2989 = vadd.f32 %v2870, %v2988
        %2990 = vmatmul.f32.gmra.mxu0 %v2927
        %v2991 = vpop.f32.mrf.mxu0
        %v2992 = vadd.f32 %v2874, %v2991
        %2993 = vmatmul.f32.gmra.mxu0 %v2930
        %v2994 = vpop.f32.mrf.mxu0
        %v2995 = vadd.f32 %v2878, %v2994
        %2996 = vmatmul.f32.gmra.mxu0 %v2933
        %v2997 = vpop.f32.mrf.mxu0
        %v2998 = vadd.f32 %v2882, %v2997
        %2999 = vmatmul.f32.gmra.mxu0 %v2936
        %v3000 = vpop.f32.mrf.mxu0
        %v3001 = vadd.f32 %v2886, %v3000
        %3002 = vmatmul.f32.gmra.mxu0 %v2939
        %v3003 = vpop.f32.mrf.mxu0
        %v3004 = vadd.f32 %v2890, %v3003
        %3005 = vmatmul.f32.gmra.mxu0 %v2942
        %v3006 = vpop.f32.mrf.mxu0
        %v3007 = vadd.f32 %v2894, %v3006
        %3008 = vdwg.mxu0
        %3009 = vmatpush.msra.mxu0 0.0
        %3010 = vmatpush.msra.mxu0 0.0
        %3011 = vmatpush.msra.mxu0 0.0
        %3012 = vmatpush.msra.mxu0 0.0
        %3013 = vmatpush.msra.mxu0 0.0
        %3014 = vmatpush.msra.mxu0 0.0
        %3015 = vmatpush.msra.mxu0 0.0
        %3016 = vmatpush.msra.mxu0 0.0
        %3017 = vmatpush.msra.mxu0 %v2809
        %3018 = vmatpush.msra.mxu0 %v2801
        %3019 = vmatpush.msra.mxu0 %v2793
        %3020 = vmatpush.msra.mxu0 %v2785
        %3021 = vmatpush.msra.mxu0 %v2777
        %3022 = vmatpush.msra.mxu0 %v2769
        %3023 = vmatpush.msra.mxu0 %v2761
        %3024 = vmatpush.msra.mxu0 %v2753
        %3025 = vmatmul.f32.gmra.mxu0 %v2897
        %v3026 = vpop.f32.mrf.mxu0
        %v3027 = vadd.f32 %v2834, %v3026
        %3028 = vmatmul.f32.gmra.mxu0 %v2900
        %v3029 = vpop.f32.mrf.mxu0
        %v3030 = vadd.f32 %v2838, %v3029
        %3031 = vmatmul.f32.gmra.mxu0 %v2903
        %v3032 = vpop.f32.mrf.mxu0
        %v3033 = vadd.f32 %v2842, %v3032
        %3034 = vmatmul.f32.gmra.mxu0 %v2906
        %v3035 = vpop.f32.mrf.mxu0
        %v3036 = vadd.f32 %v2846, %v3035
        %3037 = vmatmul.f32.gmra.mxu0 %v2909
        %v3038 = vpop.f32.mrf.mxu0
        %v3039 = vadd.f32 %v2850, %v3038
        %3040 = vmatmul.f32.gmra.mxu0 %v2912
        %v3041 = vpop.f32.mrf.mxu0
        %v3042 = vadd.f32 %v2854, %v3041
        %3043 = vmatmul.f32.gmra.mxu0 %v2915
        %v3044 = vpop.f32.mrf.mxu0
        %v3045 = vadd.f32 %v2858, %v3044
        %3046 = vmatmul.f32.gmra.mxu0 %v2918
        %v3047 = vpop.f32.mrf.mxu0
        %v3048 = vadd.f32 %v2862, %v3047
        %3049 = vmatmul.f32.gmra.mxu0 %v2921
        %v3050 = vpop.f32.mrf.mxu0
        %v3051 = vadd.f32 %v2866, %v3050
        %3052 = vmatmul.f32.gmra.mxu0 %v2924
        %v3053 = vpop.f32.mrf.mxu0
        %v3054 = vadd.f32 %v2870, %v3053
        %3055 = vmatmul.f32.gmra.mxu0 %v2927
        %v3056 = vpop.f32.mrf.mxu0
        %v3057 = vadd.f32 %v2874, %v3056
        %3058 = vmatmul.f32.gmra.mxu0 %v2930
        %v3059 = vpop.f32.mrf.mxu0
        %v3060 = vadd.f32 %v2878, %v3059
        %3061 = vmatmul.f32.gmra.mxu0 %v2933
        %v3062 = vpop.f32.mrf.mxu0
        %v3063 = vadd.f32 %v2882, %v3062
        %3064 = vmatmul.f32.gmra.mxu0 %v2936
        %v3065 = vpop.f32.mrf.mxu0
        %v3066 = vadd.f32 %v2886, %v3065
        %3067 = vmatmul.f32.gmra.mxu0 %v2939
        %v3068 = vpop.f32.mrf.mxu0
        %v3069 = vadd.f32 %v2890, %v3068
        %3070 = vmatmul.f32.gmra.mxu0 %v2942
        %v3071 = vpop.f32.mrf.mxu0
        %v3072 = vadd.f32 %v2894, %v3071
        %3073 = vdwg.mxu0
        %3074 = vmatpush.msra.mxu0 0.0
        %3075 = vmatpush.msra.mxu0 0.0
        %3076 = vmatpush.msra.mxu0 0.0
        %3077 = vmatpush.msra.mxu0 0.0
        %3078 = vmatpush.msra.mxu0 0.0
        %3079 = vmatpush.msra.mxu0 0.0
        %3080 = vmatpush.msra.mxu0 0.0
        %3081 = vmatpush.msra.mxu0 0.0
        %3082 = vmatpush.msra.mxu0 %v2810
        %3083 = vmatpush.msra.mxu0 %v2802
        %3084 = vmatpush.msra.mxu0 %v2794
        %3085 = vmatpush.msra.mxu0 %v2786
        %3086 = vmatpush.msra.mxu0 %v2778
        %3087 = vmatpush.msra.mxu0 %v2770
        %3088 = vmatpush.msra.mxu0 %v2762
        %3089 = vmatpush.msra.mxu0 %v2754
        %3090 = vmatmul.f32.gmra.mxu0 %v2897
        %v3091 = vpop.f32.mrf.mxu0
        %v3092 = vadd.f32 %v2834, %v3091
        %3093 = vmatmul.f32.gmra.mxu0 %v2900
        %v3094 = vpop.f32.mrf.mxu0
        %v3095 = vadd.f32 %v2838, %v3094
        %3096 = vmatmul.f32.gmra.mxu0 %v2903
        %v3097 = vpop.f32.mrf.mxu0
        %v3098 = vadd.f32 %v2842, %v3097
        %3099 = vmatmul.f32.gmra.mxu0 %v2906
        %v3100 = vpop.f32.mrf.mxu0
        %v3101 = vadd.f32 %v2846, %v3100
        %3102 = vmatmul.f32.gmra.mxu0 %v2909
        %v3103 = vpop.f32.mrf.mxu0
        %v3104 = vadd.f32 %v2850, %v3103
        %3105 = vmatmul.f32.gmra.mxu0 %v2912
        %v3106 = vpop.f32.mrf.mxu0
        %v3107 = vadd.f32 %v2854, %v3106
        %3108 = vmatmul.f32.gmra.mxu0 %v2915
        %v3109 = vpop.f32.mrf.mxu0
        %v3110 = vadd.f32 %v2858, %v3109
        %3111 = vmatmul.f32.gmra.mxu0 %v2918
        %v3112 = vpop.f32.mrf.mxu0
        %v3113 = vadd.f32 %v2862, %v3112
        %3114 = vmatmul.f32.gmra.mxu0 %v2921
        %v3115 = vpop.f32.mrf.mxu0
        %v3116 = vadd.f32 %v2866, %v3115
        %3117 = vmatmul.f32.gmra.mxu0 %v2924
        %v3118 = vpop.f32.mrf.mxu0
        %v3119 = vadd.f32 %v2870, %v3118
        %3120 = vmatmul.f32.gmra.mxu0 %v2927
        %v3121 = vpop.f32.mrf.mxu0
        %v3122 = vadd.f32 %v2874, %v3121
        %3123 = vmatmul.f32.gmra.mxu0 %v2930
        %v3124 = vpop.f32.mrf.mxu0
        %v3125 = vadd.f32 %v2878, %v3124
        %3126 = vmatmul.f32.gmra.mxu0 %v2933
        %v3127 = vpop.f32.mrf.mxu0
        %v3128 = vadd.f32 %v2882, %v3127
        %3129 = vmatmul.f32.gmra.mxu0 %v2936
        %v3130 = vpop.f32.mrf.mxu0
        %v3131 = vadd.f32 %v2886, %v3130
        %3132 = vmatmul.f32.gmra.mxu0 %v2939
        %v3133 = vpop.f32.mrf.mxu0
        %v3134 = vadd.f32 %v2890, %v3133
        %3135 = vmatmul.f32.gmra.mxu0 %v2942
        %v3136 = vpop.f32.mrf.mxu0
        %v3137 = vadd.f32 %v2894, %v3136
        %3138 = vdwg.mxu0
        %3139 = vmatpush.msra.mxu0 0.0
        %3140 = vmatpush.msra.mxu0 0.0
        %3141 = vmatpush.msra.mxu0 0.0
        %3142 = vmatpush.msra.mxu0 0.0
        %3143 = vmatpush.msra.mxu0 0.0
        %3144 = vmatpush.msra.mxu0 0.0
        %3145 = vmatpush.msra.mxu0 0.0
        %3146 = vmatpush.msra.mxu0 0.0
        %3147 = vmatpush.msra.mxu0 %v2811
        %3148 = vmatpush.msra.mxu0 %v2803
        %3149 = vmatpush.msra.mxu0 %v2795
        %3150 = vmatpush.msra.mxu0 %v2787
        %3151 = vmatpush.msra.mxu0 %v2779
        %3152 = vmatpush.msra.mxu0 %v2771
        %3153 = vmatpush.msra.mxu0 %v2763
        %3154 = vmatpush.msra.mxu0 %v2755
        %3155 = vmatmul.f32.gmra.mxu0 %v2897
        %v3156 = vpop.f32.mrf.mxu0
        %v3157 = vadd.f32 %v2834, %v3156
        %3158 = vmatmul.f32.gmra.mxu0 %v2900
        %v3159 = vpop.f32.mrf.mxu0
        %v3160 = vadd.f32 %v2838, %v3159
        %3161 = vmatmul.f32.gmra.mxu0 %v2903
        %v3162 = vpop.f32.mrf.mxu0
        %v3163 = vadd.f32 %v2842, %v3162
        %3164 = vmatmul.f32.gmra.mxu0 %v2906
        %v3165 = vpop.f32.mrf.mxu0
        %v3166 = vadd.f32 %v2846, %v3165
        %3167 = vmatmul.f32.gmra.mxu0 %v2909
        %v3168 = vpop.f32.mrf.mxu0
        %v3169 = vadd.f32 %v2850, %v3168
        %3170 = vmatmul.f32.gmra.mxu0 %v2912
        %v3171 = vpop.f32.mrf.mxu0
        %v3172 = vadd.f32 %v2854, %v3171
        %3173 = vmatmul.f32.gmra.mxu0 %v2915
        %v3174 = vpop.f32.mrf.mxu0
        %v3175 = vadd.f32 %v2858, %v3174
        %3176 = vmatmul.f32.gmra.mxu0 %v2918
        %v3177 = vpop.f32.mrf.mxu0
        %v3178 = vadd.f32 %v2862, %v3177
        %3179 = vmatmul.f32.gmra.mxu0 %v2921
        %v3180 = vpop.f32.mrf.mxu0
        %v3181 = vadd.f32 %v2866, %v3180
        %3182 = vmatmul.f32.gmra.mxu0 %v2924
        %v3183 = vpop.f32.mrf.mxu0
        %v3184 = vadd.f32 %v2870, %v3183
        %3185 = vmatmul.f32.gmra.mxu0 %v2927
        %v3186 = vpop.f32.mrf.mxu0
        %v3187 = vadd.f32 %v2874, %v3186
        %3188 = vmatmul.f32.gmra.mxu0 %v2930
        %v3189 = vpop.f32.mrf.mxu0
        %v3190 = vadd.f32 %v2878, %v3189
        %3191 = vmatmul.f32.gmra.mxu0 %v2933
        %v3192 = vpop.f32.mrf.mxu0
        %v3193 = vadd.f32 %v2882, %v3192
        %3194 = vmatmul.f32.gmra.mxu0 %v2936
        %v3195 = vpop.f32.mrf.mxu0
        %v3196 = vadd.f32 %v2886, %v3195
        %3197 = vmatmul.f32.gmra.mxu0 %v2939
        %v3198 = vpop.f32.mrf.mxu0
        %v3199 = vadd.f32 %v2890, %v3198
        %3200 = vmatmul.f32.gmra.mxu0 %v2942
        %v3201 = vpop.f32.mrf.mxu0
        %v3202 = vadd.f32 %v2894, %v3201
        %3203 = vdwg.mxu0
        %3204 = vmatpush.msra.mxu0 0.0
        %3205 = vmatpush.msra.mxu0 0.0
        %3206 = vmatpush.msra.mxu0 0.0
        %3207 = vmatpush.msra.mxu0 0.0
        %3208 = vmatpush.msra.mxu0 0.0
        %3209 = vmatpush.msra.mxu0 0.0
        %3210 = vmatpush.msra.mxu0 0.0
        %3211 = vmatpush.msra.mxu0 0.0
        %3212 = vmatpush.msra.mxu0 %v2812
        %3213 = vmatpush.msra.mxu0 %v2804
        %3214 = vmatpush.msra.mxu0 %v2796
        %3215 = vmatpush.msra.mxu0 %v2788
        %3216 = vmatpush.msra.mxu0 %v2780
        %3217 = vmatpush.msra.mxu0 %v2772
        %3218 = vmatpush.msra.mxu0 %v2764
        %3219 = vmatpush.msra.mxu0 %v2756
        %3220 = vmatmul.f32.gmra.mxu0 %v2897
        %v3221 = vpop.f32.mrf.mxu0
        %v3222 = vadd.f32 %v2834, %v3221
        %3223 = vmatmul.f32.gmra.mxu0 %v2900
        %v3224 = vpop.f32.mrf.mxu0
        %v3225 = vadd.f32 %v2838, %v3224
        %3226 = vmatmul.f32.gmra.mxu0 %v2903
        %v3227 = vpop.f32.mrf.mxu0
        %v3228 = vadd.f32 %v2842, %v3227
        %3229 = vmatmul.f32.gmra.mxu0 %v2906
        %v3230 = vpop.f32.mrf.mxu0
        %v3231 = vadd.f32 %v2846, %v3230
        %3232 = vmatmul.f32.gmra.mxu0 %v2909
        %v3233 = vpop.f32.mrf.mxu0
        %v3234 = vadd.f32 %v2850, %v3233
        %3235 = vmatmul.f32.gmra.mxu0 %v2912
        %v3236 = vpop.f32.mrf.mxu0
        %v3237 = vadd.f32 %v2854, %v3236
        %3238 = vmatmul.f32.gmra.mxu0 %v2915
        %v3239 = vpop.f32.mrf.mxu0
        %v3240 = vadd.f32 %v2858, %v3239
        %3241 = vmatmul.f32.gmra.mxu0 %v2918
        %v3242 = vpop.f32.mrf.mxu0
        %v3243 = vadd.f32 %v2862, %v3242
        %3244 = vmatmul.f32.gmra.mxu0 %v2921
        %v3245 = vpop.f32.mrf.mxu0
        %v3246 = vadd.f32 %v2866, %v3245
        %3247 = vmatmul.f32.gmra.mxu0 %v2924
        %v3248 = vpop.f32.mrf.mxu0
        %v3249 = vadd.f32 %v2870, %v3248
        %3250 = vmatmul.f32.gmra.mxu0 %v2927
        %v3251 = vpop.f32.mrf.mxu0
        %v3252 = vadd.f32 %v2874, %v3251
        %3253 = vmatmul.f32.gmra.mxu0 %v2930
        %v3254 = vpop.f32.mrf.mxu0
        %v3255 = vadd.f32 %v2878, %v3254
        %3256 = vmatmul.f32.gmra.mxu0 %v2933
        %v3257 = vpop.f32.mrf.mxu0
        %v3258 = vadd.f32 %v2882, %v3257
        %3259 = vmatmul.f32.gmra.mxu0 %v2936
        %v3260 = vpop.f32.mrf.mxu0
        %v3261 = vadd.f32 %v2886, %v3260
        %3262 = vmatmul.f32.gmra.mxu0 %v2939
        %v3263 = vpop.f32.mrf.mxu0
        %v3264 = vadd.f32 %v2890, %v3263
        %3265 = vmatmul.f32.gmra.mxu0 %v2942
        %v3266 = vpop.f32.mrf.mxu0
        %v3267 = vadd.f32 %v2894, %v3266
        %3268 = vdwg.mxu0
        %3269 = vmatpush.msra.mxu0 0.0
        %3270 = vmatpush.msra.mxu0 0.0
        %3271 = vmatpush.msra.mxu0 0.0
        %3272 = vmatpush.msra.mxu0 0.0
        %3273 = vmatpush.msra.mxu0 0.0
        %3274 = vmatpush.msra.mxu0 0.0
        %3275 = vmatpush.msra.mxu0 0.0
        %3276 = vmatpush.msra.mxu0 0.0
        %3277 = vmatpush.msra.mxu0 %v2813
        %3278 = vmatpush.msra.mxu0 %v2805
        %3279 = vmatpush.msra.mxu0 %v2797
        %3280 = vmatpush.msra.mxu0 %v2789
        %3281 = vmatpush.msra.mxu0 %v2781
        %3282 = vmatpush.msra.mxu0 %v2773
        %3283 = vmatpush.msra.mxu0 %v2765
        %3284 = vmatpush.msra.mxu0 %v2757
        %3285 = vmatmul.f32.gmra.mxu0 %v2897
        %v3286 = vpop.f32.mrf.mxu0
        %v3287 = vadd.f32 %v2834, %v3286
        %3288 = vmatmul.f32.gmra.mxu0 %v2900
        %v3289 = vpop.f32.mrf.mxu0
        %v3290 = vadd.f32 %v2838, %v3289
        %3291 = vmatmul.f32.gmra.mxu0 %v2903
        %v3292 = vpop.f32.mrf.mxu0
        %v3293 = vadd.f32 %v2842, %v3292
        %3294 = vmatmul.f32.gmra.mxu0 %v2906
        %v3295 = vpop.f32.mrf.mxu0
        %v3296 = vadd.f32 %v2846, %v3295
        %3297 = vmatmul.f32.gmra.mxu0 %v2909
        %v3298 = vpop.f32.mrf.mxu0
        %v3299 = vadd.f32 %v2850, %v3298
        %3300 = vmatmul.f32.gmra.mxu0 %v2912
        %v3301 = vpop.f32.mrf.mxu0
        %v3302 = vadd.f32 %v2854, %v3301
        %3303 = vmatmul.f32.gmra.mxu0 %v2915
        %v3304 = vpop.f32.mrf.mxu0
        %v3305 = vadd.f32 %v2858, %v3304
        %3306 = vmatmul.f32.gmra.mxu0 %v2918
        %v3307 = vpop.f32.mrf.mxu0
        %v3308 = vadd.f32 %v2862, %v3307
        %3309 = vmatmul.f32.gmra.mxu0 %v2921
        %v3310 = vpop.f32.mrf.mxu0
        %v3311 = vadd.f32 %v2866, %v3310
        %3312 = vmatmul.f32.gmra.mxu0 %v2924
        %v3313 = vpop.f32.mrf.mxu0
        %v3314 = vadd.f32 %v2870, %v3313
        %3315 = vmatmul.f32.gmra.mxu0 %v2927
        %v3316 = vpop.f32.mrf.mxu0
        %v3317 = vadd.f32 %v2874, %v3316
        %3318 = vmatmul.f32.gmra.mxu0 %v2930
        %v3319 = vpop.f32.mrf.mxu0
        %v3320 = vadd.f32 %v2878, %v3319
        %3321 = vmatmul.f32.gmra.mxu0 %v2933
        %v3322 = vpop.f32.mrf.mxu0
        %v3323 = vadd.f32 %v2882, %v3322
        %3324 = vmatmul.f32.gmra.mxu0 %v2936
        %v3325 = vpop.f32.mrf.mxu0
        %v3326 = vadd.f32 %v2886, %v3325
        %3327 = vmatmul.f32.gmra.mxu0 %v2939
        %v3328 = vpop.f32.mrf.mxu0
        %v3329 = vadd.f32 %v2890, %v3328
        %3330 = vmatmul.f32.gmra.mxu0 %v2942
        %v3331 = vpop.f32.mrf.mxu0
        %v3332 = vadd.f32 %v2894, %v3331
        %3333 = vdwg.mxu0
        %3334 = vmatpush.msra.mxu0 0.0
        %3335 = vmatpush.msra.mxu0 0.0
        %3336 = vmatpush.msra.mxu0 0.0
        %3337 = vmatpush.msra.mxu0 0.0
        %3338 = vmatpush.msra.mxu0 0.0
        %3339 = vmatpush.msra.mxu0 0.0
        %3340 = vmatpush.msra.mxu0 0.0
        %3341 = vmatpush.msra.mxu0 0.0
        %3342 = vmatpush.msra.mxu0 %v2814
        %3343 = vmatpush.msra.mxu0 %v2806
        %3344 = vmatpush.msra.mxu0 %v2798
        %3345 = vmatpush.msra.mxu0 %v2790
        %3346 = vmatpush.msra.mxu0 %v2782
        %3347 = vmatpush.msra.mxu0 %v2774
        %3348 = vmatpush.msra.mxu0 %v2766
        %3349 = vmatpush.msra.mxu0 %v2758
        %3350 = vmatmul.f32.gmra.mxu0 %v2897
        %v3351 = vpop.f32.mrf.mxu0
        %v3352 = vadd.f32 %v2834, %v3351
        %3353 = vmatmul.f32.gmra.mxu0 %v2900
        %v3354 = vpop.f32.mrf.mxu0
        %v3355 = vadd.f32 %v2838, %v3354
        %3356 = vmatmul.f32.gmra.mxu0 %v2903
        %v3357 = vpop.f32.mrf.mxu0
        %v3358 = vadd.f32 %v2842, %v3357
        %3359 = vmatmul.f32.gmra.mxu0 %v2906
        %v3360 = vpop.f32.mrf.mxu0
        %v3361 = vadd.f32 %v2846, %v3360
        %3362 = vmatmul.f32.gmra.mxu0 %v2909
        %v3363 = vpop.f32.mrf.mxu0
        %v3364 = vadd.f32 %v2850, %v3363
        %3365 = vmatmul.f32.gmra.mxu0 %v2912
        %v3366 = vpop.f32.mrf.mxu0
        %v3367 = vadd.f32 %v2854, %v3366
        %3368 = vmatmul.f32.gmra.mxu0 %v2915
        %v3369 = vpop.f32.mrf.mxu0
        %v3370 = vadd.f32 %v2858, %v3369
        %3371 = vmatmul.f32.gmra.mxu0 %v2918
        %v3372 = vpop.f32.mrf.mxu0
        %v3373 = vadd.f32 %v2862, %v3372
        %3374 = vmatmul.f32.gmra.mxu0 %v2921
        %v3375 = vpop.f32.mrf.mxu0
        %v3376 = vadd.f32 %v2866, %v3375
        %3377 = vmatmul.f32.gmra.mxu0 %v2924
        %v3378 = vpop.f32.mrf.mxu0
        %v3379 = vadd.f32 %v2870, %v3378
        %3380 = vmatmul.f32.gmra.mxu0 %v2927
        %v3381 = vpop.f32.mrf.mxu0
        %v3382 = vadd.f32 %v2874, %v3381
        %3383 = vmatmul.f32.gmra.mxu0 %v2930
        %v3384 = vpop.f32.mrf.mxu0
        %v3385 = vadd.f32 %v2878, %v3384
        %3386 = vmatmul.f32.gmra.mxu0 %v2933
        %v3387 = vpop.f32.mrf.mxu0
        %v3388 = vadd.f32 %v2882, %v3387
        %3389 = vmatmul.f32.gmra.mxu0 %v2936
        %v3390 = vpop.f32.mrf.mxu0
        %v3391 = vadd.f32 %v2886, %v3390
        %3392 = vmatmul.f32.gmra.mxu0 %v2939
        %v3393 = vpop.f32.mrf.mxu0
        %v3394 = vadd.f32 %v2890, %v3393
        %3395 = vmatmul.f32.gmra.mxu0 %v2942
        %v3396 = vpop.f32.mrf.mxu0
        %v3397 = vadd.f32 %v2894, %v3396
        %3398 = vdwg.mxu0
        %3399 = vmatpush.msra.mxu0 0.0
        %3400 = vmatpush.msra.mxu0 0.0
        %3401 = vmatpush.msra.mxu0 0.0
        %3402 = vmatpush.msra.mxu0 0.0
        %3403 = vmatpush.msra.mxu0 0.0
        %3404 = vmatpush.msra.mxu0 0.0
        %3405 = vmatpush.msra.mxu0 0.0
        %3406 = vmatpush.msra.mxu0 0.0
        %3407 = vmatpush.msra.mxu0 %v2815
        %3408 = vmatpush.msra.mxu0 %v2807
        %3409 = vmatpush.msra.mxu0 %v2799
        %3410 = vmatpush.msra.mxu0 %v2791
        %3411 = vmatpush.msra.mxu0 %v2783
        %3412 = vmatpush.msra.mxu0 %v2775
        %3413 = vmatpush.msra.mxu0 %v2767
        %3414 = vmatpush.msra.mxu0 %v2759
        %3415 = vmatmul.f32.gmra.mxu0 %v2897
        %v3416 = vpop.f32.mrf.mxu0
        %v3417 = vadd.f32 %v2834, %v3416
        %3418 = vmatmul.f32.gmra.mxu0 %v2900
        %v3419 = vpop.f32.mrf.mxu0
        %v3420 = vadd.f32 %v2838, %v3419
        %3421 = vmatmul.f32.gmra.mxu0 %v2903
        %v3422 = vpop.f32.mrf.mxu0
        %v3423 = vadd.f32 %v2842, %v3422
        %3424 = vmatmul.f32.gmra.mxu0 %v2906
        %v3425 = vpop.f32.mrf.mxu0
        %v3426 = vadd.f32 %v2846, %v3425
        %3427 = vmatmul.f32.gmra.mxu0 %v2909
        %v3428 = vpop.f32.mrf.mxu0
        %v3429 = vadd.f32 %v2850, %v3428
        %3430 = vmatmul.f32.gmra.mxu0 %v2912
        %v3431 = vpop.f32.mrf.mxu0
        %v3432 = vadd.f32 %v2854, %v3431
        %3433 = vmatmul.f32.gmra.mxu0 %v2915
        %v3434 = vpop.f32.mrf.mxu0
        %v3435 = vadd.f32 %v2858, %v3434
        %3436 = vmatmul.f32.gmra.mxu0 %v2918
        %v3437 = vpop.f32.mrf.mxu0
        %v3438 = vadd.f32 %v2862, %v3437
        %3439 = vmatmul.f32.gmra.mxu0 %v2921
        %v3440 = vpop.f32.mrf.mxu0
        %v3441 = vadd.f32 %v2866, %v3440
        %3442 = vmatmul.f32.gmra.mxu0 %v2924
        %v3443 = vpop.f32.mrf.mxu0
        %v3444 = vadd.f32 %v2870, %v3443
        %3445 = vmatmul.f32.gmra.mxu0 %v2927
        %v3446 = vpop.f32.mrf.mxu0
        %v3447 = vadd.f32 %v2874, %v3446
        %3448 = vmatmul.f32.gmra.mxu0 %v2930
        %v3449 = vpop.f32.mrf.mxu0
        %v3450 = vadd.f32 %v2878, %v3449
        %3451 = vmatmul.f32.gmra.mxu0 %v2933
        %v3452 = vpop.f32.mrf.mxu0
        %v3453 = vadd.f32 %v2882, %v3452
        %3454 = vmatmul.f32.gmra.mxu0 %v2936
        %v3455 = vpop.f32.mrf.mxu0
        %v3456 = vadd.f32 %v2886, %v3455
        %3457 = vmatmul.f32.gmra.mxu0 %v2939
        %v3458 = vpop.f32.mrf.mxu0
        %v3459 = vadd.f32 %v2890, %v3458
        %3460 = vmatmul.f32.gmra.mxu0 %v2942
        %v3461 = vpop.f32.mrf.mxu0
        %v3462 = vadd.f32 %v2894, %v3461
        %3463 = vdwg.mxu0
        %v3464 = vxor.u32 %v2962, 2147483648
        %v3465 = vxor.u32 %v3027, 2147483648
        %v3466 = vxor.u32 %v3092, 2147483648
        %v3467 = vxor.u32 %v3157, 2147483648
        %v3468 = vxor.u32 %v3222, 2147483648
        %v3469 = vxor.u32 %v3287, 2147483648
        %v3470 = vxor.u32 %v3352, 2147483648
        %v3471 = vxor.u32 %v3417, 2147483648
        %v3472 = vxor.u32 %v2965, 2147483648
        %v3473 = vxor.u32 %v3030, 2147483648
        %v3474 = vxor.u32 %v3095, 2147483648
        %v3475 = vxor.u32 %v3160, 2147483648
        %v3476 = vxor.u32 %v3225, 2147483648
        %v3477 = vxor.u32 %v3290, 2147483648
        %v3478 = vxor.u32 %v3355, 2147483648
        %v3479 = vxor.u32 %v3420, 2147483648
        %v3480 = vxor.u32 %v2968, 2147483648
        %v3481 = vxor.u32 %v3033, 2147483648
        %v3482 = vxor.u32 %v3098, 2147483648
        %v3483 = vxor.u32 %v3163, 2147483648
        %v3484 = vxor.u32 %v3228, 2147483648
        %v3485 = vxor.u32 %v3293, 2147483648
        %v3486 = vxor.u32 %v3358, 2147483648
        %v3487 = vxor.u32 %v3423, 2147483648
        %v3488 = vxor.u32 %v2971, 2147483648
        %v3489 = vxor.u32 %v3036, 2147483648
        %v3490 = vxor.u32 %v3101, 2147483648
        %v3491 = vxor.u32 %v3166, 2147483648
        %v3492 = vxor.u32 %v3231, 2147483648
        %v3493 = vxor.u32 %v3296, 2147483648
        %v3494 = vxor.u32 %v3361, 2147483648
        %v3495 = vxor.u32 %v3426, 2147483648
        %v3496 = vxor.u32 %v2974, 2147483648
        %v3497 = vxor.u32 %v3039, 2147483648
        %v3498 = vxor.u32 %v3104, 2147483648
        %v3499 = vxor.u32 %v3169, 2147483648
        %v3500 = vxor.u32 %v3234, 2147483648
        %v3501 = vxor.u32 %v3299, 2147483648
        %v3502 = vxor.u32 %v3364, 2147483648
        %v3503 = vxor.u32 %v3429, 2147483648
        %v3504 = vxor.u32 %v2977, 2147483648
        %v3505 = vxor.u32 %v3042, 2147483648
        %v3506 = vxor.u32 %v3107, 2147483648
        %v3507 = vxor.u32 %v3172, 2147483648
        %v3508 = vxor.u32 %v3237, 2147483648
        %v3509 = vxor.u32 %v3302, 2147483648
        %v3510 = vxor.u32 %v3367, 2147483648
        %v3511 = vxor.u32 %v3432, 2147483648
        %v3512 = vxor.u32 %v2980, 2147483648
        %v3513 = vxor.u32 %v3045, 2147483648
        %v3514 = vxor.u32 %v3110, 2147483648
        %v3515 = vxor.u32 %v3175, 2147483648
        %v3516 = vxor.u32 %v3240, 2147483648
        %v3517 = vxor.u32 %v3305, 2147483648
        %v3518 = vxor.u32 %v3370, 2147483648
        %v3519 = vxor.u32 %v3435, 2147483648
        %v3520 = vxor.u32 %v2983, 2147483648
        %v3521 = vxor.u32 %v3048, 2147483648
        %v3522 = vxor.u32 %v3113, 2147483648
        %v3523 = vxor.u32 %v3178, 2147483648
        %v3524 = vxor.u32 %v3243, 2147483648
        %v3525 = vxor.u32 %v3308, 2147483648
        %v3526 = vxor.u32 %v3373, 2147483648
        %v3527 = vxor.u32 %v3438, 2147483648
        %v3528 = vxor.u32 %v2986, 2147483648
        %v3529 = vxor.u32 %v3051, 2147483648
        %v3530 = vxor.u32 %v3116, 2147483648
        %v3531 = vxor.u32 %v3181, 2147483648
        %v3532 = vxor.u32 %v3246, 2147483648
        %v3533 = vxor.u32 %v3311, 2147483648
        %v3534 = vxor.u32 %v3376, 2147483648
        %v3535 = vxor.u32 %v3441, 2147483648
        %v3536 = vxor.u32 %v2989, 2147483648
        %v3537 = vxor.u32 %v3054, 2147483648
        %v3538 = vxor.u32 %v3119, 2147483648
        %v3539 = vxor.u32 %v3184, 2147483648
        %v3540 = vxor.u32 %v3249, 2147483648
        %v3541 = vxor.u32 %v3314, 2147483648
        %v3542 = vxor.u32 %v3379, 2147483648
        %v3543 = vxor.u32 %v3444, 2147483648
        %v3544 = vxor.u32 %v2992, 2147483648
        %v3545 = vxor.u32 %v3057, 2147483648
        %v3546 = vxor.u32 %v3122, 2147483648
        %v3547 = vxor.u32 %v3187, 2147483648
        %v3548 = vxor.u32 %v3252, 2147483648
        %v3549 = vxor.u32 %v3317, 2147483648
        %v3550 = vxor.u32 %v3382, 2147483648
        %v3551 = vxor.u32 %v3447, 2147483648
        %v3552 = vxor.u32 %v2995, 2147483648
        %v3553 = vxor.u32 %v3060, 2147483648
        %v3554 = vxor.u32 %v3125, 2147483648
        %v3555 = vxor.u32 %v3190, 2147483648
        %v3556 = vxor.u32 %v3255, 2147483648
        %v3557 = vxor.u32 %v3320, 2147483648
        %v3558 = vxor.u32 %v3385, 2147483648
        %v3559 = vxor.u32 %v3450, 2147483648
        %v3560 = vxor.u32 %v2998, 2147483648
        %v3561 = vxor.u32 %v3063, 2147483648
        %v3562 = vxor.u32 %v3128, 2147483648
        %v3563 = vxor.u32 %v3193, 2147483648
        %v3564 = vxor.u32 %v3258, 2147483648
        %v3565 = vxor.u32 %v3323, 2147483648
        %v3566 = vxor.u32 %v3388, 2147483648
        %v3567 = vxor.u32 %v3453, 2147483648
        %v3568 = vxor.u32 %v3001, 2147483648
        %v3569 = vxor.u32 %v3066, 2147483648
        %v3570 = vxor.u32 %v3131, 2147483648
        %v3571 = vxor.u32 %v3196, 2147483648
        %v3572 = vxor.u32 %v3261, 2147483648
        %v3573 = vxor.u32 %v3326, 2147483648
        %v3574 = vxor.u32 %v3391, 2147483648
        %v3575 = vxor.u32 %v3456, 2147483648
        %v3576 = vxor.u32 %v3004, 2147483648
        %v3577 = vxor.u32 %v3069, 2147483648
        %v3578 = vxor.u32 %v3134, 2147483648
        %v3579 = vxor.u32 %v3199, 2147483648
        %v3580 = vxor.u32 %v3264, 2147483648
        %v3581 = vxor.u32 %v3329, 2147483648
        %v3582 = vxor.u32 %v3394, 2147483648
        %v3583 = vxor.u32 %v3459, 2147483648
        %v3584 = vxor.u32 %v3007, 2147483648
        %v3585 = vxor.u32 %v3072, 2147483648
        %v3586 = vxor.u32 %v3137, 2147483648
        %v3587 = vxor.u32 %v3202, 2147483648
        %v3588 = vxor.u32 %v3267, 2147483648
        %v3589 = vxor.u32 %v3332, 2147483648
        %v3590 = vxor.u32 %v3397, 2147483648
        %v3591 = vxor.u32 %v3462, 2147483648
        %v3592 = vmul.f32 %v3464, 1.442695
        %v3593 = vpow.pop %v3592
        %v3594 = vmul.f32 %v3465, 1.442695
        %v3595 = vpow.pop %v3594
        %v3596 = vmul.f32 %v3466, 1.442695
        %v3597 = vpow.pop %v3596
        %v3598 = vmul.f32 %v3467, 1.442695
        %v3599 = vpow.pop %v3598
        %v3600 = vmul.f32 %v3468, 1.442695
        %v3601 = vpow.pop %v3600
        %v3602 = vmul.f32 %v3469, 1.442695
        %v3603 = vpow.pop %v3602
        %v3604 = vmul.f32 %v3470, 1.442695
        %v3605 = vpow.pop %v3604
        %v3606 = vmul.f32 %v3471, 1.442695
        %v3607 = vpow.pop %v3606
        %v3608 = vmul.f32 %v3472, 1.442695
        %v3609 = vpow.pop %v3608
        %v3610 = vmul.f32 %v3473, 1.442695
        %v3611 = vpow.pop %v3610
        %v3612 = vmul.f32 %v3474, 1.442695
        %v3613 = vpow.pop %v3612
        %v3614 = vmul.f32 %v3475, 1.442695
        %v3615 = vpow.pop %v3614
        %v3616 = vmul.f32 %v3476, 1.442695
        %v3617 = vpow.pop %v3616
        %v3618 = vmul.f32 %v3477, 1.442695
        %v3619 = vpow.pop %v3618
        %v3620 = vmul.f32 %v3478, 1.442695
        %v3621 = vpow.pop %v3620
        %v3622 = vmul.f32 %v3479, 1.442695
        %v3623 = vpow.pop %v3622
        %v3624 = vmul.f32 %v3480, 1.442695
        %v3625 = vpow.pop %v3624
        %v3626 = vmul.f32 %v3481, 1.442695
        %v3627 = vpow.pop %v3626
        %v3628 = vmul.f32 %v3482, 1.442695
        %v3629 = vpow.pop %v3628
        %v3630 = vmul.f32 %v3483, 1.442695
        %v3631 = vpow.pop %v3630
        %v3632 = vmul.f32 %v3484, 1.442695
        %v3633 = vpow.pop %v3632
        %v3634 = vmul.f32 %v3485, 1.442695
        %v3635 = vpow.pop %v3634
        %v3636 = vmul.f32 %v3486, 1.442695
        %v3637 = vpow.pop %v3636
        %v3638 = vmul.f32 %v3487, 1.442695
        %v3639 = vpow.pop %v3638
        %v3640 = vmul.f32 %v3488, 1.442695
        %v3641 = vpow.pop %v3640
        %v3642 = vmul.f32 %v3489, 1.442695
        %v3643 = vpow.pop %v3642
        %v3644 = vmul.f32 %v3490, 1.442695
        %v3645 = vpow.pop %v3644
        %v3646 = vmul.f32 %v3491, 1.442695
        %v3647 = vpow.pop %v3646
        %v3648 = vmul.f32 %v3492, 1.442695
        %v3649 = vpow.pop %v3648
        %v3650 = vmul.f32 %v3493, 1.442695
        %v3651 = vpow.pop %v3650
        %v3652 = vmul.f32 %v3494, 1.442695
        %v3653 = vpow.pop %v3652
        %v3654 = vmul.f32 %v3495, 1.442695
        %v3655 = vpow.pop %v3654
        %v3656 = vmul.f32 %v3496, 1.442695
        %v3657 = vpow.pop %v3656
        %v3658 = vmul.f32 %v3497, 1.442695
        %v3659 = vpow.pop %v3658
        %v3660 = vmul.f32 %v3498, 1.442695
        %v3661 = vpow.pop %v3660
        %v3662 = vmul.f32 %v3499, 1.442695
        %v3663 = vpow.pop %v3662
        %v3664 = vmul.f32 %v3500, 1.442695
        %v3665 = vpow.pop %v3664
        %v3666 = vmul.f32 %v3501, 1.442695
        %v3667 = vpow.pop %v3666
        %v3668 = vmul.f32 %v3502, 1.442695
        %v3669 = vpow.pop %v3668
        %v3670 = vmul.f32 %v3503, 1.442695
        %v3671 = vpow.pop %v3670
        %v3672 = vmul.f32 %v3504, 1.442695
        %v3673 = vpow.pop %v3672
        %v3674 = vmul.f32 %v3505, 1.442695
        %v3675 = vpow.pop %v3674
        %v3676 = vmul.f32 %v3506, 1.442695
        %v3677 = vpow.pop %v3676
        %v3678 = vmul.f32 %v3507, 1.442695
        %v3679 = vpow.pop %v3678
        %v3680 = vmul.f32 %v3508, 1.442695
        %v3681 = vpow.pop %v3680
        %v3682 = vmul.f32 %v3509, 1.442695
        %v3683 = vpow.pop %v3682
        %v3684 = vmul.f32 %v3510, 1.442695
        %v3685 = vpow.pop %v3684
        %v3686 = vmul.f32 %v3511, 1.442695
        %v3687 = vpow.pop %v3686
        %v3688 = vmul.f32 %v3512, 1.442695
        %v3689 = vpow.pop %v3688
        %v3690 = vmul.f32 %v3513, 1.442695
        %v3691 = vpow.pop %v3690
        %v3692 = vmul.f32 %v3514, 1.442695
        %v3693 = vpow.pop %v3692
        %v3694 = vmul.f32 %v3515, 1.442695
        %v3695 = vpow.pop %v3694
        %v3696 = vmul.f32 %v3516, 1.442695
        %v3697 = vpow.pop %v3696
        %v3698 = vmul.f32 %v3517, 1.442695
        %v3699 = vpow.pop %v3698
        %v3700 = vmul.f32 %v3518, 1.442695
        %v3701 = vpow.pop %v3700
        %v3702 = vmul.f32 %v3519, 1.442695
        %v3703 = vpow.pop %v3702
        %v3704 = vmul.f32 %v3520, 1.442695
        %v3705 = vpow.pop %v3704
        %v3706 = vmul.f32 %v3521, 1.442695
        %v3707 = vpow.pop %v3706
        %v3708 = vmul.f32 %v3522, 1.442695
        %v3709 = vpow.pop %v3708
        %v3710 = vmul.f32 %v3523, 1.442695
        %v3711 = vpow.pop %v3710
        %v3712 = vmul.f32 %v3524, 1.442695
        %v3713 = vpow.pop %v3712
        %v3714 = vmul.f32 %v3525, 1.442695
        %v3715 = vpow.pop %v3714
        %v3716 = vmul.f32 %v3526, 1.442695
        %v3717 = vpow.pop %v3716
        %v3718 = vmul.f32 %v3527, 1.442695
        %v3719 = vpow.pop %v3718
        %v3720 = vmul.f32 %v3528, 1.442695
        %v3721 = vpow.pop %v3720
        %v3722 = vmul.f32 %v3529, 1.442695
        %v3723 = vpow.pop %v3722
        %v3724 = vmul.f32 %v3530, 1.442695
        %v3725 = vpow.pop %v3724
        %v3726 = vmul.f32 %v3531, 1.442695
        %v3727 = vpow.pop %v3726
        %v3728 = vmul.f32 %v3532, 1.442695
        %v3729 = vpow.pop %v3728
        %v3730 = vmul.f32 %v3533, 1.442695
        %v3731 = vpow.pop %v3730
        %v3732 = vmul.f32 %v3534, 1.442695
        %v3733 = vpow.pop %v3732
        %v3734 = vmul.f32 %v3535, 1.442695
        %v3735 = vpow.pop %v3734
        %v3736 = vmul.f32 %v3536, 1.442695
        %v3737 = vpow.pop %v3736
        %v3738 = vmul.f32 %v3537, 1.442695
        %v3739 = vpow.pop %v3738
        %v3740 = vmul.f32 %v3538, 1.442695
        %v3741 = vpow.pop %v3740
        %v3742 = vmul.f32 %v3539, 1.442695
        %v3743 = vpow.pop %v3742
        %v3744 = vmul.f32 %v3540, 1.442695
        %v3745 = vpow.pop %v3744
        %v3746 = vmul.f32 %v3541, 1.442695
        %v3747 = vpow.pop %v3746
        %v3748 = vmul.f32 %v3542, 1.442695
        %v3749 = vpow.pop %v3748
        %v3750 = vmul.f32 %v3543, 1.442695
        %v3751 = vpow.pop %v3750
        %v3752 = vmul.f32 %v3544, 1.442695
        %v3753 = vpow.pop %v3752
        %v3754 = vmul.f32 %v3545, 1.442695
        %v3755 = vpow.pop %v3754
        %v3756 = vmul.f32 %v3546, 1.442695
        %v3757 = vpow.pop %v3756
        %v3758 = vmul.f32 %v3547, 1.442695
        %v3759 = vpow.pop %v3758
        %v3760 = vmul.f32 %v3548, 1.442695
        %v3761 = vpow.pop %v3760
        %v3762 = vmul.f32 %v3549, 1.442695
        %v3763 = vpow.pop %v3762
        %v3764 = vmul.f32 %v3550, 1.442695
        %v3765 = vpow.pop %v3764
        %v3766 = vmul.f32 %v3551, 1.442695
        %v3767 = vpow.pop %v3766
        %v3768 = vmul.f32 %v3552, 1.442695
        %v3769 = vpow.pop %v3768
        %v3770 = vmul.f32 %v3553, 1.442695
        %v3771 = vpow.pop %v3770
        %v3772 = vmul.f32 %v3554, 1.442695
        %v3773 = vpow.pop %v3772
        %v3774 = vmul.f32 %v3555, 1.442695
        %v3775 = vpow.pop %v3774
        %v3776 = vmul.f32 %v3556, 1.442695
        %v3777 = vpow.pop %v3776
        %v3778 = vmul.f32 %v3557, 1.442695
        %v3779 = vpow.pop %v3778
        %v3780 = vmul.f32 %v3558, 1.442695
        %v3781 = vpow.pop %v3780
        %v3782 = vmul.f32 %v3559, 1.442695
        %v3783 = vpow.pop %v3782
        %v3784 = vmul.f32 %v3560, 1.442695
        %v3785 = vpow.pop %v3784
        %v3786 = vmul.f32 %v3561, 1.442695
        %v3787 = vpow.pop %v3786
        %v3788 = vmul.f32 %v3562, 1.442695
        %v3789 = vpow.pop %v3788
        %v3790 = vmul.f32 %v3563, 1.442695
        %v3791 = vpow.pop %v3790
        %v3792 = vmul.f32 %v3564, 1.442695
        %v3793 = vpow.pop %v3792
        %v3794 = vmul.f32 %v3565, 1.442695
        %v3795 = vpow.pop %v3794
        %v3796 = vmul.f32 %v3566, 1.442695
        %v3797 = vpow.pop %v3796
        %v3798 = vmul.f32 %v3567, 1.442695
        %v3799 = vpow.pop %v3798
        %v3800 = vmul.f32 %v3568, 1.442695
        %v3801 = vpow.pop %v3800
        %v3802 = vmul.f32 %v3569, 1.442695
        %v3803 = vpow.pop %v3802
        %v3804 = vmul.f32 %v3570, 1.442695
        %v3805 = vpow.pop %v3804
        %v3806 = vmul.f32 %v3571, 1.442695
        %v3807 = vpow.pop %v3806
        %v3808 = vmul.f32 %v3572, 1.442695
        %v3809 = vpow.pop %v3808
        %v3810 = vmul.f32 %v3573, 1.442695
        %v3811 = vpow.pop %v3810
        %v3812 = vmul.f32 %v3574, 1.442695
        %v3813 = vpow.pop %v3812
        %v3814 = vmul.f32 %v3575, 1.442695
        %v3815 = vpow.pop %v3814
        %v3816 = vmul.f32 %v3576, 1.442695
        %v3817 = vpow.pop %v3816
        %v3818 = vmul.f32 %v3577, 1.442695
        %v3819 = vpow.pop %v3818
        %v3820 = vmul.f32 %v3578, 1.442695
        %v3821 = vpow.pop %v3820
        %v3822 = vmul.f32 %v3579, 1.442695
        %v3823 = vpow.pop %v3822
        %v3824 = vmul.f32 %v3580, 1.442695
        %v3825 = vpow.pop %v3824
        %v3826 = vmul.f32 %v3581, 1.442695
        %v3827 = vpow.pop %v3826
        %v3828 = vmul.f32 %v3582, 1.442695
        %v3829 = vpow.pop %v3828
        %v3830 = vmul.f32 %v3583, 1.442695
        %v3831 = vpow.pop %v3830
        %v3832 = vmul.f32 %v3584, 1.442695
        %v3833 = vpow.pop %v3832
        %v3834 = vmul.f32 %v3585, 1.442695
        %v3835 = vpow.pop %v3834
        %v3836 = vmul.f32 %v3586, 1.442695
        %v3837 = vpow.pop %v3836
        %v3838 = vmul.f32 %v3587, 1.442695
        %v3839 = vpow.pop %v3838
        %v3840 = vmul.f32 %v3588, 1.442695
        %v3841 = vpow.pop %v3840
        %v3842 = vmul.f32 %v3589, 1.442695
        %v3843 = vpow.pop %v3842
        %v3844 = vmul.f32 %v3590, 1.442695
        %v3845 = vpow.pop %v3844
        %v3846 = vmul.f32 %v3591, 1.442695
        %v3847 = vpow.pop %v3846
        %v3848 = vadd.f32 %v3593, 1.0
        %v3849 = vadd.f32 %v3595, 1.0
        %v3850 = vadd.f32 %v3597, 1.0
        %v3851 = vadd.f32 %v3599, 1.0
        %v3852 = vadd.f32 %v3601, 1.0
        %v3853 = vadd.f32 %v3603, 1.0
        %v3854 = vadd.f32 %v3605, 1.0
        %v3855 = vadd.f32 %v3607, 1.0
        %v3856 = vadd.f32 %v3609, 1.0
        %v3857 = vadd.f32 %v3611, 1.0
        %v3858 = vadd.f32 %v3613, 1.0
        %v3859 = vadd.f32 %v3615, 1.0
        %v3860 = vadd.f32 %v3617, 1.0
        %v3861 = vadd.f32 %v3619, 1.0
        %v3862 = vadd.f32 %v3621, 1.0
        %v3863 = vadd.f32 %v3623, 1.0
        %v3864 = vadd.f32 %v3625, 1.0
        %v3865 = vadd.f32 %v3627, 1.0
        %v3866 = vadd.f32 %v3629, 1.0
        %v3867 = vadd.f32 %v3631, 1.0
        %v3868 = vadd.f32 %v3633, 1.0
        %v3869 = vadd.f32 %v3635, 1.0
        %v3870 = vadd.f32 %v3637, 1.0
        %v3871 = vadd.f32 %v3639, 1.0
        %v3872 = vadd.f32 %v3641, 1.0
        %v3873 = vadd.f32 %v3643, 1.0
        %v3874 = vadd.f32 %v3645, 1.0
        %v3875 = vadd.f32 %v3647, 1.0
        %v3876 = vadd.f32 %v3649, 1.0
        %v3877 = vadd.f32 %v3651, 1.0
        %v3878 = vadd.f32 %v3653, 1.0
        %v3879 = vadd.f32 %v3655, 1.0
        %v3880 = vadd.f32 %v3657, 1.0
        %v3881 = vadd.f32 %v3659, 1.0
        %v3882 = vadd.f32 %v3661, 1.0
        %v3883 = vadd.f32 %v3663, 1.0
        %v3884 = vadd.f32 %v3665, 1.0
        %v3885 = vadd.f32 %v3667, 1.0
        %v3886 = vadd.f32 %v3669, 1.0
        %v3887 = vadd.f32 %v3671, 1.0
        %v3888 = vadd.f32 %v3673, 1.0
        %v3889 = vadd.f32 %v3675, 1.0
        %v3890 = vadd.f32 %v3677, 1.0
        %v3891 = vadd.f32 %v3679, 1.0
        %v3892 = vadd.f32 %v3681, 1.0
        %v3893 = vadd.f32 %v3683, 1.0
        %v3894 = vadd.f32 %v3685, 1.0
        %v3895 = vadd.f32 %v3687, 1.0
        %v3896 = vadd.f32 %v3689, 1.0
        %v3897 = vadd.f32 %v3691, 1.0
        %v3898 = vadd.f32 %v3693, 1.0
        %v3899 = vadd.f32 %v3695, 1.0
        %v3900 = vadd.f32 %v3697, 1.0
        %v3901 = vadd.f32 %v3699, 1.0
        %v3902 = vadd.f32 %v3701, 1.0
        %v3903 = vadd.f32 %v3703, 1.0
        %v3904 = vadd.f32 %v3705, 1.0
        %v3905 = vadd.f32 %v3707, 1.0
        %v3906 = vadd.f32 %v3709, 1.0
        %v3907 = vadd.f32 %v3711, 1.0
        %v3908 = vadd.f32 %v3713, 1.0
        %v3909 = vadd.f32 %v3715, 1.0
        %v3910 = vadd.f32 %v3717, 1.0
        %v3911 = vadd.f32 %v3719, 1.0
        %v3912 = vadd.f32 %v3721, 1.0
        %v3913 = vadd.f32 %v3723, 1.0
        %v3914 = vadd.f32 %v3725, 1.0
        %v3915 = vadd.f32 %v3727, 1.0
        %v3916 = vadd.f32 %v3729, 1.0
        %v3917 = vadd.f32 %v3731, 1.0
        %v3918 = vadd.f32 %v3733, 1.0
        %v3919 = vadd.f32 %v3735, 1.0
        %v3920 = vadd.f32 %v3737, 1.0
        %v3921 = vadd.f32 %v3739, 1.0
        %v3922 = vadd.f32 %v3741, 1.0
        %v3923 = vadd.f32 %v3743, 1.0
        %v3924 = vadd.f32 %v3745, 1.0
        %v3925 = vadd.f32 %v3747, 1.0
        %v3926 = vadd.f32 %v3749, 1.0
        %v3927 = vadd.f32 %v3751, 1.0
        %v3928 = vadd.f32 %v3753, 1.0
        %v3929 = vadd.f32 %v3755, 1.0
        %v3930 = vadd.f32 %v3757, 1.0
        %v3931 = vadd.f32 %v3759, 1.0
        %v3932 = vadd.f32 %v3761, 1.0
        %v3933 = vadd.f32 %v3763, 1.0
        %v3934 = vadd.f32 %v3765, 1.0
        %v3935 = vadd.f32 %v3767, 1.0
        %v3936 = vadd.f32 %v3769, 1.0
        %v3937 = vadd.f32 %v3771, 1.0
        %v3938 = vadd.f32 %v3773, 1.0
        %v3939 = vadd.f32 %v3775, 1.0
        %v3940 = vadd.f32 %v3777, 1.0
        %v3941 = vadd.f32 %v3779, 1.0
        %v3942 = vadd.f32 %v3781, 1.0
        %v3943 = vadd.f32 %v3783, 1.0
        %v3944 = vadd.f32 %v3785, 1.0
        %v3945 = vadd.f32 %v3787, 1.0
        %v3946 = vadd.f32 %v3789, 1.0
        %v3947 = vadd.f32 %v3791, 1.0
        %v3948 = vadd.f32 %v3793, 1.0
        %v3949 = vadd.f32 %v3795, 1.0
        %v3950 = vadd.f32 %v3797, 1.0
        %v3951 = vadd.f32 %v3799, 1.0
        %v3952 = vadd.f32 %v3801, 1.0
        %v3953 = vadd.f32 %v3803, 1.0
        %v3954 = vadd.f32 %v3805, 1.0
        %v3955 = vadd.f32 %v3807, 1.0
        %v3956 = vadd.f32 %v3809, 1.0
        %v3957 = vadd.f32 %v3811, 1.0
        %v3958 = vadd.f32 %v3813, 1.0
        %v3959 = vadd.f32 %v3815, 1.0
        %v3960 = vadd.f32 %v3817, 1.0
        %v3961 = vadd.f32 %v3819, 1.0
        %v3962 = vadd.f32 %v3821, 1.0
        %v3963 = vadd.f32 %v3823, 1.0
        %v3964 = vadd.f32 %v3825, 1.0
        %v3965 = vadd.f32 %v3827, 1.0
        %v3966 = vadd.f32 %v3829, 1.0
        %v3967 = vadd.f32 %v3831, 1.0
        %v3968 = vadd.f32 %v3833, 1.0
        %v3969 = vadd.f32 %v3835, 1.0
        %v3970 = vadd.f32 %v3837, 1.0
        %v3971 = vadd.f32 %v3839, 1.0
        %v3972 = vadd.f32 %v3841, 1.0
        %v3973 = vadd.f32 %v3843, 1.0
        %v3974 = vadd.f32 %v3845, 1.0
        %v3975 = vadd.f32 %v3847, 1.0
        %v3976 = vrcp.pop %v3848
        %v3977 = vmul.f32 %v3848, %v3976
        %v3978 = vsub.f32 1.0, %v3977
        %v3979 = vmul.f32 %v3976, %v3978
        %v3980 = vadd.f32 %v3976, %v3979
        %vm3981 = vweird.f32 %v3848
        %vm3982 = vweird.f32 %v3976
        %vm3983 = vmor %vm3981, %vm3982
        %v3984 = vsel %vm3983, %v3976, %v3980
        %v3985 = vand.u32 2147483647, %v3848
        %vm3986 = vcmp.eq.f32.partialorder %v3985, 8.507059e+37
        %v3987 = vand.u32 %v3848, 2147483648
        %v3988 = vor.u32 1.1754944e-38, %v3987
        %v3989 = vsel %vm3986, %v3988, %v3984
        %v3990 = vmul.f32 1.0, %v3989
        %v3991 = vrcp.pop %v3849
        %v3992 = vmul.f32 %v3849, %v3991
        %v3993 = vsub.f32 1.0, %v3992
        %v3994 = vmul.f32 %v3991, %v3993
        %v3995 = vadd.f32 %v3991, %v3994
        %vm3996 = vweird.f32 %v3849
        %vm3997 = vweird.f32 %v3991
        %vm3998 = vmor %vm3996, %vm3997
        %v3999 = vsel %vm3998, %v3991, %v3995
        %v4000 = vand.u32 2147483647, %v3849
        %vm4001 = vcmp.eq.f32.partialorder %v4000, 8.507059e+37
        %v4002 = vand.u32 %v3849, 2147483648
        %v4003 = vor.u32 1.1754944e-38, %v4002
        %v4004 = vsel %vm4001, %v4003, %v3999
        %v4005 = vmul.f32 1.0, %v4004
        %v4006 = vrcp.pop %v3850
        %v4007 = vmul.f32 %v3850, %v4006
        %v4008 = vsub.f32 1.0, %v4007
        %v4009 = vmul.f32 %v4006, %v4008
        %v4010 = vadd.f32 %v4006, %v4009
        %vm4011 = vweird.f32 %v3850
        %vm4012 = vweird.f32 %v4006
        %vm4013 = vmor %vm4011, %vm4012
        %v4014 = vsel %vm4013, %v4006, %v4010
        %v4015 = vand.u32 2147483647, %v3850
        %vm4016 = vcmp.eq.f32.partialorder %v4015, 8.507059e+37
        %v4017 = vand.u32 %v3850, 2147483648
        %v4018 = vor.u32 1.1754944e-38, %v4017
        %v4019 = vsel %vm4016, %v4018, %v4014
        %v4020 = vmul.f32 1.0, %v4019
        %v4021 = vrcp.pop %v3851
        %v4022 = vmul.f32 %v3851, %v4021
        %v4023 = vsub.f32 1.0, %v4022
        %v4024 = vmul.f32 %v4021, %v4023
        %v4025 = vadd.f32 %v4021, %v4024
        %vm4026 = vweird.f32 %v3851
        %vm4027 = vweird.f32 %v4021
        %vm4028 = vmor %vm4026, %vm4027
        %v4029 = vsel %vm4028, %v4021, %v4025
        %v4030 = vand.u32 2147483647, %v3851
        %vm4031 = vcmp.eq.f32.partialorder %v4030, 8.507059e+37
        %v4032 = vand.u32 %v3851, 2147483648
        %v4033 = vor.u32 1.1754944e-38, %v4032
        %v4034 = vsel %vm4031, %v4033, %v4029
        %v4035 = vmul.f32 1.0, %v4034
        %v4036 = vrcp.pop %v3852
        %v4037 = vmul.f32 %v3852, %v4036
        %v4038 = vsub.f32 1.0, %v4037
        %v4039 = vmul.f32 %v4036, %v4038
        %v4040 = vadd.f32 %v4036, %v4039
        %vm4041 = vweird.f32 %v3852
        %vm4042 = vweird.f32 %v4036
        %vm4043 = vmor %vm4041, %vm4042
        %v4044 = vsel %vm4043, %v4036, %v4040
        %v4045 = vand.u32 2147483647, %v3852
        %vm4046 = vcmp.eq.f32.partialorder %v4045, 8.507059e+37
        %v4047 = vand.u32 %v3852, 2147483648
        %v4048 = vor.u32 1.1754944e-38, %v4047
        %v4049 = vsel %vm4046, %v4048, %v4044
        %v4050 = vmul.f32 1.0, %v4049
        %v4051 = vrcp.pop %v3853
        %v4052 = vmul.f32 %v3853, %v4051
        %v4053 = vsub.f32 1.0, %v4052
        %v4054 = vmul.f32 %v4051, %v4053
        %v4055 = vadd.f32 %v4051, %v4054
        %vm4056 = vweird.f32 %v3853
        %vm4057 = vweird.f32 %v4051
        %vm4058 = vmor %vm4056, %vm4057
        %v4059 = vsel %vm4058, %v4051, %v4055
        %v4060 = vand.u32 2147483647, %v3853
        %vm4061 = vcmp.eq.f32.partialorder %v4060, 8.507059e+37
        %v4062 = vand.u32 %v3853, 2147483648
        %v4063 = vor.u32 1.1754944e-38, %v4062
        %v4064 = vsel %vm4061, %v4063, %v4059
        %v4065 = vmul.f32 1.0, %v4064
        %v4066 = vrcp.pop %v3854
        %v4067 = vmul.f32 %v3854, %v4066
        %v4068 = vsub.f32 1.0, %v4067
        %v4069 = vmul.f32 %v4066, %v4068
        %v4070 = vadd.f32 %v4066, %v4069
        %vm4071 = vweird.f32 %v3854
        %vm4072 = vweird.f32 %v4066
        %vm4073 = vmor %vm4071, %vm4072
        %v4074 = vsel %vm4073, %v4066, %v4070
        %v4075 = vand.u32 2147483647, %v3854
        %vm4076 = vcmp.eq.f32.partialorder %v4075, 8.507059e+37
        %v4077 = vand.u32 %v3854, 2147483648
        %v4078 = vor.u32 1.1754944e-38, %v4077
        %v4079 = vsel %vm4076, %v4078, %v4074
        %v4080 = vmul.f32 1.0, %v4079
        %v4081 = vrcp.pop %v3855
        %v4082 = vmul.f32 %v3855, %v4081
        %v4083 = vsub.f32 1.0, %v4082
        %v4084 = vmul.f32 %v4081, %v4083
        %v4085 = vadd.f32 %v4081, %v4084
        %vm4086 = vweird.f32 %v3855
        %vm4087 = vweird.f32 %v4081
        %vm4088 = vmor %vm4086, %vm4087
        %v4089 = vsel %vm4088, %v4081, %v4085
        %v4090 = vand.u32 2147483647, %v3855
        %vm4091 = vcmp.eq.f32.partialorder %v4090, 8.507059e+37
        %v4092 = vand.u32 %v3855, 2147483648
        %v4093 = vor.u32 1.1754944e-38, %v4092
        %v4094 = vsel %vm4091, %v4093, %v4089
        %v4095 = vmul.f32 1.0, %v4094
        %v4096 = vrcp.pop %v3856
        %v4097 = vmul.f32 %v3856, %v4096
        %v4098 = vsub.f32 1.0, %v4097
        %v4099 = vmul.f32 %v4096, %v4098
        %v4100 = vadd.f32 %v4096, %v4099
        %vm4101 = vweird.f32 %v3856
        %vm4102 = vweird.f32 %v4096
        %vm4103 = vmor %vm4101, %vm4102
        %v4104 = vsel %vm4103, %v4096, %v4100
        %v4105 = vand.u32 2147483647, %v3856
        %vm4106 = vcmp.eq.f32.partialorder %v4105, 8.507059e+37
        %v4107 = vand.u32 %v3856, 2147483648
        %v4108 = vor.u32 1.1754944e-38, %v4107
        %v4109 = vsel %vm4106, %v4108, %v4104
        %v4110 = vmul.f32 1.0, %v4109
        %v4111 = vrcp.pop %v3857
        %v4112 = vmul.f32 %v3857, %v4111
        %v4113 = vsub.f32 1.0, %v4112
        %v4114 = vmul.f32 %v4111, %v4113
        %v4115 = vadd.f32 %v4111, %v4114
        %vm4116 = vweird.f32 %v3857
        %vm4117 = vweird.f32 %v4111
        %vm4118 = vmor %vm4116, %vm4117
        %v4119 = vsel %vm4118, %v4111, %v4115
        %v4120 = vand.u32 2147483647, %v3857
        %vm4121 = vcmp.eq.f32.partialorder %v4120, 8.507059e+37
        %v4122 = vand.u32 %v3857, 2147483648
        %v4123 = vor.u32 1.1754944e-38, %v4122
        %v4124 = vsel %vm4121, %v4123, %v4119
        %v4125 = vmul.f32 1.0, %v4124
        %v4126 = vrcp.pop %v3858
        %v4127 = vmul.f32 %v3858, %v4126
        %v4128 = vsub.f32 1.0, %v4127
        %v4129 = vmul.f32 %v4126, %v4128
        %v4130 = vadd.f32 %v4126, %v4129
        %vm4131 = vweird.f32 %v3858
        %vm4132 = vweird.f32 %v4126
        %vm4133 = vmor %vm4131, %vm4132
        %v4134 = vsel %vm4133, %v4126, %v4130
        %v4135 = vand.u32 2147483647, %v3858
        %vm4136 = vcmp.eq.f32.partialorder %v4135, 8.507059e+37
        %v4137 = vand.u32 %v3858, 2147483648
        %v4138 = vor.u32 1.1754944e-38, %v4137
        %v4139 = vsel %vm4136, %v4138, %v4134
        %v4140 = vmul.f32 1.0, %v4139
        %v4141 = vrcp.pop %v3859
        %v4142 = vmul.f32 %v3859, %v4141
        %v4143 = vsub.f32 1.0, %v4142
        %v4144 = vmul.f32 %v4141, %v4143
        %v4145 = vadd.f32 %v4141, %v4144
        %vm4146 = vweird.f32 %v3859
        %vm4147 = vweird.f32 %v4141
        %vm4148 = vmor %vm4146, %vm4147
        %v4149 = vsel %vm4148, %v4141, %v4145
        %v4150 = vand.u32 2147483647, %v3859
        %vm4151 = vcmp.eq.f32.partialorder %v4150, 8.507059e+37
        %v4152 = vand.u32 %v3859, 2147483648
        %v4153 = vor.u32 1.1754944e-38, %v4152
        %v4154 = vsel %vm4151, %v4153, %v4149
        %v4155 = vmul.f32 1.0, %v4154
        %v4156 = vrcp.pop %v3860
        %v4157 = vmul.f32 %v3860, %v4156
        %v4158 = vsub.f32 1.0, %v4157
        %v4159 = vmul.f32 %v4156, %v4158
        %v4160 = vadd.f32 %v4156, %v4159
        %vm4161 = vweird.f32 %v3860
        %vm4162 = vweird.f32 %v4156
        %vm4163 = vmor %vm4161, %vm4162
        %v4164 = vsel %vm4163, %v4156, %v4160
        %v4165 = vand.u32 2147483647, %v3860
        %vm4166 = vcmp.eq.f32.partialorder %v4165, 8.507059e+37
        %v4167 = vand.u32 %v3860, 2147483648
        %v4168 = vor.u32 1.1754944e-38, %v4167
        %v4169 = vsel %vm4166, %v4168, %v4164
        %v4170 = vmul.f32 1.0, %v4169
        %v4171 = vrcp.pop %v3861
        %v4172 = vmul.f32 %v3861, %v4171
        %v4173 = vsub.f32 1.0, %v4172
        %v4174 = vmul.f32 %v4171, %v4173
        %v4175 = vadd.f32 %v4171, %v4174
        %vm4176 = vweird.f32 %v3861
        %vm4177 = vweird.f32 %v4171
        %vm4178 = vmor %vm4176, %vm4177
        %v4179 = vsel %vm4178, %v4171, %v4175
        %v4180 = vand.u32 2147483647, %v3861
        %vm4181 = vcmp.eq.f32.partialorder %v4180, 8.507059e+37
        %v4182 = vand.u32 %v3861, 2147483648
        %v4183 = vor.u32 1.1754944e-38, %v4182
        %v4184 = vsel %vm4181, %v4183, %v4179
        %v4185 = vmul.f32 1.0, %v4184
        %v4186 = vrcp.pop %v3862
        %v4187 = vmul.f32 %v3862, %v4186
        %v4188 = vsub.f32 1.0, %v4187
        %v4189 = vmul.f32 %v4186, %v4188
        %v4190 = vadd.f32 %v4186, %v4189
        %vm4191 = vweird.f32 %v3862
        %vm4192 = vweird.f32 %v4186
        %vm4193 = vmor %vm4191, %vm4192
        %v4194 = vsel %vm4193, %v4186, %v4190
        %v4195 = vand.u32 2147483647, %v3862
        %vm4196 = vcmp.eq.f32.partialorder %v4195, 8.507059e+37
        %v4197 = vand.u32 %v3862, 2147483648
        %v4198 = vor.u32 1.1754944e-38, %v4197
        %v4199 = vsel %vm4196, %v4198, %v4194
        %v4200 = vmul.f32 1.0, %v4199
        %v4201 = vrcp.pop %v3863
        %v4202 = vmul.f32 %v3863, %v4201
        %v4203 = vsub.f32 1.0, %v4202
        %v4204 = vmul.f32 %v4201, %v4203
        %v4205 = vadd.f32 %v4201, %v4204
        %vm4206 = vweird.f32 %v3863
        %vm4207 = vweird.f32 %v4201
        %vm4208 = vmor %vm4206, %vm4207
        %v4209 = vsel %vm4208, %v4201, %v4205
        %v4210 = vand.u32 2147483647, %v3863
        %vm4211 = vcmp.eq.f32.partialorder %v4210, 8.507059e+37
        %v4212 = vand.u32 %v3863, 2147483648
        %v4213 = vor.u32 1.1754944e-38, %v4212
        %v4214 = vsel %vm4211, %v4213, %v4209
        %v4215 = vmul.f32 1.0, %v4214
        %v4216 = vrcp.pop %v3864
        %v4217 = vmul.f32 %v3864, %v4216
        %v4218 = vsub.f32 1.0, %v4217
        %v4219 = vmul.f32 %v4216, %v4218
        %v4220 = vadd.f32 %v4216, %v4219
        %vm4221 = vweird.f32 %v3864
        %vm4222 = vweird.f32 %v4216
        %vm4223 = vmor %vm4221, %vm4222
        %v4224 = vsel %vm4223, %v4216, %v4220
        %v4225 = vand.u32 2147483647, %v3864
        %vm4226 = vcmp.eq.f32.partialorder %v4225, 8.507059e+37
        %v4227 = vand.u32 %v3864, 2147483648
        %v4228 = vor.u32 1.1754944e-38, %v4227
        %v4229 = vsel %vm4226, %v4228, %v4224
        %v4230 = vmul.f32 1.0, %v4229
        %v4231 = vrcp.pop %v3865
        %v4232 = vmul.f32 %v3865, %v4231
        %v4233 = vsub.f32 1.0, %v4232
        %v4234 = vmul.f32 %v4231, %v4233
        %v4235 = vadd.f32 %v4231, %v4234
        %vm4236 = vweird.f32 %v3865
        %vm4237 = vweird.f32 %v4231
        %vm4238 = vmor %vm4236, %vm4237
        %v4239 = vsel %vm4238, %v4231, %v4235
        %v4240 = vand.u32 2147483647, %v3865
        %vm4241 = vcmp.eq.f32.partialorder %v4240, 8.507059e+37
        %v4242 = vand.u32 %v3865, 2147483648
        %v4243 = vor.u32 1.1754944e-38, %v4242
        %v4244 = vsel %vm4241, %v4243, %v4239
        %v4245 = vmul.f32 1.0, %v4244
        %v4246 = vrcp.pop %v3866
        %v4247 = vmul.f32 %v3866, %v4246
        %v4248 = vsub.f32 1.0, %v4247
        %v4249 = vmul.f32 %v4246, %v4248
        %v4250 = vadd.f32 %v4246, %v4249
        %vm4251 = vweird.f32 %v3866
        %vm4252 = vweird.f32 %v4246
        %vm4253 = vmor %vm4251, %vm4252
        %v4254 = vsel %vm4253, %v4246, %v4250
        %v4255 = vand.u32 2147483647, %v3866
        %vm4256 = vcmp.eq.f32.partialorder %v4255, 8.507059e+37
        %v4257 = vand.u32 %v3866, 2147483648
        %v4258 = vor.u32 1.1754944e-38, %v4257
        %v4259 = vsel %vm4256, %v4258, %v4254
        %v4260 = vmul.f32 1.0, %v4259
        %v4261 = vrcp.pop %v3867
        %v4262 = vmul.f32 %v3867, %v4261
        %v4263 = vsub.f32 1.0, %v4262
        %v4264 = vmul.f32 %v4261, %v4263
        %v4265 = vadd.f32 %v4261, %v4264
        %vm4266 = vweird.f32 %v3867
        %vm4267 = vweird.f32 %v4261
        %vm4268 = vmor %vm4266, %vm4267
        %v4269 = vsel %vm4268, %v4261, %v4265
        %v4270 = vand.u32 2147483647, %v3867
        %vm4271 = vcmp.eq.f32.partialorder %v4270, 8.507059e+37
        %v4272 = vand.u32 %v3867, 2147483648
        %v4273 = vor.u32 1.1754944e-38, %v4272
        %v4274 = vsel %vm4271, %v4273, %v4269
        %v4275 = vmul.f32 1.0, %v4274
        %v4276 = vrcp.pop %v3868
        %v4277 = vmul.f32 %v3868, %v4276
        %v4278 = vsub.f32 1.0, %v4277
        %v4279 = vmul.f32 %v4276, %v4278
        %v4280 = vadd.f32 %v4276, %v4279
        %vm4281 = vweird.f32 %v3868
        %vm4282 = vweird.f32 %v4276
        %vm4283 = vmor %vm4281, %vm4282
        %v4284 = vsel %vm4283, %v4276, %v4280
        %v4285 = vand.u32 2147483647, %v3868
        %vm4286 = vcmp.eq.f32.partialorder %v4285, 8.507059e+37
        %v4287 = vand.u32 %v3868, 2147483648
        %v4288 = vor.u32 1.1754944e-38, %v4287
        %v4289 = vsel %vm4286, %v4288, %v4284
        %v4290 = vmul.f32 1.0, %v4289
        %v4291 = vrcp.pop %v3869
        %v4292 = vmul.f32 %v3869, %v4291
        %v4293 = vsub.f32 1.0, %v4292
        %v4294 = vmul.f32 %v4291, %v4293
        %v4295 = vadd.f32 %v4291, %v4294
        %vm4296 = vweird.f32 %v3869
        %vm4297 = vweird.f32 %v4291
        %vm4298 = vmor %vm4296, %vm4297
        %v4299 = vsel %vm4298, %v4291, %v4295
        %v4300 = vand.u32 2147483647, %v3869
        %vm4301 = vcmp.eq.f32.partialorder %v4300, 8.507059e+37
        %v4302 = vand.u32 %v3869, 2147483648
        %v4303 = vor.u32 1.1754944e-38, %v4302
        %v4304 = vsel %vm4301, %v4303, %v4299
        %v4305 = vmul.f32 1.0, %v4304
        %v4306 = vrcp.pop %v3870
        %v4307 = vmul.f32 %v3870, %v4306
        %v4308 = vsub.f32 1.0, %v4307
        %v4309 = vmul.f32 %v4306, %v4308
        %v4310 = vadd.f32 %v4306, %v4309
        %vm4311 = vweird.f32 %v3870
        %vm4312 = vweird.f32 %v4306
        %vm4313 = vmor %vm4311, %vm4312
        %v4314 = vsel %vm4313, %v4306, %v4310
        %v4315 = vand.u32 2147483647, %v3870
        %vm4316 = vcmp.eq.f32.partialorder %v4315, 8.507059e+37
        %v4317 = vand.u32 %v3870, 2147483648
        %v4318 = vor.u32 1.1754944e-38, %v4317
        %v4319 = vsel %vm4316, %v4318, %v4314
        %v4320 = vmul.f32 1.0, %v4319
        %v4321 = vrcp.pop %v3871
        %v4322 = vmul.f32 %v3871, %v4321
        %v4323 = vsub.f32 1.0, %v4322
        %v4324 = vmul.f32 %v4321, %v4323
        %v4325 = vadd.f32 %v4321, %v4324
        %vm4326 = vweird.f32 %v3871
        %vm4327 = vweird.f32 %v4321
        %vm4328 = vmor %vm4326, %vm4327
        %v4329 = vsel %vm4328, %v4321, %v4325
        %v4330 = vand.u32 2147483647, %v3871
        %vm4331 = vcmp.eq.f32.partialorder %v4330, 8.507059e+37
        %v4332 = vand.u32 %v3871, 2147483648
        %v4333 = vor.u32 1.1754944e-38, %v4332
        %v4334 = vsel %vm4331, %v4333, %v4329
        %v4335 = vmul.f32 1.0, %v4334
        %v4336 = vrcp.pop %v3872
        %v4337 = vmul.f32 %v3872, %v4336
        %v4338 = vsub.f32 1.0, %v4337
        %v4339 = vmul.f32 %v4336, %v4338
        %v4340 = vadd.f32 %v4336, %v4339
        %vm4341 = vweird.f32 %v3872
        %vm4342 = vweird.f32 %v4336
        %vm4343 = vmor %vm4341, %vm4342
        %v4344 = vsel %vm4343, %v4336, %v4340
        %v4345 = vand.u32 2147483647, %v3872
        %vm4346 = vcmp.eq.f32.partialorder %v4345, 8.507059e+37
        %v4347 = vand.u32 %v3872, 2147483648
        %v4348 = vor.u32 1.1754944e-38, %v4347
        %v4349 = vsel %vm4346, %v4348, %v4344
        %v4350 = vmul.f32 1.0, %v4349
        %v4351 = vrcp.pop %v3873
        %v4352 = vmul.f32 %v3873, %v4351
        %v4353 = vsub.f32 1.0, %v4352
        %v4354 = vmul.f32 %v4351, %v4353
        %v4355 = vadd.f32 %v4351, %v4354
        %vm4356 = vweird.f32 %v3873
        %vm4357 = vweird.f32 %v4351
        %vm4358 = vmor %vm4356, %vm4357
        %v4359 = vsel %vm4358, %v4351, %v4355
        %v4360 = vand.u32 2147483647, %v3873
        %vm4361 = vcmp.eq.f32.partialorder %v4360, 8.507059e+37
        %v4362 = vand.u32 %v3873, 2147483648
        %v4363 = vor.u32 1.1754944e-38, %v4362
        %v4364 = vsel %vm4361, %v4363, %v4359
        %v4365 = vmul.f32 1.0, %v4364
        %v4366 = vrcp.pop %v3874
        %v4367 = vmul.f32 %v3874, %v4366
        %v4368 = vsub.f32 1.0, %v4367
        %v4369 = vmul.f32 %v4366, %v4368
        %v4370 = vadd.f32 %v4366, %v4369
        %vm4371 = vweird.f32 %v3874
        %vm4372 = vweird.f32 %v4366
        %vm4373 = vmor %vm4371, %vm4372
        %v4374 = vsel %vm4373, %v4366, %v4370
        %v4375 = vand.u32 2147483647, %v3874
        %vm4376 = vcmp.eq.f32.partialorder %v4375, 8.507059e+37
        %v4377 = vand.u32 %v3874, 2147483648
        %v4378 = vor.u32 1.1754944e-38, %v4377
        %v4379 = vsel %vm4376, %v4378, %v4374
        %v4380 = vmul.f32 1.0, %v4379
        %v4381 = vrcp.pop %v3875
        %v4382 = vmul.f32 %v3875, %v4381
        %v4383 = vsub.f32 1.0, %v4382
        %v4384 = vmul.f32 %v4381, %v4383
        %v4385 = vadd.f32 %v4381, %v4384
        %vm4386 = vweird.f32 %v3875
        %vm4387 = vweird.f32 %v4381
        %vm4388 = vmor %vm4386, %vm4387
        %v4389 = vsel %vm4388, %v4381, %v4385
        %v4390 = vand.u32 2147483647, %v3875
        %vm4391 = vcmp.eq.f32.partialorder %v4390, 8.507059e+37
        %v4392 = vand.u32 %v3875, 2147483648
        %v4393 = vor.u32 1.1754944e-38, %v4392
        %v4394 = vsel %vm4391, %v4393, %v4389
        %v4395 = vmul.f32 1.0, %v4394
        %v4396 = vrcp.pop %v3876
        %v4397 = vmul.f32 %v3876, %v4396
        %v4398 = vsub.f32 1.0, %v4397
        %v4399 = vmul.f32 %v4396, %v4398
        %v4400 = vadd.f32 %v4396, %v4399
        %vm4401 = vweird.f32 %v3876
        %vm4402 = vweird.f32 %v4396
        %vm4403 = vmor %vm4401, %vm4402
        %v4404 = vsel %vm4403, %v4396, %v4400
        %v4405 = vand.u32 2147483647, %v3876
        %vm4406 = vcmp.eq.f32.partialorder %v4405, 8.507059e+37
        %v4407 = vand.u32 %v3876, 2147483648
        %v4408 = vor.u32 1.1754944e-38, %v4407
        %v4409 = vsel %vm4406, %v4408, %v4404
        %v4410 = vmul.f32 1.0, %v4409
        %v4411 = vrcp.pop %v3877
        %v4412 = vmul.f32 %v3877, %v4411
        %v4413 = vsub.f32 1.0, %v4412
        %v4414 = vmul.f32 %v4411, %v4413
        %v4415 = vadd.f32 %v4411, %v4414
        %vm4416 = vweird.f32 %v3877
        %vm4417 = vweird.f32 %v4411
        %vm4418 = vmor %vm4416, %vm4417
        %v4419 = vsel %vm4418, %v4411, %v4415
        %v4420 = vand.u32 2147483647, %v3877
        %vm4421 = vcmp.eq.f32.partialorder %v4420, 8.507059e+37
        %v4422 = vand.u32 %v3877, 2147483648
        %v4423 = vor.u32 1.1754944e-38, %v4422
        %v4424 = vsel %vm4421, %v4423, %v4419
        %v4425 = vmul.f32 1.0, %v4424
        %v4426 = vrcp.pop %v3878
        %v4427 = vmul.f32 %v3878, %v4426
        %v4428 = vsub.f32 1.0, %v4427
        %v4429 = vmul.f32 %v4426, %v4428
        %v4430 = vadd.f32 %v4426, %v4429
        %vm4431 = vweird.f32 %v3878
        %vm4432 = vweird.f32 %v4426
        %vm4433 = vmor %vm4431, %vm4432
        %v4434 = vsel %vm4433, %v4426, %v4430
        %v4435 = vand.u32 2147483647, %v3878
        %vm4436 = vcmp.eq.f32.partialorder %v4435, 8.507059e+37
        %v4437 = vand.u32 %v3878, 2147483648
        %v4438 = vor.u32 1.1754944e-38, %v4437
        %v4439 = vsel %vm4436, %v4438, %v4434
        %v4440 = vmul.f32 1.0, %v4439
        %v4441 = vrcp.pop %v3879
        %v4442 = vmul.f32 %v3879, %v4441
        %v4443 = vsub.f32 1.0, %v4442
        %v4444 = vmul.f32 %v4441, %v4443
        %v4445 = vadd.f32 %v4441, %v4444
        %vm4446 = vweird.f32 %v3879
        %vm4447 = vweird.f32 %v4441
        %vm4448 = vmor %vm4446, %vm4447
        %v4449 = vsel %vm4448, %v4441, %v4445
        %v4450 = vand.u32 2147483647, %v3879
        %vm4451 = vcmp.eq.f32.partialorder %v4450, 8.507059e+37
        %v4452 = vand.u32 %v3879, 2147483648
        %v4453 = vor.u32 1.1754944e-38, %v4452
        %v4454 = vsel %vm4451, %v4453, %v4449
        %v4455 = vmul.f32 1.0, %v4454
        %v4456 = vrcp.pop %v3880
        %v4457 = vmul.f32 %v3880, %v4456
        %v4458 = vsub.f32 1.0, %v4457
        %v4459 = vmul.f32 %v4456, %v4458
        %v4460 = vadd.f32 %v4456, %v4459
        %vm4461 = vweird.f32 %v3880
        %vm4462 = vweird.f32 %v4456
        %vm4463 = vmor %vm4461, %vm4462
        %v4464 = vsel %vm4463, %v4456, %v4460
        %v4465 = vand.u32 2147483647, %v3880
        %vm4466 = vcmp.eq.f32.partialorder %v4465, 8.507059e+37
        %v4467 = vand.u32 %v3880, 2147483648
        %v4468 = vor.u32 1.1754944e-38, %v4467
        %v4469 = vsel %vm4466, %v4468, %v4464
        %v4470 = vmul.f32 1.0, %v4469
        %v4471 = vrcp.pop %v3881
        %v4472 = vmul.f32 %v3881, %v4471
        %v4473 = vsub.f32 1.0, %v4472
        %v4474 = vmul.f32 %v4471, %v4473
        %v4475 = vadd.f32 %v4471, %v4474
        %vm4476 = vweird.f32 %v3881
        %vm4477 = vweird.f32 %v4471
        %vm4478 = vmor %vm4476, %vm4477
        %v4479 = vsel %vm4478, %v4471, %v4475
        %v4480 = vand.u32 2147483647, %v3881
        %vm4481 = vcmp.eq.f32.partialorder %v4480, 8.507059e+37
        %v4482 = vand.u32 %v3881, 2147483648
        %v4483 = vor.u32 1.1754944e-38, %v4482
        %v4484 = vsel %vm4481, %v4483, %v4479
        %v4485 = vmul.f32 1.0, %v4484
        %v4486 = vrcp.pop %v3882
        %v4487 = vmul.f32 %v3882, %v4486
        %v4488 = vsub.f32 1.0, %v4487
        %v4489 = vmul.f32 %v4486, %v4488
        %v4490 = vadd.f32 %v4486, %v4489
        %vm4491 = vweird.f32 %v3882
        %vm4492 = vweird.f32 %v4486
        %vm4493 = vmor %vm4491, %vm4492
        %v4494 = vsel %vm4493, %v4486, %v4490
        %v4495 = vand.u32 2147483647, %v3882
        %vm4496 = vcmp.eq.f32.partialorder %v4495, 8.507059e+37
        %v4497 = vand.u32 %v3882, 2147483648
        %v4498 = vor.u32 1.1754944e-38, %v4497
        %v4499 = vsel %vm4496, %v4498, %v4494
        %v4500 = vmul.f32 1.0, %v4499
        %v4501 = vrcp.pop %v3883
        %v4502 = vmul.f32 %v3883, %v4501
        %v4503 = vsub.f32 1.0, %v4502
        %v4504 = vmul.f32 %v4501, %v4503
        %v4505 = vadd.f32 %v4501, %v4504
        %vm4506 = vweird.f32 %v3883
        %vm4507 = vweird.f32 %v4501
        %vm4508 = vmor %vm4506, %vm4507
        %v4509 = vsel %vm4508, %v4501, %v4505
        %v4510 = vand.u32 2147483647, %v3883
        %vm4511 = vcmp.eq.f32.partialorder %v4510, 8.507059e+37
        %v4512 = vand.u32 %v3883, 2147483648
        %v4513 = vor.u32 1.1754944e-38, %v4512
        %v4514 = vsel %vm4511, %v4513, %v4509
        %v4515 = vmul.f32 1.0, %v4514
        %v4516 = vrcp.pop %v3884
        %v4517 = vmul.f32 %v3884, %v4516
        %v4518 = vsub.f32 1.0, %v4517
        %v4519 = vmul.f32 %v4516, %v4518
        %v4520 = vadd.f32 %v4516, %v4519
        %vm4521 = vweird.f32 %v3884
        %vm4522 = vweird.f32 %v4516
        %vm4523 = vmor %vm4521, %vm4522
        %v4524 = vsel %vm4523, %v4516, %v4520
        %v4525 = vand.u32 2147483647, %v3884
        %vm4526 = vcmp.eq.f32.partialorder %v4525, 8.507059e+37
        %v4527 = vand.u32 %v3884, 2147483648
        %v4528 = vor.u32 1.1754944e-38, %v4527
        %v4529 = vsel %vm4526, %v4528, %v4524
        %v4530 = vmul.f32 1.0, %v4529
        %v4531 = vrcp.pop %v3885
        %v4532 = vmul.f32 %v3885, %v4531
        %v4533 = vsub.f32 1.0, %v4532
        %v4534 = vmul.f32 %v4531, %v4533
        %v4535 = vadd.f32 %v4531, %v4534
        %vm4536 = vweird.f32 %v3885
        %vm4537 = vweird.f32 %v4531
        %vm4538 = vmor %vm4536, %vm4537
        %v4539 = vsel %vm4538, %v4531, %v4535
        %v4540 = vand.u32 2147483647, %v3885
        %vm4541 = vcmp.eq.f32.partialorder %v4540, 8.507059e+37
        %v4542 = vand.u32 %v3885, 2147483648
        %v4543 = vor.u32 1.1754944e-38, %v4542
        %v4544 = vsel %vm4541, %v4543, %v4539
        %v4545 = vmul.f32 1.0, %v4544
        %v4546 = vrcp.pop %v3886
        %v4547 = vmul.f32 %v3886, %v4546
        %v4548 = vsub.f32 1.0, %v4547
        %v4549 = vmul.f32 %v4546, %v4548
        %v4550 = vadd.f32 %v4546, %v4549
        %vm4551 = vweird.f32 %v3886
        %vm4552 = vweird.f32 %v4546
        %vm4553 = vmor %vm4551, %vm4552
        %v4554 = vsel %vm4553, %v4546, %v4550
        %v4555 = vand.u32 2147483647, %v3886
        %vm4556 = vcmp.eq.f32.partialorder %v4555, 8.507059e+37
        %v4557 = vand.u32 %v3886, 2147483648
        %v4558 = vor.u32 1.1754944e-38, %v4557
        %v4559 = vsel %vm4556, %v4558, %v4554
        %v4560 = vmul.f32 1.0, %v4559
        %v4561 = vrcp.pop %v3887
        %v4562 = vmul.f32 %v3887, %v4561
        %v4563 = vsub.f32 1.0, %v4562
        %v4564 = vmul.f32 %v4561, %v4563
        %v4565 = vadd.f32 %v4561, %v4564
        %vm4566 = vweird.f32 %v3887
        %vm4567 = vweird.f32 %v4561
        %vm4568 = vmor %vm4566, %vm4567
        %v4569 = vsel %vm4568, %v4561, %v4565
        %v4570 = vand.u32 2147483647, %v3887
        %vm4571 = vcmp.eq.f32.partialorder %v4570, 8.507059e+37
        %v4572 = vand.u32 %v3887, 2147483648
        %v4573 = vor.u32 1.1754944e-38, %v4572
        %v4574 = vsel %vm4571, %v4573, %v4569
        %v4575 = vmul.f32 1.0, %v4574
        %v4576 = vrcp.pop %v3888
        %v4577 = vmul.f32 %v3888, %v4576
        %v4578 = vsub.f32 1.0, %v4577
        %v4579 = vmul.f32 %v4576, %v4578
        %v4580 = vadd.f32 %v4576, %v4579
        %vm4581 = vweird.f32 %v3888
        %vm4582 = vweird.f32 %v4576
        %vm4583 = vmor %vm4581, %vm4582
        %v4584 = vsel %vm4583, %v4576, %v4580
        %v4585 = vand.u32 2147483647, %v3888
        %vm4586 = vcmp.eq.f32.partialorder %v4585, 8.507059e+37
        %v4587 = vand.u32 %v3888, 2147483648
        %v4588 = vor.u32 1.1754944e-38, %v4587
        %v4589 = vsel %vm4586, %v4588, %v4584
        %v4590 = vmul.f32 1.0, %v4589
        %v4591 = vrcp.pop %v3889
        %v4592 = vmul.f32 %v3889, %v4591
        %v4593 = vsub.f32 1.0, %v4592
        %v4594 = vmul.f32 %v4591, %v4593
        %v4595 = vadd.f32 %v4591, %v4594
        %vm4596 = vweird.f32 %v3889
        %vm4597 = vweird.f32 %v4591
        %vm4598 = vmor %vm4596, %vm4597
        %v4599 = vsel %vm4598, %v4591, %v4595
        %v4600 = vand.u32 2147483647, %v3889
        %vm4601 = vcmp.eq.f32.partialorder %v4600, 8.507059e+37
        %v4602 = vand.u32 %v3889, 2147483648
        %v4603 = vor.u32 1.1754944e-38, %v4602
        %v4604 = vsel %vm4601, %v4603, %v4599
        %v4605 = vmul.f32 1.0, %v4604
        %v4606 = vrcp.pop %v3890
        %v4607 = vmul.f32 %v3890, %v4606
        %v4608 = vsub.f32 1.0, %v4607
        %v4609 = vmul.f32 %v4606, %v4608
        %v4610 = vadd.f32 %v4606, %v4609
        %vm4611 = vweird.f32 %v3890
        %vm4612 = vweird.f32 %v4606
        %vm4613 = vmor %vm4611, %vm4612
        %v4614 = vsel %vm4613, %v4606, %v4610
        %v4615 = vand.u32 2147483647, %v3890
        %vm4616 = vcmp.eq.f32.partialorder %v4615, 8.507059e+37
        %v4617 = vand.u32 %v3890, 2147483648
        %v4618 = vor.u32 1.1754944e-38, %v4617
        %v4619 = vsel %vm4616, %v4618, %v4614
        %v4620 = vmul.f32 1.0, %v4619
        %v4621 = vrcp.pop %v3891
        %v4622 = vmul.f32 %v3891, %v4621
        %v4623 = vsub.f32 1.0, %v4622
        %v4624 = vmul.f32 %v4621, %v4623
        %v4625 = vadd.f32 %v4621, %v4624
        %vm4626 = vweird.f32 %v3891
        %vm4627 = vweird.f32 %v4621
        %vm4628 = vmor %vm4626, %vm4627
        %v4629 = vsel %vm4628, %v4621, %v4625
        %v4630 = vand.u32 2147483647, %v3891
        %vm4631 = vcmp.eq.f32.partialorder %v4630, 8.507059e+37
        %v4632 = vand.u32 %v3891, 2147483648
        %v4633 = vor.u32 1.1754944e-38, %v4632
        %v4634 = vsel %vm4631, %v4633, %v4629
        %v4635 = vmul.f32 1.0, %v4634
        %v4636 = vrcp.pop %v3892
        %v4637 = vmul.f32 %v3892, %v4636
        %v4638 = vsub.f32 1.0, %v4637
        %v4639 = vmul.f32 %v4636, %v4638
        %v4640 = vadd.f32 %v4636, %v4639
        %vm4641 = vweird.f32 %v3892
        %vm4642 = vweird.f32 %v4636
        %vm4643 = vmor %vm4641, %vm4642
        %v4644 = vsel %vm4643, %v4636, %v4640
        %v4645 = vand.u32 2147483647, %v3892
        %vm4646 = vcmp.eq.f32.partialorder %v4645, 8.507059e+37
        %v4647 = vand.u32 %v3892, 2147483648
        %v4648 = vor.u32 1.1754944e-38, %v4647
        %v4649 = vsel %vm4646, %v4648, %v4644
        %v4650 = vmul.f32 1.0, %v4649
        %v4651 = vrcp.pop %v3893
        %v4652 = vmul.f32 %v3893, %v4651
        %v4653 = vsub.f32 1.0, %v4652
        %v4654 = vmul.f32 %v4651, %v4653
        %v4655 = vadd.f32 %v4651, %v4654
        %vm4656 = vweird.f32 %v3893
        %vm4657 = vweird.f32 %v4651
        %vm4658 = vmor %vm4656, %vm4657
        %v4659 = vsel %vm4658, %v4651, %v4655
        %v4660 = vand.u32 2147483647, %v3893
        %vm4661 = vcmp.eq.f32.partialorder %v4660, 8.507059e+37
        %v4662 = vand.u32 %v3893, 2147483648
        %v4663 = vor.u32 1.1754944e-38, %v4662
        %v4664 = vsel %vm4661, %v4663, %v4659
        %v4665 = vmul.f32 1.0, %v4664
        %v4666 = vrcp.pop %v3894
        %v4667 = vmul.f32 %v3894, %v4666
        %v4668 = vsub.f32 1.0, %v4667
        %v4669 = vmul.f32 %v4666, %v4668
        %v4670 = vadd.f32 %v4666, %v4669
        %vm4671 = vweird.f32 %v3894
        %vm4672 = vweird.f32 %v4666
        %vm4673 = vmor %vm4671, %vm4672
        %v4674 = vsel %vm4673, %v4666, %v4670
        %v4675 = vand.u32 2147483647, %v3894
        %vm4676 = vcmp.eq.f32.partialorder %v4675, 8.507059e+37
        %v4677 = vand.u32 %v3894, 2147483648
        %v4678 = vor.u32 1.1754944e-38, %v4677
        %v4679 = vsel %vm4676, %v4678, %v4674
        %v4680 = vmul.f32 1.0, %v4679
        %v4681 = vrcp.pop %v3895
        %v4682 = vmul.f32 %v3895, %v4681
        %v4683 = vsub.f32 1.0, %v4682
        %v4684 = vmul.f32 %v4681, %v4683
        %v4685 = vadd.f32 %v4681, %v4684
        %vm4686 = vweird.f32 %v3895
        %vm4687 = vweird.f32 %v4681
        %vm4688 = vmor %vm4686, %vm4687
        %v4689 = vsel %vm4688, %v4681, %v4685
        %v4690 = vand.u32 2147483647, %v3895
        %vm4691 = vcmp.eq.f32.partialorder %v4690, 8.507059e+37
        %v4692 = vand.u32 %v3895, 2147483648
        %v4693 = vor.u32 1.1754944e-38, %v4692
        %v4694 = vsel %vm4691, %v4693, %v4689
        %v4695 = vmul.f32 1.0, %v4694
        %v4696 = vrcp.pop %v3896
        %v4697 = vmul.f32 %v3896, %v4696
        %v4698 = vsub.f32 1.0, %v4697
        %v4699 = vmul.f32 %v4696, %v4698
        %v4700 = vadd.f32 %v4696, %v4699
        %vm4701 = vweird.f32 %v3896
        %vm4702 = vweird.f32 %v4696
        %vm4703 = vmor %vm4701, %vm4702
        %v4704 = vsel %vm4703, %v4696, %v4700
        %v4705 = vand.u32 2147483647, %v3896
        %vm4706 = vcmp.eq.f32.partialorder %v4705, 8.507059e+37
        %v4707 = vand.u32 %v3896, 2147483648
        %v4708 = vor.u32 1.1754944e-38, %v4707
        %v4709 = vsel %vm4706, %v4708, %v4704
        %v4710 = vmul.f32 1.0, %v4709
        %v4711 = vrcp.pop %v3897
        %v4712 = vmul.f32 %v3897, %v4711
        %v4713 = vsub.f32 1.0, %v4712
        %v4714 = vmul.f32 %v4711, %v4713
        %v4715 = vadd.f32 %v4711, %v4714
        %vm4716 = vweird.f32 %v3897
        %vm4717 = vweird.f32 %v4711
        %vm4718 = vmor %vm4716, %vm4717
        %v4719 = vsel %vm4718, %v4711, %v4715
        %v4720 = vand.u32 2147483647, %v3897
        %vm4721 = vcmp.eq.f32.partialorder %v4720, 8.507059e+37
        %v4722 = vand.u32 %v3897, 2147483648
        %v4723 = vor.u32 1.1754944e-38, %v4722
        %v4724 = vsel %vm4721, %v4723, %v4719
        %v4725 = vmul.f32 1.0, %v4724
        %v4726 = vrcp.pop %v3898
        %v4727 = vmul.f32 %v3898, %v4726
        %v4728 = vsub.f32 1.0, %v4727
        %v4729 = vmul.f32 %v4726, %v4728
        %v4730 = vadd.f32 %v4726, %v4729
        %vm4731 = vweird.f32 %v3898
        %vm4732 = vweird.f32 %v4726
        %vm4733 = vmor %vm4731, %vm4732
        %v4734 = vsel %vm4733, %v4726, %v4730
        %v4735 = vand.u32 2147483647, %v3898
        %vm4736 = vcmp.eq.f32.partialorder %v4735, 8.507059e+37
        %v4737 = vand.u32 %v3898, 2147483648
        %v4738 = vor.u32 1.1754944e-38, %v4737
        %v4739 = vsel %vm4736, %v4738, %v4734
        %v4740 = vmul.f32 1.0, %v4739
        %v4741 = vrcp.pop %v3899
        %v4742 = vmul.f32 %v3899, %v4741
        %v4743 = vsub.f32 1.0, %v4742
        %v4744 = vmul.f32 %v4741, %v4743
        %v4745 = vadd.f32 %v4741, %v4744
        %vm4746 = vweird.f32 %v3899
        %vm4747 = vweird.f32 %v4741
        %vm4748 = vmor %vm4746, %vm4747
        %v4749 = vsel %vm4748, %v4741, %v4745
        %v4750 = vand.u32 2147483647, %v3899
        %vm4751 = vcmp.eq.f32.partialorder %v4750, 8.507059e+37
        %v4752 = vand.u32 %v3899, 2147483648
        %v4753 = vor.u32 1.1754944e-38, %v4752
        %v4754 = vsel %vm4751, %v4753, %v4749
        %v4755 = vmul.f32 1.0, %v4754
        %v4756 = vrcp.pop %v3900
        %v4757 = vmul.f32 %v3900, %v4756
        %v4758 = vsub.f32 1.0, %v4757
        %v4759 = vmul.f32 %v4756, %v4758
        %v4760 = vadd.f32 %v4756, %v4759
        %vm4761 = vweird.f32 %v3900
        %vm4762 = vweird.f32 %v4756
        %vm4763 = vmor %vm4761, %vm4762
        %v4764 = vsel %vm4763, %v4756, %v4760
        %v4765 = vand.u32 2147483647, %v3900
        %vm4766 = vcmp.eq.f32.partialorder %v4765, 8.507059e+37
        %v4767 = vand.u32 %v3900, 2147483648
        %v4768 = vor.u32 1.1754944e-38, %v4767
        %v4769 = vsel %vm4766, %v4768, %v4764
        %v4770 = vmul.f32 1.0, %v4769
        %v4771 = vrcp.pop %v3901
        %v4772 = vmul.f32 %v3901, %v4771
        %v4773 = vsub.f32 1.0, %v4772
        %v4774 = vmul.f32 %v4771, %v4773
        %v4775 = vadd.f32 %v4771, %v4774
        %vm4776 = vweird.f32 %v3901
        %vm4777 = vweird.f32 %v4771
        %vm4778 = vmor %vm4776, %vm4777
        %v4779 = vsel %vm4778, %v4771, %v4775
        %v4780 = vand.u32 2147483647, %v3901
        %vm4781 = vcmp.eq.f32.partialorder %v4780, 8.507059e+37
        %v4782 = vand.u32 %v3901, 2147483648
        %v4783 = vor.u32 1.1754944e-38, %v4782
        %v4784 = vsel %vm4781, %v4783, %v4779
        %v4785 = vmul.f32 1.0, %v4784
        %v4786 = vrcp.pop %v3902
        %v4787 = vmul.f32 %v3902, %v4786
        %v4788 = vsub.f32 1.0, %v4787
        %v4789 = vmul.f32 %v4786, %v4788
        %v4790 = vadd.f32 %v4786, %v4789
        %vm4791 = vweird.f32 %v3902
        %vm4792 = vweird.f32 %v4786
        %vm4793 = vmor %vm4791, %vm4792
        %v4794 = vsel %vm4793, %v4786, %v4790
        %v4795 = vand.u32 2147483647, %v3902
        %vm4796 = vcmp.eq.f32.partialorder %v4795, 8.507059e+37
        %v4797 = vand.u32 %v3902, 2147483648
        %v4798 = vor.u32 1.1754944e-38, %v4797
        %v4799 = vsel %vm4796, %v4798, %v4794
        %v4800 = vmul.f32 1.0, %v4799
        %v4801 = vrcp.pop %v3903
        %v4802 = vmul.f32 %v3903, %v4801
        %v4803 = vsub.f32 1.0, %v4802
        %v4804 = vmul.f32 %v4801, %v4803
        %v4805 = vadd.f32 %v4801, %v4804
        %vm4806 = vweird.f32 %v3903
        %vm4807 = vweird.f32 %v4801
        %vm4808 = vmor %vm4806, %vm4807
        %v4809 = vsel %vm4808, %v4801, %v4805
        %v4810 = vand.u32 2147483647, %v3903
        %vm4811 = vcmp.eq.f32.partialorder %v4810, 8.507059e+37
        %v4812 = vand.u32 %v3903, 2147483648
        %v4813 = vor.u32 1.1754944e-38, %v4812
        %v4814 = vsel %vm4811, %v4813, %v4809
        %v4815 = vmul.f32 1.0, %v4814
        %v4816 = vrcp.pop %v3904
        %v4817 = vmul.f32 %v3904, %v4816
        %v4818 = vsub.f32 1.0, %v4817
        %v4819 = vmul.f32 %v4816, %v4818
        %v4820 = vadd.f32 %v4816, %v4819
        %vm4821 = vweird.f32 %v3904
        %vm4822 = vweird.f32 %v4816
        %vm4823 = vmor %vm4821, %vm4822
        %v4824 = vsel %vm4823, %v4816, %v4820
        %v4825 = vand.u32 2147483647, %v3904
        %vm4826 = vcmp.eq.f32.partialorder %v4825, 8.507059e+37
        %v4827 = vand.u32 %v3904, 2147483648
        %v4828 = vor.u32 1.1754944e-38, %v4827
        %v4829 = vsel %vm4826, %v4828, %v4824
        %v4830 = vmul.f32 1.0, %v4829
        %v4831 = vrcp.pop %v3905
        %v4832 = vmul.f32 %v3905, %v4831
        %v4833 = vsub.f32 1.0, %v4832
        %v4834 = vmul.f32 %v4831, %v4833
        %v4835 = vadd.f32 %v4831, %v4834
        %vm4836 = vweird.f32 %v3905
        %vm4837 = vweird.f32 %v4831
        %vm4838 = vmor %vm4836, %vm4837
        %v4839 = vsel %vm4838, %v4831, %v4835
        %v4840 = vand.u32 2147483647, %v3905
        %vm4841 = vcmp.eq.f32.partialorder %v4840, 8.507059e+37
        %v4842 = vand.u32 %v3905, 2147483648
        %v4843 = vor.u32 1.1754944e-38, %v4842
        %v4844 = vsel %vm4841, %v4843, %v4839
        %v4845 = vmul.f32 1.0, %v4844
        %v4846 = vrcp.pop %v3906
        %v4847 = vmul.f32 %v3906, %v4846
        %v4848 = vsub.f32 1.0, %v4847
        %v4849 = vmul.f32 %v4846, %v4848
        %v4850 = vadd.f32 %v4846, %v4849
        %vm4851 = vweird.f32 %v3906
        %vm4852 = vweird.f32 %v4846
        %vm4853 = vmor %vm4851, %vm4852
        %v4854 = vsel %vm4853, %v4846, %v4850
        %v4855 = vand.u32 2147483647, %v3906
        %vm4856 = vcmp.eq.f32.partialorder %v4855, 8.507059e+37
        %v4857 = vand.u32 %v3906, 2147483648
        %v4858 = vor.u32 1.1754944e-38, %v4857
        %v4859 = vsel %vm4856, %v4858, %v4854
        %v4860 = vmul.f32 1.0, %v4859
        %v4861 = vrcp.pop %v3907
        %v4862 = vmul.f32 %v3907, %v4861
        %v4863 = vsub.f32 1.0, %v4862
        %v4864 = vmul.f32 %v4861, %v4863
        %v4865 = vadd.f32 %v4861, %v4864
        %vm4866 = vweird.f32 %v3907
        %vm4867 = vweird.f32 %v4861
        %vm4868 = vmor %vm4866, %vm4867
        %v4869 = vsel %vm4868, %v4861, %v4865
        %v4870 = vand.u32 2147483647, %v3907
        %vm4871 = vcmp.eq.f32.partialorder %v4870, 8.507059e+37
        %v4872 = vand.u32 %v3907, 2147483648
        %v4873 = vor.u32 1.1754944e-38, %v4872
        %v4874 = vsel %vm4871, %v4873, %v4869
        %v4875 = vmul.f32 1.0, %v4874
        %v4876 = vrcp.pop %v3908
        %v4877 = vmul.f32 %v3908, %v4876
        %v4878 = vsub.f32 1.0, %v4877
        %v4879 = vmul.f32 %v4876, %v4878
        %v4880 = vadd.f32 %v4876, %v4879
        %vm4881 = vweird.f32 %v3908
        %vm4882 = vweird.f32 %v4876
        %vm4883 = vmor %vm4881, %vm4882
        %v4884 = vsel %vm4883, %v4876, %v4880
        %v4885 = vand.u32 2147483647, %v3908
        %vm4886 = vcmp.eq.f32.partialorder %v4885, 8.507059e+37
        %v4887 = vand.u32 %v3908, 2147483648
        %v4888 = vor.u32 1.1754944e-38, %v4887
        %v4889 = vsel %vm4886, %v4888, %v4884
        %v4890 = vmul.f32 1.0, %v4889
        %v4891 = vrcp.pop %v3909
        %v4892 = vmul.f32 %v3909, %v4891
        %v4893 = vsub.f32 1.0, %v4892
        %v4894 = vmul.f32 %v4891, %v4893
        %v4895 = vadd.f32 %v4891, %v4894
        %vm4896 = vweird.f32 %v3909
        %vm4897 = vweird.f32 %v4891
        %vm4898 = vmor %vm4896, %vm4897
        %v4899 = vsel %vm4898, %v4891, %v4895
        %v4900 = vand.u32 2147483647, %v3909
        %vm4901 = vcmp.eq.f32.partialorder %v4900, 8.507059e+37
        %v4902 = vand.u32 %v3909, 2147483648
        %v4903 = vor.u32 1.1754944e-38, %v4902
        %v4904 = vsel %vm4901, %v4903, %v4899
        %v4905 = vmul.f32 1.0, %v4904
        %v4906 = vrcp.pop %v3910
        %v4907 = vmul.f32 %v3910, %v4906
        %v4908 = vsub.f32 1.0, %v4907
        %v4909 = vmul.f32 %v4906, %v4908
        %v4910 = vadd.f32 %v4906, %v4909
        %vm4911 = vweird.f32 %v3910
        %vm4912 = vweird.f32 %v4906
        %vm4913 = vmor %vm4911, %vm4912
        %v4914 = vsel %vm4913, %v4906, %v4910
        %v4915 = vand.u32 2147483647, %v3910
        %vm4916 = vcmp.eq.f32.partialorder %v4915, 8.507059e+37
        %v4917 = vand.u32 %v3910, 2147483648
        %v4918 = vor.u32 1.1754944e-38, %v4917
        %v4919 = vsel %vm4916, %v4918, %v4914
        %v4920 = vmul.f32 1.0, %v4919
        %v4921 = vrcp.pop %v3911
        %v4922 = vmul.f32 %v3911, %v4921
        %v4923 = vsub.f32 1.0, %v4922
        %v4924 = vmul.f32 %v4921, %v4923
        %v4925 = vadd.f32 %v4921, %v4924
        %vm4926 = vweird.f32 %v3911
        %vm4927 = vweird.f32 %v4921
        %vm4928 = vmor %vm4926, %vm4927
        %v4929 = vsel %vm4928, %v4921, %v4925
        %v4930 = vand.u32 2147483647, %v3911
        %vm4931 = vcmp.eq.f32.partialorder %v4930, 8.507059e+37
        %v4932 = vand.u32 %v3911, 2147483648
        %v4933 = vor.u32 1.1754944e-38, %v4932
        %v4934 = vsel %vm4931, %v4933, %v4929
        %v4935 = vmul.f32 1.0, %v4934
        %v4936 = vrcp.pop %v3912
        %v4937 = vmul.f32 %v3912, %v4936
        %v4938 = vsub.f32 1.0, %v4937
        %v4939 = vmul.f32 %v4936, %v4938
        %v4940 = vadd.f32 %v4936, %v4939
        %vm4941 = vweird.f32 %v3912
        %vm4942 = vweird.f32 %v4936
        %vm4943 = vmor %vm4941, %vm4942
        %v4944 = vsel %vm4943, %v4936, %v4940
        %v4945 = vand.u32 2147483647, %v3912
        %vm4946 = vcmp.eq.f32.partialorder %v4945, 8.507059e+37
        %v4947 = vand.u32 %v3912, 2147483648
        %v4948 = vor.u32 1.1754944e-38, %v4947
        %v4949 = vsel %vm4946, %v4948, %v4944
        %v4950 = vmul.f32 1.0, %v4949
        %v4951 = vrcp.pop %v3913
        %v4952 = vmul.f32 %v3913, %v4951
        %v4953 = vsub.f32 1.0, %v4952
        %v4954 = vmul.f32 %v4951, %v4953
        %v4955 = vadd.f32 %v4951, %v4954
        %vm4956 = vweird.f32 %v3913
        %vm4957 = vweird.f32 %v4951
        %vm4958 = vmor %vm4956, %vm4957
        %v4959 = vsel %vm4958, %v4951, %v4955
        %v4960 = vand.u32 2147483647, %v3913
        %vm4961 = vcmp.eq.f32.partialorder %v4960, 8.507059e+37
        %v4962 = vand.u32 %v3913, 2147483648
        %v4963 = vor.u32 1.1754944e-38, %v4962
        %v4964 = vsel %vm4961, %v4963, %v4959
        %v4965 = vmul.f32 1.0, %v4964
        %v4966 = vrcp.pop %v3914
        %v4967 = vmul.f32 %v3914, %v4966
        %v4968 = vsub.f32 1.0, %v4967
        %v4969 = vmul.f32 %v4966, %v4968
        %v4970 = vadd.f32 %v4966, %v4969
        %vm4971 = vweird.f32 %v3914
        %vm4972 = vweird.f32 %v4966
        %vm4973 = vmor %vm4971, %vm4972
        %v4974 = vsel %vm4973, %v4966, %v4970
        %v4975 = vand.u32 2147483647, %v3914
        %vm4976 = vcmp.eq.f32.partialorder %v4975, 8.507059e+37
        %v4977 = vand.u32 %v3914, 2147483648
        %v4978 = vor.u32 1.1754944e-38, %v4977
        %v4979 = vsel %vm4976, %v4978, %v4974
        %v4980 = vmul.f32 1.0, %v4979
        %v4981 = vrcp.pop %v3915
        %v4982 = vmul.f32 %v3915, %v4981
        %v4983 = vsub.f32 1.0, %v4982
        %v4984 = vmul.f32 %v4981, %v4983
        %v4985 = vadd.f32 %v4981, %v4984
        %vm4986 = vweird.f32 %v3915
        %vm4987 = vweird.f32 %v4981
        %vm4988 = vmor %vm4986, %vm4987
        %v4989 = vsel %vm4988, %v4981, %v4985
        %v4990 = vand.u32 2147483647, %v3915
        %vm4991 = vcmp.eq.f32.partialorder %v4990, 8.507059e+37
        %v4992 = vand.u32 %v3915, 2147483648
        %v4993 = vor.u32 1.1754944e-38, %v4992
        %v4994 = vsel %vm4991, %v4993, %v4989
        %v4995 = vmul.f32 1.0, %v4994
        %v4996 = vrcp.pop %v3916
        %v4997 = vmul.f32 %v3916, %v4996
        %v4998 = vsub.f32 1.0, %v4997
        %v4999 = vmul.f32 %v4996, %v4998
        %v5000 = vadd.f32 %v4996, %v4999
        %vm5001 = vweird.f32 %v3916
        %vm5002 = vweird.f32 %v4996
        %vm5003 = vmor %vm5001, %vm5002
        %v5004 = vsel %vm5003, %v4996, %v5000
        %v5005 = vand.u32 2147483647, %v3916
        %vm5006 = vcmp.eq.f32.partialorder %v5005, 8.507059e+37
        %v5007 = vand.u32 %v3916, 2147483648
        %v5008 = vor.u32 1.1754944e-38, %v5007
        %v5009 = vsel %vm5006, %v5008, %v5004
        %v5010 = vmul.f32 1.0, %v5009
        %v5011 = vrcp.pop %v3917
        %v5012 = vmul.f32 %v3917, %v5011
        %v5013 = vsub.f32 1.0, %v5012
        %v5014 = vmul.f32 %v5011, %v5013
        %v5015 = vadd.f32 %v5011, %v5014
        %vm5016 = vweird.f32 %v3917
        %vm5017 = vweird.f32 %v5011
        %vm5018 = vmor %vm5016, %vm5017
        %v5019 = vsel %vm5018, %v5011, %v5015
        %v5020 = vand.u32 2147483647, %v3917
        %vm5021 = vcmp.eq.f32.partialorder %v5020, 8.507059e+37
        %v5022 = vand.u32 %v3917, 2147483648
        %v5023 = vor.u32 1.1754944e-38, %v5022
        %v5024 = vsel %vm5021, %v5023, %v5019
        %v5025 = vmul.f32 1.0, %v5024
        %v5026 = vrcp.pop %v3918
        %v5027 = vmul.f32 %v3918, %v5026
        %v5028 = vsub.f32 1.0, %v5027
        %v5029 = vmul.f32 %v5026, %v5028
        %v5030 = vadd.f32 %v5026, %v5029
        %vm5031 = vweird.f32 %v3918
        %vm5032 = vweird.f32 %v5026
        %vm5033 = vmor %vm5031, %vm5032
        %v5034 = vsel %vm5033, %v5026, %v5030
        %v5035 = vand.u32 2147483647, %v3918
        %vm5036 = vcmp.eq.f32.partialorder %v5035, 8.507059e+37
        %v5037 = vand.u32 %v3918, 2147483648
        %v5038 = vor.u32 1.1754944e-38, %v5037
        %v5039 = vsel %vm5036, %v5038, %v5034
        %v5040 = vmul.f32 1.0, %v5039
        %v5041 = vrcp.pop %v3919
        %v5042 = vmul.f32 %v3919, %v5041
        %v5043 = vsub.f32 1.0, %v5042
        %v5044 = vmul.f32 %v5041, %v5043
        %v5045 = vadd.f32 %v5041, %v5044
        %vm5046 = vweird.f32 %v3919
        %vm5047 = vweird.f32 %v5041
        %vm5048 = vmor %vm5046, %vm5047
        %v5049 = vsel %vm5048, %v5041, %v5045
        %v5050 = vand.u32 2147483647, %v3919
        %vm5051 = vcmp.eq.f32.partialorder %v5050, 8.507059e+37
        %v5052 = vand.u32 %v3919, 2147483648
        %v5053 = vor.u32 1.1754944e-38, %v5052
        %v5054 = vsel %vm5051, %v5053, %v5049
        %v5055 = vmul.f32 1.0, %v5054
        %v5056 = vrcp.pop %v3920
        %v5057 = vmul.f32 %v3920, %v5056
        %v5058 = vsub.f32 1.0, %v5057
        %v5059 = vmul.f32 %v5056, %v5058
        %v5060 = vadd.f32 %v5056, %v5059
        %vm5061 = vweird.f32 %v3920
        %vm5062 = vweird.f32 %v5056
        %vm5063 = vmor %vm5061, %vm5062
        %v5064 = vsel %vm5063, %v5056, %v5060
        %v5065 = vand.u32 2147483647, %v3920
        %vm5066 = vcmp.eq.f32.partialorder %v5065, 8.507059e+37
        %v5067 = vand.u32 %v3920, 2147483648
        %v5068 = vor.u32 1.1754944e-38, %v5067
        %v5069 = vsel %vm5066, %v5068, %v5064
        %v5070 = vmul.f32 1.0, %v5069
        %v5071 = vrcp.pop %v3921
        %v5072 = vmul.f32 %v3921, %v5071
        %v5073 = vsub.f32 1.0, %v5072
        %v5074 = vmul.f32 %v5071, %v5073
        %v5075 = vadd.f32 %v5071, %v5074
        %vm5076 = vweird.f32 %v3921
        %vm5077 = vweird.f32 %v5071
        %vm5078 = vmor %vm5076, %vm5077
        %v5079 = vsel %vm5078, %v5071, %v5075
        %v5080 = vand.u32 2147483647, %v3921
        %vm5081 = vcmp.eq.f32.partialorder %v5080, 8.507059e+37
        %v5082 = vand.u32 %v3921, 2147483648
        %v5083 = vor.u32 1.1754944e-38, %v5082
        %v5084 = vsel %vm5081, %v5083, %v5079
        %v5085 = vmul.f32 1.0, %v5084
        %v5086 = vrcp.pop %v3922
        %v5087 = vmul.f32 %v3922, %v5086
        %v5088 = vsub.f32 1.0, %v5087
        %v5089 = vmul.f32 %v5086, %v5088
        %v5090 = vadd.f32 %v5086, %v5089
        %vm5091 = vweird.f32 %v3922
        %vm5092 = vweird.f32 %v5086
        %vm5093 = vmor %vm5091, %vm5092
        %v5094 = vsel %vm5093, %v5086, %v5090
        %v5095 = vand.u32 2147483647, %v3922
        %vm5096 = vcmp.eq.f32.partialorder %v5095, 8.507059e+37
        %v5097 = vand.u32 %v3922, 2147483648
        %v5098 = vor.u32 1.1754944e-38, %v5097
        %v5099 = vsel %vm5096, %v5098, %v5094
        %v5100 = vmul.f32 1.0, %v5099
        %v5101 = vrcp.pop %v3923
        %v5102 = vmul.f32 %v3923, %v5101
        %v5103 = vsub.f32 1.0, %v5102
        %v5104 = vmul.f32 %v5101, %v5103
        %v5105 = vadd.f32 %v5101, %v5104
        %vm5106 = vweird.f32 %v3923
        %vm5107 = vweird.f32 %v5101
        %vm5108 = vmor %vm5106, %vm5107
        %v5109 = vsel %vm5108, %v5101, %v5105
        %v5110 = vand.u32 2147483647, %v3923
        %vm5111 = vcmp.eq.f32.partialorder %v5110, 8.507059e+37
        %v5112 = vand.u32 %v3923, 2147483648
        %v5113 = vor.u32 1.1754944e-38, %v5112
        %v5114 = vsel %vm5111, %v5113, %v5109
        %v5115 = vmul.f32 1.0, %v5114
        %v5116 = vrcp.pop %v3924
        %v5117 = vmul.f32 %v3924, %v5116
        %v5118 = vsub.f32 1.0, %v5117
        %v5119 = vmul.f32 %v5116, %v5118
        %v5120 = vadd.f32 %v5116, %v5119
        %vm5121 = vweird.f32 %v3924
        %vm5122 = vweird.f32 %v5116
        %vm5123 = vmor %vm5121, %vm5122
        %v5124 = vsel %vm5123, %v5116, %v5120
        %v5125 = vand.u32 2147483647, %v3924
        %vm5126 = vcmp.eq.f32.partialorder %v5125, 8.507059e+37
        %v5127 = vand.u32 %v3924, 2147483648
        %v5128 = vor.u32 1.1754944e-38, %v5127
        %v5129 = vsel %vm5126, %v5128, %v5124
        %v5130 = vmul.f32 1.0, %v5129
        %v5131 = vrcp.pop %v3925
        %v5132 = vmul.f32 %v3925, %v5131
        %v5133 = vsub.f32 1.0, %v5132
        %v5134 = vmul.f32 %v5131, %v5133
        %v5135 = vadd.f32 %v5131, %v5134
        %vm5136 = vweird.f32 %v3925
        %vm5137 = vweird.f32 %v5131
        %vm5138 = vmor %vm5136, %vm5137
        %v5139 = vsel %vm5138, %v5131, %v5135
        %v5140 = vand.u32 2147483647, %v3925
        %vm5141 = vcmp.eq.f32.partialorder %v5140, 8.507059e+37
        %v5142 = vand.u32 %v3925, 2147483648
        %v5143 = vor.u32 1.1754944e-38, %v5142
        %v5144 = vsel %vm5141, %v5143, %v5139
        %v5145 = vmul.f32 1.0, %v5144
        %v5146 = vrcp.pop %v3926
        %v5147 = vmul.f32 %v3926, %v5146
        %v5148 = vsub.f32 1.0, %v5147
        %v5149 = vmul.f32 %v5146, %v5148
        %v5150 = vadd.f32 %v5146, %v5149
        %vm5151 = vweird.f32 %v3926
        %vm5152 = vweird.f32 %v5146
        %vm5153 = vmor %vm5151, %vm5152
        %v5154 = vsel %vm5153, %v5146, %v5150
        %v5155 = vand.u32 2147483647, %v3926
        %vm5156 = vcmp.eq.f32.partialorder %v5155, 8.507059e+37
        %v5157 = vand.u32 %v3926, 2147483648
        %v5158 = vor.u32 1.1754944e-38, %v5157
        %v5159 = vsel %vm5156, %v5158, %v5154
        %v5160 = vmul.f32 1.0, %v5159
        %v5161 = vrcp.pop %v3927
        %v5162 = vmul.f32 %v3927, %v5161
        %v5163 = vsub.f32 1.0, %v5162
        %v5164 = vmul.f32 %v5161, %v5163
        %v5165 = vadd.f32 %v5161, %v5164
        %vm5166 = vweird.f32 %v3927
        %vm5167 = vweird.f32 %v5161
        %vm5168 = vmor %vm5166, %vm5167
        %v5169 = vsel %vm5168, %v5161, %v5165
        %v5170 = vand.u32 2147483647, %v3927
        %vm5171 = vcmp.eq.f32.partialorder %v5170, 8.507059e+37
        %v5172 = vand.u32 %v3927, 2147483648
        %v5173 = vor.u32 1.1754944e-38, %v5172
        %v5174 = vsel %vm5171, %v5173, %v5169
        %v5175 = vmul.f32 1.0, %v5174
        %v5176 = vrcp.pop %v3928
        %v5177 = vmul.f32 %v3928, %v5176
        %v5178 = vsub.f32 1.0, %v5177
        %v5179 = vmul.f32 %v5176, %v5178
        %v5180 = vadd.f32 %v5176, %v5179
        %vm5181 = vweird.f32 %v3928
        %vm5182 = vweird.f32 %v5176
        %vm5183 = vmor %vm5181, %vm5182
        %v5184 = vsel %vm5183, %v5176, %v5180
        %v5185 = vand.u32 2147483647, %v3928
        %vm5186 = vcmp.eq.f32.partialorder %v5185, 8.507059e+37
        %v5187 = vand.u32 %v3928, 2147483648
        %v5188 = vor.u32 1.1754944e-38, %v5187
        %v5189 = vsel %vm5186, %v5188, %v5184
        %v5190 = vmul.f32 1.0, %v5189
        %v5191 = vrcp.pop %v3929
        %v5192 = vmul.f32 %v3929, %v5191
        %v5193 = vsub.f32 1.0, %v5192
        %v5194 = vmul.f32 %v5191, %v5193
        %v5195 = vadd.f32 %v5191, %v5194
        %vm5196 = vweird.f32 %v3929
        %vm5197 = vweird.f32 %v5191
        %vm5198 = vmor %vm5196, %vm5197
        %v5199 = vsel %vm5198, %v5191, %v5195
        %v5200 = vand.u32 2147483647, %v3929
        %vm5201 = vcmp.eq.f32.partialorder %v5200, 8.507059e+37
        %v5202 = vand.u32 %v3929, 2147483648
        %v5203 = vor.u32 1.1754944e-38, %v5202
        %v5204 = vsel %vm5201, %v5203, %v5199
        %v5205 = vmul.f32 1.0, %v5204
        %v5206 = vrcp.pop %v3930
        %v5207 = vmul.f32 %v3930, %v5206
        %v5208 = vsub.f32 1.0, %v5207
        %v5209 = vmul.f32 %v5206, %v5208
        %v5210 = vadd.f32 %v5206, %v5209
        %vm5211 = vweird.f32 %v3930
        %vm5212 = vweird.f32 %v5206
        %vm5213 = vmor %vm5211, %vm5212
        %v5214 = vsel %vm5213, %v5206, %v5210
        %v5215 = vand.u32 2147483647, %v3930
        %vm5216 = vcmp.eq.f32.partialorder %v5215, 8.507059e+37
        %v5217 = vand.u32 %v3930, 2147483648
        %v5218 = vor.u32 1.1754944e-38, %v5217
        %v5219 = vsel %vm5216, %v5218, %v5214
        %v5220 = vmul.f32 1.0, %v5219
        %v5221 = vrcp.pop %v3931
        %v5222 = vmul.f32 %v3931, %v5221
        %v5223 = vsub.f32 1.0, %v5222
        %v5224 = vmul.f32 %v5221, %v5223
        %v5225 = vadd.f32 %v5221, %v5224
        %vm5226 = vweird.f32 %v3931
        %vm5227 = vweird.f32 %v5221
        %vm5228 = vmor %vm5226, %vm5227
        %v5229 = vsel %vm5228, %v5221, %v5225
        %v5230 = vand.u32 2147483647, %v3931
        %vm5231 = vcmp.eq.f32.partialorder %v5230, 8.507059e+37
        %v5232 = vand.u32 %v3931, 2147483648
        %v5233 = vor.u32 1.1754944e-38, %v5232
        %v5234 = vsel %vm5231, %v5233, %v5229
        %v5235 = vmul.f32 1.0, %v5234
        %v5236 = vrcp.pop %v3932
        %v5237 = vmul.f32 %v3932, %v5236
        %v5238 = vsub.f32 1.0, %v5237
        %v5239 = vmul.f32 %v5236, %v5238
        %v5240 = vadd.f32 %v5236, %v5239
        %vm5241 = vweird.f32 %v3932
        %vm5242 = vweird.f32 %v5236
        %vm5243 = vmor %vm5241, %vm5242
        %v5244 = vsel %vm5243, %v5236, %v5240
        %v5245 = vand.u32 2147483647, %v3932
        %vm5246 = vcmp.eq.f32.partialorder %v5245, 8.507059e+37
        %v5247 = vand.u32 %v3932, 2147483648
        %v5248 = vor.u32 1.1754944e-38, %v5247
        %v5249 = vsel %vm5246, %v5248, %v5244
        %v5250 = vmul.f32 1.0, %v5249
        %v5251 = vrcp.pop %v3933
        %v5252 = vmul.f32 %v3933, %v5251
        %v5253 = vsub.f32 1.0, %v5252
        %v5254 = vmul.f32 %v5251, %v5253
        %v5255 = vadd.f32 %v5251, %v5254
        %vm5256 = vweird.f32 %v3933
        %vm5257 = vweird.f32 %v5251
        %vm5258 = vmor %vm5256, %vm5257
        %v5259 = vsel %vm5258, %v5251, %v5255
        %v5260 = vand.u32 2147483647, %v3933
        %vm5261 = vcmp.eq.f32.partialorder %v5260, 8.507059e+37
        %v5262 = vand.u32 %v3933, 2147483648
        %v5263 = vor.u32 1.1754944e-38, %v5262
        %v5264 = vsel %vm5261, %v5263, %v5259
        %v5265 = vmul.f32 1.0, %v5264
        %v5266 = vrcp.pop %v3934
        %v5267 = vmul.f32 %v3934, %v5266
        %v5268 = vsub.f32 1.0, %v5267
        %v5269 = vmul.f32 %v5266, %v5268
        %v5270 = vadd.f32 %v5266, %v5269
        %vm5271 = vweird.f32 %v3934
        %vm5272 = vweird.f32 %v5266
        %vm5273 = vmor %vm5271, %vm5272
        %v5274 = vsel %vm5273, %v5266, %v5270
        %v5275 = vand.u32 2147483647, %v3934
        %vm5276 = vcmp.eq.f32.partialorder %v5275, 8.507059e+37
        %v5277 = vand.u32 %v3934, 2147483648
        %v5278 = vor.u32 1.1754944e-38, %v5277
        %v5279 = vsel %vm5276, %v5278, %v5274
        %v5280 = vmul.f32 1.0, %v5279
        %v5281 = vrcp.pop %v3935
        %v5282 = vmul.f32 %v3935, %v5281
        %v5283 = vsub.f32 1.0, %v5282
        %v5284 = vmul.f32 %v5281, %v5283
        %v5285 = vadd.f32 %v5281, %v5284
        %vm5286 = vweird.f32 %v3935
        %vm5287 = vweird.f32 %v5281
        %vm5288 = vmor %vm5286, %vm5287
        %v5289 = vsel %vm5288, %v5281, %v5285
        %v5290 = vand.u32 2147483647, %v3935
        %vm5291 = vcmp.eq.f32.partialorder %v5290, 8.507059e+37
        %v5292 = vand.u32 %v3935, 2147483648
        %v5293 = vor.u32 1.1754944e-38, %v5292
        %v5294 = vsel %vm5291, %v5293, %v5289
        %v5295 = vmul.f32 1.0, %v5294
        %v5296 = vrcp.pop %v3936
        %v5297 = vmul.f32 %v3936, %v5296
        %v5298 = vsub.f32 1.0, %v5297
        %v5299 = vmul.f32 %v5296, %v5298
        %v5300 = vadd.f32 %v5296, %v5299
        %vm5301 = vweird.f32 %v3936
        %vm5302 = vweird.f32 %v5296
        %vm5303 = vmor %vm5301, %vm5302
        %v5304 = vsel %vm5303, %v5296, %v5300
        %v5305 = vand.u32 2147483647, %v3936
        %vm5306 = vcmp.eq.f32.partialorder %v5305, 8.507059e+37
        %v5307 = vand.u32 %v3936, 2147483648
        %v5308 = vor.u32 1.1754944e-38, %v5307
        %v5309 = vsel %vm5306, %v5308, %v5304
        %v5310 = vmul.f32 1.0, %v5309
        %v5311 = vrcp.pop %v3937
        %v5312 = vmul.f32 %v3937, %v5311
        %v5313 = vsub.f32 1.0, %v5312
        %v5314 = vmul.f32 %v5311, %v5313
        %v5315 = vadd.f32 %v5311, %v5314
        %vm5316 = vweird.f32 %v3937
        %vm5317 = vweird.f32 %v5311
        %vm5318 = vmor %vm5316, %vm5317
        %v5319 = vsel %vm5318, %v5311, %v5315
        %v5320 = vand.u32 2147483647, %v3937
        %vm5321 = vcmp.eq.f32.partialorder %v5320, 8.507059e+37
        %v5322 = vand.u32 %v3937, 2147483648
        %v5323 = vor.u32 1.1754944e-38, %v5322
        %v5324 = vsel %vm5321, %v5323, %v5319
        %v5325 = vmul.f32 1.0, %v5324
        %v5326 = vrcp.pop %v3938
        %v5327 = vmul.f32 %v3938, %v5326
        %v5328 = vsub.f32 1.0, %v5327
        %v5329 = vmul.f32 %v5326, %v5328
        %v5330 = vadd.f32 %v5326, %v5329
        %vm5331 = vweird.f32 %v3938
        %vm5332 = vweird.f32 %v5326
        %vm5333 = vmor %vm5331, %vm5332
        %v5334 = vsel %vm5333, %v5326, %v5330
        %v5335 = vand.u32 2147483647, %v3938
        %vm5336 = vcmp.eq.f32.partialorder %v5335, 8.507059e+37
        %v5337 = vand.u32 %v3938, 2147483648
        %v5338 = vor.u32 1.1754944e-38, %v5337
        %v5339 = vsel %vm5336, %v5338, %v5334
        %v5340 = vmul.f32 1.0, %v5339
        %v5341 = vrcp.pop %v3939
        %v5342 = vmul.f32 %v3939, %v5341
        %v5343 = vsub.f32 1.0, %v5342
        %v5344 = vmul.f32 %v5341, %v5343
        %v5345 = vadd.f32 %v5341, %v5344
        %vm5346 = vweird.f32 %v3939
        %vm5347 = vweird.f32 %v5341
        %vm5348 = vmor %vm5346, %vm5347
        %v5349 = vsel %vm5348, %v5341, %v5345
        %v5350 = vand.u32 2147483647, %v3939
        %vm5351 = vcmp.eq.f32.partialorder %v5350, 8.507059e+37
        %v5352 = vand.u32 %v3939, 2147483648
        %v5353 = vor.u32 1.1754944e-38, %v5352
        %v5354 = vsel %vm5351, %v5353, %v5349
        %v5355 = vmul.f32 1.0, %v5354
        %v5356 = vrcp.pop %v3940
        %v5357 = vmul.f32 %v3940, %v5356
        %v5358 = vsub.f32 1.0, %v5357
        %v5359 = vmul.f32 %v5356, %v5358
        %v5360 = vadd.f32 %v5356, %v5359
        %vm5361 = vweird.f32 %v3940
        %vm5362 = vweird.f32 %v5356
        %vm5363 = vmor %vm5361, %vm5362
        %v5364 = vsel %vm5363, %v5356, %v5360
        %v5365 = vand.u32 2147483647, %v3940
        %vm5366 = vcmp.eq.f32.partialorder %v5365, 8.507059e+37
        %v5367 = vand.u32 %v3940, 2147483648
        %v5368 = vor.u32 1.1754944e-38, %v5367
        %v5369 = vsel %vm5366, %v5368, %v5364
        %v5370 = vmul.f32 1.0, %v5369
        %v5371 = vrcp.pop %v3941
        %v5372 = vmul.f32 %v3941, %v5371
        %v5373 = vsub.f32 1.0, %v5372
        %v5374 = vmul.f32 %v5371, %v5373
        %v5375 = vadd.f32 %v5371, %v5374
        %vm5376 = vweird.f32 %v3941
        %vm5377 = vweird.f32 %v5371
        %vm5378 = vmor %vm5376, %vm5377
        %v5379 = vsel %vm5378, %v5371, %v5375
        %v5380 = vand.u32 2147483647, %v3941
        %vm5381 = vcmp.eq.f32.partialorder %v5380, 8.507059e+37
        %v5382 = vand.u32 %v3941, 2147483648
        %v5383 = vor.u32 1.1754944e-38, %v5382
        %v5384 = vsel %vm5381, %v5383, %v5379
        %v5385 = vmul.f32 1.0, %v5384
        %v5386 = vrcp.pop %v3942
        %v5387 = vmul.f32 %v3942, %v5386
        %v5388 = vsub.f32 1.0, %v5387
        %v5389 = vmul.f32 %v5386, %v5388
        %v5390 = vadd.f32 %v5386, %v5389
        %vm5391 = vweird.f32 %v3942
        %vm5392 = vweird.f32 %v5386
        %vm5393 = vmor %vm5391, %vm5392
        %v5394 = vsel %vm5393, %v5386, %v5390
        %v5395 = vand.u32 2147483647, %v3942
        %vm5396 = vcmp.eq.f32.partialorder %v5395, 8.507059e+37
        %v5397 = vand.u32 %v3942, 2147483648
        %v5398 = vor.u32 1.1754944e-38, %v5397
        %v5399 = vsel %vm5396, %v5398, %v5394
        %v5400 = vmul.f32 1.0, %v5399
        %v5401 = vrcp.pop %v3943
        %v5402 = vmul.f32 %v3943, %v5401
        %v5403 = vsub.f32 1.0, %v5402
        %v5404 = vmul.f32 %v5401, %v5403
        %v5405 = vadd.f32 %v5401, %v5404
        %vm5406 = vweird.f32 %v3943
        %vm5407 = vweird.f32 %v5401
        %vm5408 = vmor %vm5406, %vm5407
        %v5409 = vsel %vm5408, %v5401, %v5405
        %v5410 = vand.u32 2147483647, %v3943
        %vm5411 = vcmp.eq.f32.partialorder %v5410, 8.507059e+37
        %v5412 = vand.u32 %v3943, 2147483648
        %v5413 = vor.u32 1.1754944e-38, %v5412
        %v5414 = vsel %vm5411, %v5413, %v5409
        %v5415 = vmul.f32 1.0, %v5414
        %v5416 = vrcp.pop %v3944
        %v5417 = vmul.f32 %v3944, %v5416
        %v5418 = vsub.f32 1.0, %v5417
        %v5419 = vmul.f32 %v5416, %v5418
        %v5420 = vadd.f32 %v5416, %v5419
        %vm5421 = vweird.f32 %v3944
        %vm5422 = vweird.f32 %v5416
        %vm5423 = vmor %vm5421, %vm5422
        %v5424 = vsel %vm5423, %v5416, %v5420
        %v5425 = vand.u32 2147483647, %v3944
        %vm5426 = vcmp.eq.f32.partialorder %v5425, 8.507059e+37
        %v5427 = vand.u32 %v3944, 2147483648
        %v5428 = vor.u32 1.1754944e-38, %v5427
        %v5429 = vsel %vm5426, %v5428, %v5424
        %v5430 = vmul.f32 1.0, %v5429
        %v5431 = vrcp.pop %v3945
        %v5432 = vmul.f32 %v3945, %v5431
        %v5433 = vsub.f32 1.0, %v5432
        %v5434 = vmul.f32 %v5431, %v5433
        %v5435 = vadd.f32 %v5431, %v5434
        %vm5436 = vweird.f32 %v3945
        %vm5437 = vweird.f32 %v5431
        %vm5438 = vmor %vm5436, %vm5437
        %v5439 = vsel %vm5438, %v5431, %v5435
        %v5440 = vand.u32 2147483647, %v3945
        %vm5441 = vcmp.eq.f32.partialorder %v5440, 8.507059e+37
        %v5442 = vand.u32 %v3945, 2147483648
        %v5443 = vor.u32 1.1754944e-38, %v5442
        %v5444 = vsel %vm5441, %v5443, %v5439
        %v5445 = vmul.f32 1.0, %v5444
        %v5446 = vrcp.pop %v3946
        %v5447 = vmul.f32 %v3946, %v5446
        %v5448 = vsub.f32 1.0, %v5447
        %v5449 = vmul.f32 %v5446, %v5448
        %v5450 = vadd.f32 %v5446, %v5449
        %vm5451 = vweird.f32 %v3946
        %vm5452 = vweird.f32 %v5446
        %vm5453 = vmor %vm5451, %vm5452
        %v5454 = vsel %vm5453, %v5446, %v5450
        %v5455 = vand.u32 2147483647, %v3946
        %vm5456 = vcmp.eq.f32.partialorder %v5455, 8.507059e+37
        %v5457 = vand.u32 %v3946, 2147483648
        %v5458 = vor.u32 1.1754944e-38, %v5457
        %v5459 = vsel %vm5456, %v5458, %v5454
        %v5460 = vmul.f32 1.0, %v5459
        %v5461 = vrcp.pop %v3947
        %v5462 = vmul.f32 %v3947, %v5461
        %v5463 = vsub.f32 1.0, %v5462
        %v5464 = vmul.f32 %v5461, %v5463
        %v5465 = vadd.f32 %v5461, %v5464
        %vm5466 = vweird.f32 %v3947
        %vm5467 = vweird.f32 %v5461
        %vm5468 = vmor %vm5466, %vm5467
        %v5469 = vsel %vm5468, %v5461, %v5465
        %v5470 = vand.u32 2147483647, %v3947
        %vm5471 = vcmp.eq.f32.partialorder %v5470, 8.507059e+37
        %v5472 = vand.u32 %v3947, 2147483648
        %v5473 = vor.u32 1.1754944e-38, %v5472
        %v5474 = vsel %vm5471, %v5473, %v5469
        %v5475 = vmul.f32 1.0, %v5474
        %v5476 = vrcp.pop %v3948
        %v5477 = vmul.f32 %v3948, %v5476
        %v5478 = vsub.f32 1.0, %v5477
        %v5479 = vmul.f32 %v5476, %v5478
        %v5480 = vadd.f32 %v5476, %v5479
        %vm5481 = vweird.f32 %v3948
        %vm5482 = vweird.f32 %v5476
        %vm5483 = vmor %vm5481, %vm5482
        %v5484 = vsel %vm5483, %v5476, %v5480
        %v5485 = vand.u32 2147483647, %v3948
        %vm5486 = vcmp.eq.f32.partialorder %v5485, 8.507059e+37
        %v5487 = vand.u32 %v3948, 2147483648
        %v5488 = vor.u32 1.1754944e-38, %v5487
        %v5489 = vsel %vm5486, %v5488, %v5484
        %v5490 = vmul.f32 1.0, %v5489
        %v5491 = vrcp.pop %v3949
        %v5492 = vmul.f32 %v3949, %v5491
        %v5493 = vsub.f32 1.0, %v5492
        %v5494 = vmul.f32 %v5491, %v5493
        %v5495 = vadd.f32 %v5491, %v5494
        %vm5496 = vweird.f32 %v3949
        %vm5497 = vweird.f32 %v5491
        %vm5498 = vmor %vm5496, %vm5497
        %v5499 = vsel %vm5498, %v5491, %v5495
        %v5500 = vand.u32 2147483647, %v3949
        %vm5501 = vcmp.eq.f32.partialorder %v5500, 8.507059e+37
        %v5502 = vand.u32 %v3949, 2147483648
        %v5503 = vor.u32 1.1754944e-38, %v5502
        %v5504 = vsel %vm5501, %v5503, %v5499
        %v5505 = vmul.f32 1.0, %v5504
        %v5506 = vrcp.pop %v3950
        %v5507 = vmul.f32 %v3950, %v5506
        %v5508 = vsub.f32 1.0, %v5507
        %v5509 = vmul.f32 %v5506, %v5508
        %v5510 = vadd.f32 %v5506, %v5509
        %vm5511 = vweird.f32 %v3950
        %vm5512 = vweird.f32 %v5506
        %vm5513 = vmor %vm5511, %vm5512
        %v5514 = vsel %vm5513, %v5506, %v5510
        %v5515 = vand.u32 2147483647, %v3950
        %vm5516 = vcmp.eq.f32.partialorder %v5515, 8.507059e+37
        %v5517 = vand.u32 %v3950, 2147483648
        %v5518 = vor.u32 1.1754944e-38, %v5517
        %v5519 = vsel %vm5516, %v5518, %v5514
        %v5520 = vmul.f32 1.0, %v5519
        %v5521 = vrcp.pop %v3951
        %v5522 = vmul.f32 %v3951, %v5521
        %v5523 = vsub.f32 1.0, %v5522
        %v5524 = vmul.f32 %v5521, %v5523
        %v5525 = vadd.f32 %v5521, %v5524
        %vm5526 = vweird.f32 %v3951
        %vm5527 = vweird.f32 %v5521
        %vm5528 = vmor %vm5526, %vm5527
        %v5529 = vsel %vm5528, %v5521, %v5525
        %v5530 = vand.u32 2147483647, %v3951
        %vm5531 = vcmp.eq.f32.partialorder %v5530, 8.507059e+37
        %v5532 = vand.u32 %v3951, 2147483648
        %v5533 = vor.u32 1.1754944e-38, %v5532
        %v5534 = vsel %vm5531, %v5533, %v5529
        %v5535 = vmul.f32 1.0, %v5534
        %v5536 = vrcp.pop %v3952
        %v5537 = vmul.f32 %v3952, %v5536
        %v5538 = vsub.f32 1.0, %v5537
        %v5539 = vmul.f32 %v5536, %v5538
        %v5540 = vadd.f32 %v5536, %v5539
        %vm5541 = vweird.f32 %v3952
        %vm5542 = vweird.f32 %v5536
        %vm5543 = vmor %vm5541, %vm5542
        %v5544 = vsel %vm5543, %v5536, %v5540
        %v5545 = vand.u32 2147483647, %v3952
        %vm5546 = vcmp.eq.f32.partialorder %v5545, 8.507059e+37
        %v5547 = vand.u32 %v3952, 2147483648
        %v5548 = vor.u32 1.1754944e-38, %v5547
        %v5549 = vsel %vm5546, %v5548, %v5544
        %v5550 = vmul.f32 1.0, %v5549
        %v5551 = vrcp.pop %v3953
        %v5552 = vmul.f32 %v3953, %v5551
        %v5553 = vsub.f32 1.0, %v5552
        %v5554 = vmul.f32 %v5551, %v5553
        %v5555 = vadd.f32 %v5551, %v5554
        %vm5556 = vweird.f32 %v3953
        %vm5557 = vweird.f32 %v5551
        %vm5558 = vmor %vm5556, %vm5557
        %v5559 = vsel %vm5558, %v5551, %v5555
        %v5560 = vand.u32 2147483647, %v3953
        %vm5561 = vcmp.eq.f32.partialorder %v5560, 8.507059e+37
        %v5562 = vand.u32 %v3953, 2147483648
        %v5563 = vor.u32 1.1754944e-38, %v5562
        %v5564 = vsel %vm5561, %v5563, %v5559
        %v5565 = vmul.f32 1.0, %v5564
        %v5566 = vrcp.pop %v3954
        %v5567 = vmul.f32 %v3954, %v5566
        %v5568 = vsub.f32 1.0, %v5567
        %v5569 = vmul.f32 %v5566, %v5568
        %v5570 = vadd.f32 %v5566, %v5569
        %vm5571 = vweird.f32 %v3954
        %vm5572 = vweird.f32 %v5566
        %vm5573 = vmor %vm5571, %vm5572
        %v5574 = vsel %vm5573, %v5566, %v5570
        %v5575 = vand.u32 2147483647, %v3954
        %vm5576 = vcmp.eq.f32.partialorder %v5575, 8.507059e+37
        %v5577 = vand.u32 %v3954, 2147483648
        %v5578 = vor.u32 1.1754944e-38, %v5577
        %v5579 = vsel %vm5576, %v5578, %v5574
        %v5580 = vmul.f32 1.0, %v5579
        %v5581 = vrcp.pop %v3955
        %v5582 = vmul.f32 %v3955, %v5581
        %v5583 = vsub.f32 1.0, %v5582
        %v5584 = vmul.f32 %v5581, %v5583
        %v5585 = vadd.f32 %v5581, %v5584
        %vm5586 = vweird.f32 %v3955
        %vm5587 = vweird.f32 %v5581
        %vm5588 = vmor %vm5586, %vm5587
        %v5589 = vsel %vm5588, %v5581, %v5585
        %v5590 = vand.u32 2147483647, %v3955
        %vm5591 = vcmp.eq.f32.partialorder %v5590, 8.507059e+37
        %v5592 = vand.u32 %v3955, 2147483648
        %v5593 = vor.u32 1.1754944e-38, %v5592
        %v5594 = vsel %vm5591, %v5593, %v5589
        %v5595 = vmul.f32 1.0, %v5594
        %v5596 = vrcp.pop %v3956
        %v5597 = vmul.f32 %v3956, %v5596
        %v5598 = vsub.f32 1.0, %v5597
        %v5599 = vmul.f32 %v5596, %v5598
        %v5600 = vadd.f32 %v5596, %v5599
        %vm5601 = vweird.f32 %v3956
        %vm5602 = vweird.f32 %v5596
        %vm5603 = vmor %vm5601, %vm5602
        %v5604 = vsel %vm5603, %v5596, %v5600
        %v5605 = vand.u32 2147483647, %v3956
        %vm5606 = vcmp.eq.f32.partialorder %v5605, 8.507059e+37
        %v5607 = vand.u32 %v3956, 2147483648
        %v5608 = vor.u32 1.1754944e-38, %v5607
        %v5609 = vsel %vm5606, %v5608, %v5604
        %v5610 = vmul.f32 1.0, %v5609
        %v5611 = vrcp.pop %v3957
        %v5612 = vmul.f32 %v3957, %v5611
        %v5613 = vsub.f32 1.0, %v5612
        %v5614 = vmul.f32 %v5611, %v5613
        %v5615 = vadd.f32 %v5611, %v5614
        %vm5616 = vweird.f32 %v3957
        %vm5617 = vweird.f32 %v5611
        %vm5618 = vmor %vm5616, %vm5617
        %v5619 = vsel %vm5618, %v5611, %v5615
        %v5620 = vand.u32 2147483647, %v3957
        %vm5621 = vcmp.eq.f32.partialorder %v5620, 8.507059e+37
        %v5622 = vand.u32 %v3957, 2147483648
        %v5623 = vor.u32 1.1754944e-38, %v5622
        %v5624 = vsel %vm5621, %v5623, %v5619
        %v5625 = vmul.f32 1.0, %v5624
        %v5626 = vrcp.pop %v3958
        %v5627 = vmul.f32 %v3958, %v5626
        %v5628 = vsub.f32 1.0, %v5627
        %v5629 = vmul.f32 %v5626, %v5628
        %v5630 = vadd.f32 %v5626, %v5629
        %vm5631 = vweird.f32 %v3958
        %vm5632 = vweird.f32 %v5626
        %vm5633 = vmor %vm5631, %vm5632
        %v5634 = vsel %vm5633, %v5626, %v5630
        %v5635 = vand.u32 2147483647, %v3958
        %vm5636 = vcmp.eq.f32.partialorder %v5635, 8.507059e+37
        %v5637 = vand.u32 %v3958, 2147483648
        %v5638 = vor.u32 1.1754944e-38, %v5637
        %v5639 = vsel %vm5636, %v5638, %v5634
        %v5640 = vmul.f32 1.0, %v5639
        %v5641 = vrcp.pop %v3959
        %v5642 = vmul.f32 %v3959, %v5641
        %v5643 = vsub.f32 1.0, %v5642
        %v5644 = vmul.f32 %v5641, %v5643
        %v5645 = vadd.f32 %v5641, %v5644
        %vm5646 = vweird.f32 %v3959
        %vm5647 = vweird.f32 %v5641
        %vm5648 = vmor %vm5646, %vm5647
        %v5649 = vsel %vm5648, %v5641, %v5645
        %v5650 = vand.u32 2147483647, %v3959
        %vm5651 = vcmp.eq.f32.partialorder %v5650, 8.507059e+37
        %v5652 = vand.u32 %v3959, 2147483648
        %v5653 = vor.u32 1.1754944e-38, %v5652
        %v5654 = vsel %vm5651, %v5653, %v5649
        %v5655 = vmul.f32 1.0, %v5654
        %v5656 = vrcp.pop %v3960
        %v5657 = vmul.f32 %v3960, %v5656
        %v5658 = vsub.f32 1.0, %v5657
        %v5659 = vmul.f32 %v5656, %v5658
        %v5660 = vadd.f32 %v5656, %v5659
        %vm5661 = vweird.f32 %v3960
        %vm5662 = vweird.f32 %v5656
        %vm5663 = vmor %vm5661, %vm5662
        %v5664 = vsel %vm5663, %v5656, %v5660
        %v5665 = vand.u32 2147483647, %v3960
        %vm5666 = vcmp.eq.f32.partialorder %v5665, 8.507059e+37
        %v5667 = vand.u32 %v3960, 2147483648
        %v5668 = vor.u32 1.1754944e-38, %v5667
        %v5669 = vsel %vm5666, %v5668, %v5664
        %v5670 = vmul.f32 1.0, %v5669
        %v5671 = vrcp.pop %v3961
        %v5672 = vmul.f32 %v3961, %v5671
        %v5673 = vsub.f32 1.0, %v5672
        %v5674 = vmul.f32 %v5671, %v5673
        %v5675 = vadd.f32 %v5671, %v5674
        %vm5676 = vweird.f32 %v3961
        %vm5677 = vweird.f32 %v5671
        %vm5678 = vmor %vm5676, %vm5677
        %v5679 = vsel %vm5678, %v5671, %v5675
        %v5680 = vand.u32 2147483647, %v3961
        %vm5681 = vcmp.eq.f32.partialorder %v5680, 8.507059e+37
        %v5682 = vand.u32 %v3961, 2147483648
        %v5683 = vor.u32 1.1754944e-38, %v5682
        %v5684 = vsel %vm5681, %v5683, %v5679
        %v5685 = vmul.f32 1.0, %v5684
        %v5686 = vrcp.pop %v3962
        %v5687 = vmul.f32 %v3962, %v5686
        %v5688 = vsub.f32 1.0, %v5687
        %v5689 = vmul.f32 %v5686, %v5688
        %v5690 = vadd.f32 %v5686, %v5689
        %vm5691 = vweird.f32 %v3962
        %vm5692 = vweird.f32 %v5686
        %vm5693 = vmor %vm5691, %vm5692
        %v5694 = vsel %vm5693, %v5686, %v5690
        %v5695 = vand.u32 2147483647, %v3962
        %vm5696 = vcmp.eq.f32.partialorder %v5695, 8.507059e+37
        %v5697 = vand.u32 %v3962, 2147483648
        %v5698 = vor.u32 1.1754944e-38, %v5697
        %v5699 = vsel %vm5696, %v5698, %v5694
        %v5700 = vmul.f32 1.0, %v5699
        %v5701 = vrcp.pop %v3963
        %v5702 = vmul.f32 %v3963, %v5701
        %v5703 = vsub.f32 1.0, %v5702
        %v5704 = vmul.f32 %v5701, %v5703
        %v5705 = vadd.f32 %v5701, %v5704
        %vm5706 = vweird.f32 %v3963
        %vm5707 = vweird.f32 %v5701
        %vm5708 = vmor %vm5706, %vm5707
        %v5709 = vsel %vm5708, %v5701, %v5705
        %v5710 = vand.u32 2147483647, %v3963
        %vm5711 = vcmp.eq.f32.partialorder %v5710, 8.507059e+37
        %v5712 = vand.u32 %v3963, 2147483648
        %v5713 = vor.u32 1.1754944e-38, %v5712
        %v5714 = vsel %vm5711, %v5713, %v5709
        %v5715 = vmul.f32 1.0, %v5714
        %v5716 = vrcp.pop %v3964
        %v5717 = vmul.f32 %v3964, %v5716
        %v5718 = vsub.f32 1.0, %v5717
        %v5719 = vmul.f32 %v5716, %v5718
        %v5720 = vadd.f32 %v5716, %v5719
        %vm5721 = vweird.f32 %v3964
        %vm5722 = vweird.f32 %v5716
        %vm5723 = vmor %vm5721, %vm5722
        %v5724 = vsel %vm5723, %v5716, %v5720
        %v5725 = vand.u32 2147483647, %v3964
        %vm5726 = vcmp.eq.f32.partialorder %v5725, 8.507059e+37
        %v5727 = vand.u32 %v3964, 2147483648
        %v5728 = vor.u32 1.1754944e-38, %v5727
        %v5729 = vsel %vm5726, %v5728, %v5724
        %v5730 = vmul.f32 1.0, %v5729
        %v5731 = vrcp.pop %v3965
        %v5732 = vmul.f32 %v3965, %v5731
        %v5733 = vsub.f32 1.0, %v5732
        %v5734 = vmul.f32 %v5731, %v5733
        %v5735 = vadd.f32 %v5731, %v5734
        %vm5736 = vweird.f32 %v3965
        %vm5737 = vweird.f32 %v5731
        %vm5738 = vmor %vm5736, %vm5737
        %v5739 = vsel %vm5738, %v5731, %v5735
        %v5740 = vand.u32 2147483647, %v3965
        %vm5741 = vcmp.eq.f32.partialorder %v5740, 8.507059e+37
        %v5742 = vand.u32 %v3965, 2147483648
        %v5743 = vor.u32 1.1754944e-38, %v5742
        %v5744 = vsel %vm5741, %v5743, %v5739
        %v5745 = vmul.f32 1.0, %v5744
        %v5746 = vrcp.pop %v3966
        %v5747 = vmul.f32 %v3966, %v5746
        %v5748 = vsub.f32 1.0, %v5747
        %v5749 = vmul.f32 %v5746, %v5748
        %v5750 = vadd.f32 %v5746, %v5749
        %vm5751 = vweird.f32 %v3966
        %vm5752 = vweird.f32 %v5746
        %vm5753 = vmor %vm5751, %vm5752
        %v5754 = vsel %vm5753, %v5746, %v5750
        %v5755 = vand.u32 2147483647, %v3966
        %vm5756 = vcmp.eq.f32.partialorder %v5755, 8.507059e+37
        %v5757 = vand.u32 %v3966, 2147483648
        %v5758 = vor.u32 1.1754944e-38, %v5757
        %v5759 = vsel %vm5756, %v5758, %v5754
        %v5760 = vmul.f32 1.0, %v5759
        %v5761 = vrcp.pop %v3967
        %v5762 = vmul.f32 %v3967, %v5761
        %v5763 = vsub.f32 1.0, %v5762
        %v5764 = vmul.f32 %v5761, %v5763
        %v5765 = vadd.f32 %v5761, %v5764
        %vm5766 = vweird.f32 %v3967
        %vm5767 = vweird.f32 %v5761
        %vm5768 = vmor %vm5766, %vm5767
        %v5769 = vsel %vm5768, %v5761, %v5765
        %v5770 = vand.u32 2147483647, %v3967
        %vm5771 = vcmp.eq.f32.partialorder %v5770, 8.507059e+37
        %v5772 = vand.u32 %v3967, 2147483648
        %v5773 = vor.u32 1.1754944e-38, %v5772
        %v5774 = vsel %vm5771, %v5773, %v5769
        %v5775 = vmul.f32 1.0, %v5774
        %v5776 = vrcp.pop %v3968
        %v5777 = vmul.f32 %v3968, %v5776
        %v5778 = vsub.f32 1.0, %v5777
        %v5779 = vmul.f32 %v5776, %v5778
        %v5780 = vadd.f32 %v5776, %v5779
        %vm5781 = vweird.f32 %v3968
        %vm5782 = vweird.f32 %v5776
        %vm5783 = vmor %vm5781, %vm5782
        %v5784 = vsel %vm5783, %v5776, %v5780
        %v5785 = vand.u32 2147483647, %v3968
        %vm5786 = vcmp.eq.f32.partialorder %v5785, 8.507059e+37
        %v5787 = vand.u32 %v3968, 2147483648
        %v5788 = vor.u32 1.1754944e-38, %v5787
        %v5789 = vsel %vm5786, %v5788, %v5784
        %v5790 = vmul.f32 1.0, %v5789
        %v5791 = vrcp.pop %v3969
        %v5792 = vmul.f32 %v3969, %v5791
        %v5793 = vsub.f32 1.0, %v5792
        %v5794 = vmul.f32 %v5791, %v5793
        %v5795 = vadd.f32 %v5791, %v5794
        %vm5796 = vweird.f32 %v3969
        %vm5797 = vweird.f32 %v5791
        %vm5798 = vmor %vm5796, %vm5797
        %v5799 = vsel %vm5798, %v5791, %v5795
        %v5800 = vand.u32 2147483647, %v3969
        %vm5801 = vcmp.eq.f32.partialorder %v5800, 8.507059e+37
        %v5802 = vand.u32 %v3969, 2147483648
        %v5803 = vor.u32 1.1754944e-38, %v5802
        %v5804 = vsel %vm5801, %v5803, %v5799
        %v5805 = vmul.f32 1.0, %v5804
        %v5806 = vrcp.pop %v3970
        %v5807 = vmul.f32 %v3970, %v5806
        %v5808 = vsub.f32 1.0, %v5807
        %v5809 = vmul.f32 %v5806, %v5808
        %v5810 = vadd.f32 %v5806, %v5809
        %vm5811 = vweird.f32 %v3970
        %vm5812 = vweird.f32 %v5806
        %vm5813 = vmor %vm5811, %vm5812
        %v5814 = vsel %vm5813, %v5806, %v5810
        %v5815 = vand.u32 2147483647, %v3970
        %vm5816 = vcmp.eq.f32.partialorder %v5815, 8.507059e+37
        %v5817 = vand.u32 %v3970, 2147483648
        %v5818 = vor.u32 1.1754944e-38, %v5817
        %v5819 = vsel %vm5816, %v5818, %v5814
        %v5820 = vmul.f32 1.0, %v5819
        %v5821 = vrcp.pop %v3971
        %v5822 = vmul.f32 %v3971, %v5821
        %v5823 = vsub.f32 1.0, %v5822
        %v5824 = vmul.f32 %v5821, %v5823
        %v5825 = vadd.f32 %v5821, %v5824
        %vm5826 = vweird.f32 %v3971
        %vm5827 = vweird.f32 %v5821
        %vm5828 = vmor %vm5826, %vm5827
        %v5829 = vsel %vm5828, %v5821, %v5825
        %v5830 = vand.u32 2147483647, %v3971
        %vm5831 = vcmp.eq.f32.partialorder %v5830, 8.507059e+37
        %v5832 = vand.u32 %v3971, 2147483648
        %v5833 = vor.u32 1.1754944e-38, %v5832
        %v5834 = vsel %vm5831, %v5833, %v5829
        %v5835 = vmul.f32 1.0, %v5834
        %v5836 = vrcp.pop %v3972
        %v5837 = vmul.f32 %v3972, %v5836
        %v5838 = vsub.f32 1.0, %v5837
        %v5839 = vmul.f32 %v5836, %v5838
        %v5840 = vadd.f32 %v5836, %v5839
        %vm5841 = vweird.f32 %v3972
        %vm5842 = vweird.f32 %v5836
        %vm5843 = vmor %vm5841, %vm5842
        %v5844 = vsel %vm5843, %v5836, %v5840
        %v5845 = vand.u32 2147483647, %v3972
        %vm5846 = vcmp.eq.f32.partialorder %v5845, 8.507059e+37
        %v5847 = vand.u32 %v3972, 2147483648
        %v5848 = vor.u32 1.1754944e-38, %v5847
        %v5849 = vsel %vm5846, %v5848, %v5844
        %v5850 = vmul.f32 1.0, %v5849
        %v5851 = vrcp.pop %v3973
        %v5852 = vmul.f32 %v3973, %v5851
        %v5853 = vsub.f32 1.0, %v5852
        %v5854 = vmul.f32 %v5851, %v5853
        %v5855 = vadd.f32 %v5851, %v5854
        %vm5856 = vweird.f32 %v3973
        %vm5857 = vweird.f32 %v5851
        %vm5858 = vmor %vm5856, %vm5857
        %v5859 = vsel %vm5858, %v5851, %v5855
        %v5860 = vand.u32 2147483647, %v3973
        %vm5861 = vcmp.eq.f32.partialorder %v5860, 8.507059e+37
        %v5862 = vand.u32 %v3973, 2147483648
        %v5863 = vor.u32 1.1754944e-38, %v5862
        %v5864 = vsel %vm5861, %v5863, %v5859
        %v5865 = vmul.f32 1.0, %v5864
        %v5866 = vrcp.pop %v3974
        %v5867 = vmul.f32 %v3974, %v5866
        %v5868 = vsub.f32 1.0, %v5867
        %v5869 = vmul.f32 %v5866, %v5868
        %v5870 = vadd.f32 %v5866, %v5869
        %vm5871 = vweird.f32 %v3974
        %vm5872 = vweird.f32 %v5866
        %vm5873 = vmor %vm5871, %vm5872
        %v5874 = vsel %vm5873, %v5866, %v5870
        %v5875 = vand.u32 2147483647, %v3974
        %vm5876 = vcmp.eq.f32.partialorder %v5875, 8.507059e+37
        %v5877 = vand.u32 %v3974, 2147483648
        %v5878 = vor.u32 1.1754944e-38, %v5877
        %v5879 = vsel %vm5876, %v5878, %v5874
        %v5880 = vmul.f32 1.0, %v5879
        %v5881 = vrcp.pop %v3975
        %v5882 = vmul.f32 %v3975, %v5881
        %v5883 = vsub.f32 1.0, %v5882
        %v5884 = vmul.f32 %v5881, %v5883
        %v5885 = vadd.f32 %v5881, %v5884
        %vm5886 = vweird.f32 %v3975
        %vm5887 = vweird.f32 %v5881
        %vm5888 = vmor %vm5886, %vm5887
        %v5889 = vsel %vm5888, %v5881, %v5885
        %v5890 = vand.u32 2147483647, %v3975
        %vm5891 = vcmp.eq.f32.partialorder %v5890, 8.507059e+37
        %v5892 = vand.u32 %v3975, 2147483648
        %v5893 = vor.u32 1.1754944e-38, %v5892
        %v5894 = vsel %vm5891, %v5893, %v5889
        %v5895 = vmul.f32 1.0, %v5894
        %v5896 = vmul.f32 %v2962, %v3990
        %v5897 = vmul.f32 %v3027, %v4005
        %v5898 = vmul.f32 %v3092, %v4020
        %v5899 = vmul.f32 %v3157, %v4035
        %v5900 = vmul.f32 %v3222, %v4050
        %v5901 = vmul.f32 %v3287, %v4065
        %v5902 = vmul.f32 %v3352, %v4080
        %v5903 = vmul.f32 %v3417, %v4095
        %v5904 = vmul.f32 %v2965, %v4110
        %v5905 = vmul.f32 %v3030, %v4125
        %v5906 = vmul.f32 %v3095, %v4140
        %v5907 = vmul.f32 %v3160, %v4155
        %v5908 = vmul.f32 %v3225, %v4170
        %v5909 = vmul.f32 %v3290, %v4185
        %v5910 = vmul.f32 %v3355, %v4200
        %v5911 = vmul.f32 %v3420, %v4215
        %v5912 = vmul.f32 %v2968, %v4230
        %v5913 = vmul.f32 %v3033, %v4245
        %v5914 = vmul.f32 %v3098, %v4260
        %v5915 = vmul.f32 %v3163, %v4275
        %v5916 = vmul.f32 %v3228, %v4290
        %v5917 = vmul.f32 %v3293, %v4305
        %v5918 = vmul.f32 %v3358, %v4320
        %v5919 = vmul.f32 %v3423, %v4335
        %v5920 = vmul.f32 %v2971, %v4350
        %v5921 = vmul.f32 %v3036, %v4365
        %v5922 = vmul.f32 %v3101, %v4380
        %v5923 = vmul.f32 %v3166, %v4395
        %v5924 = vmul.f32 %v3231, %v4410
        %v5925 = vmul.f32 %v3296, %v4425
        %v5926 = vmul.f32 %v3361, %v4440
        %v5927 = vmul.f32 %v3426, %v4455
        %v5928 = vmul.f32 %v2974, %v4470
        %v5929 = vmul.f32 %v3039, %v4485
        %v5930 = vmul.f32 %v3104, %v4500
        %v5931 = vmul.f32 %v3169, %v4515
        %v5932 = vmul.f32 %v3234, %v4530
        %v5933 = vmul.f32 %v3299, %v4545
        %v5934 = vmul.f32 %v3364, %v4560
        %v5935 = vmul.f32 %v3429, %v4575
        %v5936 = vmul.f32 %v2977, %v4590
        %v5937 = vmul.f32 %v3042, %v4605
        %v5938 = vmul.f32 %v3107, %v4620
        %v5939 = vmul.f32 %v3172, %v4635
        %v5940 = vmul.f32 %v3237, %v4650
        %v5941 = vmul.f32 %v3302, %v4665
        %v5942 = vmul.f32 %v3367, %v4680
        %v5943 = vmul.f32 %v3432, %v4695
        %v5944 = vmul.f32 %v2980, %v4710
        %v5945 = vmul.f32 %v3045, %v4725
        %v5946 = vmul.f32 %v3110, %v4740
        %v5947 = vmul.f32 %v3175, %v4755
        %v5948 = vmul.f32 %v3240, %v4770
        %v5949 = vmul.f32 %v3305, %v4785
        %v5950 = vmul.f32 %v3370, %v4800
        %v5951 = vmul.f32 %v3435, %v4815
        %v5952 = vmul.f32 %v2983, %v4830
        %v5953 = vmul.f32 %v3048, %v4845
        %v5954 = vmul.f32 %v3113, %v4860
        %v5955 = vmul.f32 %v3178, %v4875
        %v5956 = vmul.f32 %v3243, %v4890
        %v5957 = vmul.f32 %v3308, %v4905
        %v5958 = vmul.f32 %v3373, %v4920
        %v5959 = vmul.f32 %v3438, %v4935
        %v5960 = vmul.f32 %v2986, %v4950
        %v5961 = vmul.f32 %v3051, %v4965
        %v5962 = vmul.f32 %v3116, %v4980
        %v5963 = vmul.f32 %v3181, %v4995
        %v5964 = vmul.f32 %v3246, %v5010
        %v5965 = vmul.f32 %v3311, %v5025
        %v5966 = vmul.f32 %v3376, %v5040
        %v5967 = vmul.f32 %v3441, %v5055
        %v5968 = vmul.f32 %v2989, %v5070
        %v5969 = vmul.f32 %v3054, %v5085
        %v5970 = vmul.f32 %v3119, %v5100
        %v5971 = vmul.f32 %v3184, %v5115
        %v5972 = vmul.f32 %v3249, %v5130
        %v5973 = vmul.f32 %v3314, %v5145
        %v5974 = vmul.f32 %v3379, %v5160
        %v5975 = vmul.f32 %v3444, %v5175
        %v5976 = vmul.f32 %v2992, %v5190
        %v5977 = vmul.f32 %v3057, %v5205
        %v5978 = vmul.f32 %v3122, %v5220
        %v5979 = vmul.f32 %v3187, %v5235
        %v5980 = vmul.f32 %v3252, %v5250
        %v5981 = vmul.f32 %v3317, %v5265
        %v5982 = vmul.f32 %v3382, %v5280
        %v5983 = vmul.f32 %v3447, %v5295
        %v5984 = vmul.f32 %v2995, %v5310
        %v5985 = vmul.f32 %v3060, %v5325
        %v5986 = vmul.f32 %v3125, %v5340
        %v5987 = vmul.f32 %v3190, %v5355
        %v5988 = vmul.f32 %v3255, %v5370
        %v5989 = vmul.f32 %v3320, %v5385
        %v5990 = vmul.f32 %v3385, %v5400
        %v5991 = vmul.f32 %v3450, %v5415
        %v5992 = vmul.f32 %v2998, %v5430
        %v5993 = vmul.f32 %v3063, %v5445
        %v5994 = vmul.f32 %v3128, %v5460
        %v5995 = vmul.f32 %v3193, %v5475
        %v5996 = vmul.f32 %v3258, %v5490
        %v5997 = vmul.f32 %v3323, %v5505
        %v5998 = vmul.f32 %v3388, %v5520
        %v5999 = vmul.f32 %v3453, %v5535
        %v6000 = vmul.f32 %v3001, %v5550
        %v6001 = vmul.f32 %v3066, %v5565
        %v6002 = vmul.f32 %v3131, %v5580
        %v6003 = vmul.f32 %v3196, %v5595
        %v6004 = vmul.f32 %v3261, %v5610
        %v6005 = vmul.f32 %v3326, %v5625
        %v6006 = vmul.f32 %v3391, %v5640
        %v6007 = vmul.f32 %v3456, %v5655
        %v6008 = vmul.f32 %v3004, %v5670
        %v6009 = vmul.f32 %v3069, %v5685
        %v6010 = vmul.f32 %v3134, %v5700
        %v6011 = vmul.f32 %v3199, %v5715
        %v6012 = vmul.f32 %v3264, %v5730
        %v6013 = vmul.f32 %v3329, %v5745
        %v6014 = vmul.f32 %v3394, %v5760
        %v6015 = vmul.f32 %v3459, %v5775
        %v6016 = vmul.f32 %v3007, %v5790
        %v6017 = vmul.f32 %v3072, %v5805
        %v6018 = vmul.f32 %v3137, %v5820
        %v6019 = vmul.f32 %v3202, %v5835
        %v6020 = vmul.f32 %v3267, %v5850
        %v6021 = vmul.f32 %v3332, %v5865
        %v6022 = vmul.f32 %v3397, %v5880
        %v6023 = vmul.f32 %v3462, %v5895
        %v6024 = vld [vmem:[%s4] sm:$0xff]
        %v6025 = vld [vmem:[%s4 + $0x8] sm:$0xff]
        %v6026 = vld [vmem:[%s4 + $0x10] sm:$0xff]
        %v6027 = vld [vmem:[%s4 + $0x18] sm:$0xff]
        %v6028 = vld [vmem:[%s4 + $0x20] sm:$0xff]
        %v6029 = vld [vmem:[%s4 + $0x28] sm:$0xff]
        %v6030 = vld [vmem:[%s4 + $0x30] sm:$0xff]
        %v6031 = vld [vmem:[%s4 + $0x38] sm:$0xff]
        %6032 = vset.pattern.permute.xlu0 3
        %6033 = vperm.xlu0 %6032, %v336
        %v6034 = vpop.permute.xlu0 %6033
        %6036 = vset.pattern.permute.xlu0 3
        %6037 = vperm.xlu0 %6036, %v337
        %v6038 = vpop.permute.xlu0 %6037
        %6040 = vset.pattern.permute.xlu0 3
        %6041 = vperm.xlu0 %6040, %v338
        %v6042 = vpop.permute.xlu0 %6041
        %6044 = vset.pattern.permute.xlu0 3
        %6045 = vperm.xlu0 %6044, %v339
        %v6046 = vpop.permute.xlu0 %6045
        %6048 = vset.pattern.permute.xlu0 3
        %6049 = vperm.xlu0 %6048, %v340
        %v6050 = vpop.permute.xlu0 %6049
        %6052 = vset.pattern.permute.xlu0 3
        %6053 = vperm.xlu0 %6052, %v341
        %v6054 = vpop.permute.xlu0 %6053
        %6056 = vset.pattern.permute.xlu0 3
        %6057 = vperm.xlu0 %6056, %v342
        %v6058 = vpop.permute.xlu0 %6057
        %6060 = vset.pattern.permute.xlu0 3
        %6061 = vperm.xlu0 %6060, %v343
        %v6062 = vpop.permute.xlu0 %6061
        %6064 = vmatpush.msra.mxu0 %v6016
        %6065 = vmatpush.msra.mxu0 %v6008
        %6066 = vmatpush.msra.mxu0 %v6000
        %6067 = vmatpush.msra.mxu0 %v5992
        %6068 = vmatpush.msra.mxu0 %v5984
        %6069 = vmatpush.msra.mxu0 %v5976
        %6070 = vmatpush.msra.mxu0 %v5968
        %6071 = vmatpush.msra.mxu0 %v5960
        %6072 = vmatpush.msra.mxu0 %v5952
        %6073 = vmatpush.msra.mxu0 %v5944
        %6074 = vmatpush.msra.mxu0 %v5936
        %6075 = vmatpush.msra.mxu0 %v5928
        %6076 = vmatpush.msra.mxu0 %v5920
        %6077 = vmatpush.msra.mxu0 %v5912
        %6078 = vmatpush.msra.mxu0 %v5904
        %6079 = vmatpush.msra.mxu0 %v5896
        %6080 = vmatmul.f32.gmra.mxu0 %v6024
        %v6081 = vpop.f32.mrf.mxu0
        %v6082 = vadd.f32 %v6034, %v6081
        %6083 = vmatmul.f32.gmra.mxu0 %v6025
        %v6084 = vpop.f32.mrf.mxu0
        %v6085 = vadd.f32 %v6038, %v6084
        %6086 = vmatmul.f32.gmra.mxu0 %v6026
        %v6087 = vpop.f32.mrf.mxu0
        %v6088 = vadd.f32 %v6042, %v6087
        %6089 = vmatmul.f32.gmra.mxu0 %v6027
        %v6090 = vpop.f32.mrf.mxu0
        %v6091 = vadd.f32 %v6046, %v6090
        %6092 = vmatmul.f32.gmra.mxu0 %v6028
        %v6093 = vpop.f32.mrf.mxu0
        %v6094 = vadd.f32 %v6050, %v6093
        %6095 = vmatmul.f32.gmra.mxu0 %v6029
        %v6096 = vpop.f32.mrf.mxu0
        %v6097 = vadd.f32 %v6054, %v6096
        %6098 = vmatmul.f32.gmra.mxu0 %v6030
        %v6099 = vpop.f32.mrf.mxu0
        %v6100 = vadd.f32 %v6058, %v6099
        %6101 = vmatmul.f32.gmra.mxu0 %v6031
        %v6102 = vpop.f32.mrf.mxu0
        %v6103 = vadd.f32 %v6062, %v6102
        %6104 = vdwg.mxu0
        %6105 = vmatpush.msra.mxu0 %v6017
        %6106 = vmatpush.msra.mxu0 %v6009
        %6107 = vmatpush.msra.mxu0 %v6001
        %6108 = vmatpush.msra.mxu0 %v5993
        %6109 = vmatpush.msra.mxu0 %v5985
        %6110 = vmatpush.msra.mxu0 %v5977
        %6111 = vmatpush.msra.mxu0 %v5969
        %6112 = vmatpush.msra.mxu0 %v5961
        %6113 = vmatpush.msra.mxu0 %v5953
        %6114 = vmatpush.msra.mxu0 %v5945
        %6115 = vmatpush.msra.mxu0 %v5937
        %6116 = vmatpush.msra.mxu0 %v5929
        %6117 = vmatpush.msra.mxu0 %v5921
        %6118 = vmatpush.msra.mxu0 %v5913
        %6119 = vmatpush.msra.mxu0 %v5905
        %6120 = vmatpush.msra.mxu0 %v5897
        %6121 = vmatmul.f32.gmra.mxu0 %v6024
        %v6122 = vpop.f32.mrf.mxu0
        %v6123 = vadd.f32 %v6034, %v6122
        %6124 = vmatmul.f32.gmra.mxu0 %v6025
        %v6125 = vpop.f32.mrf.mxu0
        %v6126 = vadd.f32 %v6038, %v6125
        %6127 = vmatmul.f32.gmra.mxu0 %v6026
        %v6128 = vpop.f32.mrf.mxu0
        %v6129 = vadd.f32 %v6042, %v6128
        %6130 = vmatmul.f32.gmra.mxu0 %v6027
        %v6131 = vpop.f32.mrf.mxu0
        %v6132 = vadd.f32 %v6046, %v6131
        %6133 = vmatmul.f32.gmra.mxu0 %v6028
        %v6134 = vpop.f32.mrf.mxu0
        %v6135 = vadd.f32 %v6050, %v6134
        %6136 = vmatmul.f32.gmra.mxu0 %v6029
        %v6137 = vpop.f32.mrf.mxu0
        %v6138 = vadd.f32 %v6054, %v6137
        %6139 = vmatmul.f32.gmra.mxu0 %v6030
        %v6140 = vpop.f32.mrf.mxu0
        %v6141 = vadd.f32 %v6058, %v6140
        %6142 = vmatmul.f32.gmra.mxu0 %v6031
        %v6143 = vpop.f32.mrf.mxu0
        %v6144 = vadd.f32 %v6062, %v6143
        %6145 = vdwg.mxu0
        %6146 = vmatpush.msra.mxu0 %v6018
        %6147 = vmatpush.msra.mxu0 %v6010
        %6148 = vmatpush.msra.mxu0 %v6002
        %6149 = vmatpush.msra.mxu0 %v5994
        %6150 = vmatpush.msra.mxu0 %v5986
        %6151 = vmatpush.msra.mxu0 %v5978
        %6152 = vmatpush.msra.mxu0 %v5970
        %6153 = vmatpush.msra.mxu0 %v5962
        %6154 = vmatpush.msra.mxu0 %v5954
        %6155 = vmatpush.msra.mxu0 %v5946
        %6156 = vmatpush.msra.mxu0 %v5938
        %6157 = vmatpush.msra.mxu0 %v5930
        %6158 = vmatpush.msra.mxu0 %v5922
        %6159 = vmatpush.msra.mxu0 %v5914
        %6160 = vmatpush.msra.mxu0 %v5906
        %6161 = vmatpush.msra.mxu0 %v5898
        %6162 = vmatmul.f32.gmra.mxu0 %v6024
        %v6163 = vpop.f32.mrf.mxu0
        %v6164 = vadd.f32 %v6034, %v6163
        %6165 = vmatmul.f32.gmra.mxu0 %v6025
        %v6166 = vpop.f32.mrf.mxu0
        %v6167 = vadd.f32 %v6038, %v6166
        %6168 = vmatmul.f32.gmra.mxu0 %v6026
        %v6169 = vpop.f32.mrf.mxu0
        %v6170 = vadd.f32 %v6042, %v6169
        %6171 = vmatmul.f32.gmra.mxu0 %v6027
        %v6172 = vpop.f32.mrf.mxu0
        %v6173 = vadd.f32 %v6046, %v6172
        %6174 = vmatmul.f32.gmra.mxu0 %v6028
        %v6175 = vpop.f32.mrf.mxu0
        %v6176 = vadd.f32 %v6050, %v6175
        %6177 = vmatmul.f32.gmra.mxu0 %v6029
        %v6178 = vpop.f32.mrf.mxu0
        %v6179 = vadd.f32 %v6054, %v6178
        %6180 = vmatmul.f32.gmra.mxu0 %v6030
        %v6181 = vpop.f32.mrf.mxu0
        %v6182 = vadd.f32 %v6058, %v6181
        %6183 = vmatmul.f32.gmra.mxu0 %v6031
        %v6184 = vpop.f32.mrf.mxu0
        %v6185 = vadd.f32 %v6062, %v6184
        %6186 = vdwg.mxu0
        %6187 = vmatpush.msra.mxu0 %v6019
        %6188 = vmatpush.msra.mxu0 %v6011
        %6189 = vmatpush.msra.mxu0 %v6003
        %6190 = vmatpush.msra.mxu0 %v5995
        %6191 = vmatpush.msra.mxu0 %v5987
        %6192 = vmatpush.msra.mxu0 %v5979
        %6193 = vmatpush.msra.mxu0 %v5971
        %6194 = vmatpush.msra.mxu0 %v5963
        %6195 = vmatpush.msra.mxu0 %v5955
        %6196 = vmatpush.msra.mxu0 %v5947
        %6197 = vmatpush.msra.mxu0 %v5939
        %6198 = vmatpush.msra.mxu0 %v5931
        %6199 = vmatpush.msra.mxu0 %v5923
        %6200 = vmatpush.msra.mxu0 %v5915
        %6201 = vmatpush.msra.mxu0 %v5907
        %6202 = vmatpush.msra.mxu0 %v5899
        %6203 = vmatmul.f32.gmra.mxu0 %v6024
        %v6204 = vpop.f32.mrf.mxu0
        %v6205 = vadd.f32 %v6034, %v6204
        %6206 = vmatmul.f32.gmra.mxu0 %v6025
        %v6207 = vpop.f32.mrf.mxu0
        %v6208 = vadd.f32 %v6038, %v6207
        %6209 = vmatmul.f32.gmra.mxu0 %v6026
        %v6210 = vpop.f32.mrf.mxu0
        %v6211 = vadd.f32 %v6042, %v6210
        %6212 = vmatmul.f32.gmra.mxu0 %v6027
        %v6213 = vpop.f32.mrf.mxu0
        %v6214 = vadd.f32 %v6046, %v6213
        %6215 = vmatmul.f32.gmra.mxu0 %v6028
        %v6216 = vpop.f32.mrf.mxu0
        %v6217 = vadd.f32 %v6050, %v6216
        %6218 = vmatmul.f32.gmra.mxu0 %v6029
        %v6219 = vpop.f32.mrf.mxu0
        %v6220 = vadd.f32 %v6054, %v6219
        %6221 = vmatmul.f32.gmra.mxu0 %v6030
        %v6222 = vpop.f32.mrf.mxu0
        %v6223 = vadd.f32 %v6058, %v6222
        %6224 = vmatmul.f32.gmra.mxu0 %v6031
        %v6225 = vpop.f32.mrf.mxu0
        %v6226 = vadd.f32 %v6062, %v6225
        %6227 = vdwg.mxu0
        %6228 = vmatpush.msra.mxu0 %v6020
        %6229 = vmatpush.msra.mxu0 %v6012
        %6230 = vmatpush.msra.mxu0 %v6004
        %6231 = vmatpush.msra.mxu0 %v5996
        %6232 = vmatpush.msra.mxu0 %v5988
        %6233 = vmatpush.msra.mxu0 %v5980
        %6234 = vmatpush.msra.mxu0 %v5972
        %6235 = vmatpush.msra.mxu0 %v5964
        %6236 = vmatpush.msra.mxu0 %v5956
        %6237 = vmatpush.msra.mxu0 %v5948
        %6238 = vmatpush.msra.mxu0 %v5940
        %6239 = vmatpush.msra.mxu0 %v5932
        %6240 = vmatpush.msra.mxu0 %v5924
        %6241 = vmatpush.msra.mxu0 %v5916
        %6242 = vmatpush.msra.mxu0 %v5908
        %6243 = vmatpush.msra.mxu0 %v5900
        %6244 = vmatmul.f32.gmra.mxu0 %v6024
        %v6245 = vpop.f32.mrf.mxu0
        %v6246 = vadd.f32 %v6034, %v6245
        %6247 = vmatmul.f32.gmra.mxu0 %v6025
        %v6248 = vpop.f32.mrf.mxu0
        %v6249 = vadd.f32 %v6038, %v6248
        %6250 = vmatmul.f32.gmra.mxu0 %v6026
        %v6251 = vpop.f32.mrf.mxu0
        %v6252 = vadd.f32 %v6042, %v6251
        %6253 = vmatmul.f32.gmra.mxu0 %v6027
        %v6254 = vpop.f32.mrf.mxu0
        %v6255 = vadd.f32 %v6046, %v6254
        %6256 = vmatmul.f32.gmra.mxu0 %v6028
        %v6257 = vpop.f32.mrf.mxu0
        %v6258 = vadd.f32 %v6050, %v6257
        %6259 = vmatmul.f32.gmra.mxu0 %v6029
        %v6260 = vpop.f32.mrf.mxu0
        %v6261 = vadd.f32 %v6054, %v6260
        %6262 = vmatmul.f32.gmra.mxu0 %v6030
        %v6263 = vpop.f32.mrf.mxu0
        %v6264 = vadd.f32 %v6058, %v6263
        %6265 = vmatmul.f32.gmra.mxu0 %v6031
        %v6266 = vpop.f32.mrf.mxu0
        %v6267 = vadd.f32 %v6062, %v6266
        %6268 = vdwg.mxu0
        %6269 = vmatpush.msra.mxu0 %v6021
        %6270 = vmatpush.msra.mxu0 %v6013
        %6271 = vmatpush.msra.mxu0 %v6005
        %6272 = vmatpush.msra.mxu0 %v5997
        %6273 = vmatpush.msra.mxu0 %v5989
        %6274 = vmatpush.msra.mxu0 %v5981
        %6275 = vmatpush.msra.mxu0 %v5973
        %6276 = vmatpush.msra.mxu0 %v5965
        %6277 = vmatpush.msra.mxu0 %v5957
        %6278 = vmatpush.msra.mxu0 %v5949
        %6279 = vmatpush.msra.mxu0 %v5941
        %6280 = vmatpush.msra.mxu0 %v5933
        %6281 = vmatpush.msra.mxu0 %v5925
        %6282 = vmatpush.msra.mxu0 %v5917
        %6283 = vmatpush.msra.mxu0 %v5909
        %6284 = vmatpush.msra.mxu0 %v5901
        %6285 = vmatmul.f32.gmra.mxu0 %v6024
        %v6286 = vpop.f32.mrf.mxu0
        %v6287 = vadd.f32 %v6034, %v6286
        %6288 = vmatmul.f32.gmra.mxu0 %v6025
        %v6289 = vpop.f32.mrf.mxu0
        %v6290 = vadd.f32 %v6038, %v6289
        %6291 = vmatmul.f32.gmra.mxu0 %v6026
        %v6292 = vpop.f32.mrf.mxu0
        %v6293 = vadd.f32 %v6042, %v6292
        %6294 = vmatmul.f32.gmra.mxu0 %v6027
        %v6295 = vpop.f32.mrf.mxu0
        %v6296 = vadd.f32 %v6046, %v6295
        %6297 = vmatmul.f32.gmra.mxu0 %v6028
        %v6298 = vpop.f32.mrf.mxu0
        %v6299 = vadd.f32 %v6050, %v6298
        %6300 = vmatmul.f32.gmra.mxu0 %v6029
        %v6301 = vpop.f32.mrf.mxu0
        %v6302 = vadd.f32 %v6054, %v6301
        %6303 = vmatmul.f32.gmra.mxu0 %v6030
        %v6304 = vpop.f32.mrf.mxu0
        %v6305 = vadd.f32 %v6058, %v6304
        %6306 = vmatmul.f32.gmra.mxu0 %v6031
        %v6307 = vpop.f32.mrf.mxu0
        %v6308 = vadd.f32 %v6062, %v6307
        %6309 = vdwg.mxu0
        %6310 = vmatpush.msra.mxu0 %v6022
        %6311 = vmatpush.msra.mxu0 %v6014
        %6312 = vmatpush.msra.mxu0 %v6006
        %6313 = vmatpush.msra.mxu0 %v5998
        %6314 = vmatpush.msra.mxu0 %v5990
        %6315 = vmatpush.msra.mxu0 %v5982
        %6316 = vmatpush.msra.mxu0 %v5974
        %6317 = vmatpush.msra.mxu0 %v5966
        %6318 = vmatpush.msra.mxu0 %v5958
        %6319 = vmatpush.msra.mxu0 %v5950
        %6320 = vmatpush.msra.mxu0 %v5942
        %6321 = vmatpush.msra.mxu0 %v5934
        %6322 = vmatpush.msra.mxu0 %v5926
        %6323 = vmatpush.msra.mxu0 %v5918
        %6324 = vmatpush.msra.mxu0 %v5910
        %6325 = vmatpush.msra.mxu0 %v5902
        %6326 = vmatmul.f32.gmra.mxu0 %v6024
        %v6327 = vpop.f32.mrf.mxu0
        %v6328 = vadd.f32 %v6034, %v6327
        %6329 = vmatmul.f32.gmra.mxu0 %v6025
        %v6330 = vpop.f32.mrf.mxu0
        %v6331 = vadd.f32 %v6038, %v6330
        %6332 = vmatmul.f32.gmra.mxu0 %v6026
        %v6333 = vpop.f32.mrf.mxu0
        %v6334 = vadd.f32 %v6042, %v6333
        %6335 = vmatmul.f32.gmra.mxu0 %v6027
        %v6336 = vpop.f32.mrf.mxu0
        %v6337 = vadd.f32 %v6046, %v6336
        %6338 = vmatmul.f32.gmra.mxu0 %v6028
        %v6339 = vpop.f32.mrf.mxu0
        %v6340 = vadd.f32 %v6050, %v6339
        %6341 = vmatmul.f32.gmra.mxu0 %v6029
        %v6342 = vpop.f32.mrf.mxu0
        %v6343 = vadd.f32 %v6054, %v6342
        %6344 = vmatmul.f32.gmra.mxu0 %v6030
        %v6345 = vpop.f32.mrf.mxu0
        %v6346 = vadd.f32 %v6058, %v6345
        %6347 = vmatmul.f32.gmra.mxu0 %v6031
        %v6348 = vpop.f32.mrf.mxu0
        %v6349 = vadd.f32 %v6062, %v6348
        %6350 = vdwg.mxu0
        %6351 = vmatpush.msra.mxu0 %v6023
        %6352 = vmatpush.msra.mxu0 %v6015
        %6353 = vmatpush.msra.mxu0 %v6007
        %6354 = vmatpush.msra.mxu0 %v5999
        %6355 = vmatpush.msra.mxu0 %v5991
        %6356 = vmatpush.msra.mxu0 %v5983
        %6357 = vmatpush.msra.mxu0 %v5975
        %6358 = vmatpush.msra.mxu0 %v5967
        %6359 = vmatpush.msra.mxu0 %v5959
        %6360 = vmatpush.msra.mxu0 %v5951
        %6361 = vmatpush.msra.mxu0 %v5943
        %6362 = vmatpush.msra.mxu0 %v5935
        %6363 = vmatpush.msra.mxu0 %v5927
        %6364 = vmatpush.msra.mxu0 %v5919
        %6365 = vmatpush.msra.mxu0 %v5911
        %6366 = vmatpush.msra.mxu0 %v5903
        %6367 = vmatmul.f32.gmra.mxu0 %v6024
        %v6368 = vpop.f32.mrf.mxu0
        %v6369 = vadd.f32 %v6034, %v6368
        %6370 = vmatmul.f32.gmra.mxu0 %v6025
        %v6371 = vpop.f32.mrf.mxu0
        %v6372 = vadd.f32 %v6038, %v6371
        %6373 = vmatmul.f32.gmra.mxu0 %v6026
        %v6374 = vpop.f32.mrf.mxu0
        %v6375 = vadd.f32 %v6042, %v6374
        %6376 = vmatmul.f32.gmra.mxu0 %v6027
        %v6377 = vpop.f32.mrf.mxu0
        %v6378 = vadd.f32 %v6046, %v6377
        %6379 = vmatmul.f32.gmra.mxu0 %v6028
        %v6380 = vpop.f32.mrf.mxu0
        %v6381 = vadd.f32 %v6050, %v6380
        %6382 = vmatmul.f32.gmra.mxu0 %v6029
        %v6383 = vpop.f32.mrf.mxu0
        %v6384 = vadd.f32 %v6054, %v6383
        %6385 = vmatmul.f32.gmra.mxu0 %v6030
        %v6386 = vpop.f32.mrf.mxu0
        %v6387 = vadd.f32 %v6058, %v6386
        %6388 = vmatmul.f32.gmra.mxu0 %v6031
        %v6389 = vpop.f32.mrf.mxu0
        %v6390 = vadd.f32 %v6062, %v6389
        %6391 = vdwg.mxu0
        %v6392 = vadd.f32 %v2374, %v6082
        %v6393 = vadd.f32 %v2375, %v6123
        %v6394 = vadd.f32 %v2376, %v6164
        %v6395 = vadd.f32 %v2377, %v6205
        %v6396 = vadd.f32 %v2378, %v6246
        %v6397 = vadd.f32 %v2379, %v6287
        %v6398 = vadd.f32 %v2380, %v6328
        %v6399 = vadd.f32 %v2381, %v6369
        %v6400 = vadd.f32 %v2382, %v6085
        %v6401 = vadd.f32 %v2383, %v6126
        %v6402 = vadd.f32 %v2384, %v6167
        %v6403 = vadd.f32 %v2385, %v6208
        %v6404 = vadd.f32 %v2386, %v6249
        %v6405 = vadd.f32 %v2387, %v6290
        %v6406 = vadd.f32 %v2388, %v6331
        %v6407 = vadd.f32 %v2389, %v6372
        %v6408 = vadd.f32 %v2390, %v6088
        %v6409 = vadd.f32 %v2391, %v6129
        %v6410 = vadd.f32 %v2392, %v6170
        %v6411 = vadd.f32 %v2393, %v6211
        %v6412 = vadd.f32 %v2394, %v6252
        %v6413 = vadd.f32 %v2395, %v6293
        %v6414 = vadd.f32 %v2396, %v6334
        %v6415 = vadd.f32 %v2397, %v6375
        %v6416 = vadd.f32 %v2398, %v6091
        %v6417 = vadd.f32 %v2399, %v6132
        %v6418 = vadd.f32 %v2400, %v6173
        %v6419 = vadd.f32 %v2401, %v6214
        %v6420 = vadd.f32 %v2402, %v6255
        %v6421 = vadd.f32 %v2403, %v6296
        %v6422 = vadd.f32 %v2404, %v6337
        %v6423 = vadd.f32 %v2405, %v6378
        %v6424 = vadd.f32 %v2406, %v6094
        %v6425 = vadd.f32 %v2407, %v6135
        %v6426 = vadd.f32 %v2408, %v6176
        %v6427 = vadd.f32 %v2409, %v6217
        %v6428 = vadd.f32 %v2410, %v6258
        %v6429 = vadd.f32 %v2411, %v6299
        %v6430 = vadd.f32 %v2412, %v6340
        %v6431 = vadd.f32 %v2413, %v6381
        %v6432 = vadd.f32 %v2414, %v6097
        %v6433 = vadd.f32 %v2415, %v6138
        %v6434 = vadd.f32 %v2416, %v6179
        %v6435 = vadd.f32 %v2417, %v6220
        %v6436 = vadd.f32 %v2418, %v6261
        %v6437 = vadd.f32 %v2419, %v6302
        %v6438 = vadd.f32 %v2420, %v6343
        %v6439 = vadd.f32 %v2421, %v6384
        %v6440 = vadd.f32 %v2422, %v6100
        %v6441 = vadd.f32 %v2423, %v6141
        %v6442 = vadd.f32 %v2424, %v6182
        %v6443 = vadd.f32 %v2425, %v6223
        %v6444 = vadd.f32 %v2426, %v6264
        %v6445 = vadd.f32 %v2427, %v6305
        %v6446 = vadd.f32 %v2428, %v6346
        %v6447 = vadd.f32 %v2429, %v6387
        %v6448 = vadd.f32 %v2430, %v6103
        %v6449 = vadd.f32 %v2431, %v6144
        %v6450 = vadd.f32 %v2432, %v6185
        %v6451 = vadd.f32 %v2433, %v6226
        %v6452 = vadd.f32 %v2434, %v6267
        %v6453 = vadd.f32 %v2435, %v6308
        %v6454 = vadd.f32 %v2436, %v6349
        %v6455 = vadd.f32 %v2437, %v6390
        %6456 = vst [vmem:[%s271] sm:$0xff] %v6392
        %6457 = vst [vmem:[%s271 + $0x8] sm:$0xff] %v6393
        %6458 = vst [vmem:[%s271 + $0x10] sm:$0xff] %v6394
        %6459 = vst [vmem:[%s271 + $0x18] sm:$0xff] %v6395
        %6460 = vst [vmem:[%s271 + $0x20] sm:$0xff] %v6396
        %6461 = vst [vmem:[%s271 + $0x28] sm:$0xff] %v6397
        %6462 = vst [vmem:[%s271 + $0x30] sm:$0xff] %v6398
        %6463 = vst [vmem:[%s271 + $0x38] sm:$0xff] %v6399
        %6464 = vst [vmem:[%s271 + $0x40] sm:$0xff] %v6400
        %6465 = vst [vmem:[%s271 + $0x48] sm:$0xff] %v6401
        %6466 = vst [vmem:[%s271 + $0x50] sm:$0xff] %v6402
        %6467 = vst [vmem:[%s271 + $0x58] sm:$0xff] %v6403
        %6468 = vst [vmem:[%s271 + $0x60] sm:$0xff] %v6404
        %6469 = vst [vmem:[%s271 + $0x68] sm:$0xff] %v6405
        %6470 = vst [vmem:[%s271 + $0x70] sm:$0xff] %v6406
        %6471 = vst [vmem:[%s271 + $0x78] sm:$0xff] %v6407
        %6472 = vst [vmem:[%s271 + $0x80] sm:$0xff] %v6408
        %6473 = vst [vmem:[%s271 + $0x88] sm:$0xff] %v6409
        %6474 = vst [vmem:[%s271 + $0x90] sm:$0xff] %v6410
        %6475 = vst [vmem:[%s271 + $0x98] sm:$0xff] %v6411
        %6476 = vst [vmem:[%s271 + $0xa0] sm:$0xff] %v6412
        %6477 = vst [vmem:[%s271 + $0xa8] sm:$0xff] %v6413
        %6478 = vst [vmem:[%s271 + $0xb0] sm:$0xff] %v6414
        %6479 = vst [vmem:[%s271 + $0xb8] sm:$0xff] %v6415
        %6480 = vst [vmem:[%s271 + $0xc0] sm:$0xff] %v6416
        %6481 = vst [vmem:[%s271 + $0xc8] sm:$0xff] %v6417
        %6482 = vst [vmem:[%s271 + $0xd0] sm:$0xff] %v6418
        %6483 = vst [vmem:[%s271 + $0xd8] sm:$0xff] %v6419
        %6484 = vst [vmem:[%s271 + $0xe0] sm:$0xff] %v6420
        %6485 = vst [vmem:[%s271 + $0xe8] sm:$0xff] %v6421
        %6486 = vst [vmem:[%s271 + $0xf0] sm:$0xff] %v6422
        %6487 = vst [vmem:[%s271 + $0xf8] sm:$0xff] %v6423
        %6488 = vst [vmem:[%s271 + $0x100] sm:$0xff] %v6424
        %6489 = vst [vmem:[%s271 + $0x108] sm:$0xff] %v6425
        %6490 = vst [vmem:[%s271 + $0x110] sm:$0xff] %v6426
        %6491 = vst [vmem:[%s271 + $0x118] sm:$0xff] %v6427
        %6492 = vst [vmem:[%s271 + $0x120] sm:$0xff] %v6428
        %6493 = vst [vmem:[%s271 + $0x128] sm:$0xff] %v6429
        %6494 = vst [vmem:[%s271 + $0x130] sm:$0xff] %v6430
        %6495 = vst [vmem:[%s271 + $0x138] sm:$0xff] %v6431
        %6496 = vst [vmem:[%s271 + $0x140] sm:$0xff] %v6432
        %6497 = vst [vmem:[%s271 + $0x148] sm:$0xff] %v6433
        %6498 = vst [vmem:[%s271 + $0x150] sm:$0xff] %v6434
        %6499 = vst [vmem:[%s271 + $0x158] sm:$0xff] %v6435
        %6500 = vst [vmem:[%s271 + $0x160] sm:$0xff] %v6436
        %6501 = vst [vmem:[%s271 + $0x168] sm:$0xff] %v6437
        %6502 = vst [vmem:[%s271 + $0x170] sm:$0xff] %v6438
        %6503 = vst [vmem:[%s271 + $0x178] sm:$0xff] %v6439
        %6504 = vst [vmem:[%s271 + $0x180] sm:$0xff] %v6440
        %6505 = vst [vmem:[%s271 + $0x188] sm:$0xff] %v6441
        %6506 = vst [vmem:[%s271 + $0x190] sm:$0xff] %v6442
        %6507 = vst [vmem:[%s271 + $0x198] sm:$0xff] %v6443
        %6508 = vst [vmem:[%s271 + $0x1a0] sm:$0xff] %v6444
        %6509 = vst [vmem:[%s271 + $0x1a8] sm:$0xff] %v6445
        %6510 = vst [vmem:[%s271 + $0x1b0] sm:$0xff] %v6446
        %6511 = vst [vmem:[%s271 + $0x1b8] sm:$0xff] %v6447
        %6512 = vst [vmem:[%s271 + $0x1c0] sm:$0xff] %v6448
        %6513 = vst [vmem:[%s271 + $0x1c8] sm:$0xff] %v6449
        %6514 = vst [vmem:[%s271 + $0x1d0] sm:$0xff] %v6450
        %6515 = vst [vmem:[%s271 + $0x1d8] sm:$0xff] %v6451
        %6516 = vst [vmem:[%s271 + $0x1e0] sm:$0xff] %v6452
        %6517 = vst [vmem:[%s271 + $0x1e8] sm:$0xff] %v6453
        %6518 = vst [vmem:[%s271 + $0x1f0] sm:$0xff] %v6454
        %6519 = vst [vmem:[%s271 + $0x1f8] sm:$0xff] %v6455
        %s6520 = sand.u32 %s162, 1
        %s6521 = scalar_lea.sflag [#allocation5], %s6520
        %s6522 = sand.u32 %s162, 1
        %s6523 = smul.addr %s6522, 512
        %s6524 = scalar_lea.vmem [#allocation6], %s6523
        // Predicated region
        $region49: #{tpu_custom_call.1} parent=43 // pred_check
          %p6525 = pneg %p172
        $region50: #{tpu_custom_call.1} parent=43 // pred_check_branch
          %6527 = sbr.rel (%p6525) target = $region52
        $region51: #{tpu_custom_call.1} parent=43 // pred_region
          %6529 = vsyncadd %s6521, 0
          %s6530 = smul.addr %s23, 64
          %s6531 = smul.addr %s6530, 8
          %s6532 = scalar_lea.hbm %s6, %s6531
          %s6533 = sshll.u32 %s6524, 4
          %s6534 = int_to_ptr.vmem [resolvable:$true] %s6533
          %s6535 = sshll.u32 %s6532, 4
          %s6536 = int_to_ptr.hbm [resolvable:$true] %s6535
          %6541 = dma.vmem_to_hbm [thread:$0]  %s6534, 8192, %s6536, %s6521, 1024, 1024, 64
        $region52: #{tpu_custom_call.1} parent=43 // pred_fallthru
          _
      $region44: #{tpu_custom_call.1} parent=5 // pred_fallthru
        _
      %p6542 = scmp.le.s32.totalorder 2, %s18
      // Predicated region
      $region53: #{tpu_custom_call.1} parent=5 // pred_check
        %p6543 = pneg %p6542
      $region54: #{tpu_custom_call.1} parent=5 // pred_check_branch
        %6545 = sbr.rel (%p6543) target = $region56
      $region55: #{tpu_custom_call.1} parent=5 // pred_region
        %s6546 = ssub.s32 %s18, 2
        // Predicated region
        $region57: #{tpu_custom_call.1} parent=55 // pred_check
          %p6547 = pneg %p178
        $region58: #{tpu_custom_call.1} parent=55 // pred_check_branch
          %6549 = sbr.rel (%p6547) target = $region60
        $region59: #{tpu_custom_call.1} parent=55 // pred_region
          %s6550 = sand.u32 %s163, 1
          %s6551 = scalar_lea.sflag [#allocation5], %s6550
          %s6552 = sand.u32 %s163, 1
          %s6553 = smul.addr %s6552, 512
          %s6554 = scalar_lea.vmem [#allocation6], %s6553
          %6556 = dma.done %s6551, 8192
        $region60: #{tpu_custom_call.1} parent=55 // pred_fallthru
          _
      $region56: #{tpu_custom_call.1} parent=5 // pred_fallthru
        _
    $region6: #{tpu_custom_call.1} parent=1 // loop_footer
      %s22 = sadd.s32 1, %s18
    $region7: #{tpu_custom_call.1} parent=1 // loop_footer_branch
      %17 = sbr.rel target = $region3
    $region8: #{tpu_custom_call.1} parent=1 // loop_exit
      _
    %6557 = vsyncpa [#allocation4], 1
    %s6558 = scalar_lea.sflag [#allocation4], 1
    %6559 = vsyncpa %s6558, 1
    %6560 = vsyncpa [#allocation5], 1
    %s6561 = scalar_lea.sflag [#allocation5], 1
    %6562 = vsyncpa %s6561, 1

</llo_original>
